<compile_context>
chip_gen: v7x
topology: tpu7x:2x2x1
jax: 0.10.0
libtpu: 0.0.40
codegen_flags: <defaults>
</compile_context>

<pallas_src>
import functools

import numpy as np

import jax
import jax.numpy as jnp
from jax import lax
from jax.experimental import pallas as pl
from jax.experimental.pallas import tpu as pltpu

_S = 28  # input spatial size


# ----------------------------------------------------------------------------
# The single fused, batch-blocked kernel
# ----------------------------------------------------------------------------
def _fused_autoencoder_kernel(
        x_ref,
        k1_ref, b1_ref, q1_ref,          # conv1 + pool1 (w-selection)
        k2_ref, b2_ref, q2_ref,          # conv2 + pool2 (w-selection)
        w1p_ref, bf1_ref,                # fc1 (flatten folded in)
        w2p_ref, bf2_ref,                # fc2 (unflatten folded in)
        c1_ref, bd1_ref,                 # deconv1 (overlap-in-w matrices)
        c2_ref, bd2_ref,                 # deconv2
        o_ref):
    bblk = x_ref.shape[1]                # batch block size (multiple of 8)

    def mm(a, b):
        # bf16 x bf16 MXU matmul with f32 accumulation
        return jnp.dot(a.astype(jnp.bfloat16), b,
                       preferred_element_type=jnp.float32)

    def pool_h(y, out_h, cols):
        # rows are h*bblk + b: pair h = (2ho, 2ho+1); floor-drops trailing row
        yp = y[0:2 * out_h * bblk, :].reshape(out_h, 2, bblk, cols)
        return jnp.maximum(yp[:, 0], yp[:, 1]).reshape(out_h * bblk, cols)

    def overlap_add(t_list, in_h, out_h):
        # ConvTranspose row overlap-add (stride 2): out row oh = 2*ih + kh
        rows = []
        for oh in range(out_h):
            acc = None
            for kh, t in enumerate(t_list):
                r = oh - kh
                if r < 0 or (r % 2) != 0:
                    continue
                ih = r // 2
                if ih >= in_h:
                    continue
                blk = t[ih * bblk:(ih + 1) * bblk, :]
                acc = blk if acc is None else acc + blk
            rows.append(acc)
        return jnp.concatenate(rows, axis=0)

    # rows = h*bblk + b, cols = w   (tile-aligned reshape: bblk % 8 == 0)
    x = x_ref[...].reshape(_S * bblk, _S)

    # ---- conv1 3x3 (1->16) + bias + ReLU -> (26*B, 16*26) -----------------
    y1 = (mm(x[0:26 * bblk], k1_ref[0])
          + mm(x[bblk:27 * bblk], k1_ref[1])
          + mm(x[2 * bblk:28 * bblk], k1_ref[2]))
    y1 = jnp.maximum(y1 + b1_ref[...], 0.0)

    # ---- maxpool 2x2 -> (13*B, 16*13) --------------------------------------
    z1 = pool_h(y1, 13, 16 * 26)
    a1 = jnp.maximum(mm(z1, q1_ref[0]), mm(z1, q1_ref[1]))

    # ---- conv2 3x3 (16->32) + bias + ReLU -> (11*B, 32*11) -----------------
    y2 = (mm(a1[0:11 * bblk], k2_ref[0])
          + mm(a1[bblk:12 * bblk], k2_ref[1])
          + mm(a1[2 * bblk:13 * bblk], k2_ref[2]))
    y2 = jnp.maximum(y2 + b2_ref[...], 0.0)

    # ---- maxpool 2x2 (floor: drops h=10, w=10) -> (5*B, 32*5) --------------
    z2 = pool_h(y2, 5, 32 * 11)
    a2 = jnp.maximum(mm(z2, q2_ref[0]), mm(z2, q2_ref[1]))

    # ---- flatten + fc1 + ReLU -> (B, n)  (PyTorch (c,h,w) order in w1p) ----
    lat = mm(a2[0:bblk], w1p_ref[0])
    for h in range(1, 5):
        lat = lat + mm(a2[h * bblk:(h + 1) * bblk], w1p_ref[h])
    lat = jnp.maximum(lat + bf1_ref[...], 0.0)

    # ---- fc2 + ReLU + unflatten -> (5*B, 32*5), rows ih*bblk + b -----------
    d = jnp.concatenate(
        [jnp.maximum(mm(lat, w2p_ref[ih]) + bf2_ref[ih], 0.0)
         for ih in range(5)], axis=0)

    # ---- deconv1 5x5 stride 2 (32->16) + bias + ReLU -> (13*B, 16*13) ------
    t1 = [mm(d, c1_ref[kh]) for kh in range(5)]      # big K=160 GEMMs first
    u1 = jnp.maximum(overlap_add(t1, 5, 13) + bd1_ref[...], 0.0)

    # ---- deconv2 4x4 stride 2 (16->1) + bias + ReLU -> (28*B, 28) ----------
    t2 = [mm(u1, c2_ref[kh]) for kh in range(4)]     # big K=208 GEMMs first
    out = jnp.maximum(overlap_add(t2, 13, 28) + bd2_ref[...], 0.0)

    o_ref[...] = out.reshape(_S, bblk, _S)


def _resident_spec(arr):
    """Whole-array block, constant index -> DMA'd once, VMEM-resident."""
    zeros = (0,) * arr.ndim
    return pl.BlockSpec(tuple(arr.shape), lambda b, _z=zeros: _z)


def _round_up(a, m):
    return ((a + m - 1) // m) * m


@functools.partial(jax.jit, static_argnames=("block_b",))
def autoencoder_forward(x, consts, block_b=32):
    """x: (B, 1, 28, 28) float32 -> (B, 1, 28, 28) float32 (eval-mode)."""
    B = x.shape[0]
    bblk = min(_round_up(block_b, 8), _round_up(B, 8))   # multiple of 8
    bpad = _round_up(B, bblk)

    # (28, Bpad, 28): h-major / batch-minor layout used inside the kernel
    xs = jnp.transpose(x.reshape(B, _S, _S).astype(jnp.float32), (1, 0, 2))
    if bpad != B:
        xs = jnp.pad(xs, ((0, 0), (0, bpad - B), (0, 0)))

    in_specs = [pl.BlockSpec((_S, bblk, _S), lambda i: (0, i, 0))]
    in_specs += [_resident_spec(c) for c in consts]

    out = pl.pallas_call(
        _fused_autoencoder_kernel,
        grid=(bpad // bblk,),
        out_shape=jax.ShapeDtypeStruct((_S, bpad, _S), jnp.float32),
        in_specs=in_specs,
        out_specs=pl.BlockSpec((_S, bblk, _S), lambda i: (0, i, 0)),
        compiler_params=pltpu.CompilerParams(
            dimension_semantics=("parallel",),     # v7x: 2 TCs split the batch
            vmem_limit_bytes=32 * 1024 * 1024),
    )(xs, *consts)

    return jnp.transpose(out, (1, 0, 2))[:B].reshape(B, 1, _S, _S)


# ----------------------------------------------------------------------------
# One-time weight preprocessing (hoisted out of the jitted forward)
# ----------------------------------------------------------------------------
def build_kernel_constants(params):
    f32 = np.float32
    w1 = np.asarray(params["conv1_w"], f32)     # (16, 1, 3, 3)
    b1 = np.asarray(params["conv1_b"], f32)
    w2 = np.asarray(params["conv2_w"], f32)     # (32, 16, 3, 3)
    b2 = np.asarray(params["conv2_b"], f32)
    wf1 = np.asarray(params["fc1_w"], f32)      # (n, 800)
    bf1 = np.asarray(params["fc1_b"], f32)
    wf2 = np.asarray(params["fc2_w"], f32)      # (800, n)
    bf2 = np.asarray(params["fc2_b"], f32)
    wd1 = np.asarray(params["deconv1_w"], f32)  # (32, 16, 5, 5)
    bd1 = np.asarray(params["deconv1_b"], f32)
    wd2 = np.asarray(params["deconv2_w"], f32)  # (16, 1, 4, 4)
    bd2 = np.asarray(params["deconv2_b"], f32)
    n = wf1.shape[0]

    # conv1 banded: Y1[row, co*26+wo] = sum_i X_slice_i @ k1[i]
    k1 = np.zeros((3, 28, 16 * 26), f32)
    co_g, wo_g = np.meshgrid(np.arange(16), np.arange(26), indexing="ij")
    for i in range(3):
        for j in range(3):
            k1[i, wo_g + j, co_g * 26 + wo_g] = w1[co_g, 0, i, j]
    b1row = np.repeat(b1, 26).reshape(1, 16 * 26)

    # pool1 width-selection (within-channel even/odd columns)
    q1 = np.zeros((2, 16 * 26, 16 * 13), f32)
    w_ = np.arange(13)
    for c in range(16):
        q1[0, c * 26 + 2 * w_, c * 13 + w_] = 1.0
        q1[1, c * 26 + 2 * w_ + 1, c * 13 + w_] = 1.0

    # conv2 banded
    k2 = np.zeros((3, 16 * 13, 32 * 11), f32)
    ci_g, co_g, wo_g = np.meshgrid(np.arange(16), np.arange(32), np.arange(11),
                                   indexing="ij")
    for i in range(3):
        for j in range(3):
            k2[i, ci_g * 13 + wo_g + j, co_g * 11 + wo_g] = w2[co_g, ci_g, i, j]
    b2row = np.repeat(b2, 11).reshape(1, 32 * 11)

    # pool2 width-selection (drops w=10 per channel)
    q2 = np.zeros((2, 32 * 11, 32 * 5), f32)
    w_ = np.arange(5)
    for c in range(32):
        q2[0, c * 11 + 2 * w_, c * 5 + w_] = 1.0
        q2[1, c * 11 + 2 * w_ + 1, c * 5 + w_] = 1.0

    # fc1: PyTorch flatten order (c,h,w) folded into the weight, split per h
    # w1p[h, c*5+w, k] = wf1[k, c*25 + h*5 + w]
    w1p = wf1.reshape(n, 32, 5, 5).transpose(2, 1, 3, 0).reshape(5, 160, n)
    bf1row = bf1.reshape(1, n)

    # fc2: output reordered straight into the deconv layout D[ih, ci*5+iw]
    # w2p[ih, k, ci*5+iw] = wf2[ci*25 + ih*5 + iw, k]
    w2p = wf2.reshape(32, 5, 5, n).transpose(1, 3, 0, 2).reshape(5, n, 160)
    bf2rows = bf2.reshape(32, 5, 5).transpose(1, 0, 2).reshape(5, 1, 160)

    # deconv1 (ConvTranspose2d 32->16, 5x5, stride 2): T_kh = D @ c1m[kh]
    c1m = np.zeros((5, 160, 16 * 13), f32)
    ci_g, co_g, iw_g = np.meshgrid(np.arange(32), np.arange(16), np.arange(5),
                                   indexing="ij")
    for kh in range(5):
        for kw in range(5):
            c1m[kh, ci_g * 5 + iw_g, co_g * 13 + 2 * iw_g + kw] = wd1[ci_g, co_g, kh, kw]
    bd1row = np.repeat(bd1, 13).reshape(1, 16 * 13)

    # deconv2 (ConvTranspose2d 16->1, 4x4, stride 2)
    c2m = np.zeros((4, 16 * 13, 28), f32)
    ci_g, iw_g = np.meshgrid(np.arange(16), np.arange(13), indexing="ij")
    for kh in range(4):
        for kw in range(4):
            c2m[kh, ci_g * 13 + iw_g, 2 * iw_g + kw] = wd2[ci_g, 0, kh, kw]
    bd2s = bd2.reshape(1, 1)

    as_bf16 = lambda a: jnp.asarray(a, jnp.bfloat16)   # MXU-native matrices
    as_f32 = lambda a: jnp.asarray(a, jnp.float32)     # biases stay f32
    return (as_bf16(k1), as_f32(b1row), as_bf16(q1),
            as_bf16(k2), as_f32(b2row), as_bf16(q2),
            as_bf16(w1p), as_f32(bf1row),
            as_bf16(w2p), as_f32(bf2rows),
            as_bf16(c1m), as_f32(bd1row),
            as_bf16(c2m), as_f32(bd2s))


# ----------------------------------------------------------------------------
# PyTorch-layout parameter init (same as the nn.Module with n=512)
# ----------------------------------------------------------------------------
def init_params(key, n=512):
    ks = jax.random.split(key, 12)
    s = 0.1
    return {
        "conv1_w": jax.random.normal(ks[0], (16, 1, 3, 3), jnp.float32) * s,
        "conv1_b": jax.random.normal(ks[1], (16,), jnp.float32) * s,
        "conv2_w": jax.random.normal(ks[2], (32, 16, 3, 3), jnp.float32) * s,
        "conv2_b": jax.random.normal(ks[3], (32,), jnp.float32) * s,
        "fc1_w": jax.random.normal(ks[4], (n, 800), jnp.float32) * s,
        "fc1_b": jax.random.normal(ks[5], (n,), jnp.float32) * s,
        "fc2_w": jax.random.normal(ks[6], (800, n), jnp.float32) * s,
        "fc2_b": jax.random.normal(ks[7], (800,), jnp.float32) * s,
        "deconv1_w": jax.random.normal(ks[8], (32, 16, 5, 5), jnp.float32) * s,
        "deconv1_b": jax.random.normal(ks[9], (16,), jnp.float32) * s,
        "deconv2_w": jax.random.normal(ks[10], (16, 1, 4, 4), jnp.float32) * s,
        "deconv2_b": jax.random.normal(ks[11], (1,), jnp.float32) * s,
    }


# ----------------------------------------------------------------------------
# Plain-JAX reference (eval-mode), used only for a numerical self-check
# ----------------------------------------------------------------------------
def _reference_forward(x, params):
    dn = ("NCHW", "OIHW", "NCHW")
    y = lax.conv_general_dilated(x, params["conv1_w"], (1, 1), "VALID",
                                 dimension_numbers=dn)
    y = jax.nn.relu(y + params["conv1_b"][None, :, None, None])
    y = lax.reduce_window(y, -jnp.inf, lax.max, (1, 1, 2, 2), (1, 1, 2, 2), "VALID")
    y = lax.conv_general_dilated(y, params["conv2_w"], (1, 1), "VALID",
                                 dimension_numbers=dn)
    y = jax.nn.relu(y + params["conv2_b"][None, :, None, None])
    y = lax.reduce_window(y, -jnp.inf, lax.max, (1, 1, 2, 2), (1, 1, 2, 2), "VALID")
    B = y.shape[0]
    y = y.reshape(B, -1)
    y = jax.nn.relu(y @ params["fc1_w"].T + params["fc1_b"])
    y = jax.nn.relu(y @ params["fc2_w"].T + params["fc2_b"])
    y = y.reshape(B, 32, 5, 5)
    for w_key, b_key, k in (("deconv1_w", "deconv1_b", 5), ("deconv2_w", "deconv2_b", 4)):
        w_conv = jnp.flip(params[w_key], (2, 3)).transpose(1, 0, 2, 3)
        y = lax.conv_general_dilated(
            y, w_conv, (1, 1), [(k - 1, k - 1), (k - 1, k - 1)],
            lhs_dilation=(2, 2), dimension_numbers=dn)
        y = jax.nn.relu(y + params[b_key][None, :, None, None])
    return y


if __name__ == "__main__":
    key = jax.random.PRNGKey(0)
    k_par, k_in = jax.random.split(key)
    params = init_params(k_par, n=512)
    consts = build_kernel_constants(params)     # one-time weight prep (outside jit)

    # batch=2, 1 channel, 28x28 (the only spatial size consistent with 32*5*5)
    x = jax.random.normal(k_in, (2, 1, 28, 28), jnp.float32)

    out = jax.block_until_ready(autoencoder_forward(x, consts))

    assert out.shape == (2, 1, 28, 28), out.shape
    assert out.dtype == jnp.float32
    assert bool(jnp.all(out >= 0.0))            # final ReLU

    # numerical self-check against a plain-JAX reference (loose tolerance:
    # matmul operands are bf16, accumulation f32)
    ref = jax.block_until_ready(jax.jit(_reference_forward)(x, params))
    err = float(jnp.max(jnp.abs(out - ref)))
    scale = float(jnp.max(jnp.abs(ref)))
    assert err <= 5e-2 * max(1.0, scale), f"mismatch: max|diff|={err:.3e} vs max|ref|={scale:.3e}"

    print("KERNEL_OK")
</pallas_src>

<mosaic_0001>
module attributes {stable_mosaic.version = 11 : i64} {
  func.func @_fused_autoencoder_kernel(%arg0: i32, %arg1: memref<28x8x28xf32, #tpu.memory_space<vmem>>, %arg2: memref<3x28x416xbf16, #tpu.memory_space<vmem>>, %arg3: memref<1x416xf32, #tpu.memory_space<vmem>>, %arg4: memref<2x416x208xbf16, #tpu.memory_space<vmem>>, %arg5: memref<3x208x352xbf16, #tpu.memory_space<vmem>>, %arg6: memref<1x352xf32, #tpu.memory_space<vmem>>, %arg7: memref<2x352x160xbf16, #tpu.memory_space<vmem>>, %arg8: memref<5x160x512xbf16, #tpu.memory_space<vmem>>, %arg9: memref<1x512xf32, #tpu.memory_space<vmem>>, %arg10: memref<5x512x160xbf16, #tpu.memory_space<vmem>>, %arg11: memref<5x1x160xf32, #tpu.memory_space<vmem>>, %arg12: memref<5x160x208xbf16, #tpu.memory_space<vmem>>, %arg13: memref<1x208xf32, #tpu.memory_space<vmem>>, %arg14: memref<4x208x28xbf16, #tpu.memory_space<vmem>>, %arg15: memref<1x1xf32, #tpu.memory_space<vmem>>, %arg16: memref<28x8x28xf32, #tpu.memory_space<vmem>>) attributes {dimension_semantics = [#tpu.dimension_semantics<parallel>], iteration_bounds = array<i64: 1>, scalar_prefetch = 0 : i64, scratch_operands = 0 : i64, tpu.core_type = #tpu.core_type<tc>, window_params = [{transform_indices = @transform_0, window_bounds = array<i64: 28, 8, 28>}, {pipeline_mode = #tpu.pipeline_mode<synchronous>, transform_indices = @transform_1, window_bounds = array<i64: 3, 28, 416>}, {pipeline_mode = #tpu.pipeline_mode<synchronous>, transform_indices = @transform_2, window_bounds = array<i64: 1, 416>}, {pipeline_mode = #tpu.pipeline_mode<synchronous>, transform_indices = @transform_3, window_bounds = array<i64: 2, 416, 208>}, {pipeline_mode = #tpu.pipeline_mode<synchronous>, transform_indices = @transform_4, window_bounds = array<i64: 3, 208, 352>}, {pipeline_mode = #tpu.pipeline_mode<synchronous>, transform_indices = @transform_5, window_bounds = array<i64: 1, 352>}, {pipeline_mode = #tpu.pipeline_mode<synchronous>, transform_indices = @transform_6, window_bounds = array<i64: 2, 352, 160>}, {pipeline_mode = #tpu.pipeline_mode<synchronous>, transform_indices = @transform_7, window_bounds = array<i64: 5, 160, 512>}, {pipeline_mode = #tpu.pipeline_mode<synchronous>, transform_indices = @transform_8, window_bounds = array<i64: 1, 512>}, {pipeline_mode = #tpu.pipeline_mode<synchronous>, transform_indices = @transform_9, window_bounds = array<i64: 5, 512, 160>}, {pipeline_mode = #tpu.pipeline_mode<synchronous>, transform_indices = @transform_10, window_bounds = array<i64: 5, 1, 160>}, {pipeline_mode = #tpu.pipeline_mode<synchronous>, transform_indices = @transform_11, window_bounds = array<i64: 5, 160, 208>}, {pipeline_mode = #tpu.pipeline_mode<synchronous>, transform_indices = @transform_12, window_bounds = array<i64: 1, 208>}, {pipeline_mode = #tpu.pipeline_mode<synchronous>, transform_indices = @transform_13, window_bounds = array<i64: 4, 208, 28>}, {pipeline_mode = #tpu.pipeline_mode<synchronous>, transform_indices = @transform_14, window_bounds = array<i64: 1, 1>}, {transform_indices = @transform_15, window_bounds = array<i64: 28, 8, 28>}]} {
    %c0 = arith.constant 0 : index
    %c0_0 = arith.constant 0 : index
    %c0_1 = arith.constant 0 : index
    %0 = vector.load %arg1[%c0, %c0_0, %c0_1] : memref<28x8x28xf32, #tpu.memory_space<vmem>>, vector<28x8x28xf32>
    %1 = vector.shape_cast %0 : vector<28x8x28xf32> to vector<224x28xf32>
    %2 = vector.extract_strided_slice %1 {offsets = [0, 0], sizes = [208, 28], strides = [1, 1]} : vector<224x28xf32> to vector<208x28xf32>
    %c0_2 = arith.constant 0 : index
    %c0_3 = arith.constant 0 : index
    %c0_4 = arith.constant 0 : index
    %3 = vector.load %arg2[%c0_2, %c0_3, %c0_4] : memref<3x28x416xbf16, #tpu.memory_space<vmem>>, vector<1x28x416xbf16>
    %4 = vector.shape_cast %3 : vector<1x28x416xbf16> to vector<28x416xbf16>
    %5 = arith.truncf %2 : vector<208x28xf32> to vector<208x28xbf16>
    %cst = arith.constant dense<0.000000e+00> : vector<208x416xf32>
    %6 = tpu.matmul %5, %4, %cst {dimension_numbers = #tpu.dot_dimension_numbers<[1], [0], [0], [1], [0, 0, 1, 1], [], []>} : vector<208x28xbf16>, vector<28x416xbf16>, vector<208x416xf32> -> vector<208x416xf32>
    %7 = vector.extract_strided_slice %1 {offsets = [8, 0], sizes = [208, 28], strides = [1, 1]} : vector<224x28xf32> to vector<208x28xf32>
    %c1 = arith.constant 1 : index
    %c0_5 = arith.constant 0 : index
    %c0_6 = arith.constant 0 : index
    %8 = vector.load %arg2[%c1, %c0_5, %c0_6] : memref<3x28x416xbf16, #tpu.memory_space<vmem>>, vector<1x28x416xbf16>
    %9 = vector.shape_cast %8 : vector<1x28x416xbf16> to vector<28x416xbf16>
    %10 = arith.truncf %7 : vector<208x28xf32> to vector<208x28xbf16>
    %cst_7 = arith.constant dense<0.000000e+00> : vector<208x416xf32>
    %11 = tpu.matmul %10, %9, %cst_7 {dimension_numbers = #tpu.dot_dimension_numbers<[1], [0], [0], [1], [0, 0, 1, 1], [], []>} : vector<208x28xbf16>, vector<28x416xbf16>, vector<208x416xf32> -> vector<208x416xf32>
    %12 = arith.addf %6, %11 : vector<208x416xf32>
    %13 = vector.extract_strided_slice %1 {offsets = [16, 0], sizes = [208, 28], strides = [1, 1]} : vector<224x28xf32> to vector<208x28xf32>
    %c2 = arith.constant 2 : index
    %c0_8 = arith.constant 0 : index
    %c0_9 = arith.constant 0 : index
    %14 = vector.load %arg2[%c2, %c0_8, %c0_9] : memref<3x28x416xbf16, #tpu.memory_space<vmem>>, vector<1x28x416xbf16>
    %15 = vector.shape_cast %14 : vector<1x28x416xbf16> to vector<28x416xbf16>
    %16 = arith.truncf %13 : vector<208x28xf32> to vector<208x28xbf16>
    %cst_10 = arith.constant dense<0.000000e+00> : vector<208x416xf32>
    %17 = tpu.matmul %16, %15, %cst_10 {dimension_numbers = #tpu.dot_dimension_numbers<[1], [0], [0], [1], [0, 0, 1, 1], [], []>} : vector<208x28xbf16>, vector<28x416xbf16>, vector<208x416xf32> -> vector<208x416xf32>
    %18 = arith.addf %12, %17 : vector<208x416xf32>
    %c0_11 = arith.constant 0 : index
    %c0_12 = arith.constant 0 : index
    %19 = vector.load %arg3[%c0_11, %c0_12] : memref<1x416xf32, #tpu.memory_space<vmem>>, vector<1x416xf32>
    %20 = vector.broadcast %19 : vector<1x416xf32> to vector<208x416xf32>
    %21 = arith.addf %18, %20 : vector<208x416xf32>
    %cst_13 = arith.constant 0.000000e+00 : f32
    %22 = vector.broadcast %cst_13 : f32 to vector<208x416xf32>
    %23 = arith.maximumf %21, %22 : vector<208x416xf32>
    %24 = vector.shape_cast %23 : vector<208x416xf32> to vector<13x2x8x416xf32>
    %25 = vector.extract_strided_slice %24 {offsets = [0, 0, 0, 0], sizes = [13, 1, 8, 416], strides = [1, 1, 1, 1]} : vector<13x2x8x416xf32> to vector<13x1x8x416xf32>
    %26 = vector.shape_cast %25 : vector<13x1x8x416xf32> to vector<13x8x416xf32>
    %27 = vector.extract_strided_slice %24 {offsets = [0, 1, 0, 0], sizes = [13, 1, 8, 416], strides = [1, 1, 1, 1]} : vector<13x2x8x416xf32> to vector<13x1x8x416xf32>
    %28 = vector.shape_cast %27 : vector<13x1x8x416xf32> to vector<13x8x416xf32>
    %29 = arith.maximumf %26, %28 : vector<13x8x416xf32>
    %30 = vector.shape_cast %29 : vector<13x8x416xf32> to vector<104x416xf32>
    %c0_14 = arith.constant 0 : index
    %c0_15 = arith.constant 0 : index
    %c0_16 = arith.constant 0 : index
    %31 = vector.load %arg4[%c0_14, %c0_15, %c0_16] : memref<2x416x208xbf16, #tpu.memory_space<vmem>>, vector<1x416x208xbf16>
    %32 = vector.shape_cast %31 : vector<1x416x208xbf16> to vector<416x208xbf16>
    %33 = arith.truncf %30 : vector<104x416xf32> to vector<104x416xbf16>
    %cst_17 = arith.constant dense<0.000000e+00> : vector<104x208xf32>
    %34 = tpu.matmul %33, %32, %cst_17 {dimension_numbers = #tpu.dot_dimension_numbers<[1], [0], [0], [1], [0, 0, 1, 1], [], []>} : vector<104x416xbf16>, vector<416x208xbf16>, vector<104x208xf32> -> vector<104x208xf32>
    %c1_18 = arith.constant 1 : index
    %c0_19 = arith.constant 0 : index
    %c0_20 = arith.constant 0 : index
    %35 = vector.load %arg4[%c1_18, %c0_19, %c0_20] : memref<2x416x208xbf16, #tpu.memory_space<vmem>>, vector<1x416x208xbf16>
    %36 = vector.shape_cast %35 : vector<1x416x208xbf16> to vector<416x208xbf16>
    %37 = arith.truncf %30 : vector<104x416xf32> to vector<104x416xbf16>
    %cst_21 = arith.constant dense<0.000000e+00> : vector<104x208xf32>
    %38 = tpu.matmul %37, %36, %cst_21 {dimension_numbers = #tpu.dot_dimension_numbers<[1], [0], [0], [1], [0, 0, 1, 1], [], []>} : vector<104x416xbf16>, vector<416x208xbf16>, vector<104x208xf32> -> vector<104x208xf32>
    %39 = arith.maximumf %34, %38 : vector<104x208xf32>
    %40 = vector.extract_strided_slice %39 {offsets = [0, 0], sizes = [88, 208], strides = [1, 1]} : vector<104x208xf32> to vector<88x208xf32>
    %c0_22 = arith.constant 0 : index
    %c0_23 = arith.constant 0 : index
    %c0_24 = arith.constant 0 : index
    %41 = vector.load %arg5[%c0_22, %c0_23, %c0_24] : memref<3x208x352xbf16, #tpu.memory_space<vmem>>, vector<1x208x352xbf16>
    %42 = vector.shape_cast %41 : vector<1x208x352xbf16> to vector<208x352xbf16>
    %43 = arith.truncf %40 : vector<88x208xf32> to vector<88x208xbf16>
    %cst_25 = arith.constant dense<0.000000e+00> : vector<88x352xf32>
    %44 = tpu.matmul %43, %42, %cst_25 {dimension_numbers = #tpu.dot_dimension_numbers<[1], [0], [0], [1], [0, 0, 1, 1], [], []>} : vector<88x208xbf16>, vector<208x352xbf16>, vector<88x352xf32> -> vector<88x352xf32>
    %45 = vector.extract_strided_slice %39 {offsets = [8, 0], sizes = [88, 208], strides = [1, 1]} : vector<104x208xf32> to vector<88x208xf32>
    %c1_26 = arith.constant 1 : index
    %c0_27 = arith.constant 0 : index
    %c0_28 = arith.constant 0 : index
    %46 = vector.load %arg5[%c1_26, %c0_27, %c0_28] : memref<3x208x352xbf16, #tpu.memory_space<vmem>>, vector<1x208x352xbf16>
    %47 = vector.shape_cast %46 : vector<1x208x352xbf16> to vector<208x352xbf16>
    %48 = arith.truncf %45 : vector<88x208xf32> to vector<88x208xbf16>
    %cst_29 = arith.constant dense<0.000000e+00> : vector<88x352xf32>
    %49 = tpu.matmul %48, %47, %cst_29 {dimension_numbers = #tpu.dot_dimension_numbers<[1], [0], [0], [1], [0, 0, 1, 1], [], []>} : vector<88x208xbf16>, vector<208x352xbf16>, vector<88x352xf32> -> vector<88x352xf32>
    %50 = arith.addf %44, %49 : vector<88x352xf32>
    %51 = vector.extract_strided_slice %39 {offsets = [16, 0], sizes = [88, 208], strides = [1, 1]} : vector<104x208xf32> to vector<88x208xf32>
    %c2_30 = arith.constant 2 : index
    %c0_31 = arith.constant 0 : index
    %c0_32 = arith.constant 0 : index
    %52 = vector.load %arg5[%c2_30, %c0_31, %c0_32] : memref<3x208x352xbf16, #tpu.memory_space<vmem>>, vector<1x208x352xbf16>
    %53 = vector.shape_cast %52 : vector<1x208x352xbf16> to vector<208x352xbf16>
    %54 = arith.truncf %51 : vector<88x208xf32> to vector<88x208xbf16>
    %cst_33 = arith.constant dense<0.000000e+00> : vector<88x352xf32>
    %55 = tpu.matmul %54, %53, %cst_33 {dimension_numbers = #tpu.dot_dimension_numbers<[1], [0], [0], [1], [0, 0, 1, 1], [], []>} : vector<88x208xbf16>, vector<208x352xbf16>, vector<88x352xf32> -> vector<88x352xf32>
    %56 = arith.addf %50, %55 : vector<88x352xf32>
    %c0_34 = arith.constant 0 : index
    %c0_35 = arith.constant 0 : index
    %57 = vector.load %arg6[%c0_34, %c0_35] : memref<1x352xf32, #tpu.memory_space<vmem>>, vector<1x352xf32>
    %58 = vector.broadcast %57 : vector<1x352xf32> to vector<88x352xf32>
    %59 = arith.addf %56, %58 : vector<88x352xf32>
    %cst_36 = arith.constant 0.000000e+00 : f32
    %60 = vector.broadcast %cst_36 : f32 to vector<88x352xf32>
    %61 = arith.maximumf %59, %60 : vector<88x352xf32>
    %62 = vector.extract_strided_slice %61 {offsets = [0, 0], sizes = [80, 352], strides = [1, 1]} : vector<88x352xf32> to vector<80x352xf32>
    %63 = vector.shape_cast %62 : vector<80x352xf32> to vector<5x2x8x352xf32>
    %64 = vector.extract_strided_slice %63 {offsets = [0, 0, 0, 0], sizes = [5, 1, 8, 352], strides = [1, 1, 1, 1]} : vector<5x2x8x352xf32> to vector<5x1x8x352xf32>
    %65 = vector.shape_cast %64 : vector<5x1x8x352xf32> to vector<5x8x352xf32>
    %66 = vector.extract_strided_slice %63 {offsets = [0, 1, 0, 0], sizes = [5, 1, 8, 352], strides = [1, 1, 1, 1]} : vector<5x2x8x352xf32> to vector<5x1x8x352xf32>
    %67 = vector.shape_cast %66 : vector<5x1x8x352xf32> to vector<5x8x352xf32>
    %68 = arith.maximumf %65, %67 : vector<5x8x352xf32>
    %69 = vector.shape_cast %68 : vector<5x8x352xf32> to vector<40x352xf32>
    %c0_37 = arith.constant 0 : index
    %c0_38 = arith.constant 0 : index
    %c0_39 = arith.constant 0 : index
    %70 = vector.load %arg7[%c0_37, %c0_38, %c0_39] : memref<2x352x160xbf16, #tpu.memory_space<vmem>>, vector<1x352x160xbf16>
    %71 = vector.shape_cast %70 : vector<1x352x160xbf16> to vector<352x160xbf16>
    %72 = arith.truncf %69 : vector<40x352xf32> to vector<40x352xbf16>
    %cst_40 = arith.constant dense<0.000000e+00> : vector<40x160xf32>
    %73 = tpu.matmul %72, %71, %cst_40 {dimension_numbers = #tpu.dot_dimension_numbers<[1], [0], [0], [1], [0, 0, 1, 1], [], []>} : vector<40x352xbf16>, vector<352x160xbf16>, vector<40x160xf32> -> vector<40x160xf32>
    %c1_41 = arith.constant 1 : index
    %c0_42 = arith.constant 0 : index
    %c0_43 = arith.constant 0 : index
    %74 = vector.load %arg7[%c1_41, %c0_42, %c0_43] : memref<2x352x160xbf16, #tpu.memory_space<vmem>>, vector<1x352x160xbf16>
    %75 = vector.shape_cast %74 : vector<1x352x160xbf16> to vector<352x160xbf16>
    %76 = arith.truncf %69 : vector<40x352xf32> to vector<40x352xbf16>
    %cst_44 = arith.constant dense<0.000000e+00> : vector<40x160xf32>
    %77 = tpu.matmul %76, %75, %cst_44 {dimension_numbers = #tpu.dot_dimension_numbers<[1], [0], [0], [1], [0, 0, 1, 1], [], []>} : vector<40x352xbf16>, vector<352x160xbf16>, vector<40x160xf32> -> vector<40x160xf32>
    %78 = arith.maximumf %73, %77 : vector<40x160xf32>
    %79 = vector.extract_strided_slice %78 {offsets = [0, 0], sizes = [8, 160], strides = [1, 1]} : vector<40x160xf32> to vector<8x160xf32>
    %c0_45 = arith.constant 0 : index
    %c0_46 = arith.constant 0 : index
    %c0_47 = arith.constant 0 : index
    %80 = vector.load %arg8[%c0_45, %c0_46, %c0_47] : memref<5x160x512xbf16, #tpu.memory_space<vmem>>, vector<1x160x512xbf16>
    %81 = vector.shape_cast %80 : vector<1x160x512xbf16> to vector<160x512xbf16>
    %82 = arith.truncf %79 : vector<8x160xf32> to vector<8x160xbf16>
    %cst_48 = arith.constant dense<0.000000e+00> : vector<8x512xf32>
    %83 = tpu.matmul %82, %81, %cst_48 {dimension_numbers = #tpu.dot_dimension_numbers<[1], [0], [0], [1], [0, 0, 1, 1], [], []>} : vector<8x160xbf16>, vector<160x512xbf16>, vector<8x512xf32> -> vector<8x512xf32>
    %84 = vector.extract_strided_slice %78 {offsets = [8, 0], sizes = [8, 160], strides = [1, 1]} : vector<40x160xf32> to vector<8x160xf32>
    %c1_49 = arith.constant 1 : index
    %c0_50 = arith.constant 0 : index
    %c0_51 = arith.constant 0 : index
    %85 = vector.load %arg8[%c1_49, %c0_50, %c0_51] : memref<5x160x512xbf16, #tpu.memory_space<vmem>>, vector<1x160x512xbf16>
    %86 = vector.shape_cast %85 : vector<1x160x512xbf16> to vector<160x512xbf16>
    %87 = arith.truncf %84 : vector<8x160xf32> to vector<8x160xbf16>
    %cst_52 = arith.constant dense<0.000000e+00> : vector<8x512xf32>
    %88 = tpu.matmul %87, %86, %cst_52 {dimension_numbers = #tpu.dot_dimension_numbers<[1], [0], [0], [1], [0, 0, 1, 1], [], []>} : vector<8x160xbf16>, vector<160x512xbf16>, vector<8x512xf32> -> vector<8x512xf32>
    %89 = arith.addf %83, %88 : vector<8x512xf32>
    %90 = vector.extract_strided_slice %78 {offsets = [16, 0], sizes = [8, 160], strides = [1, 1]} : vector<40x160xf32> to vector<8x160xf32>
    %c2_53 = arith.constant 2 : index
    %c0_54 = arith.constant 0 : index
    %c0_55 = arith.constant 0 : index
    %91 = vector.load %arg8[%c2_53, %c0_54, %c0_55] : memref<5x160x512xbf16, #tpu.memory_space<vmem>>, vector<1x160x512xbf16>
    %92 = vector.shape_cast %91 : vector<1x160x512xbf16> to vector<160x512xbf16>
    %93 = arith.truncf %90 : vector<8x160xf32> to vector<8x160xbf16>
    %cst_56 = arith.constant dense<0.000000e+00> : vector<8x512xf32>
    %94 = tpu.matmul %93, %92, %cst_56 {dimension_numbers = #tpu.dot_dimension_numbers<[1], [0], [0], [1], [0, 0, 1, 1], [], []>} : vector<8x160xbf16>, vector<160x512xbf16>, vector<8x512xf32> -> vector<8x512xf32>
    %95 = arith.addf %89, %94 : vector<8x512xf32>
    %96 = vector.extract_strided_slice %78 {offsets = [24, 0], sizes = [8, 160], strides = [1, 1]} : vector<40x160xf32> to vector<8x160xf32>
    %c3 = arith.constant 3 : index
    %c0_57 = arith.constant 0 : index
    %c0_58 = arith.constant 0 : index
    %97 = vector.load %arg8[%c3, %c0_57, %c0_58] : memref<5x160x512xbf16, #tpu.memory_space<vmem>>, vector<1x160x512xbf16>
    %98 = vector.shape_cast %97 : vector<1x160x512xbf16> to vector<160x512xbf16>
    %99 = arith.truncf %96 : vector<8x160xf32> to vector<8x160xbf16>
    %cst_59 = arith.constant dense<0.000000e+00> : vector<8x512xf32>
    %100 = tpu.matmul %99, %98, %cst_59 {dimension_numbers = #tpu.dot_dimension_numbers<[1], [0], [0], [1], [0, 0, 1, 1], [], []>} : vector<8x160xbf16>, vector<160x512xbf16>, vector<8x512xf32> -> vector<8x512xf32>
    %101 = arith.addf %95, %100 : vector<8x512xf32>
    %102 = vector.extract_strided_slice %78 {offsets = [32, 0], sizes = [8, 160], strides = [1, 1]} : vector<40x160xf32> to vector<8x160xf32>
    %c4 = arith.constant 4 : index
    %c0_60 = arith.constant 0 : index
    %c0_61 = arith.constant 0 : index
    %103 = vector.load %arg8[%c4, %c0_60, %c0_61] : memref<5x160x512xbf16, #tpu.memory_space<vmem>>, vector<1x160x512xbf16>
    %104 = vector.shape_cast %103 : vector<1x160x512xbf16> to vector<160x512xbf16>
    %105 = arith.truncf %102 : vector<8x160xf32> to vector<8x160xbf16>
    %cst_62 = arith.constant dense<0.000000e+00> : vector<8x512xf32>
    %106 = tpu.matmul %105, %104, %cst_62 {dimension_numbers = #tpu.dot_dimension_numbers<[1], [0], [0], [1], [0, 0, 1, 1], [], []>} : vector<8x160xbf16>, vector<160x512xbf16>, vector<8x512xf32> -> vector<8x512xf32>
    %107 = arith.addf %101, %106 : vector<8x512xf32>
    %c0_63 = arith.constant 0 : index
    %c0_64 = arith.constant 0 : index
    %108 = vector.load %arg9[%c0_63, %c0_64] : memref<1x512xf32, #tpu.memory_space<vmem>>, vector<1x512xf32>
    %109 = vector.broadcast %108 : vector<1x512xf32> to vector<8x512xf32>
    %110 = arith.addf %107, %109 : vector<8x512xf32>
    %cst_65 = arith.constant 0.000000e+00 : f32
    %111 = vector.broadcast %cst_65 : f32 to vector<8x512xf32>
    %112 = arith.maximumf %110, %111 : vector<8x512xf32>
    %c0_66 = arith.constant 0 : index
    %c0_67 = arith.constant 0 : index
    %c0_68 = arith.constant 0 : index
    %113 = vector.load %arg10[%c0_66, %c0_67, %c0_68] : memref<5x512x160xbf16, #tpu.memory_space<vmem>>, vector<1x512x160xbf16>
    %114 = vector.shape_cast %113 : vector<1x512x160xbf16> to vector<512x160xbf16>
    %115 = arith.truncf %112 : vector<8x512xf32> to vector<8x512xbf16>
    %cst_69 = arith.constant dense<0.000000e+00> : vector<8x160xf32>
    %116 = tpu.matmul %115, %114, %cst_69 {dimension_numbers = #tpu.dot_dimension_numbers<[1], [0], [0], [1], [0, 0, 1, 1], [], []>} : vector<8x512xbf16>, vector<512x160xbf16>, vector<8x160xf32> -> vector<8x160xf32>
    %c0_70 = arith.constant 0 : index
    %c0_71 = arith.constant 0 : index
    %c0_72 = arith.constant 0 : index
    %117 = vector.load %arg11[%c0_70, %c0_71, %c0_72] : memref<5x1x160xf32, #tpu.memory_space<vmem>>, vector<1x1x160xf32>
    %118 = vector.shape_cast %117 : vector<1x1x160xf32> to vector<1x160xf32>
    %119 = vector.broadcast %118 : vector<1x160xf32> to vector<8x160xf32>
    %120 = arith.addf %116, %119 : vector<8x160xf32>
    %cst_73 = arith.constant 0.000000e+00 : f32
    %121 = vector.broadcast %cst_73 : f32 to vector<8x160xf32>
    %122 = arith.maximumf %120, %121 : vector<8x160xf32>
    %c1_74 = arith.constant 1 : index
    %c0_75 = arith.constant 0 : index
    %c0_76 = arith.constant 0 : index
    %123 = vector.load %arg10[%c1_74, %c0_75, %c0_76] : memref<5x512x160xbf16, #tpu.memory_space<vmem>>, vector<1x512x160xbf16>
    %124 = vector.shape_cast %123 : vector<1x512x160xbf16> to vector<512x160xbf16>
    %125 = arith.truncf %112 : vector<8x512xf32> to vector<8x512xbf16>
    %cst_77 = arith.constant dense<0.000000e+00> : vector<8x160xf32>
    %126 = tpu.matmul %125, %124, %cst_77 {dimension_numbers = #tpu.dot_dimension_numbers<[1], [0], [0], [1], [0, 0, 1, 1], [], []>} : vector<8x512xbf16>, vector<512x160xbf16>, vector<8x160xf32> -> vector<8x160xf32>
    %c1_78 = arith.constant 1 : index
    %c0_79 = arith.constant 0 : index
    %c0_80 = arith.constant 0 : index
    %127 = vector.load %arg11[%c1_78, %c0_79, %c0_80] : memref<5x1x160xf32, #tpu.memory_space<vmem>>, vector<1x1x160xf32>
    %128 = vector.shape_cast %127 : vector<1x1x160xf32> to vector<1x160xf32>
    %129 = vector.broadcast %128 : vector<1x160xf32> to vector<8x160xf32>
    %130 = arith.addf %126, %129 : vector<8x160xf32>
    %cst_81 = arith.constant 0.000000e+00 : f32
    %131 = vector.broadcast %cst_81 : f32 to vector<8x160xf32>
    %132 = arith.maximumf %130, %131 : vector<8x160xf32>
    %c2_82 = arith.constant 2 : index
    %c0_83 = arith.constant 0 : index
    %c0_84 = arith.constant 0 : index
    %133 = vector.load %arg10[%c2_82, %c0_83, %c0_84] : memref<5x512x160xbf16, #tpu.memory_space<vmem>>, vector<1x512x160xbf16>
    %134 = vector.shape_cast %133 : vector<1x512x160xbf16> to vector<512x160xbf16>
    %135 = arith.truncf %112 : vector<8x512xf32> to vector<8x512xbf16>
    %cst_85 = arith.constant dense<0.000000e+00> : vector<8x160xf32>
    %136 = tpu.matmul %135, %134, %cst_85 {dimension_numbers = #tpu.dot_dimension_numbers<[1], [0], [0], [1], [0, 0, 1, 1], [], []>} : vector<8x512xbf16>, vector<512x160xbf16>, vector<8x160xf32> -> vector<8x160xf32>
    %c2_86 = arith.constant 2 : index
    %c0_87 = arith.constant 0 : index
    %c0_88 = arith.constant 0 : index
    %137 = vector.load %arg11[%c2_86, %c0_87, %c0_88] : memref<5x1x160xf32, #tpu.memory_space<vmem>>, vector<1x1x160xf32>
    %138 = vector.shape_cast %137 : vector<1x1x160xf32> to vector<1x160xf32>
    %139 = vector.broadcast %138 : vector<1x160xf32> to vector<8x160xf32>
    %140 = arith.addf %136, %139 : vector<8x160xf32>
    %cst_89 = arith.constant 0.000000e+00 : f32
    %141 = vector.broadcast %cst_89 : f32 to vector<8x160xf32>
    %142 = arith.maximumf %140, %141 : vector<8x160xf32>
    %c3_90 = arith.constant 3 : index
    %c0_91 = arith.constant 0 : index
    %c0_92 = arith.constant 0 : index
    %143 = vector.load %arg10[%c3_90, %c0_91, %c0_92] : memref<5x512x160xbf16, #tpu.memory_space<vmem>>, vector<1x512x160xbf16>
    %144 = vector.shape_cast %143 : vector<1x512x160xbf16> to vector<512x160xbf16>
    %145 = arith.truncf %112 : vector<8x512xf32> to vector<8x512xbf16>
    %cst_93 = arith.constant dense<0.000000e+00> : vector<8x160xf32>
    %146 = tpu.matmul %145, %144, %cst_93 {dimension_numbers = #tpu.dot_dimension_numbers<[1], [0], [0], [1], [0, 0, 1, 1], [], []>} : vector<8x512xbf16>, vector<512x160xbf16>, vector<8x160xf32> -> vector<8x160xf32>
    %c3_94 = arith.constant 3 : index
    %c0_95 = arith.constant 0 : index
    %c0_96 = arith.constant 0 : index
    %147 = vector.load %arg11[%c3_94, %c0_95, %c0_96] : memref<5x1x160xf32, #tpu.memory_space<vmem>>, vector<1x1x160xf32>
    %148 = vector.shape_cast %147 : vector<1x1x160xf32> to vector<1x160xf32>
    %149 = vector.broadcast %148 : vector<1x160xf32> to vector<8x160xf32>
    %150 = arith.addf %146, %149 : vector<8x160xf32>
    %cst_97 = arith.constant 0.000000e+00 : f32
    %151 = vector.broadcast %cst_97 : f32 to vector<8x160xf32>
    %152 = arith.maximumf %150, %151 : vector<8x160xf32>
    %c4_98 = arith.constant 4 : index
    %c0_99 = arith.constant 0 : index
    %c0_100 = arith.constant 0 : index
    %153 = vector.load %arg10[%c4_98, %c0_99, %c0_100] : memref<5x512x160xbf16, #tpu.memory_space<vmem>>, vector<1x512x160xbf16>
    %154 = vector.shape_cast %153 : vector<1x512x160xbf16> to vector<512x160xbf16>
    %155 = arith.truncf %112 : vector<8x512xf32> to vector<8x512xbf16>
    %cst_101 = arith.constant dense<0.000000e+00> : vector<8x160xf32>
    %156 = tpu.matmul %155, %154, %cst_101 {dimension_numbers = #tpu.dot_dimension_numbers<[1], [0], [0], [1], [0, 0, 1, 1], [], []>} : vector<8x512xbf16>, vector<512x160xbf16>, vector<8x160xf32> -> vector<8x160xf32>
    %c4_102 = arith.constant 4 : index
    %c0_103 = arith.constant 0 : index
    %c0_104 = arith.constant 0 : index
    %157 = vector.load %arg11[%c4_102, %c0_103, %c0_104] : memref<5x1x160xf32, #tpu.memory_space<vmem>>, vector<1x1x160xf32>
    %158 = vector.shape_cast %157 : vector<1x1x160xf32> to vector<1x160xf32>
    %159 = vector.broadcast %158 : vector<1x160xf32> to vector<8x160xf32>
    %160 = arith.addf %156, %159 : vector<8x160xf32>
    %cst_105 = arith.constant 0.000000e+00 : f32
    %161 = vector.broadcast %cst_105 : f32 to vector<8x160xf32>
    %162 = arith.maximumf %160, %161 : vector<8x160xf32>
    %163 = tpu.concatenate %122, %132, %142, %152, %162 in 0 : vector<8x160xf32>, vector<8x160xf32>, vector<8x160xf32>, vector<8x160xf32>, vector<8x160xf32> -> vector<40x160xf32>
    %c0_106 = arith.constant 0 : index
    %c0_107 = arith.constant 0 : index
    %c0_108 = arith.constant 0 : index
    %164 = vector.load %arg12[%c0_106, %c0_107, %c0_108] : memref<5x160x208xbf16, #tpu.memory_space<vmem>>, vector<1x160x208xbf16>
    %165 = vector.shape_cast %164 : vector<1x160x208xbf16> to vector<160x208xbf16>
    %166 = arith.truncf %163 : vector<40x160xf32> to vector<40x160xbf16>
    %cst_109 = arith.constant dense<0.000000e+00> : vector<40x208xf32>
    %167 = tpu.matmul %166, %165, %cst_109 {dimension_numbers = #tpu.dot_dimension_numbers<[1], [0], [0], [1], [0, 0, 1, 1], [], []>} : vector<40x160xbf16>, vector<160x208xbf16>, vector<40x208xf32> -> vector<40x208xf32>
    %c1_110 = arith.constant 1 : index
    %c0_111 = arith.constant 0 : index
    %c0_112 = arith.constant 0 : index
    %168 = vector.load %arg12[%c1_110, %c0_111, %c0_112] : memref<5x160x208xbf16, #tpu.memory_space<vmem>>, vector<1x160x208xbf16>
    %169 = vector.shape_cast %168 : vector<1x160x208xbf16> to vector<160x208xbf16>
    %170 = arith.truncf %163 : vector<40x160xf32> to vector<40x160xbf16>
    %cst_113 = arith.constant dense<0.000000e+00> : vector<40x208xf32>
    %171 = tpu.matmul %170, %169, %cst_113 {dimension_numbers = #tpu.dot_dimension_numbers<[1], [0], [0], [1], [0, 0, 1, 1], [], []>} : vector<40x160xbf16>, vector<160x208xbf16>, vector<40x208xf32> -> vector<40x208xf32>
    %c2_114 = arith.constant 2 : index
    %c0_115 = arith.constant 0 : index
    %c0_116 = arith.constant 0 : index
    %172 = vector.load %arg12[%c2_114, %c0_115, %c0_116] : memref<5x160x208xbf16, #tpu.memory_space<vmem>>, vector<1x160x208xbf16>
    %173 = vector.shape_cast %172 : vector<1x160x208xbf16> to vector<160x208xbf16>
    %174 = arith.truncf %163 : vector<40x160xf32> to vector<40x160xbf16>
    %cst_117 = arith.constant dense<0.000000e+00> : vector<40x208xf32>
    %175 = tpu.matmul %174, %173, %cst_117 {dimension_numbers = #tpu.dot_dimension_numbers<[1], [0], [0], [1], [0, 0, 1, 1], [], []>} : vector<40x160xbf16>, vector<160x208xbf16>, vector<40x208xf32> -> vector<40x208xf32>
    %c3_118 = arith.constant 3 : index
    %c0_119 = arith.constant 0 : index
    %c0_120 = arith.constant 0 : index
    %176 = vector.load %arg12[%c3_118, %c0_119, %c0_120] : memref<5x160x208xbf16, #tpu.memory_space<vmem>>, vector<1x160x208xbf16>
    %177 = vector.shape_cast %176 : vector<1x160x208xbf16> to vector<160x208xbf16>
    %178 = arith.truncf %163 : vector<40x160xf32> to vector<40x160xbf16>
    %cst_121 = arith.constant dense<0.000000e+00> : vector<40x208xf32>
    %179 = tpu.matmul %178, %177, %cst_121 {dimension_numbers = #tpu.dot_dimension_numbers<[1], [0], [0], [1], [0, 0, 1, 1], [], []>} : vector<40x160xbf16>, vector<160x208xbf16>, vector<40x208xf32> -> vector<40x208xf32>
    %c4_122 = arith.constant 4 : index
    %c0_123 = arith.constant 0 : index
    %c0_124 = arith.constant 0 : index
    %180 = vector.load %arg12[%c4_122, %c0_123, %c0_124] : memref<5x160x208xbf16, #tpu.memory_space<vmem>>, vector<1x160x208xbf16>
    %181 = vector.shape_cast %180 : vector<1x160x208xbf16> to vector<160x208xbf16>
    %182 = arith.truncf %163 : vector<40x160xf32> to vector<40x160xbf16>
    %cst_125 = arith.constant dense<0.000000e+00> : vector<40x208xf32>
    %183 = tpu.matmul %182, %181, %cst_125 {dimension_numbers = #tpu.dot_dimension_numbers<[1], [0], [0], [1], [0, 0, 1, 1], [], []>} : vector<40x160xbf16>, vector<160x208xbf16>, vector<40x208xf32> -> vector<40x208xf32>
    %184 = vector.extract_strided_slice %167 {offsets = [0, 0], sizes = [8, 208], strides = [1, 1]} : vector<40x208xf32> to vector<8x208xf32>
    %185 = vector.extract_strided_slice %171 {offsets = [0, 0], sizes = [8, 208], strides = [1, 1]} : vector<40x208xf32> to vector<8x208xf32>
    %186 = vector.extract_strided_slice %167 {offsets = [8, 0], sizes = [8, 208], strides = [1, 1]} : vector<40x208xf32> to vector<8x208xf32>
    %187 = vector.extract_strided_slice %175 {offsets = [0, 0], sizes = [8, 208], strides = [1, 1]} : vector<40x208xf32> to vector<8x208xf32>
    %188 = arith.addf %186, %187 : vector<8x208xf32>
    %189 = vector.extract_strided_slice %171 {offsets = [8, 0], sizes = [8, 208], strides = [1, 1]} : vector<40x208xf32> to vector<8x208xf32>
    %190 = vector.extract_strided_slice %179 {offsets = [0, 0], sizes = [8, 208], strides = [1, 1]} : vector<40x208xf32> to vector<8x208xf32>
    %191 = arith.addf %189, %190 : vector<8x208xf32>
    %192 = vector.extract_strided_slice %167 {offsets = [16, 0], sizes = [8, 208], strides = [1, 1]} : vector<40x208xf32> to vector<8x208xf32>
    %193 = vector.extract_strided_slice %175 {offsets = [8, 0], sizes = [8, 208], strides = [1, 1]} : vector<40x208xf32> to vector<8x208xf32>
    %194 = arith.addf %192, %193 : vector<8x208xf32>
    %195 = vector.extract_strided_slice %183 {offsets = [0, 0], sizes = [8, 208], strides = [1, 1]} : vector<40x208xf32> to vector<8x208xf32>
    %196 = arith.addf %194, %195 : vector<8x208xf32>
    %197 = vector.extract_strided_slice %171 {offsets = [16, 0], sizes = [8, 208], strides = [1, 1]} : vector<40x208xf32> to vector<8x208xf32>
    %198 = vector.extract_strided_slice %179 {offsets = [8, 0], sizes = [8, 208], strides = [1, 1]} : vector<40x208xf32> to vector<8x208xf32>
    %199 = arith.addf %197, %198 : vector<8x208xf32>
    %200 = vector.extract_strided_slice %167 {offsets = [24, 0], sizes = [8, 208], strides = [1, 1]} : vector<40x208xf32> to vector<8x208xf32>
    %201 = vector.extract_strided_slice %175 {offsets = [16, 0], sizes = [8, 208], strides = [1, 1]} : vector<40x208xf32> to vector<8x208xf32>
    %202 = arith.addf %200, %201 : vector<8x208xf32>
    %203 = vector.extract_strided_slice %183 {offsets = [8, 0], sizes = [8, 208], strides = [1, 1]} : vector<40x208xf32> to vector<8x208xf32>
    %204 = arith.addf %202, %203 : vector<8x208xf32>
    %205 = vector.extract_strided_slice %171 {offsets = [24, 0], sizes = [8, 208], strides = [1, 1]} : vector<40x208xf32> to vector<8x208xf32>
    %206 = vector.extract_strided_slice %179 {offsets = [16, 0], sizes = [8, 208], strides = [1, 1]} : vector<40x208xf32> to vector<8x208xf32>
    %207 = arith.addf %205, %206 : vector<8x208xf32>
    %208 = vector.extract_strided_slice %167 {offsets = [32, 0], sizes = [8, 208], strides = [1, 1]} : vector<40x208xf32> to vector<8x208xf32>
    %209 = vector.extract_strided_slice %175 {offsets = [24, 0], sizes = [8, 208], strides = [1, 1]} : vector<40x208xf32> to vector<8x208xf32>
    %210 = arith.addf %208, %209 : vector<8x208xf32>
    %211 = vector.extract_strided_slice %183 {offsets = [16, 0], sizes = [8, 208], strides = [1, 1]} : vector<40x208xf32> to vector<8x208xf32>
    %212 = arith.addf %210, %211 : vector<8x208xf32>
    %213 = vector.extract_strided_slice %171 {offsets = [32, 0], sizes = [8, 208], strides = [1, 1]} : vector<40x208xf32> to vector<8x208xf32>
    %214 = vector.extract_strided_slice %179 {offsets = [24, 0], sizes = [8, 208], strides = [1, 1]} : vector<40x208xf32> to vector<8x208xf32>
    %215 = arith.addf %213, %214 : vector<8x208xf32>
    %216 = vector.extract_strided_slice %175 {offsets = [32, 0], sizes = [8, 208], strides = [1, 1]} : vector<40x208xf32> to vector<8x208xf32>
    %217 = vector.extract_strided_slice %183 {offsets = [24, 0], sizes = [8, 208], strides = [1, 1]} : vector<40x208xf32> to vector<8x208xf32>
    %218 = arith.addf %216, %217 : vector<8x208xf32>
    %219 = vector.extract_strided_slice %179 {offsets = [32, 0], sizes = [8, 208], strides = [1, 1]} : vector<40x208xf32> to vector<8x208xf32>
    %220 = vector.extract_strided_slice %183 {offsets = [32, 0], sizes = [8, 208], strides = [1, 1]} : vector<40x208xf32> to vector<8x208xf32>
    %221 = tpu.concatenate %184, %185, %188, %191, %196, %199, %204, %207, %212, %215, %218, %219, %220 in 0 : vector<8x208xf32>, vector<8x208xf32>, vector<8x208xf32>, vector<8x208xf32>, vector<8x208xf32>, vector<8x208xf32>, vector<8x208xf32>, vector<8x208xf32>, vector<8x208xf32>, vector<8x208xf32>, vector<8x208xf32>, vector<8x208xf32>, vector<8x208xf32> -> vector<104x208xf32>
    %c0_126 = arith.constant 0 : index
    %c0_127 = arith.constant 0 : index
    %222 = vector.load %arg13[%c0_126, %c0_127] : memref<1x208xf32, #tpu.memory_space<vmem>>, vector<1x208xf32>
    %223 = vector.broadcast %222 : vector<1x208xf32> to vector<104x208xf32>
    %224 = arith.addf %221, %223 : vector<104x208xf32>
    %cst_128 = arith.constant 0.000000e+00 : f32
    %225 = vector.broadcast %cst_128 : f32 to vector<104x208xf32>
    %226 = arith.maximumf %224, %225 : vector<104x208xf32>
    %c0_129 = arith.constant 0 : index
    %c0_130 = arith.constant 0 : index
    %c0_131 = arith.constant 0 : index
    %227 = vector.load %arg14[%c0_129, %c0_130, %c0_131] : memref<4x208x28xbf16, #tpu.memory_space<vmem>>, vector<1x208x28xbf16>
    %228 = vector.shape_cast %227 : vector<1x208x28xbf16> to vector<208x28xbf16>
    %229 = arith.truncf %226 : vector<104x208xf32> to vector<104x208xbf16>
    %cst_132 = arith.constant dense<0.000000e+00> : vector<104x28xf32>
    %230 = tpu.matmul %229, %228, %cst_132 {dimension_numbers = #tpu.dot_dimension_numbers<[1], [0], [0], [1], [0, 0, 1, 1], [], []>} : vector<104x208xbf16>, vector<208x28xbf16>, vector<104x28xf32> -> vector<104x28xf32>
    %c1_133 = arith.constant 1 : index
    %c0_134 = arith.constant 0 : index
    %c0_135 = arith.constant 0 : index
    %231 = vector.load %arg14[%c1_133, %c0_134, %c0_135] : memref<4x208x28xbf16, #tpu.memory_space<vmem>>, vector<1x208x28xbf16>
    %232 = vector.shape_cast %231 : vector<1x208x28xbf16> to vector<208x28xbf16>
    %233 = arith.truncf %226 : vector<104x208xf32> to vector<104x208xbf16>
    %cst_136 = arith.constant dense<0.000000e+00> : vector<104x28xf32>
    %234 = tpu.matmul %233, %232, %cst_136 {dimension_numbers = #tpu.dot_dimension_numbers<[1], [0], [0], [1], [0, 0, 1, 1], [], []>} : vector<104x208xbf16>, vector<208x28xbf16>, vector<104x28xf32> -> vector<104x28xf32>
    %c2_137 = arith.constant 2 : index
    %c0_138 = arith.constant 0 : index
    %c0_139 = arith.constant 0 : index
    %235 = vector.load %arg14[%c2_137, %c0_138, %c0_139] : memref<4x208x28xbf16, #tpu.memory_space<vmem>>, vector<1x208x28xbf16>
    %236 = vector.shape_cast %235 : vector<1x208x28xbf16> to vector<208x28xbf16>
    %237 = arith.truncf %226 : vector<104x208xf32> to vector<104x208xbf16>
    %cst_140 = arith.constant dense<0.000000e+00> : vector<104x28xf32>
    %238 = tpu.matmul %237, %236, %cst_140 {dimension_numbers = #tpu.dot_dimension_numbers<[1], [0], [0], [1], [0, 0, 1, 1], [], []>} : vector<104x208xbf16>, vector<208x28xbf16>, vector<104x28xf32> -> vector<104x28xf32>
    %c3_141 = arith.constant 3 : index
    %c0_142 = arith.constant 0 : index
    %c0_143 = arith.constant 0 : index
    %239 = vector.load %arg14[%c3_141, %c0_142, %c0_143] : memref<4x208x28xbf16, #tpu.memory_space<vmem>>, vector<1x208x28xbf16>
    %240 = vector.shape_cast %239 : vector<1x208x28xbf16> to vector<208x28xbf16>
    %241 = arith.truncf %226 : vector<104x208xf32> to vector<104x208xbf16>
    %cst_144 = arith.constant dense<0.000000e+00> : vector<104x28xf32>
    %242 = tpu.matmul %241, %240, %cst_144 {dimension_numbers = #tpu.dot_dimension_numbers<[1], [0], [0], [1], [0, 0, 1, 1], [], []>} : vector<104x208xbf16>, vector<208x28xbf16>, vector<104x28xf32> -> vector<104x28xf32>
    %243 = vector.extract_strided_slice %230 {offsets = [0, 0], sizes = [8, 28], strides = [1, 1]} : vector<104x28xf32> to vector<8x28xf32>
    %244 = vector.extract_strided_slice %234 {offsets = [0, 0], sizes = [8, 28], strides = [1, 1]} : vector<104x28xf32> to vector<8x28xf32>
    %245 = vector.extract_strided_slice %230 {offsets = [8, 0], sizes = [8, 28], strides = [1, 1]} : vector<104x28xf32> to vector<8x28xf32>
    %246 = vector.extract_strided_slice %238 {offsets = [0, 0], sizes = [8, 28], strides = [1, 1]} : vector<104x28xf32> to vector<8x28xf32>
    %247 = arith.addf %245, %246 : vector<8x28xf32>
    %248 = vector.extract_strided_slice %234 {offsets = [8, 0], sizes = [8, 28], strides = [1, 1]} : vector<104x28xf32> to vector<8x28xf32>
    %249 = vector.extract_strided_slice %242 {offsets = [0, 0], sizes = [8, 28], strides = [1, 1]} : vector<104x28xf32> to vector<8x28xf32>
    %250 = arith.addf %248, %249 : vector<8x28xf32>
    %251 = vector.extract_strided_slice %230 {offsets = [16, 0], sizes = [8, 28], strides = [1, 1]} : vector<104x28xf32> to vector<8x28xf32>
    %252 = vector.extract_strided_slice %238 {offsets = [8, 0], sizes = [8, 28], strides = [1, 1]} : vector<104x28xf32> to vector<8x28xf32>
    %253 = arith.addf %251, %252 : vector<8x28xf32>
    %254 = vector.extract_strided_slice %234 {offsets = [16, 0], sizes = [8, 28], strides = [1, 1]} : vector<104x28xf32> to vector<8x28xf32>
    %255 = vector.extract_strided_slice %242 {offsets = [8, 0], sizes = [8, 28], strides = [1, 1]} : vector<104x28xf32> to vector<8x28xf32>
    %256 = arith.addf %254, %255 : vector<8x28xf32>
    %257 = vector.extract_strided_slice %230 {offsets = [24, 0], sizes = [8, 28], strides = [1, 1]} : vector<104x28xf32> to vector<8x28xf32>
    %258 = vector.extract_strided_slice %238 {offsets = [16, 0], sizes = [8, 28], strides = [1, 1]} : vector<104x28xf32> to vector<8x28xf32>
    %259 = arith.addf %257, %258 : vector<8x28xf32>
    %260 = vector.extract_strided_slice %234 {offsets = [24, 0], sizes = [8, 28], strides = [1, 1]} : vector<104x28xf32> to vector<8x28xf32>
    %261 = vector.extract_strided_slice %242 {offsets = [16, 0], sizes = [8, 28], strides = [1, 1]} : vector<104x28xf32> to vector<8x28xf32>
    %262 = arith.addf %260, %261 : vector<8x28xf32>
    %263 = vector.extract_strided_slice %230 {offsets = [32, 0], sizes = [8, 28], strides = [1, 1]} : vector<104x28xf32> to vector<8x28xf32>
    %264 = vector.extract_strided_slice %238 {offsets = [24, 0], sizes = [8, 28], strides = [1, 1]} : vector<104x28xf32> to vector<8x28xf32>
    %265 = arith.addf %263, %264 : vector<8x28xf32>
    %266 = vector.extract_strided_slice %234 {offsets = [32, 0], sizes = [8, 28], strides = [1, 1]} : vector<104x28xf32> to vector<8x28xf32>
    %267 = vector.extract_strided_slice %242 {offsets = [24, 0], sizes = [8, 28], strides = [1, 1]} : vector<104x28xf32> to vector<8x28xf32>
    %268 = arith.addf %266, %267 : vector<8x28xf32>
    %269 = vector.extract_strided_slice %230 {offsets = [40, 0], sizes = [8, 28], strides = [1, 1]} : vector<104x28xf32> to vector<8x28xf32>
    %270 = vector.extract_strided_slice %238 {offsets = [32, 0], sizes = [8, 28], strides = [1, 1]} : vector<104x28xf32> to vector<8x28xf32>
    %271 = arith.addf %269, %270 : vector<8x28xf32>
    %272 = vector.extract_strided_slice %234 {offsets = [40, 0], sizes = [8, 28], strides = [1, 1]} : vector<104x28xf32> to vector<8x28xf32>
    %273 = vector.extract_strided_slice %242 {offsets = [32, 0], sizes = [8, 28], strides = [1, 1]} : vector<104x28xf32> to vector<8x28xf32>
    %274 = arith.addf %272, %273 : vector<8x28xf32>
    %275 = vector.extract_strided_slice %230 {offsets = [48, 0], sizes = [8, 28], strides = [1, 1]} : vector<104x28xf32> to vector<8x28xf32>
    %276 = vector.extract_strided_slice %238 {offsets = [40, 0], sizes = [8, 28], strides = [1, 1]} : vector<104x28xf32> to vector<8x28xf32>
    %277 = arith.addf %275, %276 : vector<8x28xf32>
    %278 = vector.extract_strided_slice %234 {offsets = [48, 0], sizes = [8, 28], strides = [1, 1]} : vector<104x28xf32> to vector<8x28xf32>
    %279 = vector.extract_strided_slice %242 {offsets = [40, 0], sizes = [8, 28], strides = [1, 1]} : vector<104x28xf32> to vector<8x28xf32>
    %280 = arith.addf %278, %279 : vector<8x28xf32>
    %281 = vector.extract_strided_slice %230 {offsets = [56, 0], sizes = [8, 28], strides = [1, 1]} : vector<104x28xf32> to vector<8x28xf32>
    %282 = vector.extract_strided_slice %238 {offsets = [48, 0], sizes = [8, 28], strides = [1, 1]} : vector<104x28xf32> to vector<8x28xf32>
    %283 = arith.addf %281, %282 : vector<8x28xf32>
    %284 = vector.extract_strided_slice %234 {offsets = [56, 0], sizes = [8, 28], strides = [1, 1]} : vector<104x28xf32> to vector<8x28xf32>
    %285 = vector.extract_strided_slice %242 {offsets = [48, 0], sizes = [8, 28], strides = [1, 1]} : vector<104x28xf32> to vector<8x28xf32>
    %286 = arith.addf %284, %285 : vector<8x28xf32>
    %287 = vector.extract_strided_slice %230 {offsets = [64, 0], sizes = [8, 28], strides = [1, 1]} : vector<104x28xf32> to vector<8x28xf32>
    %288 = vector.extract_strided_slice %238 {offsets = [56, 0], sizes = [8, 28], strides = [1, 1]} : vector<104x28xf32> to vector<8x28xf32>
    %289 = arith.addf %287, %288 : vector<8x28xf32>
    %290 = vector.extract_strided_slice %234 {offsets = [64, 0], sizes = [8, 28], strides = [1, 1]} : vector<104x28xf32> to vector<8x28xf32>
    %291 = vector.extract_strided_slice %242 {offsets = [56, 0], sizes = [8, 28], strides = [1, 1]} : vector<104x28xf32> to vector<8x28xf32>
    %292 = arith.addf %290, %291 : vector<8x28xf32>
    %293 = vector.extract_strided_slice %230 {offsets = [72, 0], sizes = [8, 28], strides = [1, 1]} : vector<104x28xf32> to vector<8x28xf32>
    %294 = vector.extract_strided_slice %238 {offsets = [64, 0], sizes = [8, 28], strides = [1, 1]} : vector<104x28xf32> to vector<8x28xf32>
    %295 = arith.addf %293, %294 : vector<8x28xf32>
    %296 = vector.extract_strided_slice %234 {offsets = [72, 0], sizes = [8, 28], strides = [1, 1]} : vector<104x28xf32> to vector<8x28xf32>
    %297 = vector.extract_strided_slice %242 {offsets = [64, 0], sizes = [8, 28], strides = [1, 1]} : vector<104x28xf32> to vector<8x28xf32>
    %298 = arith.addf %296, %297 : vector<8x28xf32>
    %299 = vector.extract_strided_slice %230 {offsets = [80, 0], sizes = [8, 28], strides = [1, 1]} : vector<104x28xf32> to vector<8x28xf32>
    %300 = vector.extract_strided_slice %238 {offsets = [72, 0], sizes = [8, 28], strides = [1, 1]} : vector<104x28xf32> to vector<8x28xf32>
    %301 = arith.addf %299, %300 : vector<8x28xf32>
    %302 = vector.extract_strided_slice %234 {offsets = [80, 0], sizes = [8, 28], strides = [1, 1]} : vector<104x28xf32> to vector<8x28xf32>
    %303 = vector.extract_strided_slice %242 {offsets = [72, 0], sizes = [8, 28], strides = [1, 1]} : vector<104x28xf32> to vector<8x28xf32>
    %304 = arith.addf %302, %303 : vector<8x28xf32>
    %305 = vector.extract_strided_slice %230 {offsets = [88, 0], sizes = [8, 28], strides = [1, 1]} : vector<104x28xf32> to vector<8x28xf32>
    %306 = vector.extract_strided_slice %238 {offsets = [80, 0], sizes = [8, 28], strides = [1, 1]} : vector<104x28xf32> to vector<8x28xf32>
    %307 = arith.addf %305, %306 : vector<8x28xf32>
    %308 = vector.extract_strided_slice %234 {offsets = [88, 0], sizes = [8, 28], strides = [1, 1]} : vector<104x28xf32> to vector<8x28xf32>
    %309 = vector.extract_strided_slice %242 {offsets = [80, 0], sizes = [8, 28], strides = [1, 1]} : vector<104x28xf32> to vector<8x28xf32>
    %310 = arith.addf %308, %309 : vector<8x28xf32>
    %311 = vector.extract_strided_slice %230 {offsets = [96, 0], sizes = [8, 28], strides = [1, 1]} : vector<104x28xf32> to vector<8x28xf32>
    %312 = vector.extract_strided_slice %238 {offsets = [88, 0], sizes = [8, 28], strides = [1, 1]} : vector<104x28xf32> to vector<8x28xf32>
    %313 = arith.addf %311, %312 : vector<8x28xf32>
    %314 = vector.extract_strided_slice %234 {offsets = [96, 0], sizes = [8, 28], strides = [1, 1]} : vector<104x28xf32> to vector<8x28xf32>
    %315 = vector.extract_strided_slice %242 {offsets = [88, 0], sizes = [8, 28], strides = [1, 1]} : vector<104x28xf32> to vector<8x28xf32>
    %316 = arith.addf %314, %315 : vector<8x28xf32>
    %317 = vector.extract_strided_slice %238 {offsets = [96, 0], sizes = [8, 28], strides = [1, 1]} : vector<104x28xf32> to vector<8x28xf32>
    %318 = vector.extract_strided_slice %242 {offsets = [96, 0], sizes = [8, 28], strides = [1, 1]} : vector<104x28xf32> to vector<8x28xf32>
    %319 = tpu.concatenate %243, %244, %247, %250, %253, %256, %259, %262, %265, %268, %271, %274, %277, %280, %283, %286 in 0 : vector<8x28xf32>, vector<8x28xf32>, vector<8x28xf32>, vector<8x28xf32>, vector<8x28xf32>, vector<8x28xf32>, vector<8x28xf32>, vector<8x28xf32>, vector<8x28xf32>, vector<8x28xf32>, vector<8x28xf32>, vector<8x28xf32>, vector<8x28xf32>, vector<8x28xf32>, vector<8x28xf32>, vector<8x28xf32> -> vector<128x28xf32>
    %320 = tpu.concatenate %289, %292, %295, %298, %301, %304, %307, %310, %313, %316, %317, %318 in 0 : vector<8x28xf32>, vector<8x28xf32>, vector<8x28xf32>, vector<8x28xf32>, vector<8x28xf32>, vector<8x28xf32>, vector<8x28xf32>, vector<8x28xf32>, vector<8x28xf32>, vector<8x28xf32>, vector<8x28xf32>, vector<8x28xf32> -> vector<96x28xf32>
    %321 = tpu.concatenate %319, %320 in 0 : vector<128x28xf32>, vector<96x28xf32> -> vector<224x28xf32>
    %c0_145 = arith.constant 0 : index
    %c0_146 = arith.constant 0 : index
    %322 = vector.load %arg15[%c0_145, %c0_146] : memref<1x1xf32, #tpu.memory_space<vmem>>, vector<1x1xf32>
    %323 = vector.broadcast %322 : vector<1x1xf32> to vector<224x28xf32>
    %324 = arith.addf %321, %323 : vector<224x28xf32>
    %cst_147 = arith.constant 0.000000e+00 : f32
    %325 = vector.broadcast %cst_147 : f32 to vector<224x28xf32>
    %326 = arith.maximumf %324, %325 : vector<224x28xf32>
    %327 = vector.shape_cast %326 : vector<224x28xf32> to vector<28x8x28xf32>
    %c0_148 = arith.constant 0 : index
    %c0_149 = arith.constant 0 : index
    %c0_150 = arith.constant 0 : index
    %328 = vector.load %arg16[%c0_148, %c0_149, %c0_150] : memref<28x8x28xf32, #tpu.memory_space<vmem>>, vector<28x8x28xf32>
    tpu.vector_store %arg16[%c0_148, %c0_149, %c0_150], %327 {strides = array<i32>} : memref<28x8x28xf32, #tpu.memory_space<vmem>>, vector<28x8x28xf32>,
    return
  }
  func.func @transform_0(%arg0: i32) -> (i32, i32, i32) {
    %c0_i32 = arith.constant 0 : i32
    %c0_i32_0 = arith.constant 0 : i32
    %c0_i32_1 = arith.constant 0 : i32
    return %c0_i32, %arg0, %c0_i32_0 : i32, i32, i32
  }
  func.func @transform_1(%arg0: i32) -> (i32, i32, i32) {
    %c0_i32 = arith.constant 0 : i32
    %c0_i32_0 = arith.constant 0 : i32
    %c0_i32_1 = arith.constant 0 : i32
    %c0_i32_2 = arith.constant 0 : i32
    return %c0_i32, %c0_i32_0, %c0_i32_1 : i32, i32, i32
  }
  func.func @transform_2(%arg0: i32) -> (i32, i32) {
    %c0_i32 = arith.constant 0 : i32
    %c0_i32_0 = arith.constant 0 : i32
    %c0_i32_1 = arith.constant 0 : i32
    return %c0_i32, %c0_i32_0 : i32, i32
  }
  func.func @transform_3(%arg0: i32) -> (i32, i32, i32) {
    %c0_i32 = arith.constant 0 : i32
    %c0_i32_0 = arith.constant 0 : i32
    %c0_i32_1 = arith.constant 0 : i32
    %c0_i32_2 = arith.constant 0 : i32
    return %c0_i32, %c0_i32_0, %c0_i32_1 : i32, i32, i32
  }
  func.func @transform_4(%arg0: i32) -> (i32, i32, i32) {
    %c0_i32 = arith.constant 0 : i32
    %c0_i32_0 = arith.constant 0 : i32
    %c0_i32_1 = arith.constant 0 : i32
    %c0_i32_2 = arith.constant 0 : i32
    return %c0_i32, %c0_i32_0, %c0_i32_1 : i32, i32, i32
  }
  func.func @transform_5(%arg0: i32) -> (i32, i32) {
    %c0_i32 = arith.constant 0 : i32
    %c0_i32_0 = arith.constant 0 : i32
    %c0_i32_1 = arith.constant 0 : i32
    return %c0_i32, %c0_i32_0 : i32, i32
  }
  func.func @transform_6(%arg0: i32) -> (i32, i32, i32) {
    %c0_i32 = arith.constant 0 : i32
    %c0_i32_0 = arith.constant 0 : i32
    %c0_i32_1 = arith.constant 0 : i32
    %c0_i32_2 = arith.constant 0 : i32
    return %c0_i32, %c0_i32_0, %c0_i32_1 : i32, i32, i32
  }
  func.func @transform_7(%arg0: i32) -> (i32, i32, i32) {
    %c0_i32 = arith.constant 0 : i32
    %c0_i32_0 = arith.constant 0 : i32
    %c0_i32_1 = arith.constant 0 : i32
    %c0_i32_2 = arith.constant 0 : i32
    return %c0_i32, %c0_i32_0, %c0_i32_1 : i32, i32, i32
  }
  func.func @transform_8(%arg0: i32) -> (i32, i32) {
    %c0_i32 = arith.constant 0 : i32
    %c0_i32_0 = arith.constant 0 : i32
    %c0_i32_1 = arith.constant 0 : i32
    return %c0_i32, %c0_i32_0 : i32, i32
  }
  func.func @transform_9(%arg0: i32) -> (i32, i32, i32) {
    %c0_i32 = arith.constant 0 : i32
    %c0_i32_0 = arith.constant 0 : i32
    %c0_i32_1 = arith.constant 0 : i32
    %c0_i32_2 = arith.constant 0 : i32
    return %c0_i32, %c0_i32_0, %c0_i32_1 : i32, i32, i32
  }
  func.func @transform_10(%arg0: i32) -> (i32, i32, i32) {
    %c0_i32 = arith.constant 0 : i32
    %c0_i32_0 = arith.constant 0 : i32
    %c0_i32_1 = arith.constant 0 : i32
    %c0_i32_2 = arith.constant 0 : i32
    return %c0_i32, %c0_i32_0, %c0_i32_1 : i32, i32, i32
  }
  func.func @transform_11(%arg0: i32) -> (i32, i32, i32) {
    %c0_i32 = arith.constant 0 : i32
    %c0_i32_0 = arith.constant 0 : i32
    %c0_i32_1 = arith.constant 0 : i32
    %c0_i32_2 = arith.constant 0 : i32
    return %c0_i32, %c0_i32_0, %c0_i32_1 : i32, i32, i32
  }
  func.func @transform_12(%arg0: i32) -> (i32, i32) {
    %c0_i32 = arith.constant 0 : i32
    %c0_i32_0 = arith.constant 0 : i32
    %c0_i32_1 = arith.constant 0 : i32
    return %c0_i32, %c0_i32_0 : i32, i32
  }
  func.func @transform_13(%arg0: i32) -> (i32, i32, i32) {
    %c0_i32 = arith.constant 0 : i32
    %c0_i32_0 = arith.constant 0 : i32
    %c0_i32_1 = arith.constant 0 : i32
    %c0_i32_2 = arith.constant 0 : i32
    return %c0_i32, %c0_i32_0, %c0_i32_1 : i32, i32, i32
  }
  func.func @transform_14(%arg0: i32) -> (i32, i32) {
    %c0_i32 = arith.constant 0 : i32
    %c0_i32_0 = arith.constant 0 : i32
    %c0_i32_1 = arith.constant 0 : i32
    return %c0_i32, %c0_i32_0 : i32, i32
  }
  func.func @transform_15(%arg0: i32) -> (i32, i32, i32) {
    %c0_i32 = arith.constant 0 : i32
    %c0_i32_0 = arith.constant 0 : i32
    %c0_i32_1 = arith.constant 0 : i32
    return %c0_i32, %arg0, %c0_i32_0 : i32, i32, i32
  }
}

</mosaic_0001>

<llo_original>
// kernel: autoencoder_forward.1
$region0: #{autoencoder_forward.1}
  #allocation0 [shape = 'u32[]', space=smem, size = 0x4, offset = 0x4, fixed_abs, tag = 'smem constant byte address 0x4 - core index']
  #allocation1 [shape = 'u32[144,128]{1,0:T(1,128)}', space=vmem, size = 0x12000, scoped, tag = 'internal scratch']
  #allocation2 [shape = 'f32[1,1]{1,0:T(1,128)S(1)}', space=vmem, size = 0x200, scoped, tag = 'scoped memory for autoencoder_forward.1']
  %s0 = inlined_call_operand.vmem [shape: f32[28,8,28], index: 0, kind: input, shape index: {}]
  %s1 = inlined_call_operand.vmem [shape: bf16[3,28,416], index: 1, kind: input, shape index: {}]
  %s2 = inlined_call_operand.vmem [shape: f32[1,416], index: 2, kind: input, shape index: {}]
  %s3 = inlined_call_operand.vmem [shape: bf16[2,416,208], index: 3, kind: input, shape index: {}]
  %s4 = inlined_call_operand.vmem [shape: bf16[3,208,352], index: 4, kind: input, shape index: {}]
  %s5 = inlined_call_operand.vmem [shape: f32[1,352], index: 5, kind: input, shape index: {}]
  %s6 = inlined_call_operand.vmem [shape: bf16[2,352,160], index: 6, kind: input, shape index: {}]
  %s7 = inlined_call_operand.vmem [shape: bf16[5,160,512], index: 7, kind: input, shape index: {}]
  %s8 = inlined_call_operand.vmem [shape: f32[1,512], index: 8, kind: input, shape index: {}]
  %s9 = inlined_call_operand.vmem [shape: bf16[5,512,160], index: 9, kind: input, shape index: {}]
  %s10 = inlined_call_operand.vmem [shape: f32[5,1,160], index: 10, kind: input, shape index: {}]
  %s11 = inlined_call_operand.vmem [shape: bf16[5,160,208], index: 11, kind: input, shape index: {}]
  %s12 = inlined_call_operand.vmem [shape: f32[1,208], index: 12, kind: input, shape index: {}]
  %s13 = inlined_call_operand.vmem [shape: bf16[4,208,28], index: 13, kind: input, shape index: {}]
  %s14 = inlined_call_operand.<no memory space> [shape: f32[1,1], index: 14, kind: input, shape index: {}]
  %s15 = inlined_call_operand.vmem [shape: f32[28,8,28], index: 15, kind: output, shape index: {}]
  %s16 = sld [smem:[#allocation0]]
  $region70: #{autoencoder_forward.1} parent=0
    _
  %s18 = ssub.s32 1, %s16
  %s19 = scalar_select 0, %s18, %s16
  %v20 = vstv %s14
  %21 = vst [vmem:[#allocation2] sm:$0x1] %v20
  // Predicated region
  $region2: #{autoencoder_forward.1} parent=0 // pred_check
    _
  $region3: #{autoencoder_forward.1} parent=0 // pred_check_branch
    %23 = sbr.rel (0) target = $region5
  $region4: #{autoencoder_forward.1} parent=0 // pred_region
    _
  $region5: #{autoencoder_forward.1} parent=0 // pred_fallthru
    _
  // Predicated region
  $region6: #{autoencoder_forward.1} parent=0 // pred_check
    _
  $region7: #{autoencoder_forward.1} parent=0 // pred_check_branch
    %25 = sbr.rel (0) target = $region9
  $region8: #{autoencoder_forward.1} parent=0 // pred_region
    _
  $region9: #{autoencoder_forward.1} parent=0 // pred_fallthru
    _
  // Predicated region
  $region10: #{autoencoder_forward.1} parent=0 // pred_check
    _
  $region11: #{autoencoder_forward.1} parent=0 // pred_check_branch
    %27 = sbr.rel (0) target = $region13
  $region12: #{autoencoder_forward.1} parent=0 // pred_region
    _
  $region13: #{autoencoder_forward.1} parent=0 // pred_fallthru
    _
  // Predicated region
  $region14: #{autoencoder_forward.1} parent=0 // pred_check
    _
  $region15: #{autoencoder_forward.1} parent=0 // pred_check_branch
    %29 = sbr.rel (0) target = $region17
  $region16: #{autoencoder_forward.1} parent=0 // pred_region
    _
  $region17: #{autoencoder_forward.1} parent=0 // pred_fallthru
    _
  // Predicated region
  $region18: #{autoencoder_forward.1} parent=0 // pred_check
    _
  $region19: #{autoencoder_forward.1} parent=0 // pred_check_branch
    %31 = sbr.rel (0) target = $region21
  $region20: #{autoencoder_forward.1} parent=0 // pred_region
    _
  $region21: #{autoencoder_forward.1} parent=0 // pred_fallthru
    _
  // Predicated region
  $region22: #{autoencoder_forward.1} parent=0 // pred_check
    _
  $region23: #{autoencoder_forward.1} parent=0 // pred_check_branch
    %33 = sbr.rel (0) target = $region25
  $region24: #{autoencoder_forward.1} parent=0 // pred_region
    _
  $region25: #{autoencoder_forward.1} parent=0 // pred_fallthru
    _
  // Predicated region
  $region26: #{autoencoder_forward.1} parent=0 // pred_check
    _
  $region27: #{autoencoder_forward.1} parent=0 // pred_check_branch
    %35 = sbr.rel (0) target = $region29
  $region28: #{autoencoder_forward.1} parent=0 // pred_region
    _
  $region29: #{autoencoder_forward.1} parent=0 // pred_fallthru
    _
  // Predicated region
  $region30: #{autoencoder_forward.1} parent=0 // pred_check
    _
  $region31: #{autoencoder_forward.1} parent=0 // pred_check_branch
    %37 = sbr.rel (0) target = $region33
  $region32: #{autoencoder_forward.1} parent=0 // pred_region
    _
  $region33: #{autoencoder_forward.1} parent=0 // pred_fallthru
    _
  // Predicated region
  $region34: #{autoencoder_forward.1} parent=0 // pred_check
    _
  $region35: #{autoencoder_forward.1} parent=0 // pred_check_branch
    %39 = sbr.rel (0) target = $region37
  $region36: #{autoencoder_forward.1} parent=0 // pred_region
    _
  $region37: #{autoencoder_forward.1} parent=0 // pred_fallthru
    _
  // Predicated region
  $region38: #{autoencoder_forward.1} parent=0 // pred_check
    _
  $region39: #{autoencoder_forward.1} parent=0 // pred_check_branch
    %41 = sbr.rel (0) target = $region41
  $region40: #{autoencoder_forward.1} parent=0 // pred_region
    _
  $region41: #{autoencoder_forward.1} parent=0 // pred_fallthru
    _
  // Predicated region
  $region42: #{autoencoder_forward.1} parent=0 // pred_check
    _
  $region43: #{autoencoder_forward.1} parent=0 // pred_check_branch
    %43 = sbr.rel (0) target = $region45
  $region44: #{autoencoder_forward.1} parent=0 // pred_region
    _
  $region45: #{autoencoder_forward.1} parent=0 // pred_fallthru
    _
  // Predicated region
  $region46: #{autoencoder_forward.1} parent=0 // pred_check
    _
  $region47: #{autoencoder_forward.1} parent=0 // pred_check_branch
    %45 = sbr.rel (0) target = $region49
  $region48: #{autoencoder_forward.1} parent=0 // pred_region
    _
  $region49: #{autoencoder_forward.1} parent=0 // pred_fallthru
    _
  // Predicated region
  $region50: #{autoencoder_forward.1} parent=0 // pred_check
    _
  $region51: #{autoencoder_forward.1} parent=0 // pred_check_branch
    %47 = sbr.rel (0) target = $region53
  $region52: #{autoencoder_forward.1} parent=0 // pred_region
    _
  $region53: #{autoencoder_forward.1} parent=0 // pred_fallthru
    _
  // Predicated region
  $region54: #{autoencoder_forward.1} parent=0 // pred_check
    _
  $region55: #{autoencoder_forward.1} parent=0 // pred_check_branch
    %49 = sbr.rel (0) target = $region57
  $region56: #{autoencoder_forward.1} parent=0 // pred_region
    _
  $region57: #{autoencoder_forward.1} parent=0 // pred_fallthru
    _
  // Predicated region
  $region58: #{autoencoder_forward.1} parent=0 // pred_check
    _
  $region59: #{autoencoder_forward.1} parent=0 // pred_check_branch
    %51 = sbr.rel (0) target = $region61
  $region60: #{autoencoder_forward.1} parent=0 // pred_region
    _
  $region61: #{autoencoder_forward.1} parent=0 // pred_fallthru
    _
  %v53 = vld [vmem:[%s0] sm:$0xff]
  %v54 = vld [vmem:[%s0 + $0x8] sm:$0xff]
  %v55 = vld [vmem:[%s0 + $0x10] sm:$0xff]
  %v56 = vld [vmem:[%s0 + $0x18] sm:$0xff]
  %v57 = vld [vmem:[%s0 + $0x20] sm:$0xff]
  %v58 = vld [vmem:[%s0 + $0x28] sm:$0xff]
  %v59 = vld [vmem:[%s0 + $0x30] sm:$0xff]
  %v60 = vld [vmem:[%s0 + $0x38] sm:$0xff]
  %v61 = vld [vmem:[%s0 + $0x40] sm:$0xff]
  %v62 = vld [vmem:[%s0 + $0x48] sm:$0xff]
  %v63 = vld [vmem:[%s0 + $0x50] sm:$0xff]
  %v64 = vld [vmem:[%s0 + $0x58] sm:$0xff]
  %v65 = vld [vmem:[%s0 + $0x60] sm:$0xff]
  %v66 = vld [vmem:[%s0 + $0x68] sm:$0xff]
  %v67 = vld [vmem:[%s0 + $0x70] sm:$0xff]
  %v68 = vld [vmem:[%s0 + $0x78] sm:$0xff]
  %v69 = vld [vmem:[%s0 + $0x80] sm:$0xff]
  %v70 = vld [vmem:[%s0 + $0x88] sm:$0xff]
  %v71 = vld [vmem:[%s0 + $0x90] sm:$0xff]
  %v72 = vld [vmem:[%s0 + $0x98] sm:$0xff]
  %v73 = vld [vmem:[%s0 + $0xa0] sm:$0xff]
  %v74 = vld [vmem:[%s0 + $0xa8] sm:$0xff]
  %v75 = vld [vmem:[%s0 + $0xb0] sm:$0xff]
  %v76 = vld [vmem:[%s0 + $0xb8] sm:$0xff]
  %v77 = vld [vmem:[%s0 + $0xc0] sm:$0xff]
  %v78 = vld [vmem:[%s0 + $0xc8] sm:$0xff]
  %v79 = vld [vmem:[%s0 + $0xd0] sm:$0xff]
  %v80 = vld [vmem:[%s0 + $0xd8] sm:$0xff]
  %v81 = vld [vmem:[%s1] sm:$0xff]
  %v82 = vld [vmem:[%s1 + $0x8] sm:$0xff]
  %v83 = vld [vmem:[%s1 + $0x10] sm:$0xff]
  %v84 = vld [vmem:[%s1 + $0x18] sm:$0xff]
  %v85 = vld [vmem:[%s1 + $0x20] sm:$0xff]
  %v86 = vld [vmem:[%s1 + $0x28] sm:$0xff]
  %v87 = vld [vmem:[%s1 + $0x30] sm:$0x33]
  %v88 = vld [vmem:[%s1 + $0x38] sm:$0x33]
  %v89 = vpack.c.bf16 %v54, %v53
  %v90 = vpack.c.bf16 %v56, %v55
  %v91 = vpack.c.bf16 %v58, %v57
  %v92 = vpack.c.bf16 %v60, %v59
  %v93 = vpack.c.bf16 %v62, %v61
  %v94 = vpack.c.bf16 %v64, %v63
  %v95 = vpack.c.bf16 %v66, %v65
  %v96 = vpack.c.bf16 %v68, %v67
  %v97 = vpack.c.bf16 %v70, %v69
  %v98 = vpack.c.bf16 %v72, %v71
  %v99 = vpack.c.bf16 %v74, %v73
  %v100 = vpack.c.bf16 %v76, %v75
  %v101 = vpack.c.bf16 %v78, %v77
  %s102 = scalar_lea.vmem %s1, 64
  %v103 = vld [vmem:[%s102] sm:$0xff]
  %v104 = vld [vmem:[%s102 + $0x8] sm:$0xff]
  %v105 = vld [vmem:[%s102 + $0x10] sm:$0xff]
  %v106 = vld [vmem:[%s102 + $0x18] sm:$0xff]
  %v107 = vld [vmem:[%s102 + $0x20] sm:$0xff]
  %v108 = vld [vmem:[%s102 + $0x28] sm:$0xff]
  %v109 = vld [vmem:[%s102 + $0x30] sm:$0x33]
  %v110 = vld [vmem:[%s102 + $0x38] sm:$0x33]
  %v111 = vpack.c.bf16 %v55, %v54
  %v112 = vpack.c.bf16 %v57, %v56
  %v113 = vpack.c.bf16 %v59, %v58
  %v114 = vpack.c.bf16 %v61, %v60
  %v115 = vpack.c.bf16 %v63, %v62
  %v116 = vpack.c.bf16 %v65, %v64
  %v117 = vpack.c.bf16 %v67, %v66
  %v118 = vpack.c.bf16 %v69, %v68
  %v119 = vpack.c.bf16 %v71, %v70
  %v120 = vpack.c.bf16 %v73, %v72
  %v121 = vpack.c.bf16 %v75, %v74
  %v122 = vpack.c.bf16 %v77, %v76
  %v123 = vpack.c.bf16 %v79, %v78
  %v132 = vunpack.c.l.b16 %v103
  %v133 = vunpack.c.h.b16 %v103
  %v134 = vunpack.c.l.b16 %v104
  %v135 = vunpack.c.h.b16 %v104
  %v136 = vunpack.c.l.b16 %v105
  %v137 = vunpack.c.h.b16 %v105
  %v138 = vunpack.c.l.b16 %v106
  %v139 = vunpack.c.h.b16 %v106
  %v140 = vunpack.c.l.b16 %v107
  %v141 = vunpack.c.h.b16 %v107
  %v142 = vunpack.c.l.b16 %v108
  %v143 = vunpack.c.h.b16 %v108
  %v144 = vunpack.c.l.b16 %v109
  %v145 = vunpack.c.h.b16 %v109
  %v146 = vunpack.c.l.b16 %v110
  %v147 = vunpack.c.h.b16 %v110
  %v148 = vpack.c.b16 %v136, %v132
  %v149 = vpack.c.b16 %v137, %v133
  %v150 = vpack.c.b16 %v138, %v134
  %v151 = vpack.c.b16 %v139, %v135
  %v152 = vpack.c.b16 %v144, %v140
  %v153 = vpack.c.b16 %v145, %v141
  %v154 = vpack.c.b16 %v146, %v142
  %v155 = vpack.c.b16 %v147, %v143
  %vm160 = vcmask 228352
  %v162 = vsel %vm160, %v111, 0
  %v165 = vsel %vm160, %v112, 0
  %v168 = vsel %vm160, %v113, 0
  %v171 = vsel %vm160, %v114, 0
  %v174 = vsel %vm160, %v115, 0
  %v177 = vsel %vm160, %v116, 0
  %v180 = vsel %vm160, %v117, 0
  %v183 = vsel %vm160, %v118, 0
  %v186 = vsel %vm160, %v119, 0
  %v189 = vsel %vm160, %v120, 0
  %v192 = vsel %vm160, %v121, 0
  %v195 = vsel %vm160, %v122, 0
  %v198 = vsel %vm160, %v123, 0
  %vm200 = vcmask 1045504
  %v202 = vsel %vm200, %v152, 0
  %v205 = vsel %vm200, %v153, 0
  %v208 = vsel %vm200, %v154, 0
  %v211 = vsel %vm200, %v155, 0
  %213 = vmatprep.subr.bf16.mxu0 %v149
  %214 = vmatpush1.bf16.msra.mxu0 %v148
  %215 = vmatprep.subr.bf16.mxu0 %v205
  %216 = vmatpush1.bf16.msra.mxu0 %v202
  %217 = vmatprep.subr.bf16.mxu0 0
  %218 = vmatpush1.bf16.msra.mxu0 0
  %219 = vmatprep.subr.bf16.mxu0 0
  %220 = vmatpush1.bf16.msra.mxu0 0
  %221 = vmatprep.subr.bf16.mxu0 0
  %222 = vmatpush1.bf16.msra.mxu0 0
  %223 = vmatprep.subr.bf16.mxu0 0
  %224 = vmatpush1.bf16.msra.mxu0 0
  %225 = vmatprep.subr.bf16.mxu0 0
  %226 = vmatpush1.bf16.msra.mxu0 0
  %227 = vmatprep.subr.bf16.mxu0 0
  %228 = vmatpush1.bf16.msra.mxu0 0
  %229 = vmatprep.subr.bf16.mxu0 0
  %230 = vmatpush1.bf16.msra.mxu0 0
  %231 = vmatprep.subr.bf16.mxu0 0
  %232 = vmatpush1.bf16.msra.mxu0 0
  %233 = vmatprep.subr.bf16.mxu0 0
  %234 = vmatpush1.bf16.msra.mxu0 0
  %235 = vmatprep.subr.bf16.mxu0 0
  %236 = vmatpush1.bf16.msra.mxu0 0
  %237 = vmatprep.subr.bf16.mxu0 0
  %238 = vmatpush1.bf16.msra.mxu0 0
  %239 = vmatprep.subr.bf16.mxu0 0
  %240 = vmatpush1.bf16.msra.mxu0 0
  %241 = vmatprep.subr.bf16.mxu0 0
  %242 = vmatpush1.bf16.msra.mxu0 0
  %243 = vmatprep.subr.bf16.mxu0 0
  %244 = vmatpush1.bf16.msra.mxu0 0
  %245 = vmatprep.mubr.bf16.mxu0 0
  %246 = vmatmul.mubr.bf16.gmra.mrb[0].mxu0 %v162
  %v247 = vpop.f32.mrb[0].mxu0
  %v248 = vadd.f32 0.0, %v247
  %v249 = vpop.f32.mrb[0].mxu0
  %v250 = vadd.f32 0.0, %v249
  %v251 = vpop.f32.mrb[0].mxu0
  %v252 = vadd.f32 0.0, %v251
  %v253 = vpop.f32.mrb[0].mxu0
  %v254 = vadd.f32 0.0, %v253
  %255 = vmatprep.mubr.bf16.mxu0 0
  %256 = vmatmul.mubr.bf16.gmra.mrb[0].mxu0 %v165
  %v257 = vpop.f32.mrb[0].mxu0
  %v258 = vadd.f32 0.0, %v257
  %v259 = vpop.f32.mrb[0].mxu0
  %v260 = vadd.f32 0.0, %v259
  %v261 = vpop.f32.mrb[0].mxu0
  %v262 = vadd.f32 0.0, %v261
  %v263 = vpop.f32.mrb[0].mxu0
  %v264 = vadd.f32 0.0, %v263
  %265 = vmatprep.mubr.bf16.mxu0 0
  %266 = vmatmul.mubr.bf16.gmra.mrb[0].mxu0 %v168
  %v267 = vpop.f32.mrb[0].mxu0
  %v268 = vadd.f32 0.0, %v267
  %v269 = vpop.f32.mrb[0].mxu0
  %v270 = vadd.f32 0.0, %v269
  %v271 = vpop.f32.mrb[0].mxu0
  %v272 = vadd.f32 0.0, %v271
  %v273 = vpop.f32.mrb[0].mxu0
  %v274 = vadd.f32 0.0, %v273
  %275 = vmatprep.mubr.bf16.mxu0 0
  %276 = vmatmul.mubr.bf16.gmra.mrb[0].mxu0 %v171
  %v277 = vpop.f32.mrb[0].mxu0
  %v278 = vadd.f32 0.0, %v277
  %v279 = vpop.f32.mrb[0].mxu0
  %v280 = vadd.f32 0.0, %v279
  %v281 = vpop.f32.mrb[0].mxu0
  %v282 = vadd.f32 0.0, %v281
  %v283 = vpop.f32.mrb[0].mxu0
  %v284 = vadd.f32 0.0, %v283
  %285 = vmatprep.mubr.bf16.mxu0 0
  %286 = vmatmul.mubr.bf16.gmra.mrb[0].mxu0 %v174
  %v287 = vpop.f32.mrb[0].mxu0
  %v288 = vadd.f32 0.0, %v287
  %v289 = vpop.f32.mrb[0].mxu0
  %v290 = vadd.f32 0.0, %v289
  %v291 = vpop.f32.mrb[0].mxu0
  %v292 = vadd.f32 0.0, %v291
  %v293 = vpop.f32.mrb[0].mxu0
  %v294 = vadd.f32 0.0, %v293
  %295 = vmatprep.mubr.bf16.mxu0 0
  %296 = vmatmul.mubr.bf16.gmra.mrb[0].mxu0 %v177
  %v297 = vpop.f32.mrb[0].mxu0
  %v298 = vadd.f32 0.0, %v297
  %v299 = vpop.f32.mrb[0].mxu0
  %v300 = vadd.f32 0.0, %v299
  %v301 = vpop.f32.mrb[0].mxu0
  %v302 = vadd.f32 0.0, %v301
  %v303 = vpop.f32.mrb[0].mxu0
  %v304 = vadd.f32 0.0, %v303
  %305 = vmatprep.mubr.bf16.mxu0 0
  %306 = vmatmul.mubr.bf16.gmra.mrb[0].mxu0 %v180
  %v307 = vpop.f32.mrb[0].mxu0
  %v308 = vadd.f32 0.0, %v307
  %v309 = vpop.f32.mrb[0].mxu0
  %v310 = vadd.f32 0.0, %v309
  %v311 = vpop.f32.mrb[0].mxu0
  %v312 = vadd.f32 0.0, %v311
  %v313 = vpop.f32.mrb[0].mxu0
  %v314 = vadd.f32 0.0, %v313
  %315 = vmatprep.mubr.bf16.mxu0 0
  %316 = vmatmul.mubr.bf16.gmra.mrb[0].mxu0 %v183
  %v317 = vpop.f32.mrb[0].mxu0
  %v318 = vadd.f32 0.0, %v317
  %v319 = vpop.f32.mrb[0].mxu0
  %v320 = vadd.f32 0.0, %v319
  %v321 = vpop.f32.mrb[0].mxu0
  %v322 = vadd.f32 0.0, %v321
  %v323 = vpop.f32.mrb[0].mxu0
  %v324 = vadd.f32 0.0, %v323
  %325 = vmatprep.mubr.bf16.mxu0 0
  %326 = vmatmul.mubr.bf16.gmra.mrb[0].mxu0 %v186
  %v327 = vpop.f32.mrb[0].mxu0
  %v328 = vadd.f32 0.0, %v327
  %v329 = vpop.f32.mrb[0].mxu0
  %v330 = vadd.f32 0.0, %v329
  %v331 = vpop.f32.mrb[0].mxu0
  %v332 = vadd.f32 0.0, %v331
  %v333 = vpop.f32.mrb[0].mxu0
  %v334 = vadd.f32 0.0, %v333
  %335 = vmatprep.mubr.bf16.mxu0 0
  %336 = vmatmul.mubr.bf16.gmra.mrb[0].mxu0 %v189
  %v337 = vpop.f32.mrb[0].mxu0
  %v338 = vadd.f32 0.0, %v337
  %v339 = vpop.f32.mrb[0].mxu0
  %v340 = vadd.f32 0.0, %v339
  %v341 = vpop.f32.mrb[0].mxu0
  %v342 = vadd.f32 0.0, %v341
  %v343 = vpop.f32.mrb[0].mxu0
  %v344 = vadd.f32 0.0, %v343
  %345 = vmatprep.mubr.bf16.mxu0 0
  %346 = vmatmul.mubr.bf16.gmra.mrb[0].mxu0 %v192
  %v347 = vpop.f32.mrb[0].mxu0
  %v348 = vadd.f32 0.0, %v347
  %v349 = vpop.f32.mrb[0].mxu0
  %v350 = vadd.f32 0.0, %v349
  %v351 = vpop.f32.mrb[0].mxu0
  %v352 = vadd.f32 0.0, %v351
  %v353 = vpop.f32.mrb[0].mxu0
  %v354 = vadd.f32 0.0, %v353
  %355 = vmatprep.mubr.bf16.mxu0 0
  %356 = vmatmul.mubr.bf16.gmra.mrb[0].mxu0 %v195
  %v357 = vpop.f32.mrb[0].mxu0
  %v358 = vadd.f32 0.0, %v357
  %v359 = vpop.f32.mrb[0].mxu0
  %v360 = vadd.f32 0.0, %v359
  %v361 = vpop.f32.mrb[0].mxu0
  %v362 = vadd.f32 0.0, %v361
  %v363 = vpop.f32.mrb[0].mxu0
  %v364 = vadd.f32 0.0, %v363
  %365 = vmatprep.mubr.bf16.mxu0 0
  %366 = vmatmul.mubr.bf16.gmra.mrb[0].mxu0 %v198
  %v367 = vpop.f32.mrb[0].mxu0
  %v368 = vadd.f32 0.0, %v367
  %v369 = vpop.f32.mrb[0].mxu0
  %v370 = vadd.f32 0.0, %v369
  %v371 = vpop.f32.mrb[0].mxu0
  %v372 = vadd.f32 0.0, %v371
  %v373 = vpop.f32.mrb[0].mxu0
  %v374 = vadd.f32 0.0, %v373
  %375 = vdwg.mxu0
  %376 = vmatprep.subr.bf16.mxu0 %v151
  %377 = vmatpush1.bf16.msra.mxu0 %v150
  %378 = vmatprep.subr.bf16.mxu0 %v211
  %379 = vmatpush1.bf16.msra.mxu0 %v208
  %380 = vmatprep.subr.bf16.mxu0 0
  %381 = vmatpush1.bf16.msra.mxu0 0
  %382 = vmatprep.subr.bf16.mxu0 0
  %383 = vmatpush1.bf16.msra.mxu0 0
  %384 = vmatprep.subr.bf16.mxu0 0
  %385 = vmatpush1.bf16.msra.mxu0 0
  %386 = vmatprep.subr.bf16.mxu0 0
  %387 = vmatpush1.bf16.msra.mxu0 0
  %388 = vmatprep.subr.bf16.mxu0 0
  %389 = vmatpush1.bf16.msra.mxu0 0
  %390 = vmatprep.subr.bf16.mxu0 0
  %391 = vmatpush1.bf16.msra.mxu0 0
  %392 = vmatprep.subr.bf16.mxu0 0
  %393 = vmatpush1.bf16.msra.mxu0 0
  %394 = vmatprep.subr.bf16.mxu0 0
  %395 = vmatpush1.bf16.msra.mxu0 0
  %396 = vmatprep.subr.bf16.mxu0 0
  %397 = vmatpush1.bf16.msra.mxu0 0
  %398 = vmatprep.subr.bf16.mxu0 0
  %399 = vmatpush1.bf16.msra.mxu0 0
  %400 = vmatprep.subr.bf16.mxu0 0
  %401 = vmatpush1.bf16.msra.mxu0 0
  %402 = vmatprep.subr.bf16.mxu0 0
  %403 = vmatpush1.bf16.msra.mxu0 0
  %404 = vmatprep.subr.bf16.mxu0 0
  %405 = vmatpush1.bf16.msra.mxu0 0
  %406 = vmatprep.subr.bf16.mxu0 0
  %407 = vmatpush1.bf16.msra.mxu0 0
  %408 = vmatprep.mubr.bf16.mxu0 0
  %409 = vmatmul.mubr.bf16.gmra.mrb[0].mxu0 %v162
  %v410 = vpop.f32.mrb[0].mxu0
  %v411 = vadd.f32 0.0, %v410
  %v412 = vpop.f32.mrb[0].mxu0
  %v413 = vadd.f32 0.0, %v412
  %v414 = vpop.f32.mrb[0].mxu0
  %v415 = vadd.f32 0.0, %v414
  %v416 = vpop.f32.mrb[0].mxu0
  %v417 = vadd.f32 0.0, %v416
  %418 = vmatprep.mubr.bf16.mxu0 0
  %419 = vmatmul.mubr.bf16.gmra.mrb[0].mxu0 %v165
  %v420 = vpop.f32.mrb[0].mxu0
  %v421 = vadd.f32 0.0, %v420
  %v422 = vpop.f32.mrb[0].mxu0
  %v423 = vadd.f32 0.0, %v422
  %v424 = vpop.f32.mrb[0].mxu0
  %v425 = vadd.f32 0.0, %v424
  %v426 = vpop.f32.mrb[0].mxu0
  %v427 = vadd.f32 0.0, %v426
  %428 = vmatprep.mubr.bf16.mxu0 0
  %429 = vmatmul.mubr.bf16.gmra.mrb[0].mxu0 %v168
  %v430 = vpop.f32.mrb[0].mxu0
  %v431 = vadd.f32 0.0, %v430
  %v432 = vpop.f32.mrb[0].mxu0
  %v433 = vadd.f32 0.0, %v432
  %v434 = vpop.f32.mrb[0].mxu0
  %v435 = vadd.f32 0.0, %v434
  %v436 = vpop.f32.mrb[0].mxu0
  %v437 = vadd.f32 0.0, %v436
  %438 = vmatprep.mubr.bf16.mxu0 0
  %439 = vmatmul.mubr.bf16.gmra.mrb[0].mxu0 %v171
  %v440 = vpop.f32.mrb[0].mxu0
  %v441 = vadd.f32 0.0, %v440
  %v442 = vpop.f32.mrb[0].mxu0
  %v443 = vadd.f32 0.0, %v442
  %v444 = vpop.f32.mrb[0].mxu0
  %v445 = vadd.f32 0.0, %v444
  %v446 = vpop.f32.mrb[0].mxu0
  %v447 = vadd.f32 0.0, %v446
  %448 = vmatprep.mubr.bf16.mxu0 0
  %449 = vmatmul.mubr.bf16.gmra.mrb[0].mxu0 %v174
  %v450 = vpop.f32.mrb[0].mxu0
  %v451 = vadd.f32 0.0, %v450
  %v452 = vpop.f32.mrb[0].mxu0
  %v453 = vadd.f32 0.0, %v452
  %v454 = vpop.f32.mrb[0].mxu0
  %v455 = vadd.f32 0.0, %v454
  %v456 = vpop.f32.mrb[0].mxu0
  %v457 = vadd.f32 0.0, %v456
  %458 = vmatprep.mubr.bf16.mxu0 0
  %459 = vmatmul.mubr.bf16.gmra.mrb[0].mxu0 %v177
  %v460 = vpop.f32.mrb[0].mxu0
  %v461 = vadd.f32 0.0, %v460
  %v462 = vpop.f32.mrb[0].mxu0
  %v463 = vadd.f32 0.0, %v462
  %v464 = vpop.f32.mrb[0].mxu0
  %v465 = vadd.f32 0.0, %v464
  %v466 = vpop.f32.mrb[0].mxu0
  %v467 = vadd.f32 0.0, %v466
  %468 = vmatprep.mubr.bf16.mxu0 0
  %469 = vmatmul.mubr.bf16.gmra.mrb[0].mxu0 %v180
  %v470 = vpop.f32.mrb[0].mxu0
  %v471 = vadd.f32 0.0, %v470
  %v472 = vpop.f32.mrb[0].mxu0
  %v473 = vadd.f32 0.0, %v472
  %v474 = vpop.f32.mrb[0].mxu0
  %v475 = vadd.f32 0.0, %v474
  %v476 = vpop.f32.mrb[0].mxu0
  %v477 = vadd.f32 0.0, %v476
  %478 = vmatprep.mubr.bf16.mxu0 0
  %479 = vmatmul.mubr.bf16.gmra.mrb[0].mxu0 %v183
  %v480 = vpop.f32.mrb[0].mxu0
  %v481 = vadd.f32 0.0, %v480
  %v482 = vpop.f32.mrb[0].mxu0
  %v483 = vadd.f32 0.0, %v482
  %v484 = vpop.f32.mrb[0].mxu0
  %v485 = vadd.f32 0.0, %v484
  %v486 = vpop.f32.mrb[0].mxu0
  %v487 = vadd.f32 0.0, %v486
  %488 = vmatprep.mubr.bf16.mxu0 0
  %489 = vmatmul.mubr.bf16.gmra.mrb[0].mxu0 %v186
  %v490 = vpop.f32.mrb[0].mxu0
  %v491 = vadd.f32 0.0, %v490
  %v492 = vpop.f32.mrb[0].mxu0
  %v493 = vadd.f32 0.0, %v492
  %v494 = vpop.f32.mrb[0].mxu0
  %v495 = vadd.f32 0.0, %v494
  %v496 = vpop.f32.mrb[0].mxu0
  %v497 = vadd.f32 0.0, %v496
  %498 = vmatprep.mubr.bf16.mxu0 0
  %499 = vmatmul.mubr.bf16.gmra.mrb[0].mxu0 %v189
  %v500 = vpop.f32.mrb[0].mxu0
  %v501 = vadd.f32 0.0, %v500
  %v502 = vpop.f32.mrb[0].mxu0
  %v503 = vadd.f32 0.0, %v502
  %v504 = vpop.f32.mrb[0].mxu0
  %v505 = vadd.f32 0.0, %v504
  %v506 = vpop.f32.mrb[0].mxu0
  %v507 = vadd.f32 0.0, %v506
  %508 = vmatprep.mubr.bf16.mxu0 0
  %509 = vmatmul.mubr.bf16.gmra.mrb[0].mxu0 %v192
  %v510 = vpop.f32.mrb[0].mxu0
  %v511 = vadd.f32 0.0, %v510
  %v512 = vpop.f32.mrb[0].mxu0
  %v513 = vadd.f32 0.0, %v512
  %v514 = vpop.f32.mrb[0].mxu0
  %v515 = vadd.f32 0.0, %v514
  %v516 = vpop.f32.mrb[0].mxu0
  %v517 = vadd.f32 0.0, %v516
  %518 = vmatprep.mubr.bf16.mxu0 0
  %519 = vmatmul.mubr.bf16.gmra.mrb[0].mxu0 %v195
  %v520 = vpop.f32.mrb[0].mxu0
  %v521 = vadd.f32 0.0, %v520
  %v522 = vpop.f32.mrb[0].mxu0
  %v523 = vadd.f32 0.0, %v522
  %v524 = vpop.f32.mrb[0].mxu0
  %v525 = vadd.f32 0.0, %v524
  %v526 = vpop.f32.mrb[0].mxu0
  %v527 = vadd.f32 0.0, %v526
  %528 = vmatprep.mubr.bf16.mxu0 0
  %529 = vmatmul.mubr.bf16.gmra.mrb[0].mxu0 %v198
  %v530 = vpop.f32.mrb[0].mxu0
  %v531 = vadd.f32 0.0, %v530
  %v532 = vpop.f32.mrb[0].mxu0
  %v533 = vadd.f32 0.0, %v532
  %v534 = vpop.f32.mrb[0].mxu0
  %v535 = vadd.f32 0.0, %v534
  %v536 = vpop.f32.mrb[0].mxu0
  %v537 = vadd.f32 0.0, %v536
  %538 = vdwg.mxu0
  %v547 = vunpack.c.l.b16 %v81
  %v548 = vunpack.c.h.b16 %v81
  %v549 = vunpack.c.l.b16 %v82
  %v550 = vunpack.c.h.b16 %v82
  %v551 = vunpack.c.l.b16 %v83
  %v552 = vunpack.c.h.b16 %v83
  %v553 = vunpack.c.l.b16 %v84
  %v554 = vunpack.c.h.b16 %v84
  %v555 = vunpack.c.l.b16 %v85
  %v556 = vunpack.c.h.b16 %v85
  %v557 = vunpack.c.l.b16 %v86
  %v558 = vunpack.c.h.b16 %v86
  %v559 = vunpack.c.l.b16 %v87
  %v560 = vunpack.c.h.b16 %v87
  %v561 = vunpack.c.l.b16 %v88
  %v562 = vunpack.c.h.b16 %v88
  %v563 = vpack.c.b16 %v551, %v547
  %v564 = vpack.c.b16 %v552, %v548
  %v565 = vpack.c.b16 %v553, %v549
  %v566 = vpack.c.b16 %v554, %v550
  %v567 = vpack.c.b16 %v559, %v555
  %v568 = vpack.c.b16 %v560, %v556
  %v569 = vpack.c.b16 %v561, %v557
  %v570 = vpack.c.b16 %v562, %v558
  %v576 = vsel %vm160, %v89, 0
  %v579 = vsel %vm160, %v90, 0
  %v582 = vsel %vm160, %v91, 0
  %v585 = vsel %vm160, %v92, 0
  %v588 = vsel %vm160, %v93, 0
  %v591 = vsel %vm160, %v94, 0
  %v594 = vsel %vm160, %v95, 0
  %v597 = vsel %vm160, %v96, 0
  %v600 = vsel %vm160, %v97, 0
  %v603 = vsel %vm160, %v98, 0
  %v606 = vsel %vm160, %v99, 0
  %v609 = vsel %vm160, %v100, 0
  %v612 = vsel %vm160, %v101, 0
  %v615 = vsel %vm200, %v567, 0
  %v618 = vsel %vm200, %v568, 0
  %v621 = vsel %vm200, %v569, 0
  %v624 = vsel %vm200, %v570, 0
  %626 = vmatprep.subr.bf16.mxu0 %v564
  %627 = vmatpush1.bf16.msra.mxu0 %v563
  %628 = vmatprep.subr.bf16.mxu0 %v618
  %629 = vmatpush1.bf16.msra.mxu0 %v615
  %630 = vmatprep.subr.bf16.mxu0 0
  %631 = vmatpush1.bf16.msra.mxu0 0
  %632 = vmatprep.subr.bf16.mxu0 0
  %633 = vmatpush1.bf16.msra.mxu0 0
  %634 = vmatprep.subr.bf16.mxu0 0
  %635 = vmatpush1.bf16.msra.mxu0 0
  %636 = vmatprep.subr.bf16.mxu0 0
  %637 = vmatpush1.bf16.msra.mxu0 0
  %638 = vmatprep.subr.bf16.mxu0 0
  %639 = vmatpush1.bf16.msra.mxu0 0
  %640 = vmatprep.subr.bf16.mxu0 0
  %641 = vmatpush1.bf16.msra.mxu0 0
  %642 = vmatprep.subr.bf16.mxu0 0
  %643 = vmatpush1.bf16.msra.mxu0 0
  %644 = vmatprep.subr.bf16.mxu0 0
  %645 = vmatpush1.bf16.msra.mxu0 0
  %646 = vmatprep.subr.bf16.mxu0 0
  %647 = vmatpush1.bf16.msra.mxu0 0
  %648 = vmatprep.subr.bf16.mxu0 0
  %649 = vmatpush1.bf16.msra.mxu0 0
  %650 = vmatprep.subr.bf16.mxu0 0
  %651 = vmatpush1.bf16.msra.mxu0 0
  %652 = vmatprep.subr.bf16.mxu0 0
  %653 = vmatpush1.bf16.msra.mxu0 0
  %654 = vmatprep.subr.bf16.mxu0 0
  %655 = vmatpush1.bf16.msra.mxu0 0
  %656 = vmatprep.subr.bf16.mxu0 0
  %657 = vmatpush1.bf16.msra.mxu0 0
  %658 = vmatprep.mubr.bf16.mxu0 0
  %659 = vmatmul.mubr.bf16.gmra.mrb[0].mxu0 %v576
  %v660 = vpop.f32.mrb[0].mxu0
  %v661 = vadd.f32 %v248, %v660
  %v662 = vpop.f32.mrb[0].mxu0
  %v663 = vadd.f32 %v250, %v662
  %v664 = vpop.f32.mrb[0].mxu0
  %v665 = vadd.f32 %v252, %v664
  %v666 = vpop.f32.mrb[0].mxu0
  %v667 = vadd.f32 %v254, %v666
  %668 = vmatprep.mubr.bf16.mxu0 0
  %669 = vmatmul.mubr.bf16.gmra.mrb[0].mxu0 %v579
  %v670 = vpop.f32.mrb[0].mxu0
  %v671 = vadd.f32 %v258, %v670
  %v672 = vpop.f32.mrb[0].mxu0
  %v673 = vadd.f32 %v260, %v672
  %v674 = vpop.f32.mrb[0].mxu0
  %v675 = vadd.f32 %v262, %v674
  %v676 = vpop.f32.mrb[0].mxu0
  %v677 = vadd.f32 %v264, %v676
  %678 = vmatprep.mubr.bf16.mxu0 0
  %679 = vmatmul.mubr.bf16.gmra.mrb[0].mxu0 %v582
  %v680 = vpop.f32.mrb[0].mxu0
  %v681 = vadd.f32 %v268, %v680
  %v682 = vpop.f32.mrb[0].mxu0
  %v683 = vadd.f32 %v270, %v682
  %v684 = vpop.f32.mrb[0].mxu0
  %v685 = vadd.f32 %v272, %v684
  %v686 = vpop.f32.mrb[0].mxu0
  %v687 = vadd.f32 %v274, %v686
  %688 = vmatprep.mubr.bf16.mxu0 0
  %689 = vmatmul.mubr.bf16.gmra.mrb[0].mxu0 %v585
  %v690 = vpop.f32.mrb[0].mxu0
  %v691 = vadd.f32 %v278, %v690
  %v692 = vpop.f32.mrb[0].mxu0
  %v693 = vadd.f32 %v280, %v692
  %v694 = vpop.f32.mrb[0].mxu0
  %v695 = vadd.f32 %v282, %v694
  %v696 = vpop.f32.mrb[0].mxu0
  %v697 = vadd.f32 %v284, %v696
  %698 = vmatprep.mubr.bf16.mxu0 0
  %699 = vmatmul.mubr.bf16.gmra.mrb[0].mxu0 %v588
  %v700 = vpop.f32.mrb[0].mxu0
  %v701 = vadd.f32 %v288, %v700
  %v702 = vpop.f32.mrb[0].mxu0
  %v703 = vadd.f32 %v290, %v702
  %v704 = vpop.f32.mrb[0].mxu0
  %v705 = vadd.f32 %v292, %v704
  %v706 = vpop.f32.mrb[0].mxu0
  %v707 = vadd.f32 %v294, %v706
  %708 = vmatprep.mubr.bf16.mxu0 0
  %709 = vmatmul.mubr.bf16.gmra.mrb[0].mxu0 %v591
  %v710 = vpop.f32.mrb[0].mxu0
  %v711 = vadd.f32 %v298, %v710
  %v712 = vpop.f32.mrb[0].mxu0
  %v713 = vadd.f32 %v300, %v712
  %v714 = vpop.f32.mrb[0].mxu0
  %v715 = vadd.f32 %v302, %v714
  %v716 = vpop.f32.mrb[0].mxu0
  %v717 = vadd.f32 %v304, %v716
  %718 = vmatprep.mubr.bf16.mxu0 0
  %719 = vmatmul.mubr.bf16.gmra.mrb[0].mxu0 %v594
  %v720 = vpop.f32.mrb[0].mxu0
  %v721 = vadd.f32 %v308, %v720
  %v722 = vpop.f32.mrb[0].mxu0
  %v723 = vadd.f32 %v310, %v722
  %v724 = vpop.f32.mrb[0].mxu0
  %v725 = vadd.f32 %v312, %v724
  %v726 = vpop.f32.mrb[0].mxu0
  %v727 = vadd.f32 %v314, %v726
  %728 = vmatprep.mubr.bf16.mxu0 0
  %729 = vmatmul.mubr.bf16.gmra.mrb[0].mxu0 %v597
  %v730 = vpop.f32.mrb[0].mxu0
  %v731 = vadd.f32 %v318, %v730
  %v732 = vpop.f32.mrb[0].mxu0
  %v733 = vadd.f32 %v320, %v732
  %v734 = vpop.f32.mrb[0].mxu0
  %v735 = vadd.f32 %v322, %v734
  %v736 = vpop.f32.mrb[0].mxu0
  %v737 = vadd.f32 %v324, %v736
  %738 = vmatprep.mubr.bf16.mxu0 0
  %739 = vmatmul.mubr.bf16.gmra.mrb[0].mxu0 %v600
  %v740 = vpop.f32.mrb[0].mxu0
  %v741 = vadd.f32 %v328, %v740
  %v742 = vpop.f32.mrb[0].mxu0
  %v743 = vadd.f32 %v330, %v742
  %v744 = vpop.f32.mrb[0].mxu0
  %v745 = vadd.f32 %v332, %v744
  %v746 = vpop.f32.mrb[0].mxu0
  %v747 = vadd.f32 %v334, %v746
  %748 = vmatprep.mubr.bf16.mxu0 0
  %749 = vmatmul.mubr.bf16.gmra.mrb[0].mxu0 %v603
  %v750 = vpop.f32.mrb[0].mxu0
  %v751 = vadd.f32 %v338, %v750
  %v752 = vpop.f32.mrb[0].mxu0
  %v753 = vadd.f32 %v340, %v752
  %v754 = vpop.f32.mrb[0].mxu0
  %v755 = vadd.f32 %v342, %v754
  %v756 = vpop.f32.mrb[0].mxu0
  %v757 = vadd.f32 %v344, %v756
  %758 = vmatprep.mubr.bf16.mxu0 0
  %759 = vmatmul.mubr.bf16.gmra.mrb[0].mxu0 %v606
  %v760 = vpop.f32.mrb[0].mxu0
  %v761 = vadd.f32 %v348, %v760
  %v762 = vpop.f32.mrb[0].mxu0
  %v763 = vadd.f32 %v350, %v762
  %v764 = vpop.f32.mrb[0].mxu0
  %v765 = vadd.f32 %v352, %v764
  %v766 = vpop.f32.mrb[0].mxu0
  %v767 = vadd.f32 %v354, %v766
  %768 = vmatprep.mubr.bf16.mxu0 0
  %769 = vmatmul.mubr.bf16.gmra.mrb[0].mxu0 %v609
  %v770 = vpop.f32.mrb[0].mxu0
  %v771 = vadd.f32 %v358, %v770
  %v772 = vpop.f32.mrb[0].mxu0
  %v773 = vadd.f32 %v360, %v772
  %v774 = vpop.f32.mrb[0].mxu0
  %v775 = vadd.f32 %v362, %v774
  %v776 = vpop.f32.mrb[0].mxu0
  %v777 = vadd.f32 %v364, %v776
  %778 = vmatprep.mubr.bf16.mxu0 0
  %779 = vmatmul.mubr.bf16.gmra.mrb[0].mxu0 %v612
  %v780 = vpop.f32.mrb[0].mxu0
  %v781 = vadd.f32 %v368, %v780
  %v782 = vpop.f32.mrb[0].mxu0
  %v783 = vadd.f32 %v370, %v782
  %v784 = vpop.f32.mrb[0].mxu0
  %v785 = vadd.f32 %v372, %v784
  %v786 = vpop.f32.mrb[0].mxu0
  %v787 = vadd.f32 %v374, %v786
  %788 = vdwg.mxu0
  %789 = vmatprep.subr.bf16.mxu0 %v566
  %790 = vmatpush1.bf16.msra.mxu0 %v565
  %791 = vmatprep.subr.bf16.mxu0 %v624
  %792 = vmatpush1.bf16.msra.mxu0 %v621
  %793 = vmatprep.subr.bf16.mxu0 0
  %794 = vmatpush1.bf16.msra.mxu0 0
  %795 = vmatprep.subr.bf16.mxu0 0
  %796 = vmatpush1.bf16.msra.mxu0 0
  %797 = vmatprep.subr.bf16.mxu0 0
  %798 = vmatpush1.bf16.msra.mxu0 0
  %799 = vmatprep.subr.bf16.mxu0 0
  %800 = vmatpush1.bf16.msra.mxu0 0
  %801 = vmatprep.subr.bf16.mxu0 0
  %802 = vmatpush1.bf16.msra.mxu0 0
  %803 = vmatprep.subr.bf16.mxu0 0
  %804 = vmatpush1.bf16.msra.mxu0 0
  %805 = vmatprep.subr.bf16.mxu0 0
  %806 = vmatpush1.bf16.msra.mxu0 0
  %807 = vmatprep.subr.bf16.mxu0 0
  %808 = vmatpush1.bf16.msra.mxu0 0
  %809 = vmatprep.subr.bf16.mxu0 0
  %810 = vmatpush1.bf16.msra.mxu0 0
  %811 = vmatprep.subr.bf16.mxu0 0
  %812 = vmatpush1.bf16.msra.mxu0 0
  %813 = vmatprep.subr.bf16.mxu0 0
  %814 = vmatpush1.bf16.msra.mxu0 0
  %815 = vmatprep.subr.bf16.mxu0 0
  %816 = vmatpush1.bf16.msra.mxu0 0
  %817 = vmatprep.subr.bf16.mxu0 0
  %818 = vmatpush1.bf16.msra.mxu0 0
  %819 = vmatprep.subr.bf16.mxu0 0
  %820 = vmatpush1.bf16.msra.mxu0 0
  %821 = vmatprep.mubr.bf16.mxu0 0
  %822 = vmatmul.mubr.bf16.gmra.mrb[0].mxu0 %v576
  %v823 = vpop.f32.mrb[0].mxu0
  %v824 = vadd.f32 %v411, %v823
  %v825 = vpop.f32.mrb[0].mxu0
  %v826 = vadd.f32 %v413, %v825
  %v827 = vpop.f32.mrb[0].mxu0
  %v828 = vadd.f32 %v415, %v827
  %v829 = vpop.f32.mrb[0].mxu0
  %v830 = vadd.f32 %v417, %v829
  %831 = vmatprep.mubr.bf16.mxu0 0
  %832 = vmatmul.mubr.bf16.gmra.mrb[0].mxu0 %v579
  %v833 = vpop.f32.mrb[0].mxu0
  %v834 = vadd.f32 %v421, %v833
  %v835 = vpop.f32.mrb[0].mxu0
  %v836 = vadd.f32 %v423, %v835
  %v837 = vpop.f32.mrb[0].mxu0
  %v838 = vadd.f32 %v425, %v837
  %v839 = vpop.f32.mrb[0].mxu0
  %v840 = vadd.f32 %v427, %v839
  %841 = vmatprep.mubr.bf16.mxu0 0
  %842 = vmatmul.mubr.bf16.gmra.mrb[0].mxu0 %v582
  %v843 = vpop.f32.mrb[0].mxu0
  %v844 = vadd.f32 %v431, %v843
  %v845 = vpop.f32.mrb[0].mxu0
  %v846 = vadd.f32 %v433, %v845
  %v847 = vpop.f32.mrb[0].mxu0
  %v848 = vadd.f32 %v435, %v847
  %v849 = vpop.f32.mrb[0].mxu0
  %v850 = vadd.f32 %v437, %v849
  %851 = vmatprep.mubr.bf16.mxu0 0
  %852 = vmatmul.mubr.bf16.gmra.mrb[0].mxu0 %v585
  %v853 = vpop.f32.mrb[0].mxu0
  %v854 = vadd.f32 %v441, %v853
  %v855 = vpop.f32.mrb[0].mxu0
  %v856 = vadd.f32 %v443, %v855
  %v857 = vpop.f32.mrb[0].mxu0
  %v858 = vadd.f32 %v445, %v857
  %v859 = vpop.f32.mrb[0].mxu0
  %v860 = vadd.f32 %v447, %v859
  %861 = vmatprep.mubr.bf16.mxu0 0
  %862 = vmatmul.mubr.bf16.gmra.mrb[0].mxu0 %v588
  %v863 = vpop.f32.mrb[0].mxu0
  %v864 = vadd.f32 %v451, %v863
  %v865 = vpop.f32.mrb[0].mxu0
  %v866 = vadd.f32 %v453, %v865
  %v867 = vpop.f32.mrb[0].mxu0
  %v868 = vadd.f32 %v455, %v867
  %v869 = vpop.f32.mrb[0].mxu0
  %v870 = vadd.f32 %v457, %v869
  %871 = vmatprep.mubr.bf16.mxu0 0
  %872 = vmatmul.mubr.bf16.gmra.mrb[0].mxu0 %v591
  %v873 = vpop.f32.mrb[0].mxu0
  %v874 = vadd.f32 %v461, %v873
  %v875 = vpop.f32.mrb[0].mxu0
  %v876 = vadd.f32 %v463, %v875
  %v877 = vpop.f32.mrb[0].mxu0
  %v878 = vadd.f32 %v465, %v877
  %v879 = vpop.f32.mrb[0].mxu0
  %v880 = vadd.f32 %v467, %v879
  %881 = vmatprep.mubr.bf16.mxu0 0
  %882 = vmatmul.mubr.bf16.gmra.mrb[0].mxu0 %v594
  %v883 = vpop.f32.mrb[0].mxu0
  %v884 = vadd.f32 %v471, %v883
  %v885 = vpop.f32.mrb[0].mxu0
  %v886 = vadd.f32 %v473, %v885
  %v887 = vpop.f32.mrb[0].mxu0
  %v888 = vadd.f32 %v475, %v887
  %v889 = vpop.f32.mrb[0].mxu0
  %v890 = vadd.f32 %v477, %v889
  %891 = vmatprep.mubr.bf16.mxu0 0
  %892 = vmatmul.mubr.bf16.gmra.mrb[0].mxu0 %v597
  %v893 = vpop.f32.mrb[0].mxu0
  %v894 = vadd.f32 %v481, %v893
  %v895 = vpop.f32.mrb[0].mxu0
  %v896 = vadd.f32 %v483, %v895
  %v897 = vpop.f32.mrb[0].mxu0
  %v898 = vadd.f32 %v485, %v897
  %v899 = vpop.f32.mrb[0].mxu0
  %v900 = vadd.f32 %v487, %v899
  %901 = vmatprep.mubr.bf16.mxu0 0
  %902 = vmatmul.mubr.bf16.gmra.mrb[0].mxu0 %v600
  %v903 = vpop.f32.mrb[0].mxu0
  %v904 = vadd.f32 %v491, %v903
  %v905 = vpop.f32.mrb[0].mxu0
  %v906 = vadd.f32 %v493, %v905
  %v907 = vpop.f32.mrb[0].mxu0
  %v908 = vadd.f32 %v495, %v907
  %v909 = vpop.f32.mrb[0].mxu0
  %v910 = vadd.f32 %v497, %v909
  %911 = vmatprep.mubr.bf16.mxu0 0
  %912 = vmatmul.mubr.bf16.gmra.mrb[0].mxu0 %v603
  %v913 = vpop.f32.mrb[0].mxu0
  %v914 = vadd.f32 %v501, %v913
  %v915 = vpop.f32.mrb[0].mxu0
  %v916 = vadd.f32 %v503, %v915
  %v917 = vpop.f32.mrb[0].mxu0
  %v918 = vadd.f32 %v505, %v917
  %v919 = vpop.f32.mrb[0].mxu0
  %v920 = vadd.f32 %v507, %v919
  %921 = vmatprep.mubr.bf16.mxu0 0
  %922 = vmatmul.mubr.bf16.gmra.mrb[0].mxu0 %v606
  %v923 = vpop.f32.mrb[0].mxu0
  %v924 = vadd.f32 %v511, %v923
  %v925 = vpop.f32.mrb[0].mxu0
  %v926 = vadd.f32 %v513, %v925
  %v927 = vpop.f32.mrb[0].mxu0
  %v928 = vadd.f32 %v515, %v927
  %v929 = vpop.f32.mrb[0].mxu0
  %v930 = vadd.f32 %v517, %v929
  %931 = vmatprep.mubr.bf16.mxu0 0
  %932 = vmatmul.mubr.bf16.gmra.mrb[0].mxu0 %v609
  %v933 = vpop.f32.mrb[0].mxu0
  %v934 = vadd.f32 %v521, %v933
  %v935 = vpop.f32.mrb[0].mxu0
  %v936 = vadd.f32 %v523, %v935
  %v937 = vpop.f32.mrb[0].mxu0
  %v938 = vadd.f32 %v525, %v937
  %v939 = vpop.f32.mrb[0].mxu0
  %v940 = vadd.f32 %v527, %v939
  %941 = vmatprep.mubr.bf16.mxu0 0
  %942 = vmatmul.mubr.bf16.gmra.mrb[0].mxu0 %v612
  %v943 = vpop.f32.mrb[0].mxu0
  %v944 = vadd.f32 %v531, %v943
  %v945 = vpop.f32.mrb[0].mxu0
  %v946 = vadd.f32 %v533, %v945
  %v947 = vpop.f32.mrb[0].mxu0
  %v948 = vadd.f32 %v535, %v947
  %v949 = vpop.f32.mrb[0].mxu0
  %v950 = vadd.f32 %v537, %v949
  %951 = vdwg.mxu0
  %s952 = scalar_lea.vmem %s1, 128
  %v953 = vld [vmem:[%s952] sm:$0xff]
  %v954 = vld [vmem:[%s952 + $0x8] sm:$0xff]
  %v955 = vld [vmem:[%s952 + $0x10] sm:$0xff]
  %v956 = vld [vmem:[%s952 + $0x18] sm:$0xff]
  %v957 = vld [vmem:[%s952 + $0x20] sm:$0xff]
  %v958 = vld [vmem:[%s952 + $0x28] sm:$0xff]
  %v959 = vld [vmem:[%s952 + $0x30] sm:$0x33]
  %v960 = vld [vmem:[%s952 + $0x38] sm:$0x33]
  %v961 = vpack.c.bf16 %v80, %v79
  %v970 = vunpack.c.l.b16 %v953
  %v971 = vunpack.c.h.b16 %v953
  %v972 = vunpack.c.l.b16 %v954
  %v973 = vunpack.c.h.b16 %v954
  %v974 = vunpack.c.l.b16 %v955
  %v975 = vunpack.c.h.b16 %v955
  %v976 = vunpack.c.l.b16 %v956
  %v977 = vunpack.c.h.b16 %v956
  %v978 = vunpack.c.l.b16 %v957
  %v979 = vunpack.c.h.b16 %v957
  %v980 = vunpack.c.l.b16 %v958
  %v981 = vunpack.c.h.b16 %v958
  %v982 = vunpack.c.l.b16 %v959
  %v983 = vunpack.c.h.b16 %v959
  %v984 = vunpack.c.l.b16 %v960
  %v985 = vunpack.c.h.b16 %v960
  %v986 = vpack.c.b16 %v974, %v970
  %v987 = vpack.c.b16 %v975, %v971
  %v988 = vpack.c.b16 %v976, %v972
  %v989 = vpack.c.b16 %v977, %v973
  %v990 = vpack.c.b16 %v982, %v978
  %v991 = vpack.c.b16 %v983, %v979
  %v992 = vpack.c.b16 %v984, %v980
  %v993 = vpack.c.b16 %v985, %v981
  %v999 = vsel %vm160, %v961, 0
  %v1002 = vsel %vm200, %v990, 0
  %v1005 = vsel %vm200, %v991, 0
  %v1008 = vsel %vm200, %v992, 0
  %v1011 = vsel %vm200, %v993, 0
  %1013 = vmatprep.subr.bf16.mxu0 %v987
  %1014 = vmatpush1.bf16.msra.mxu0 %v986
  %1015 = vmatprep.subr.bf16.mxu0 %v1005
  %1016 = vmatpush1.bf16.msra.mxu0 %v1002
  %1017 = vmatprep.subr.bf16.mxu0 0
  %1018 = vmatpush1.bf16.msra.mxu0 0
  %1019 = vmatprep.subr.bf16.mxu0 0
  %1020 = vmatpush1.bf16.msra.mxu0 0
  %1021 = vmatprep.subr.bf16.mxu0 0
  %1022 = vmatpush1.bf16.msra.mxu0 0
  %1023 = vmatprep.subr.bf16.mxu0 0
  %1024 = vmatpush1.bf16.msra.mxu0 0
  %1025 = vmatprep.subr.bf16.mxu0 0
  %1026 = vmatpush1.bf16.msra.mxu0 0
  %1027 = vmatprep.subr.bf16.mxu0 0
  %1028 = vmatpush1.bf16.msra.mxu0 0
  %1029 = vmatprep.subr.bf16.mxu0 0
  %1030 = vmatpush1.bf16.msra.mxu0 0
  %1031 = vmatprep.subr.bf16.mxu0 0
  %1032 = vmatpush1.bf16.msra.mxu0 0
  %1033 = vmatprep.subr.bf16.mxu0 0
  %1034 = vmatpush1.bf16.msra.mxu0 0
  %1035 = vmatprep.subr.bf16.mxu0 0
  %1036 = vmatpush1.bf16.msra.mxu0 0
  %1037 = vmatprep.subr.bf16.mxu0 0
  %1038 = vmatpush1.bf16.msra.mxu0 0
  %1039 = vmatprep.subr.bf16.mxu0 0
  %1040 = vmatpush1.bf16.msra.mxu0 0
  %1041 = vmatprep.subr.bf16.mxu0 0
  %1042 = vmatpush1.bf16.msra.mxu0 0
  %1043 = vmatprep.subr.bf16.mxu0 0
  %1044 = vmatpush1.bf16.msra.mxu0 0
  %1045 = vmatprep.mubr.bf16.mxu0 0
  %1046 = vmatmul.mubr.bf16.gmra.mrb[0].mxu0 %v579
  %v1047 = vpop.f32.mrb[0].mxu0
  %v1048 = vadd.f32 0.0, %v1047
  %v1049 = vpop.f32.mrb[0].mxu0
  %v1050 = vadd.f32 0.0, %v1049
  %v1051 = vpop.f32.mrb[0].mxu0
  %v1052 = vadd.f32 0.0, %v1051
  %v1053 = vpop.f32.mrb[0].mxu0
  %v1054 = vadd.f32 0.0, %v1053
  %1055 = vmatprep.mubr.bf16.mxu0 0
  %1056 = vmatmul.mubr.bf16.gmra.mrb[0].mxu0 %v582
  %v1057 = vpop.f32.mrb[0].mxu0
  %v1058 = vadd.f32 0.0, %v1057
  %v1059 = vpop.f32.mrb[0].mxu0
  %v1060 = vadd.f32 0.0, %v1059
  %v1061 = vpop.f32.mrb[0].mxu0
  %v1062 = vadd.f32 0.0, %v1061
  %v1063 = vpop.f32.mrb[0].mxu0
  %v1064 = vadd.f32 0.0, %v1063
  %1065 = vmatprep.mubr.bf16.mxu0 0
  %1066 = vmatmul.mubr.bf16.gmra.mrb[0].mxu0 %v585
  %v1067 = vpop.f32.mrb[0].mxu0
  %v1068 = vadd.f32 0.0, %v1067
  %v1069 = vpop.f32.mrb[0].mxu0
  %v1070 = vadd.f32 0.0, %v1069
  %v1071 = vpop.f32.mrb[0].mxu0
  %v1072 = vadd.f32 0.0, %v1071
  %v1073 = vpop.f32.mrb[0].mxu0
  %v1074 = vadd.f32 0.0, %v1073
  %1075 = vmatprep.mubr.bf16.mxu0 0
  %1076 = vmatmul.mubr.bf16.gmra.mrb[0].mxu0 %v588
  %v1077 = vpop.f32.mrb[0].mxu0
  %v1078 = vadd.f32 0.0, %v1077
  %v1079 = vpop.f32.mrb[0].mxu0
  %v1080 = vadd.f32 0.0, %v1079
  %v1081 = vpop.f32.mrb[0].mxu0
  %v1082 = vadd.f32 0.0, %v1081
  %v1083 = vpop.f32.mrb[0].mxu0
  %v1084 = vadd.f32 0.0, %v1083
  %1085 = vmatprep.mubr.bf16.mxu0 0
  %1086 = vmatmul.mubr.bf16.gmra.mrb[0].mxu0 %v591
  %v1087 = vpop.f32.mrb[0].mxu0
  %v1088 = vadd.f32 0.0, %v1087
  %v1089 = vpop.f32.mrb[0].mxu0
  %v1090 = vadd.f32 0.0, %v1089
  %v1091 = vpop.f32.mrb[0].mxu0
  %v1092 = vadd.f32 0.0, %v1091
  %v1093 = vpop.f32.mrb[0].mxu0
  %v1094 = vadd.f32 0.0, %v1093
  %1095 = vmatprep.mubr.bf16.mxu0 0
  %1096 = vmatmul.mubr.bf16.gmra.mrb[0].mxu0 %v594
  %v1097 = vpop.f32.mrb[0].mxu0
  %v1098 = vadd.f32 0.0, %v1097
  %v1099 = vpop.f32.mrb[0].mxu0
  %v1100 = vadd.f32 0.0, %v1099
  %v1101 = vpop.f32.mrb[0].mxu0
  %v1102 = vadd.f32 0.0, %v1101
  %v1103 = vpop.f32.mrb[0].mxu0
  %v1104 = vadd.f32 0.0, %v1103
  %1105 = vmatprep.mubr.bf16.mxu0 0
  %1106 = vmatmul.mubr.bf16.gmra.mrb[0].mxu0 %v597
  %v1107 = vpop.f32.mrb[0].mxu0
  %v1108 = vadd.f32 0.0, %v1107
  %v1109 = vpop.f32.mrb[0].mxu0
  %v1110 = vadd.f32 0.0, %v1109
  %v1111 = vpop.f32.mrb[0].mxu0
  %v1112 = vadd.f32 0.0, %v1111
  %v1113 = vpop.f32.mrb[0].mxu0
  %v1114 = vadd.f32 0.0, %v1113
  %1115 = vmatprep.mubr.bf16.mxu0 0
  %1116 = vmatmul.mubr.bf16.gmra.mrb[0].mxu0 %v600
  %v1117 = vpop.f32.mrb[0].mxu0
  %v1118 = vadd.f32 0.0, %v1117
  %v1119 = vpop.f32.mrb[0].mxu0
  %v1120 = vadd.f32 0.0, %v1119
  %v1121 = vpop.f32.mrb[0].mxu0
  %v1122 = vadd.f32 0.0, %v1121
  %v1123 = vpop.f32.mrb[0].mxu0
  %v1124 = vadd.f32 0.0, %v1123
  %1125 = vmatprep.mubr.bf16.mxu0 0
  %1126 = vmatmul.mubr.bf16.gmra.mrb[0].mxu0 %v603
  %v1127 = vpop.f32.mrb[0].mxu0
  %v1128 = vadd.f32 0.0, %v1127
  %v1129 = vpop.f32.mrb[0].mxu0
  %v1130 = vadd.f32 0.0, %v1129
  %v1131 = vpop.f32.mrb[0].mxu0
  %v1132 = vadd.f32 0.0, %v1131
  %v1133 = vpop.f32.mrb[0].mxu0
  %v1134 = vadd.f32 0.0, %v1133
  %1135 = vmatprep.mubr.bf16.mxu0 0
  %1136 = vmatmul.mubr.bf16.gmra.mrb[0].mxu0 %v606
  %v1137 = vpop.f32.mrb[0].mxu0
  %v1138 = vadd.f32 0.0, %v1137
  %v1139 = vpop.f32.mrb[0].mxu0
  %v1140 = vadd.f32 0.0, %v1139
  %v1141 = vpop.f32.mrb[0].mxu0
  %v1142 = vadd.f32 0.0, %v1141
  %v1143 = vpop.f32.mrb[0].mxu0
  %v1144 = vadd.f32 0.0, %v1143
  %1145 = vmatprep.mubr.bf16.mxu0 0
  %1146 = vmatmul.mubr.bf16.gmra.mrb[0].mxu0 %v609
  %v1147 = vpop.f32.mrb[0].mxu0
  %v1148 = vadd.f32 0.0, %v1147
  %v1149 = vpop.f32.mrb[0].mxu0
  %v1150 = vadd.f32 0.0, %v1149
  %v1151 = vpop.f32.mrb[0].mxu0
  %v1152 = vadd.f32 0.0, %v1151
  %v1153 = vpop.f32.mrb[0].mxu0
  %v1154 = vadd.f32 0.0, %v1153
  %1155 = vmatprep.mubr.bf16.mxu0 0
  %1156 = vmatmul.mubr.bf16.gmra.mrb[0].mxu0 %v612
  %v1157 = vpop.f32.mrb[0].mxu0
  %v1158 = vadd.f32 0.0, %v1157
  %v1159 = vpop.f32.mrb[0].mxu0
  %v1160 = vadd.f32 0.0, %v1159
  %v1161 = vpop.f32.mrb[0].mxu0
  %v1162 = vadd.f32 0.0, %v1161
  %v1163 = vpop.f32.mrb[0].mxu0
  %v1164 = vadd.f32 0.0, %v1163
  %1165 = vmatprep.mubr.bf16.mxu0 0
  %1166 = vmatmul.mubr.bf16.gmra.mrb[0].mxu0 %v999
  %v1167 = vpop.f32.mrb[0].mxu0
  %v1168 = vadd.f32 0.0, %v1167
  %v1169 = vpop.f32.mrb[0].mxu0
  %v1170 = vadd.f32 0.0, %v1169
  %v1171 = vpop.f32.mrb[0].mxu0
  %v1172 = vadd.f32 0.0, %v1171
  %v1173 = vpop.f32.mrb[0].mxu0
  %v1174 = vadd.f32 0.0, %v1173
  %1175 = vdwg.mxu0
  %1176 = vmatprep.subr.bf16.mxu0 %v989
  %1177 = vmatpush1.bf16.msra.mxu0 %v988
  %1178 = vmatprep.subr.bf16.mxu0 %v1011
  %1179 = vmatpush1.bf16.msra.mxu0 %v1008
  %1180 = vmatprep.subr.bf16.mxu0 0
  %1181 = vmatpush1.bf16.msra.mxu0 0
  %1182 = vmatprep.subr.bf16.mxu0 0
  %1183 = vmatpush1.bf16.msra.mxu0 0
  %1184 = vmatprep.subr.bf16.mxu0 0
  %1185 = vmatpush1.bf16.msra.mxu0 0
  %1186 = vmatprep.subr.bf16.mxu0 0
  %1187 = vmatpush1.bf16.msra.mxu0 0
  %1188 = vmatprep.subr.bf16.mxu0 0
  %1189 = vmatpush1.bf16.msra.mxu0 0
  %1190 = vmatprep.subr.bf16.mxu0 0
  %1191 = vmatpush1.bf16.msra.mxu0 0
  %1192 = vmatprep.subr.bf16.mxu0 0
  %1193 = vmatpush1.bf16.msra.mxu0 0
  %1194 = vmatprep.subr.bf16.mxu0 0
  %1195 = vmatpush1.bf16.msra.mxu0 0
  %1196 = vmatprep.subr.bf16.mxu0 0
  %1197 = vmatpush1.bf16.msra.mxu0 0
  %1198 = vmatprep.subr.bf16.mxu0 0
  %1199 = vmatpush1.bf16.msra.mxu0 0
  %1200 = vmatprep.subr.bf16.mxu0 0
  %1201 = vmatpush1.bf16.msra.mxu0 0
  %1202 = vmatprep.subr.bf16.mxu0 0
  %1203 = vmatpush1.bf16.msra.mxu0 0
  %1204 = vmatprep.subr.bf16.mxu0 0
  %1205 = vmatpush1.bf16.msra.mxu0 0
  %1206 = vmatprep.subr.bf16.mxu0 0
  %1207 = vmatpush1.bf16.msra.mxu0 0
  %1208 = vmatprep.mubr.bf16.mxu0 0
  %1209 = vmatmul.mubr.bf16.gmra.mrb[0].mxu0 %v579
  %v1210 = vpop.f32.mrb[0].mxu0
  %v1211 = vadd.f32 0.0, %v1210
  %v1212 = vpop.f32.mrb[0].mxu0
  %v1213 = vadd.f32 0.0, %v1212
  %v1214 = vpop.f32.mrb[0].mxu0
  %v1215 = vadd.f32 0.0, %v1214
  %v1216 = vpop.f32.mrb[0].mxu0
  %v1217 = vadd.f32 0.0, %v1216
  %1218 = vmatprep.mubr.bf16.mxu0 0
  %1219 = vmatmul.mubr.bf16.gmra.mrb[0].mxu0 %v582
  %v1220 = vpop.f32.mrb[0].mxu0
  %v1221 = vadd.f32 0.0, %v1220
  %v1222 = vpop.f32.mrb[0].mxu0
  %v1223 = vadd.f32 0.0, %v1222
  %v1224 = vpop.f32.mrb[0].mxu0
  %v1225 = vadd.f32 0.0, %v1224
  %v1226 = vpop.f32.mrb[0].mxu0
  %v1227 = vadd.f32 0.0, %v1226
  %1228 = vmatprep.mubr.bf16.mxu0 0
  %1229 = vmatmul.mubr.bf16.gmra.mrb[0].mxu0 %v585
  %v1230 = vpop.f32.mrb[0].mxu0
  %v1231 = vadd.f32 0.0, %v1230
  %v1232 = vpop.f32.mrb[0].mxu0
  %v1233 = vadd.f32 0.0, %v1232
  %v1234 = vpop.f32.mrb[0].mxu0
  %v1235 = vadd.f32 0.0, %v1234
  %v1236 = vpop.f32.mrb[0].mxu0
  %v1237 = vadd.f32 0.0, %v1236
  %1238 = vmatprep.mubr.bf16.mxu0 0
  %1239 = vmatmul.mubr.bf16.gmra.mrb[0].mxu0 %v588
  %v1240 = vpop.f32.mrb[0].mxu0
  %v1241 = vadd.f32 0.0, %v1240
  %v1242 = vpop.f32.mrb[0].mxu0
  %v1243 = vadd.f32 0.0, %v1242
  %v1244 = vpop.f32.mrb[0].mxu0
  %v1245 = vadd.f32 0.0, %v1244
  %v1246 = vpop.f32.mrb[0].mxu0
  %v1247 = vadd.f32 0.0, %v1246
  %1248 = vmatprep.mubr.bf16.mxu0 0
  %1249 = vmatmul.mubr.bf16.gmra.mrb[0].mxu0 %v591
  %v1250 = vpop.f32.mrb[0].mxu0
  %v1251 = vadd.f32 0.0, %v1250
  %v1252 = vpop.f32.mrb[0].mxu0
  %v1253 = vadd.f32 0.0, %v1252
  %v1254 = vpop.f32.mrb[0].mxu0
  %v1255 = vadd.f32 0.0, %v1254
  %v1256 = vpop.f32.mrb[0].mxu0
  %v1257 = vadd.f32 0.0, %v1256
  %1258 = vmatprep.mubr.bf16.mxu0 0
  %1259 = vmatmul.mubr.bf16.gmra.mrb[0].mxu0 %v594
  %v1260 = vpop.f32.mrb[0].mxu0
  %v1261 = vadd.f32 0.0, %v1260
  %v1262 = vpop.f32.mrb[0].mxu0
  %v1263 = vadd.f32 0.0, %v1262
  %v1264 = vpop.f32.mrb[0].mxu0
  %v1265 = vadd.f32 0.0, %v1264
  %v1266 = vpop.f32.mrb[0].mxu0
  %v1267 = vadd.f32 0.0, %v1266
  %1268 = vmatprep.mubr.bf16.mxu0 0
  %1269 = vmatmul.mubr.bf16.gmra.mrb[0].mxu0 %v597
  %v1270 = vpop.f32.mrb[0].mxu0
  %v1271 = vadd.f32 0.0, %v1270
  %v1272 = vpop.f32.mrb[0].mxu0
  %v1273 = vadd.f32 0.0, %v1272
  %v1274 = vpop.f32.mrb[0].mxu0
  %v1275 = vadd.f32 0.0, %v1274
  %v1276 = vpop.f32.mrb[0].mxu0
  %v1277 = vadd.f32 0.0, %v1276
  %1278 = vmatprep.mubr.bf16.mxu0 0
  %1279 = vmatmul.mubr.bf16.gmra.mrb[0].mxu0 %v600
  %v1280 = vpop.f32.mrb[0].mxu0
  %v1281 = vadd.f32 0.0, %v1280
  %v1282 = vpop.f32.mrb[0].mxu0
  %v1283 = vadd.f32 0.0, %v1282
  %v1284 = vpop.f32.mrb[0].mxu0
  %v1285 = vadd.f32 0.0, %v1284
  %v1286 = vpop.f32.mrb[0].mxu0
  %v1287 = vadd.f32 0.0, %v1286
  %1288 = vmatprep.mubr.bf16.mxu0 0
  %1289 = vmatmul.mubr.bf16.gmra.mrb[0].mxu0 %v603
  %v1290 = vpop.f32.mrb[0].mxu0
  %v1291 = vadd.f32 0.0, %v1290
  %v1292 = vpop.f32.mrb[0].mxu0
  %v1293 = vadd.f32 0.0, %v1292
  %v1294 = vpop.f32.mrb[0].mxu0
  %v1295 = vadd.f32 0.0, %v1294
  %v1296 = vpop.f32.mrb[0].mxu0
  %v1297 = vadd.f32 0.0, %v1296
  %1298 = vmatprep.mubr.bf16.mxu0 0
  %1299 = vmatmul.mubr.bf16.gmra.mrb[0].mxu0 %v606
  %v1300 = vpop.f32.mrb[0].mxu0
  %v1301 = vadd.f32 0.0, %v1300
  %v1302 = vpop.f32.mrb[0].mxu0
  %v1303 = vadd.f32 0.0, %v1302
  %v1304 = vpop.f32.mrb[0].mxu0
  %v1305 = vadd.f32 0.0, %v1304
  %v1306 = vpop.f32.mrb[0].mxu0
  %v1307 = vadd.f32 0.0, %v1306
  %1308 = vmatprep.mubr.bf16.mxu0 0
  %1309 = vmatmul.mubr.bf16.gmra.mrb[0].mxu0 %v609
  %v1310 = vpop.f32.mrb[0].mxu0
  %v1311 = vadd.f32 0.0, %v1310
  %v1312 = vpop.f32.mrb[0].mxu0
  %v1313 = vadd.f32 0.0, %v1312
  %v1314 = vpop.f32.mrb[0].mxu0
  %v1315 = vadd.f32 0.0, %v1314
  %v1316 = vpop.f32.mrb[0].mxu0
  %v1317 = vadd.f32 0.0, %v1316
  %1318 = vmatprep.mubr.bf16.mxu0 0
  %1319 = vmatmul.mubr.bf16.gmra.mrb[0].mxu0 %v612
  %v1320 = vpop.f32.mrb[0].mxu0
  %v1321 = vadd.f32 0.0, %v1320
  %v1322 = vpop.f32.mrb[0].mxu0
  %v1323 = vadd.f32 0.0, %v1322
  %v1324 = vpop.f32.mrb[0].mxu0
  %v1325 = vadd.f32 0.0, %v1324
  %v1326 = vpop.f32.mrb[0].mxu0
  %v1327 = vadd.f32 0.0, %v1326
  %1328 = vmatprep.mubr.bf16.mxu0 0
  %1329 = vmatmul.mubr.bf16.gmra.mrb[0].mxu0 %v999
  %v1330 = vpop.f32.mrb[0].mxu0
  %v1331 = vadd.f32 0.0, %v1330
  %v1332 = vpop.f32.mrb[0].mxu0
  %v1333 = vadd.f32 0.0, %v1332
  %v1334 = vpop.f32.mrb[0].mxu0
  %v1335 = vadd.f32 0.0, %v1334
  %v1336 = vpop.f32.mrb[0].mxu0
  %v1337 = vadd.f32 0.0, %v1336
  %1338 = vdwg.mxu0
  %v1339 = vadd.f32 %v661, %v1048
  %v1340 = vadd.f32 %v663, %v1050
  %v1341 = vadd.f32 %v824, %v1211
  %v1342 = vadd.f32 %v826, %v1213
  %v1343 = vadd.f32 %v665, %v1052
  %v1344 = vadd.f32 %v667, %v1054
  %v1345 = vadd.f32 %v828, %v1215
  %v1346 = vadd.f32 %v830, %v1217
  %v1347 = vadd.f32 %v671, %v1058
  %v1348 = vadd.f32 %v673, %v1060
  %v1349 = vadd.f32 %v834, %v1221
  %v1350 = vadd.f32 %v836, %v1223
  %v1351 = vadd.f32 %v675, %v1062
  %v1352 = vadd.f32 %v677, %v1064
  %v1353 = vadd.f32 %v838, %v1225
  %v1354 = vadd.f32 %v840, %v1227
  %v1355 = vadd.f32 %v681, %v1068
  %v1356 = vadd.f32 %v683, %v1070
  %v1357 = vadd.f32 %v844, %v1231
  %v1358 = vadd.f32 %v846, %v1233
  %v1359 = vadd.f32 %v685, %v1072
  %v1360 = vadd.f32 %v687, %v1074
  %v1361 = vadd.f32 %v848, %v1235
  %v1362 = vadd.f32 %v850, %v1237
  %v1363 = vadd.f32 %v691, %v1078
  %v1364 = vadd.f32 %v693, %v1080
  %v1365 = vadd.f32 %v854, %v1241
  %v1366 = vadd.f32 %v856, %v1243
  %v1367 = vadd.f32 %v695, %v1082
  %v1368 = vadd.f32 %v697, %v1084
  %v1369 = vadd.f32 %v858, %v1245
  %v1370 = vadd.f32 %v860, %v1247
  %v1371 = vadd.f32 %v701, %v1088
  %v1372 = vadd.f32 %v703, %v1090
  %v1373 = vadd.f32 %v864, %v1251
  %v1374 = vadd.f32 %v866, %v1253
  %v1375 = vadd.f32 %v705, %v1092
  %v1376 = vadd.f32 %v707, %v1094
  %v1377 = vadd.f32 %v868, %v1255
  %v1378 = vadd.f32 %v870, %v1257
  %v1379 = vadd.f32 %v711, %v1098
  %v1380 = vadd.f32 %v713, %v1100
  %v1381 = vadd.f32 %v874, %v1261
  %v1382 = vadd.f32 %v876, %v1263
  %v1383 = vadd.f32 %v715, %v1102
  %v1384 = vadd.f32 %v717, %v1104
  %v1385 = vadd.f32 %v878, %v1265
  %v1386 = vadd.f32 %v880, %v1267
  %v1387 = vadd.f32 %v721, %v1108
  %v1388 = vadd.f32 %v723, %v1110
  %v1389 = vadd.f32 %v884, %v1271
  %v1390 = vadd.f32 %v886, %v1273
  %v1391 = vadd.f32 %v725, %v1112
  %v1392 = vadd.f32 %v727, %v1114
  %v1393 = vadd.f32 %v888, %v1275
  %v1394 = vadd.f32 %v890, %v1277
  %v1395 = vadd.f32 %v731, %v1118
  %v1396 = vadd.f32 %v733, %v1120
  %v1397 = vadd.f32 %v894, %v1281
  %v1398 = vadd.f32 %v896, %v1283
  %v1399 = vadd.f32 %v735, %v1122
  %v1400 = vadd.f32 %v737, %v1124
  %v1401 = vadd.f32 %v898, %v1285
  %v1402 = vadd.f32 %v900, %v1287
  %v1403 = vadd.f32 %v741, %v1128
  %v1404 = vadd.f32 %v743, %v1130
  %v1405 = vadd.f32 %v904, %v1291
  %v1406 = vadd.f32 %v906, %v1293
  %v1407 = vadd.f32 %v745, %v1132
  %v1408 = vadd.f32 %v747, %v1134
  %v1409 = vadd.f32 %v908, %v1295
  %v1410 = vadd.f32 %v910, %v1297
  %v1411 = vadd.f32 %v751, %v1138
  %v1412 = vadd.f32 %v753, %v1140
  %v1413 = vadd.f32 %v914, %v1301
  %v1414 = vadd.f32 %v916, %v1303
  %v1415 = vadd.f32 %v755, %v1142
  %v1416 = vadd.f32 %v757, %v1144
  %v1417 = vadd.f32 %v918, %v1305
  %v1418 = vadd.f32 %v920, %v1307
  %v1419 = vadd.f32 %v761, %v1148
  %v1420 = vadd.f32 %v763, %v1150
  %v1421 = vadd.f32 %v924, %v1311
  %v1422 = vadd.f32 %v926, %v1313
  %v1423 = vadd.f32 %v765, %v1152
  %v1424 = vadd.f32 %v767, %v1154
  %v1425 = vadd.f32 %v928, %v1315
  %v1426 = vadd.f32 %v930, %v1317
  %v1427 = vadd.f32 %v771, %v1158
  %v1428 = vadd.f32 %v773, %v1160
  %v1429 = vadd.f32 %v934, %v1321
  %v1430 = vadd.f32 %v936, %v1323
  %v1431 = vadd.f32 %v775, %v1162
  %v1432 = vadd.f32 %v777, %v1164
  %v1433 = vadd.f32 %v938, %v1325
  %v1434 = vadd.f32 %v940, %v1327
  %v1435 = vadd.f32 %v781, %v1168
  %v1436 = vadd.f32 %v783, %v1170
  %v1437 = vadd.f32 %v944, %v1331
  %v1438 = vadd.f32 %v946, %v1333
  %v1439 = vadd.f32 %v785, %v1172
  %v1440 = vadd.f32 %v787, %v1174
  %v1441 = vadd.f32 %v948, %v1335
  %v1442 = vadd.f32 %v950, %v1337
  %v1443 = vld [vmem:[%s2] sm:$0xf]
  %v1445 = vlaneseq
  %v1446 = vshrl.u32 %v1445, 7
  %v1447 = vsub.s32 0, %v1446
  %v1448 = vrot.slane %v1443, %v1447
  %v1449 = vlaneseq
  %v1450 = vshrl.u32 %v1449, 7
  %v1451 = vsub.s32 1, %v1450
  %v1452 = vrot.slane %v1443, %v1451
  %v1453 = vlaneseq
  %v1454 = vshrl.u32 %v1453, 7
  %v1455 = vsub.s32 2, %v1454
  %v1456 = vrot.slane %v1443, %v1455
  %v1457 = vlaneseq
  %v1458 = vshrl.u32 %v1457, 7
  %v1459 = vsub.s32 3, %v1458
  %v1460 = vrot.slane %v1443, %v1459
  %v1465 = vadd.f32 %v1339, %v1448
  %v1466 = vadd.f32 %v1340, %v1452
  %v1467 = vadd.f32 %v1341, %v1456
  %v1468 = vadd.f32 %v1342, %v1460
  %v1469 = vadd.f32 %v1343, %v1448
  %v1470 = vadd.f32 %v1344, %v1452
  %v1471 = vadd.f32 %v1345, %v1456
  %v1472 = vadd.f32 %v1346, %v1460
  %v1473 = vadd.f32 %v1347, %v1448
  %v1474 = vadd.f32 %v1348, %v1452
  %v1475 = vadd.f32 %v1349, %v1456
  %v1476 = vadd.f32 %v1350, %v1460
  %v1477 = vadd.f32 %v1351, %v1448
  %v1478 = vadd.f32 %v1352, %v1452
  %v1479 = vadd.f32 %v1353, %v1456
  %v1480 = vadd.f32 %v1354, %v1460
  %v1481 = vadd.f32 %v1355, %v1448
  %v1482 = vadd.f32 %v1356, %v1452
  %v1483 = vadd.f32 %v1357, %v1456
  %v1484 = vadd.f32 %v1358, %v1460
  %v1485 = vadd.f32 %v1359, %v1448
  %v1486 = vadd.f32 %v1360, %v1452
  %v1487 = vadd.f32 %v1361, %v1456
  %v1488 = vadd.f32 %v1362, %v1460
  %v1489 = vadd.f32 %v1363, %v1448
  %v1490 = vadd.f32 %v1364, %v1452
  %v1491 = vadd.f32 %v1365, %v1456
  %v1492 = vadd.f32 %v1366, %v1460
  %v1493 = vadd.f32 %v1367, %v1448
  %v1494 = vadd.f32 %v1368, %v1452
  %v1495 = vadd.f32 %v1369, %v1456
  %v1496 = vadd.f32 %v1370, %v1460
  %v1497 = vadd.f32 %v1371, %v1448
  %v1498 = vadd.f32 %v1372, %v1452
  %v1499 = vadd.f32 %v1373, %v1456
  %v1500 = vadd.f32 %v1374, %v1460
  %v1501 = vadd.f32 %v1375, %v1448
  %v1502 = vadd.f32 %v1376, %v1452
  %v1503 = vadd.f32 %v1377, %v1456
  %v1504 = vadd.f32 %v1378, %v1460
  %v1505 = vadd.f32 %v1379, %v1448
  %v1506 = vadd.f32 %v1380, %v1452
  %v1507 = vadd.f32 %v1381, %v1456
  %v1508 = vadd.f32 %v1382, %v1460
  %v1509 = vadd.f32 %v1383, %v1448
  %v1510 = vadd.f32 %v1384, %v1452
  %v1511 = vadd.f32 %v1385, %v1456
  %v1512 = vadd.f32 %v1386, %v1460
  %v1513 = vadd.f32 %v1387, %v1448
  %v1514 = vadd.f32 %v1388, %v1452
  %v1515 = vadd.f32 %v1389, %v1456
  %v1516 = vadd.f32 %v1390, %v1460
  %v1517 = vadd.f32 %v1391, %v1448
  %v1518 = vadd.f32 %v1392, %v1452
  %v1519 = vadd.f32 %v1393, %v1456
  %v1520 = vadd.f32 %v1394, %v1460
  %v1521 = vadd.f32 %v1395, %v1448
  %v1522 = vadd.f32 %v1396, %v1452
  %v1523 = vadd.f32 %v1397, %v1456
  %v1524 = vadd.f32 %v1398, %v1460
  %v1525 = vadd.f32 %v1399, %v1448
  %v1526 = vadd.f32 %v1400, %v1452
  %v1527 = vadd.f32 %v1401, %v1456
  %v1528 = vadd.f32 %v1402, %v1460
  %v1529 = vadd.f32 %v1403, %v1448
  %v1530 = vadd.f32 %v1404, %v1452
  %v1531 = vadd.f32 %v1405, %v1456
  %v1532 = vadd.f32 %v1406, %v1460
  %v1533 = vadd.f32 %v1407, %v1448
  %v1534 = vadd.f32 %v1408, %v1452
  %v1535 = vadd.f32 %v1409, %v1456
  %v1536 = vadd.f32 %v1410, %v1460
  %v1537 = vadd.f32 %v1411, %v1448
  %v1538 = vadd.f32 %v1412, %v1452
  %v1539 = vadd.f32 %v1413, %v1456
  %v1540 = vadd.f32 %v1414, %v1460
  %v1541 = vadd.f32 %v1415, %v1448
  %v1542 = vadd.f32 %v1416, %v1452
  %v1543 = vadd.f32 %v1417, %v1456
  %v1544 = vadd.f32 %v1418, %v1460
  %v1545 = vadd.f32 %v1419, %v1448
  %v1546 = vadd.f32 %v1420, %v1452
  %v1547 = vadd.f32 %v1421, %v1456
  %v1548 = vadd.f32 %v1422, %v1460
  %v1549 = vadd.f32 %v1423, %v1448
  %v1550 = vadd.f32 %v1424, %v1452
  %v1551 = vadd.f32 %v1425, %v1456
  %v1552 = vadd.f32 %v1426, %v1460
  %v1553 = vadd.f32 %v1427, %v1448
  %v1554 = vadd.f32 %v1428, %v1452
  %v1555 = vadd.f32 %v1429, %v1456
  %v1556 = vadd.f32 %v1430, %v1460
  %v1557 = vadd.f32 %v1431, %v1448
  %v1558 = vadd.f32 %v1432, %v1452
  %v1559 = vadd.f32 %v1433, %v1456
  %v1560 = vadd.f32 %v1434, %v1460
  %v1561 = vadd.f32 %v1435, %v1448
  %v1562 = vadd.f32 %v1436, %v1452
  %v1563 = vadd.f32 %v1437, %v1456
  %v1564 = vadd.f32 %v1438, %v1460
  %v1565 = vadd.f32 %v1439, %v1448
  %v1566 = vadd.f32 %v1440, %v1452
  %v1567 = vadd.f32 %v1441, %v1456
  %v1568 = vadd.f32 %v1442, %v1460
  %v1569 = vmax.f32 %v1465, 0.0
  %v1570 = vmax.f32 %v1466, 0.0
  %v1571 = vmax.f32 %v1467, 0.0
  %v1572 = vmax.f32 %v1468, 0.0
  %v1573 = vmax.f32 %v1469, 0.0
  %v1574 = vmax.f32 %v1470, 0.0
  %v1575 = vmax.f32 %v1471, 0.0
  %v1576 = vmax.f32 %v1472, 0.0
  %v1577 = vmax.f32 %v1473, 0.0
  %v1578 = vmax.f32 %v1474, 0.0
  %v1579 = vmax.f32 %v1475, 0.0
  %v1580 = vmax.f32 %v1476, 0.0
  %v1581 = vmax.f32 %v1477, 0.0
  %v1582 = vmax.f32 %v1478, 0.0
  %v1583 = vmax.f32 %v1479, 0.0
  %v1584 = vmax.f32 %v1480, 0.0
  %v1585 = vmax.f32 %v1481, 0.0
  %v1586 = vmax.f32 %v1482, 0.0
  %v1587 = vmax.f32 %v1483, 0.0
  %v1588 = vmax.f32 %v1484, 0.0
  %v1589 = vmax.f32 %v1485, 0.0
  %v1590 = vmax.f32 %v1486, 0.0
  %v1591 = vmax.f32 %v1487, 0.0
  %v1592 = vmax.f32 %v1488, 0.0
  %v1593 = vmax.f32 %v1489, 0.0
  %v1594 = vmax.f32 %v1490, 0.0
  %v1595 = vmax.f32 %v1491, 0.0
  %v1596 = vmax.f32 %v1492, 0.0
  %v1597 = vmax.f32 %v1493, 0.0
  %v1598 = vmax.f32 %v1494, 0.0
  %v1599 = vmax.f32 %v1495, 0.0
  %v1600 = vmax.f32 %v1496, 0.0
  %v1601 = vmax.f32 %v1497, 0.0
  %v1602 = vmax.f32 %v1498, 0.0
  %v1603 = vmax.f32 %v1499, 0.0
  %v1604 = vmax.f32 %v1500, 0.0
  %v1605 = vmax.f32 %v1501, 0.0
  %v1606 = vmax.f32 %v1502, 0.0
  %v1607 = vmax.f32 %v1503, 0.0
  %v1608 = vmax.f32 %v1504, 0.0
  %v1609 = vmax.f32 %v1505, 0.0
  %v1610 = vmax.f32 %v1506, 0.0
  %v1611 = vmax.f32 %v1507, 0.0
  %v1612 = vmax.f32 %v1508, 0.0
  %v1613 = vmax.f32 %v1509, 0.0
  %v1614 = vmax.f32 %v1510, 0.0
  %v1615 = vmax.f32 %v1511, 0.0
  %v1616 = vmax.f32 %v1512, 0.0
  %v1617 = vmax.f32 %v1513, 0.0
  %v1618 = vmax.f32 %v1514, 0.0
  %v1619 = vmax.f32 %v1515, 0.0
  %v1620 = vmax.f32 %v1516, 0.0
  %v1621 = vmax.f32 %v1517, 0.0
  %v1622 = vmax.f32 %v1518, 0.0
  %v1623 = vmax.f32 %v1519, 0.0
  %v1624 = vmax.f32 %v1520, 0.0
  %v1625 = vmax.f32 %v1521, 0.0
  %v1626 = vmax.f32 %v1522, 0.0
  %v1627 = vmax.f32 %v1523, 0.0
  %v1628 = vmax.f32 %v1524, 0.0
  %v1629 = vmax.f32 %v1525, 0.0
  %v1630 = vmax.f32 %v1526, 0.0
  %v1631 = vmax.f32 %v1527, 0.0
  %v1632 = vmax.f32 %v1528, 0.0
  %v1633 = vmax.f32 %v1529, 0.0
  %v1634 = vmax.f32 %v1530, 0.0
  %v1635 = vmax.f32 %v1531, 0.0
  %v1636 = vmax.f32 %v1532, 0.0
  %v1637 = vmax.f32 %v1533, 0.0
  %v1638 = vmax.f32 %v1534, 0.0
  %v1639 = vmax.f32 %v1535, 0.0
  %v1640 = vmax.f32 %v1536, 0.0
  %v1641 = vmax.f32 %v1537, 0.0
  %v1642 = vmax.f32 %v1538, 0.0
  %v1643 = vmax.f32 %v1539, 0.0
  %v1644 = vmax.f32 %v1540, 0.0
  %v1645 = vmax.f32 %v1541, 0.0
  %v1646 = vmax.f32 %v1542, 0.0
  %v1647 = vmax.f32 %v1543, 0.0
  %v1648 = vmax.f32 %v1544, 0.0
  %v1649 = vmax.f32 %v1545, 0.0
  %v1650 = vmax.f32 %v1546, 0.0
  %v1651 = vmax.f32 %v1547, 0.0
  %v1652 = vmax.f32 %v1548, 0.0
  %v1653 = vmax.f32 %v1549, 0.0
  %v1654 = vmax.f32 %v1550, 0.0
  %v1655 = vmax.f32 %v1551, 0.0
  %v1656 = vmax.f32 %v1552, 0.0
  %v1657 = vmax.f32 %v1553, 0.0
  %v1658 = vmax.f32 %v1554, 0.0
  %v1659 = vmax.f32 %v1555, 0.0
  %v1660 = vmax.f32 %v1556, 0.0
  %v1661 = vmax.f32 %v1557, 0.0
  %v1662 = vmax.f32 %v1558, 0.0
  %v1663 = vmax.f32 %v1559, 0.0
  %v1664 = vmax.f32 %v1560, 0.0
  %v1665 = vmax.f32 %v1561, 0.0
  %v1666 = vmax.f32 %v1562, 0.0
  %v1667 = vmax.f32 %v1563, 0.0
  %v1668 = vmax.f32 %v1564, 0.0
  %v1669 = vmax.f32 %v1565, 0.0
  %v1670 = vmax.f32 %v1566, 0.0
  %v1671 = vmax.f32 %v1567, 0.0
  %v1672 = vmax.f32 %v1568, 0.0
  %v1673 = vmax.f32 %v1569, %v1573
  %v1674 = vmax.f32 %v1570, %v1574
  %v1675 = vmax.f32 %v1571, %v1575
  %v1676 = vmax.f32 %v1572, %v1576
  %v1677 = vmax.f32 %v1577, %v1581
  %v1678 = vmax.f32 %v1578, %v1582
  %v1679 = vmax.f32 %v1579, %v1583
  %v1680 = vmax.f32 %v1580, %v1584
  %v1681 = vmax.f32 %v1585, %v1589
  %v1682 = vmax.f32 %v1586, %v1590
  %v1683 = vmax.f32 %v1587, %v1591
  %v1684 = vmax.f32 %v1588, %v1592
  %v1685 = vmax.f32 %v1593, %v1597
  %v1686 = vmax.f32 %v1594, %v1598
  %v1687 = vmax.f32 %v1595, %v1599
  %v1688 = vmax.f32 %v1596, %v1600
  %v1689 = vmax.f32 %v1601, %v1605
  %v1690 = vmax.f32 %v1602, %v1606
  %v1691 = vmax.f32 %v1603, %v1607
  %v1692 = vmax.f32 %v1604, %v1608
  %v1693 = vmax.f32 %v1609, %v1613
  %v1694 = vmax.f32 %v1610, %v1614
  %v1695 = vmax.f32 %v1611, %v1615
  %v1696 = vmax.f32 %v1612, %v1616
  %v1697 = vmax.f32 %v1617, %v1621
  %v1698 = vmax.f32 %v1618, %v1622
  %v1699 = vmax.f32 %v1619, %v1623
  %v1700 = vmax.f32 %v1620, %v1624
  %v1701 = vmax.f32 %v1625, %v1629
  %v1702 = vmax.f32 %v1626, %v1630
  %v1703 = vmax.f32 %v1627, %v1631
  %v1704 = vmax.f32 %v1628, %v1632
  %v1705 = vmax.f32 %v1633, %v1637
  %v1706 = vmax.f32 %v1634, %v1638
  %v1707 = vmax.f32 %v1635, %v1639
  %v1708 = vmax.f32 %v1636, %v1640
  %v1709 = vmax.f32 %v1641, %v1645
  %v1710 = vmax.f32 %v1642, %v1646
  %v1711 = vmax.f32 %v1643, %v1647
  %v1712 = vmax.f32 %v1644, %v1648
  %v1713 = vmax.f32 %v1649, %v1653
  %v1714 = vmax.f32 %v1650, %v1654
  %v1715 = vmax.f32 %v1651, %v1655
  %v1716 = vmax.f32 %v1652, %v1656
  %v1717 = vmax.f32 %v1657, %v1661
  %v1718 = vmax.f32 %v1658, %v1662
  %v1719 = vmax.f32 %v1659, %v1663
  %v1720 = vmax.f32 %v1660, %v1664
  %v1721 = vmax.f32 %v1665, %v1669
  %v1722 = vmax.f32 %v1666, %v1670
  %v1723 = vmax.f32 %v1667, %v1671
  %v1724 = vmax.f32 %v1668, %v1672
  %v1725 = vld [vmem:[%s3] sm:$0xff]
  %v1726 = vld [vmem:[%s3 + $0x8] sm:$0xff]
  %v1727 = vld [vmem:[%s3 + $0x10] sm:$0xff]
  %v1728 = vld [vmem:[%s3 + $0x18] sm:$0xff]
  %v1729 = vld [vmem:[%s3 + $0x20] sm:$0xff]
  %v1730 = vld [vmem:[%s3 + $0x28] sm:$0xff]
  %v1731 = vld [vmem:[%s3 + $0x30] sm:$0xff]
  %v1732 = vld [vmem:[%s3 + $0x38] sm:$0xff]
  %v1733 = vld [vmem:[%s3 + $0x40] sm:$0xff]
  %v1734 = vld [vmem:[%s3 + $0x48] sm:$0xff]
  %v1735 = vld [vmem:[%s3 + $0x50] sm:$0xff]
  %v1736 = vld [vmem:[%s3 + $0x58] sm:$0xff]
  %v1737 = vld [vmem:[%s3 + $0x60] sm:$0xff]
  %v1738 = vld [vmem:[%s3 + $0x68] sm:$0xff]
  %v1739 = vld [vmem:[%s3 + $0x70] sm:$0xff]
  %v1740 = vld [vmem:[%s3 + $0x78] sm:$0xff]
  %v1741 = vld [vmem:[%s3 + $0x80] sm:$0xff]
  %v1742 = vld [vmem:[%s3 + $0x88] sm:$0xff]
  %v1743 = vld [vmem:[%s3 + $0x90] sm:$0xff]
  %v1744 = vld [vmem:[%s3 + $0x98] sm:$0xff]
  %v1745 = vld [vmem:[%s3 + $0xa0] sm:$0xff]
  %v1746 = vld [vmem:[%s3 + $0xa8] sm:$0xff]
  %v1747 = vld [vmem:[%s3 + $0xb0] sm:$0xff]
  %v1748 = vld [vmem:[%s3 + $0xb8] sm:$0xff]
  %v1749 = vld [vmem:[%s3 + $0xc0] sm:$0xff]
  %v1750 = vld [vmem:[%s3 + $0xc8] sm:$0xff]
  %v1751 = vld [vmem:[%s3 + $0xd0] sm:$0xff]
  %v1752 = vld [vmem:[%s3 + $0xd8] sm:$0xff]
  %v1753 = vld [vmem:[%s3 + $0xe0] sm:$0xff]
  %v1754 = vld [vmem:[%s3 + $0xe8] sm:$0xff]
  %v1755 = vld [vmem:[%s3 + $0xf0] sm:$0xff]
  %v1756 = vld [vmem:[%s3 + $0xf8] sm:$0xff]
  %v1757 = vld [vmem:[%s3 + $0x100] sm:$0xff]
  %v1758 = vld [vmem:[%s3 + $0x108] sm:$0xff]
  %v1759 = vld [vmem:[%s3 + $0x110] sm:$0xff]
  %v1760 = vld [vmem:[%s3 + $0x118] sm:$0xff]
  %v1761 = vld [vmem:[%s3 + $0x120] sm:$0xff]
  %v1762 = vld [vmem:[%s3 + $0x128] sm:$0xff]
  %v1763 = vld [vmem:[%s3 + $0x130] sm:$0xff]
  %v1764 = vld [vmem:[%s3 + $0x138] sm:$0xff]
  %v1765 = vld [vmem:[%s3 + $0x140] sm:$0xff]
  %v1766 = vld [vmem:[%s3 + $0x148] sm:$0xff]
  %v1767 = vld [vmem:[%s3 + $0x150] sm:$0xff]
  %v1768 = vld [vmem:[%s3 + $0x158] sm:$0xff]
  %v1769 = vld [vmem:[%s3 + $0x160] sm:$0xff]
  %v1770 = vld [vmem:[%s3 + $0x168] sm:$0xff]
  %v1771 = vld [vmem:[%s3 + $0x170] sm:$0xff]
  %v1772 = vld [vmem:[%s3 + $0x178] sm:$0xff]
  %v1773 = vld [vmem:[%s3 + $0x180] sm:$0xff]
  %v1774 = vld [vmem:[%s3 + $0x188] sm:$0xff]
  %v1775 = vld [vmem:[%s3 + $0x190] sm:$0xff]
  %v1776 = vld [vmem:[%s3 + $0x198] sm:$0xff]
  %v1777 = vpack.c.bf16 %v1677, %v1673
  %v1778 = vpack.c.bf16 %v1678, %v1674
  %v1779 = vpack.c.bf16 %v1679, %v1675
  %v1780 = vpack.c.bf16 %v1680, %v1676
  %v1781 = vpack.c.bf16 %v1685, %v1681
  %v1782 = vpack.c.bf16 %v1686, %v1682
  %v1783 = vpack.c.bf16 %v1687, %v1683
  %v1784 = vpack.c.bf16 %v1688, %v1684
  %v1785 = vpack.c.bf16 %v1693, %v1689
  %v1786 = vpack.c.bf16 %v1694, %v1690
  %v1787 = vpack.c.bf16 %v1695, %v1691
  %v1788 = vpack.c.bf16 %v1696, %v1692
  %v1789 = vpack.c.bf16 %v1701, %v1697
  %v1790 = vpack.c.bf16 %v1702, %v1698
  %v1791 = vpack.c.bf16 %v1703, %v1699
  %v1792 = vpack.c.bf16 %v1704, %v1700
  %v1793 = vpack.c.bf16 %v1709, %v1705
  %v1794 = vpack.c.bf16 %v1710, %v1706
  %v1795 = vpack.c.bf16 %v1711, %v1707
  %v1796 = vpack.c.bf16 %v1712, %v1708
  %v1797 = vpack.c.bf16 %v1717, %v1713
  %v1798 = vpack.c.bf16 %v1718, %v1714
  %v1799 = vpack.c.bf16 %v1719, %v1715
  %v1800 = vpack.c.bf16 %v1720, %v1716
  %v1801 = vpack.c.bf16 %v1721, %v1721
  %v1802 = vpack.c.bf16 %v1722, %v1722
  %v1803 = vpack.c.bf16 %v1723, %v1723
  %v1804 = vpack.c.bf16 %v1724, %v1724
  %v1857 = vunpack.c.l.b16 %v1725
  %v1858 = vunpack.c.h.b16 %v1725
  %v1859 = vunpack.c.l.b16 %v1726
  %v1860 = vunpack.c.h.b16 %v1726
  %v1861 = vunpack.c.l.b16 %v1727
  %v1862 = vunpack.c.h.b16 %v1727
  %v1863 = vunpack.c.l.b16 %v1728
  %v1864 = vunpack.c.h.b16 %v1728
  %v1865 = vunpack.c.l.b16 %v1729
  %v1866 = vunpack.c.h.b16 %v1729
  %v1867 = vunpack.c.l.b16 %v1730
  %v1868 = vunpack.c.h.b16 %v1730
  %v1869 = vunpack.c.l.b16 %v1731
  %v1870 = vunpack.c.h.b16 %v1731
  %v1871 = vunpack.c.l.b16 %v1732
  %v1872 = vunpack.c.h.b16 %v1732
  %v1873 = vunpack.c.l.b16 %v1733
  %v1874 = vunpack.c.h.b16 %v1733
  %v1875 = vunpack.c.l.b16 %v1734
  %v1876 = vunpack.c.h.b16 %v1734
  %v1877 = vunpack.c.l.b16 %v1735
  %v1878 = vunpack.c.h.b16 %v1735
  %v1879 = vunpack.c.l.b16 %v1736
  %v1880 = vunpack.c.h.b16 %v1736
  %v1881 = vunpack.c.l.b16 %v1737
  %v1882 = vunpack.c.h.b16 %v1737
  %v1883 = vunpack.c.l.b16 %v1738
  %v1884 = vunpack.c.h.b16 %v1738
  %v1885 = vunpack.c.l.b16 %v1739
  %v1886 = vunpack.c.h.b16 %v1739
  %v1887 = vunpack.c.l.b16 %v1740
  %v1888 = vunpack.c.h.b16 %v1740
  %v1889 = vunpack.c.l.b16 %v1741
  %v1890 = vunpack.c.h.b16 %v1741
  %v1891 = vunpack.c.l.b16 %v1742
  %v1892 = vunpack.c.h.b16 %v1742
  %v1893 = vunpack.c.l.b16 %v1743
  %v1894 = vunpack.c.h.b16 %v1743
  %v1895 = vunpack.c.l.b16 %v1744
  %v1896 = vunpack.c.h.b16 %v1744
  %v1897 = vunpack.c.l.b16 %v1745
  %v1898 = vunpack.c.h.b16 %v1745
  %v1899 = vunpack.c.l.b16 %v1746
  %v1900 = vunpack.c.h.b16 %v1746
  %v1901 = vunpack.c.l.b16 %v1747
  %v1902 = vunpack.c.h.b16 %v1747
  %v1903 = vunpack.c.l.b16 %v1748
  %v1904 = vunpack.c.h.b16 %v1748
  %v1905 = vunpack.c.l.b16 %v1749
  %v1906 = vunpack.c.h.b16 %v1749
  %v1907 = vunpack.c.l.b16 %v1750
  %v1908 = vunpack.c.h.b16 %v1750
  %v1909 = vunpack.c.l.b16 %v1751
  %v1910 = vunpack.c.h.b16 %v1751
  %v1911 = vunpack.c.l.b16 %v1752
  %v1912 = vunpack.c.h.b16 %v1752
  %v1913 = vunpack.c.l.b16 %v1753
  %v1914 = vunpack.c.h.b16 %v1753
  %v1915 = vunpack.c.l.b16 %v1754
  %v1916 = vunpack.c.h.b16 %v1754
  %v1917 = vunpack.c.l.b16 %v1755
  %v1918 = vunpack.c.h.b16 %v1755
  %v1919 = vunpack.c.l.b16 %v1756
  %v1920 = vunpack.c.h.b16 %v1756
  %v1921 = vunpack.c.l.b16 %v1757
  %v1922 = vunpack.c.h.b16 %v1757
  %v1923 = vunpack.c.l.b16 %v1758
  %v1924 = vunpack.c.h.b16 %v1758
  %v1925 = vunpack.c.l.b16 %v1759
  %v1926 = vunpack.c.h.b16 %v1759
  %v1927 = vunpack.c.l.b16 %v1760
  %v1928 = vunpack.c.h.b16 %v1760
  %v1929 = vunpack.c.l.b16 %v1761
  %v1930 = vunpack.c.h.b16 %v1761
  %v1931 = vunpack.c.l.b16 %v1762
  %v1932 = vunpack.c.h.b16 %v1762
  %v1933 = vunpack.c.l.b16 %v1763
  %v1934 = vunpack.c.h.b16 %v1763
  %v1935 = vunpack.c.l.b16 %v1764
  %v1936 = vunpack.c.h.b16 %v1764
  %v1937 = vunpack.c.l.b16 %v1765
  %v1938 = vunpack.c.h.b16 %v1765
  %v1939 = vunpack.c.l.b16 %v1766
  %v1940 = vunpack.c.h.b16 %v1766
  %v1941 = vunpack.c.l.b16 %v1767
  %v1942 = vunpack.c.h.b16 %v1767
  %v1943 = vunpack.c.l.b16 %v1768
  %v1944 = vunpack.c.h.b16 %v1768
  %v1945 = vunpack.c.l.b16 %v1769
  %v1946 = vunpack.c.h.b16 %v1769
  %v1947 = vunpack.c.l.b16 %v1770
  %v1948 = vunpack.c.h.b16 %v1770
  %v1949 = vunpack.c.l.b16 %v1771
  %v1950 = vunpack.c.h.b16 %v1771
  %v1951 = vunpack.c.l.b16 %v1772
  %v1952 = vunpack.c.h.b16 %v1772
  %v1953 = vunpack.c.l.b16 %v1773
  %v1954 = vunpack.c.h.b16 %v1773
  %v1955 = vunpack.c.l.b16 %v1774
  %v1956 = vunpack.c.h.b16 %v1774
  %v1957 = vunpack.c.l.b16 %v1775
  %v1958 = vunpack.c.h.b16 %v1775
  %v1959 = vunpack.c.l.b16 %v1776
  %v1960 = vunpack.c.h.b16 %v1776
  %v1961 = vpack.c.b16 %v1859, %v1857
  %v1962 = vpack.c.b16 %v1860, %v1858
  %v1963 = vpack.c.b16 %v1863, %v1861
  %v1964 = vpack.c.b16 %v1864, %v1862
  %v1965 = vpack.c.b16 %v1867, %v1865
  %v1966 = vpack.c.b16 %v1868, %v1866
  %v1967 = vpack.c.b16 %v1871, %v1869
  %v1968 = vpack.c.b16 %v1872, %v1870
  %v1969 = vpack.c.b16 %v1875, %v1873
  %v1970 = vpack.c.b16 %v1876, %v1874
  %v1971 = vpack.c.b16 %v1879, %v1877
  %v1972 = vpack.c.b16 %v1880, %v1878
  %v1973 = vpack.c.b16 %v1883, %v1881
  %v1974 = vpack.c.b16 %v1884, %v1882
  %v1975 = vpack.c.b16 %v1887, %v1885
  %v1976 = vpack.c.b16 %v1888, %v1886
  %v1977 = vpack.c.b16 %v1891, %v1889
  %v1978 = vpack.c.b16 %v1892, %v1890
  %v1979 = vpack.c.b16 %v1895, %v1893
  %v1980 = vpack.c.b16 %v1896, %v1894
  %v1981 = vpack.c.b16 %v1899, %v1897
  %v1982 = vpack.c.b16 %v1900, %v1898
  %v1983 = vpack.c.b16 %v1903, %v1901
  %v1984 = vpack.c.b16 %v1904, %v1902
  %v1985 = vpack.c.b16 %v1907, %v1905
  %v1986 = vpack.c.b16 %v1908, %v1906
  %v1987 = vpack.c.b16 %v1911, %v1909
  %v1988 = vpack.c.b16 %v1912, %v1910
  %v1989 = vpack.c.b16 %v1915, %v1913
  %v1990 = vpack.c.b16 %v1916, %v1914
  %v1991 = vpack.c.b16 %v1919, %v1917
  %v1992 = vpack.c.b16 %v1920, %v1918
  %v1993 = vpack.c.b16 %v1923, %v1921
  %v1994 = vpack.c.b16 %v1924, %v1922
  %v1995 = vpack.c.b16 %v1927, %v1925
  %v1996 = vpack.c.b16 %v1928, %v1926
  %v1997 = vpack.c.b16 %v1931, %v1929
  %v1998 = vpack.c.b16 %v1932, %v1930
  %v1999 = vpack.c.b16 %v1935, %v1933
  %v2000 = vpack.c.b16 %v1936, %v1934
  %v2001 = vpack.c.b16 %v1939, %v1937
  %v2002 = vpack.c.b16 %v1940, %v1938
  %v2003 = vpack.c.b16 %v1943, %v1941
  %v2004 = vpack.c.b16 %v1944, %v1942
  %v2005 = vpack.c.b16 %v1947, %v1945
  %v2006 = vpack.c.b16 %v1948, %v1946
  %v2007 = vpack.c.b16 %v1951, %v1949
  %v2008 = vpack.c.b16 %v1952, %v1950
  %v2009 = vpack.c.b16 %v1955, %v1953
  %v2010 = vpack.c.b16 %v1956, %v1954
  %v2011 = vpack.c.b16 %v1959, %v1957
  %v2012 = vpack.c.b16 %v1960, %v1958
  %vm2065 = vcmask 261120
  %v2067 = vsel %vm2065, %v1780, 0
  %v2070 = vsel %vm2065, %v1784, 0
  %v2073 = vsel %vm2065, %v1788, 0
  %v2076 = vsel %vm2065, %v1792, 0
  %v2079 = vsel %vm2065, %v1796, 0
  %v2082 = vsel %vm2065, %v1800, 0
  %v2085 = vsel %vm2065, %v1804, 0
  %2087 = vmatprep.subr.bf16.mxu0 %v1962
  %2088 = vmatpush1.bf16.msra.mxu0 %v1961
  %2089 = vmatprep.subr.bf16.mxu0 %v1964
  %2090 = vmatpush1.bf16.msra.mxu0 %v1963
  %2091 = vmatprep.subr.bf16.mxu0 %v1966
  %2092 = vmatpush1.bf16.msra.mxu0 %v1965
  %2093 = vmatprep.subr.bf16.mxu0 %v1968
  %2094 = vmatpush1.bf16.msra.mxu0 %v1967
  %2095 = vmatprep.subr.bf16.mxu0 %v1970
  %2096 = vmatpush1.bf16.msra.mxu0 %v1969
  %2097 = vmatprep.subr.bf16.mxu0 %v1972
  %2098 = vmatpush1.bf16.msra.mxu0 %v1971
  %2099 = vmatprep.subr.bf16.mxu0 %v1974
  %2100 = vmatpush1.bf16.msra.mxu0 %v1973
  %2101 = vmatprep.subr.bf16.mxu0 %v1976
  %2102 = vmatpush1.bf16.msra.mxu0 %v1975
  %2103 = vmatprep.subr.bf16.mxu0 %v1978
  %2104 = vmatpush1.bf16.msra.mxu0 %v1977
  %2105 = vmatprep.subr.bf16.mxu0 %v1980
  %2106 = vmatpush1.bf16.msra.mxu0 %v1979
  %2107 = vmatprep.subr.bf16.mxu0 %v1982
  %2108 = vmatpush1.bf16.msra.mxu0 %v1981
  %2109 = vmatprep.subr.bf16.mxu0 %v1984
  %2110 = vmatpush1.bf16.msra.mxu0 %v1983
  %2111 = vmatprep.subr.bf16.mxu0 %v1986
  %2112 = vmatpush1.bf16.msra.mxu0 %v1985
  %2113 = vmatprep.subr.bf16.mxu0 %v1988
  %2114 = vmatpush1.bf16.msra.mxu0 %v1987
  %2115 = vmatprep.subr.bf16.mxu0 %v1990
  %2116 = vmatpush1.bf16.msra.mxu0 %v1989
  %2117 = vmatprep.subr.bf16.mxu0 %v1992
  %2118 = vmatpush1.bf16.msra.mxu0 %v1991
  %2119 = vmatprep.mubr.bf16.mxu0 %v1778
  %2120 = vmatmul.mubr.bf16.gmra.mrb[0].mxu0 %v1777
  %v2121 = vpop.f32.mrb[0].mxu0
  %v2122 = vadd.f32 0.0, %v2121
  %v2123 = vpop.f32.mrb[0].mxu0
  %v2124 = vadd.f32 0.0, %v2123
  %v2125 = vpop.f32.mrb[0].mxu0
  %v2126 = vadd.f32 0.0, %v2125
  %v2127 = vpop.f32.mrb[0].mxu0
  %v2128 = vadd.f32 0.0, %v2127
  %2129 = vmatprep.mubr.bf16.mxu0 %v1782
  %2130 = vmatmul.mubr.bf16.gmra.mrb[0].mxu0 %v1781
  %v2131 = vpop.f32.mrb[0].mxu0
  %v2132 = vadd.f32 0.0, %v2131
  %v2133 = vpop.f32.mrb[0].mxu0
  %v2134 = vadd.f32 0.0, %v2133
  %v2135 = vpop.f32.mrb[0].mxu0
  %v2136 = vadd.f32 0.0, %v2135
  %v2137 = vpop.f32.mrb[0].mxu0
  %v2138 = vadd.f32 0.0, %v2137
  %2139 = vmatprep.mubr.bf16.mxu0 %v1786
  %2140 = vmatmul.mubr.bf16.gmra.mrb[0].mxu0 %v1785
  %v2141 = vpop.f32.mrb[0].mxu0
  %v2142 = vadd.f32 0.0, %v2141
  %v2143 = vpop.f32.mrb[0].mxu0
  %v2144 = vadd.f32 0.0, %v2143
  %v2145 = vpop.f32.mrb[0].mxu0
  %v2146 = vadd.f32 0.0, %v2145
  %v2147 = vpop.f32.mrb[0].mxu0
  %v2148 = vadd.f32 0.0, %v2147
  %2149 = vmatprep.mubr.bf16.mxu0 %v1790
  %2150 = vmatmul.mubr.bf16.gmra.mrb[0].mxu0 %v1789
  %v2151 = vpop.f32.mrb[0].mxu0
  %v2152 = vadd.f32 0.0, %v2151
  %v2153 = vpop.f32.mrb[0].mxu0
  %v2154 = vadd.f32 0.0, %v2153
  %v2155 = vpop.f32.mrb[0].mxu0
  %v2156 = vadd.f32 0.0, %v2155
  %v2157 = vpop.f32.mrb[0].mxu0
  %v2158 = vadd.f32 0.0, %v2157
  %2159 = vmatprep.mubr.bf16.mxu0 %v1794
  %2160 = vmatmul.mubr.bf16.gmra.mrb[0].mxu0 %v1793
  %v2161 = vpop.f32.mrb[0].mxu0
  %v2162 = vadd.f32 0.0, %v2161
  %v2163 = vpop.f32.mrb[0].mxu0
  %v2164 = vadd.f32 0.0, %v2163
  %v2165 = vpop.f32.mrb[0].mxu0
  %v2166 = vadd.f32 0.0, %v2165
  %v2167 = vpop.f32.mrb[0].mxu0
  %v2168 = vadd.f32 0.0, %v2167
  %2169 = vmatprep.mubr.bf16.mxu0 %v1798
  %2170 = vmatmul.mubr.bf16.gmra.mrb[0].mxu0 %v1797
  %v2171 = vpop.f32.mrb[0].mxu0
  %v2172 = vadd.f32 0.0, %v2171
  %v2173 = vpop.f32.mrb[0].mxu0
  %v2174 = vadd.f32 0.0, %v2173
  %v2175 = vpop.f32.mrb[0].mxu0
  %v2176 = vadd.f32 0.0, %v2175
  %v2177 = vpop.f32.mrb[0].mxu0
  %v2178 = vadd.f32 0.0, %v2177
  %2179 = vmatprep.mubr.bf16.mxu0 %v1802
  %2180 = vmatmul.mubr.bf16.gmra.mrb[0].mxu0 %v1801
  %v2181 = vpop.f32.mrb[0].mxu0
  %v2182 = vadd.f32 0.0, %v2181
  %v2183 = vpop.f32.mrb[0].mxu0
  %v2184 = vadd.f32 0.0, %v2183
  %v2185 = vpop.f32.mrb[0].mxu0
  %v2186 = vpop.f32.mrb[0].mxu0
  %2187 = vdwg.mxu0
  %2188 = vmatprep.subr.bf16.mxu0 %v1994
  %2189 = vmatpush1.bf16.msra.mxu0 %v1993
  %2190 = vmatprep.subr.bf16.mxu0 %v1996
  %2191 = vmatpush1.bf16.msra.mxu0 %v1995
  %2192 = vmatprep.subr.bf16.mxu0 %v1998
  %2193 = vmatpush1.bf16.msra.mxu0 %v1997
  %2194 = vmatprep.subr.bf16.mxu0 %v2000
  %2195 = vmatpush1.bf16.msra.mxu0 %v1999
  %2196 = vmatprep.subr.bf16.mxu0 %v2002
  %2197 = vmatpush1.bf16.msra.mxu0 %v2001
  %2198 = vmatprep.subr.bf16.mxu0 %v2004
  %2199 = vmatpush1.bf16.msra.mxu0 %v2003
  %2200 = vmatprep.subr.bf16.mxu0 %v2006
  %2201 = vmatpush1.bf16.msra.mxu0 %v2005
  %2202 = vmatprep.subr.bf16.mxu0 %v2008
  %2203 = vmatpush1.bf16.msra.mxu0 %v2007
  %2204 = vmatprep.subr.bf16.mxu0 %v2010
  %2205 = vmatpush1.bf16.msra.mxu0 %v2009
  %2206 = vmatprep.subr.bf16.mxu0 %v2012
  %2207 = vmatpush1.bf16.msra.mxu0 %v2011
  %2208 = vmatprep.subr.bf16.mxu0 0
  %2209 = vmatpush1.bf16.msra.mxu0 0
  %2210 = vmatprep.subr.bf16.mxu0 0
  %2211 = vmatpush1.bf16.msra.mxu0 0
  %2212 = vmatprep.subr.bf16.mxu0 0
  %2213 = vmatpush1.bf16.msra.mxu0 0
  %2214 = vmatprep.subr.bf16.mxu0 0
  %2215 = vmatpush1.bf16.msra.mxu0 0
  %2216 = vmatprep.subr.bf16.mxu0 0
  %2217 = vmatpush1.bf16.msra.mxu0 0
  %2218 = vmatprep.subr.bf16.mxu0 0
  %2219 = vmatpush1.bf16.msra.mxu0 0
  %2220 = vmatprep.mubr.bf16.mxu0 %v2067
  %2221 = vmatmul.mubr.bf16.gmra.mrb[0].mxu0 %v1779
  %v2222 = vpop.f32.mrb[0].mxu0
  %v2223 = vadd.f32 %v2122, %v2222
  %v2224 = vpop.f32.mrb[0].mxu0
  %v2225 = vadd.f32 %v2124, %v2224
  %v2226 = vpop.f32.mrb[0].mxu0
  %v2227 = vadd.f32 %v2126, %v2226
  %v2228 = vpop.f32.mrb[0].mxu0
  %v2229 = vadd.f32 %v2128, %v2228
  %2230 = vmatprep.mubr.bf16.mxu0 %v2070
  %2231 = vmatmul.mubr.bf16.gmra.mrb[0].mxu0 %v1783
  %v2232 = vpop.f32.mrb[0].mxu0
  %v2233 = vadd.f32 %v2132, %v2232
  %v2234 = vpop.f32.mrb[0].mxu0
  %v2235 = vadd.f32 %v2134, %v2234
  %v2236 = vpop.f32.mrb[0].mxu0
  %v2237 = vadd.f32 %v2136, %v2236
  %v2238 = vpop.f32.mrb[0].mxu0
  %v2239 = vadd.f32 %v2138, %v2238
  %2240 = vmatprep.mubr.bf16.mxu0 %v2073
  %2241 = vmatmul.mubr.bf16.gmra.mrb[0].mxu0 %v1787
  %v2242 = vpop.f32.mrb[0].mxu0
  %v2243 = vadd.f32 %v2142, %v2242
  %v2244 = vpop.f32.mrb[0].mxu0
  %v2245 = vadd.f32 %v2144, %v2244
  %v2246 = vpop.f32.mrb[0].mxu0
  %v2247 = vadd.f32 %v2146, %v2246
  %v2248 = vpop.f32.mrb[0].mxu0
  %v2249 = vadd.f32 %v2148, %v2248
  %2250 = vmatprep.mubr.bf16.mxu0 %v2076
  %2251 = vmatmul.mubr.bf16.gmra.mrb[0].mxu0 %v1791
  %v2252 = vpop.f32.mrb[0].mxu0
  %v2253 = vadd.f32 %v2152, %v2252
  %v2254 = vpop.f32.mrb[0].mxu0
  %v2255 = vadd.f32 %v2154, %v2254
  %v2256 = vpop.f32.mrb[0].mxu0
  %v2257 = vadd.f32 %v2156, %v2256
  %v2258 = vpop.f32.mrb[0].mxu0
  %v2259 = vadd.f32 %v2158, %v2258
  %2260 = vmatprep.mubr.bf16.mxu0 %v2079
  %2261 = vmatmul.mubr.bf16.gmra.mrb[0].mxu0 %v1795
  %v2262 = vpop.f32.mrb[0].mxu0
  %v2263 = vadd.f32 %v2162, %v2262
  %v2264 = vpop.f32.mrb[0].mxu0
  %v2265 = vadd.f32 %v2164, %v2264
  %v2266 = vpop.f32.mrb[0].mxu0
  %v2267 = vadd.f32 %v2166, %v2266
  %v2268 = vpop.f32.mrb[0].mxu0
  %v2269 = vadd.f32 %v2168, %v2268
  %2270 = vmatprep.mubr.bf16.mxu0 %v2082
  %2271 = vmatmul.mubr.bf16.gmra.mrb[0].mxu0 %v1799
  %v2272 = vpop.f32.mrb[0].mxu0
  %v2273 = vadd.f32 %v2172, %v2272
  %v2274 = vpop.f32.mrb[0].mxu0
  %v2275 = vadd.f32 %v2174, %v2274
  %v2276 = vpop.f32.mrb[0].mxu0
  %v2277 = vadd.f32 %v2176, %v2276
  %v2278 = vpop.f32.mrb[0].mxu0
  %v2279 = vadd.f32 %v2178, %v2278
  %2280 = vmatprep.mubr.bf16.mxu0 %v2085
  %2281 = vmatmul.mubr.bf16.gmra.mrb[0].mxu0 %v1803
  %v2282 = vpop.f32.mrb[0].mxu0
  %v2283 = vadd.f32 %v2182, %v2282
  %v2284 = vpop.f32.mrb[0].mxu0
  %v2285 = vadd.f32 %v2184, %v2284
  %v2286 = vpop.f32.mrb[0].mxu0
  %v2287 = vpop.f32.mrb[0].mxu0
  %2288 = vdwg.mxu0
  %s2289 = scalar_lea.vmem %s3, 416
  %v2290 = vld [vmem:[%s2289] sm:$0xff]
  %v2291 = vld [vmem:[%s2289 + $0x8] sm:$0xff]
  %v2292 = vld [vmem:[%s2289 + $0x10] sm:$0xff]
  %v2293 = vld [vmem:[%s2289 + $0x18] sm:$0xff]
  %v2294 = vld [vmem:[%s2289 + $0x20] sm:$0xff]
  %v2295 = vld [vmem:[%s2289 + $0x28] sm:$0xff]
  %v2296 = vld [vmem:[%s2289 + $0x30] sm:$0xff]
  %v2297 = vld [vmem:[%s2289 + $0x38] sm:$0xff]
  %v2298 = vld [vmem:[%s2289 + $0x40] sm:$0xff]
  %v2299 = vld [vmem:[%s2289 + $0x48] sm:$0xff]
  %v2300 = vld [vmem:[%s2289 + $0x50] sm:$0xff]
  %v2301 = vld [vmem:[%s2289 + $0x58] sm:$0xff]
  %v2302 = vld [vmem:[%s2289 + $0x60] sm:$0xff]
  %v2303 = vld [vmem:[%s2289 + $0x68] sm:$0xff]
  %v2304 = vld [vmem:[%s2289 + $0x70] sm:$0xff]
  %v2305 = vld [vmem:[%s2289 + $0x78] sm:$0xff]
  %v2306 = vld [vmem:[%s2289 + $0x80] sm:$0xff]
  %v2307 = vld [vmem:[%s2289 + $0x88] sm:$0xff]
  %v2308 = vld [vmem:[%s2289 + $0x90] sm:$0xff]
  %v2309 = vld [vmem:[%s2289 + $0x98] sm:$0xff]
  %v2310 = vld [vmem:[%s2289 + $0xa0] sm:$0xff]
  %v2311 = vld [vmem:[%s2289 + $0xa8] sm:$0xff]
  %v2312 = vld [vmem:[%s2289 + $0xb0] sm:$0xff]
  %v2313 = vld [vmem:[%s2289 + $0xb8] sm:$0xff]
  %v2314 = vld [vmem:[%s2289 + $0xc0] sm:$0xff]
  %v2315 = vld [vmem:[%s2289 + $0xc8] sm:$0xff]
  %v2316 = vld [vmem:[%s2289 + $0xd0] sm:$0xff]
  %v2317 = vld [vmem:[%s2289 + $0xd8] sm:$0xff]
  %v2318 = vld [vmem:[%s2289 + $0xe0] sm:$0xff]
  %v2319 = vld [vmem:[%s2289 + $0xe8] sm:$0xff]
  %v2320 = vld [vmem:[%s2289 + $0xf0] sm:$0xff]
  %v2321 = vld [vmem:[%s2289 + $0xf8] sm:$0xff]
  %v2322 = vld [vmem:[%s2289 + $0x100] sm:$0xff]
  %v2323 = vld [vmem:[%s2289 + $0x108] sm:$0xff]
  %v2324 = vld [vmem:[%s2289 + $0x110] sm:$0xff]
  %v2325 = vld [vmem:[%s2289 + $0x118] sm:$0xff]
  %v2326 = vld [vmem:[%s2289 + $0x120] sm:$0xff]
  %v2327 = vld [vmem:[%s2289 + $0x128] sm:$0xff]
  %v2328 = vld [vmem:[%s2289 + $0x130] sm:$0xff]
  %v2329 = vld [vmem:[%s2289 + $0x138] sm:$0xff]
  %v2330 = vld [vmem:[%s2289 + $0x140] sm:$0xff]
  %v2331 = vld [vmem:[%s2289 + $0x148] sm:$0xff]
  %v2332 = vld [vmem:[%s2289 + $0x150] sm:$0xff]
  %v2333 = vld [vmem:[%s2289 + $0x158] sm:$0xff]
  %v2334 = vld [vmem:[%s2289 + $0x160] sm:$0xff]
  %v2335 = vld [vmem:[%s2289 + $0x168] sm:$0xff]
  %v2336 = vld [vmem:[%s2289 + $0x170] sm:$0xff]
  %v2337 = vld [vmem:[%s2289 + $0x178] sm:$0xff]
  %v2338 = vld [vmem:[%s2289 + $0x180] sm:$0xff]
  %v2339 = vld [vmem:[%s2289 + $0x188] sm:$0xff]
  %v2340 = vld [vmem:[%s2289 + $0x190] sm:$0xff]
  %v2341 = vld [vmem:[%s2289 + $0x198] sm:$0xff]
  %v2394 = vunpack.c.l.b16 %v2290
  %v2395 = vunpack.c.h.b16 %v2290
  %v2396 = vunpack.c.l.b16 %v2291
  %v2397 = vunpack.c.h.b16 %v2291
  %v2398 = vunpack.c.l.b16 %v2292
  %v2399 = vunpack.c.h.b16 %v2292
  %v2400 = vunpack.c.l.b16 %v2293
  %v2401 = vunpack.c.h.b16 %v2293
  %v2402 = vunpack.c.l.b16 %v2294
  %v2403 = vunpack.c.h.b16 %v2294
  %v2404 = vunpack.c.l.b16 %v2295
  %v2405 = vunpack.c.h.b16 %v2295
  %v2406 = vunpack.c.l.b16 %v2296
  %v2407 = vunpack.c.h.b16 %v2296
  %v2408 = vunpack.c.l.b16 %v2297
  %v2409 = vunpack.c.h.b16 %v2297
  %v2410 = vunpack.c.l.b16 %v2298
  %v2411 = vunpack.c.h.b16 %v2298
  %v2412 = vunpack.c.l.b16 %v2299
  %v2413 = vunpack.c.h.b16 %v2299
  %v2414 = vunpack.c.l.b16 %v2300
  %v2415 = vunpack.c.h.b16 %v2300
  %v2416 = vunpack.c.l.b16 %v2301
  %v2417 = vunpack.c.h.b16 %v2301
  %v2418 = vunpack.c.l.b16 %v2302
  %v2419 = vunpack.c.h.b16 %v2302
  %v2420 = vunpack.c.l.b16 %v2303
  %v2421 = vunpack.c.h.b16 %v2303
  %v2422 = vunpack.c.l.b16 %v2304
  %v2423 = vunpack.c.h.b16 %v2304
  %v2424 = vunpack.c.l.b16 %v2305
  %v2425 = vunpack.c.h.b16 %v2305
  %v2426 = vunpack.c.l.b16 %v2306
  %v2427 = vunpack.c.h.b16 %v2306
  %v2428 = vunpack.c.l.b16 %v2307
  %v2429 = vunpack.c.h.b16 %v2307
  %v2430 = vunpack.c.l.b16 %v2308
  %v2431 = vunpack.c.h.b16 %v2308
  %v2432 = vunpack.c.l.b16 %v2309
  %v2433 = vunpack.c.h.b16 %v2309
  %v2434 = vunpack.c.l.b16 %v2310
  %v2435 = vunpack.c.h.b16 %v2310
  %v2436 = vunpack.c.l.b16 %v2311
  %v2437 = vunpack.c.h.b16 %v2311
  %v2438 = vunpack.c.l.b16 %v2312
  %v2439 = vunpack.c.h.b16 %v2312
  %v2440 = vunpack.c.l.b16 %v2313
  %v2441 = vunpack.c.h.b16 %v2313
  %v2442 = vunpack.c.l.b16 %v2314
  %v2443 = vunpack.c.h.b16 %v2314
  %v2444 = vunpack.c.l.b16 %v2315
  %v2445 = vunpack.c.h.b16 %v2315
  %v2446 = vunpack.c.l.b16 %v2316
  %v2447 = vunpack.c.h.b16 %v2316
  %v2448 = vunpack.c.l.b16 %v2317
  %v2449 = vunpack.c.h.b16 %v2317
  %v2450 = vunpack.c.l.b16 %v2318
  %v2451 = vunpack.c.h.b16 %v2318
  %v2452 = vunpack.c.l.b16 %v2319
  %v2453 = vunpack.c.h.b16 %v2319
  %v2454 = vunpack.c.l.b16 %v2320
  %v2455 = vunpack.c.h.b16 %v2320
  %v2456 = vunpack.c.l.b16 %v2321
  %v2457 = vunpack.c.h.b16 %v2321
  %v2458 = vunpack.c.l.b16 %v2322
  %v2459 = vunpack.c.h.b16 %v2322
  %v2460 = vunpack.c.l.b16 %v2323
  %v2461 = vunpack.c.h.b16 %v2323
  %v2462 = vunpack.c.l.b16 %v2324
  %v2463 = vunpack.c.h.b16 %v2324
  %v2464 = vunpack.c.l.b16 %v2325
  %v2465 = vunpack.c.h.b16 %v2325
  %v2466 = vunpack.c.l.b16 %v2326
  %v2467 = vunpack.c.h.b16 %v2326
  %v2468 = vunpack.c.l.b16 %v2327
  %v2469 = vunpack.c.h.b16 %v2327
  %v2470 = vunpack.c.l.b16 %v2328
  %v2471 = vunpack.c.h.b16 %v2328
  %v2472 = vunpack.c.l.b16 %v2329
  %v2473 = vunpack.c.h.b16 %v2329
  %v2474 = vunpack.c.l.b16 %v2330
  %v2475 = vunpack.c.h.b16 %v2330
  %v2476 = vunpack.c.l.b16 %v2331
  %v2477 = vunpack.c.h.b16 %v2331
  %v2478 = vunpack.c.l.b16 %v2332
  %v2479 = vunpack.c.h.b16 %v2332
  %v2480 = vunpack.c.l.b16 %v2333
  %v2481 = vunpack.c.h.b16 %v2333
  %v2482 = vunpack.c.l.b16 %v2334
  %v2483 = vunpack.c.h.b16 %v2334
  %v2484 = vunpack.c.l.b16 %v2335
  %v2485 = vunpack.c.h.b16 %v2335
  %v2486 = vunpack.c.l.b16 %v2336
  %v2487 = vunpack.c.h.b16 %v2336
  %v2488 = vunpack.c.l.b16 %v2337
  %v2489 = vunpack.c.h.b16 %v2337
  %v2490 = vunpack.c.l.b16 %v2338
  %v2491 = vunpack.c.h.b16 %v2338
  %v2492 = vunpack.c.l.b16 %v2339
  %v2493 = vunpack.c.h.b16 %v2339
  %v2494 = vunpack.c.l.b16 %v2340
  %v2495 = vunpack.c.h.b16 %v2340
  %v2496 = vunpack.c.l.b16 %v2341
  %v2497 = vunpack.c.h.b16 %v2341
  %v2498 = vpack.c.b16 %v2396, %v2394
  %v2499 = vpack.c.b16 %v2397, %v2395
  %v2500 = vpack.c.b16 %v2400, %v2398
  %v2501 = vpack.c.b16 %v2401, %v2399
  %v2502 = vpack.c.b16 %v2404, %v2402
  %v2503 = vpack.c.b16 %v2405, %v2403
  %v2504 = vpack.c.b16 %v2408, %v2406
  %v2505 = vpack.c.b16 %v2409, %v2407
  %v2506 = vpack.c.b16 %v2412, %v2410
  %v2507 = vpack.c.b16 %v2413, %v2411
  %v2508 = vpack.c.b16 %v2416, %v2414
  %v2509 = vpack.c.b16 %v2417, %v2415
  %v2510 = vpack.c.b16 %v2420, %v2418
  %v2511 = vpack.c.b16 %v2421, %v2419
  %v2512 = vpack.c.b16 %v2424, %v2422
  %v2513 = vpack.c.b16 %v2425, %v2423
  %v2514 = vpack.c.b16 %v2428, %v2426
  %v2515 = vpack.c.b16 %v2429, %v2427
  %v2516 = vpack.c.b16 %v2432, %v2430
  %v2517 = vpack.c.b16 %v2433, %v2431
  %v2518 = vpack.c.b16 %v2436, %v2434
  %v2519 = vpack.c.b16 %v2437, %v2435
  %v2520 = vpack.c.b16 %v2440, %v2438
  %v2521 = vpack.c.b16 %v2441, %v2439
  %v2522 = vpack.c.b16 %v2444, %v2442
  %v2523 = vpack.c.b16 %v2445, %v2443
  %v2524 = vpack.c.b16 %v2448, %v2446
  %v2525 = vpack.c.b16 %v2449, %v2447
  %v2526 = vpack.c.b16 %v2452, %v2450
  %v2527 = vpack.c.b16 %v2453, %v2451
  %v2528 = vpack.c.b16 %v2456, %v2454
  %v2529 = vpack.c.b16 %v2457, %v2455
  %v2530 = vpack.c.b16 %v2460, %v2458
  %v2531 = vpack.c.b16 %v2461, %v2459
  %v2532 = vpack.c.b16 %v2464, %v2462
  %v2533 = vpack.c.b16 %v2465, %v2463
  %v2534 = vpack.c.b16 %v2468, %v2466
  %v2535 = vpack.c.b16 %v2469, %v2467
  %v2536 = vpack.c.b16 %v2472, %v2470
  %v2537 = vpack.c.b16 %v2473, %v2471
  %v2538 = vpack.c.b16 %v2476, %v2474
  %v2539 = vpack.c.b16 %v2477, %v2475
  %v2540 = vpack.c.b16 %v2480, %v2478
  %v2541 = vpack.c.b16 %v2481, %v2479
  %v2542 = vpack.c.b16 %v2484, %v2482
  %v2543 = vpack.c.b16 %v2485, %v2483
  %v2544 = vpack.c.b16 %v2488, %v2486
  %v2545 = vpack.c.b16 %v2489, %v2487
  %v2546 = vpack.c.b16 %v2492, %v2490
  %v2547 = vpack.c.b16 %v2493, %v2491
  %v2548 = vpack.c.b16 %v2496, %v2494
  %v2549 = vpack.c.b16 %v2497, %v2495
  %2602 = vmatprep.subr.bf16.mxu0 %v2499
  %2603 = vmatpush1.bf16.msra.mxu0 %v2498
  %2604 = vmatprep.subr.bf16.mxu0 %v2501
  %2605 = vmatpush1.bf16.msra.mxu0 %v2500
  %2606 = vmatprep.subr.bf16.mxu0 %v2503
  %2607 = vmatpush1.bf16.msra.mxu0 %v2502
  %2608 = vmatprep.subr.bf16.mxu0 %v2505
  %2609 = vmatpush1.bf16.msra.mxu0 %v2504
  %2610 = vmatprep.subr.bf16.mxu0 %v2507
  %2611 = vmatpush1.bf16.msra.mxu0 %v2506
  %2612 = vmatprep.subr.bf16.mxu0 %v2509
  %2613 = vmatpush1.bf16.msra.mxu0 %v2508
  %2614 = vmatprep.subr.bf16.mxu0 %v2511
  %2615 = vmatpush1.bf16.msra.mxu0 %v2510
  %2616 = vmatprep.subr.bf16.mxu0 %v2513
  %2617 = vmatpush1.bf16.msra.mxu0 %v2512
  %2618 = vmatprep.subr.bf16.mxu0 %v2515
  %2619 = vmatpush1.bf16.msra.mxu0 %v2514
  %2620 = vmatprep.subr.bf16.mxu0 %v2517
  %2621 = vmatpush1.bf16.msra.mxu0 %v2516
  %2622 = vmatprep.subr.bf16.mxu0 %v2519
  %2623 = vmatpush1.bf16.msra.mxu0 %v2518
  %2624 = vmatprep.subr.bf16.mxu0 %v2521
  %2625 = vmatpush1.bf16.msra.mxu0 %v2520
  %2626 = vmatprep.subr.bf16.mxu0 %v2523
  %2627 = vmatpush1.bf16.msra.mxu0 %v2522
  %2628 = vmatprep.subr.bf16.mxu0 %v2525
  %2629 = vmatpush1.bf16.msra.mxu0 %v2524
  %2630 = vmatprep.subr.bf16.mxu0 %v2527
  %2631 = vmatpush1.bf16.msra.mxu0 %v2526
  %2632 = vmatprep.subr.bf16.mxu0 %v2529
  %2633 = vmatpush1.bf16.msra.mxu0 %v2528
  %2634 = vmatprep.mubr.bf16.mxu0 %v1778
  %2635 = vmatmul.mubr.bf16.gmra.mrb[0].mxu0 %v1777
  %v2636 = vpop.f32.mrb[0].mxu0
  %v2637 = vadd.f32 0.0, %v2636
  %v2638 = vpop.f32.mrb[0].mxu0
  %v2639 = vadd.f32 0.0, %v2638
  %v2640 = vpop.f32.mrb[0].mxu0
  %v2641 = vadd.f32 0.0, %v2640
  %v2642 = vpop.f32.mrb[0].mxu0
  %v2643 = vadd.f32 0.0, %v2642
  %2644 = vmatprep.mubr.bf16.mxu0 %v1782
  %2645 = vmatmul.mubr.bf16.gmra.mrb[0].mxu0 %v1781
  %v2646 = vpop.f32.mrb[0].mxu0
  %v2647 = vadd.f32 0.0, %v2646
  %v2648 = vpop.f32.mrb[0].mxu0
  %v2649 = vadd.f32 0.0, %v2648
  %v2650 = vpop.f32.mrb[0].mxu0
  %v2651 = vadd.f32 0.0, %v2650
  %v2652 = vpop.f32.mrb[0].mxu0
  %v2653 = vadd.f32 0.0, %v2652
  %2654 = vmatprep.mubr.bf16.mxu0 %v1786
  %2655 = vmatmul.mubr.bf16.gmra.mrb[0].mxu0 %v1785
  %v2656 = vpop.f32.mrb[0].mxu0
  %v2657 = vadd.f32 0.0, %v2656
  %v2658 = vpop.f32.mrb[0].mxu0
  %v2659 = vadd.f32 0.0, %v2658
  %v2660 = vpop.f32.mrb[0].mxu0
  %v2661 = vadd.f32 0.0, %v2660
  %v2662 = vpop.f32.mrb[0].mxu0
  %v2663 = vadd.f32 0.0, %v2662
  %2664 = vmatprep.mubr.bf16.mxu0 %v1790
  %2665 = vmatmul.mubr.bf16.gmra.mrb[0].mxu0 %v1789
  %v2666 = vpop.f32.mrb[0].mxu0
  %v2667 = vadd.f32 0.0, %v2666
  %v2668 = vpop.f32.mrb[0].mxu0
  %v2669 = vadd.f32 0.0, %v2668
  %v2670 = vpop.f32.mrb[0].mxu0
  %v2671 = vadd.f32 0.0, %v2670
  %v2672 = vpop.f32.mrb[0].mxu0
  %v2673 = vadd.f32 0.0, %v2672
  %2674 = vmatprep.mubr.bf16.mxu0 %v1794
  %2675 = vmatmul.mubr.bf16.gmra.mrb[0].mxu0 %v1793
  %v2676 = vpop.f32.mrb[0].mxu0
  %v2677 = vadd.f32 0.0, %v2676
  %v2678 = vpop.f32.mrb[0].mxu0
  %v2679 = vadd.f32 0.0, %v2678
  %v2680 = vpop.f32.mrb[0].mxu0
  %v2681 = vadd.f32 0.0, %v2680
  %v2682 = vpop.f32.mrb[0].mxu0
  %v2683 = vadd.f32 0.0, %v2682
  %2684 = vmatprep.mubr.bf16.mxu0 %v1798
  %2685 = vmatmul.mubr.bf16.gmra.mrb[0].mxu0 %v1797
  %v2686 = vpop.f32.mrb[0].mxu0
  %v2687 = vadd.f32 0.0, %v2686
  %v2688 = vpop.f32.mrb[0].mxu0
  %v2689 = vadd.f32 0.0, %v2688
  %v2690 = vpop.f32.mrb[0].mxu0
  %v2691 = vadd.f32 0.0, %v2690
  %v2692 = vpop.f32.mrb[0].mxu0
  %v2693 = vadd.f32 0.0, %v2692
  %2694 = vmatprep.mubr.bf16.mxu0 %v1802
  %2695 = vmatmul.mubr.bf16.gmra.mrb[0].mxu0 %v1801
  %v2696 = vpop.f32.mrb[0].mxu0
  %v2697 = vadd.f32 0.0, %v2696
  %v2698 = vpop.f32.mrb[0].mxu0
  %v2699 = vadd.f32 0.0, %v2698
  %v2700 = vpop.f32.mrb[0].mxu0
  %v2701 = vpop.f32.mrb[0].mxu0
  %2702 = vdwg.mxu0
  %2703 = vmatprep.subr.bf16.mxu0 %v2531
  %2704 = vmatpush1.bf16.msra.mxu0 %v2530
  %2705 = vmatprep.subr.bf16.mxu0 %v2533
  %2706 = vmatpush1.bf16.msra.mxu0 %v2532
  %2707 = vmatprep.subr.bf16.mxu0 %v2535
  %2708 = vmatpush1.bf16.msra.mxu0 %v2534
  %2709 = vmatprep.subr.bf16.mxu0 %v2537
  %2710 = vmatpush1.bf16.msra.mxu0 %v2536
  %2711 = vmatprep.subr.bf16.mxu0 %v2539
  %2712 = vmatpush1.bf16.msra.mxu0 %v2538
  %2713 = vmatprep.subr.bf16.mxu0 %v2541
  %2714 = vmatpush1.bf16.msra.mxu0 %v2540
  %2715 = vmatprep.subr.bf16.mxu0 %v2543
  %2716 = vmatpush1.bf16.msra.mxu0 %v2542
  %2717 = vmatprep.subr.bf16.mxu0 %v2545
  %2718 = vmatpush1.bf16.msra.mxu0 %v2544
  %2719 = vmatprep.subr.bf16.mxu0 %v2547
  %2720 = vmatpush1.bf16.msra.mxu0 %v2546
  %2721 = vmatprep.subr.bf16.mxu0 %v2549
  %2722 = vmatpush1.bf16.msra.mxu0 %v2548
  %2723 = vmatprep.subr.bf16.mxu0 0
  %2724 = vmatpush1.bf16.msra.mxu0 0
  %2725 = vmatprep.subr.bf16.mxu0 0
  %2726 = vmatpush1.bf16.msra.mxu0 0
  %2727 = vmatprep.subr.bf16.mxu0 0
  %2728 = vmatpush1.bf16.msra.mxu0 0
  %2729 = vmatprep.subr.bf16.mxu0 0
  %2730 = vmatpush1.bf16.msra.mxu0 0
  %2731 = vmatprep.subr.bf16.mxu0 0
  %2732 = vmatpush1.bf16.msra.mxu0 0
  %2733 = vmatprep.subr.bf16.mxu0 0
  %2734 = vmatpush1.bf16.msra.mxu0 0
  %2735 = vmatprep.mubr.bf16.mxu0 %v2067
  %2736 = vmatmul.mubr.bf16.gmra.mrb[0].mxu0 %v1779
  %v2737 = vpop.f32.mrb[0].mxu0
  %v2738 = vadd.f32 %v2637, %v2737
  %v2739 = vpop.f32.mrb[0].mxu0
  %v2740 = vadd.f32 %v2639, %v2739
  %v2741 = vpop.f32.mrb[0].mxu0
  %v2742 = vadd.f32 %v2641, %v2741
  %v2743 = vpop.f32.mrb[0].mxu0
  %v2744 = vadd.f32 %v2643, %v2743
  %2745 = vmatprep.mubr.bf16.mxu0 %v2070
  %2746 = vmatmul.mubr.bf16.gmra.mrb[0].mxu0 %v1783
  %v2747 = vpop.f32.mrb[0].mxu0
  %v2748 = vadd.f32 %v2647, %v2747
  %v2749 = vpop.f32.mrb[0].mxu0
  %v2750 = vadd.f32 %v2649, %v2749
  %v2751 = vpop.f32.mrb[0].mxu0
  %v2752 = vadd.f32 %v2651, %v2751
  %v2753 = vpop.f32.mrb[0].mxu0
  %v2754 = vadd.f32 %v2653, %v2753
  %2755 = vmatprep.mubr.bf16.mxu0 %v2073
  %2756 = vmatmul.mubr.bf16.gmra.mrb[0].mxu0 %v1787
  %v2757 = vpop.f32.mrb[0].mxu0
  %v2758 = vadd.f32 %v2657, %v2757
  %v2759 = vpop.f32.mrb[0].mxu0
  %v2760 = vadd.f32 %v2659, %v2759
  %v2761 = vpop.f32.mrb[0].mxu0
  %v2762 = vadd.f32 %v2661, %v2761
  %v2763 = vpop.f32.mrb[0].mxu0
  %v2764 = vadd.f32 %v2663, %v2763
  %2765 = vmatprep.mubr.bf16.mxu0 %v2076
  %2766 = vmatmul.mubr.bf16.gmra.mrb[0].mxu0 %v1791
  %v2767 = vpop.f32.mrb[0].mxu0
  %v2768 = vadd.f32 %v2667, %v2767
  %v2769 = vpop.f32.mrb[0].mxu0
  %v2770 = vadd.f32 %v2669, %v2769
  %v2771 = vpop.f32.mrb[0].mxu0
  %v2772 = vadd.f32 %v2671, %v2771
  %v2773 = vpop.f32.mrb[0].mxu0
  %v2774 = vadd.f32 %v2673, %v2773
  %2775 = vmatprep.mubr.bf16.mxu0 %v2079
  %2776 = vmatmul.mubr.bf16.gmra.mrb[0].mxu0 %v1795
  %v2777 = vpop.f32.mrb[0].mxu0
  %v2778 = vadd.f32 %v2677, %v2777
  %v2779 = vpop.f32.mrb[0].mxu0
  %v2780 = vadd.f32 %v2679, %v2779
  %v2781 = vpop.f32.mrb[0].mxu0
  %v2782 = vadd.f32 %v2681, %v2781
  %v2783 = vpop.f32.mrb[0].mxu0
  %v2784 = vadd.f32 %v2683, %v2783
  %2785 = vmatprep.mubr.bf16.mxu0 %v2082
  %2786 = vmatmul.mubr.bf16.gmra.mrb[0].mxu0 %v1799
  %v2787 = vpop.f32.mrb[0].mxu0
  %v2788 = vadd.f32 %v2687, %v2787
  %v2789 = vpop.f32.mrb[0].mxu0
  %v2790 = vadd.f32 %v2689, %v2789
  %v2791 = vpop.f32.mrb[0].mxu0
  %v2792 = vadd.f32 %v2691, %v2791
  %v2793 = vpop.f32.mrb[0].mxu0
  %v2794 = vadd.f32 %v2693, %v2793
  %2795 = vmatprep.mubr.bf16.mxu0 %v2085
  %2796 = vmatmul.mubr.bf16.gmra.mrb[0].mxu0 %v1803
  %v2797 = vpop.f32.mrb[0].mxu0
  %v2798 = vadd.f32 %v2697, %v2797
  %v2799 = vpop.f32.mrb[0].mxu0
  %v2800 = vadd.f32 %v2699, %v2799
  %v2801 = vpop.f32.mrb[0].mxu0
  %v2802 = vpop.f32.mrb[0].mxu0
  %2803 = vdwg.mxu0
  %v2804 = vmax.f32 %v2223, %v2738
  %v2805 = vmax.f32 %v2225, %v2740
  %v2806 = vmax.f32 %v2227, %v2742
  %v2807 = vmax.f32 %v2229, %v2744
  %v2808 = vmax.f32 %v2233, %v2748
  %v2809 = vmax.f32 %v2235, %v2750
  %v2810 = vmax.f32 %v2237, %v2752
  %v2811 = vmax.f32 %v2239, %v2754
  %v2812 = vmax.f32 %v2243, %v2758
  %v2813 = vmax.f32 %v2245, %v2760
  %v2814 = vmax.f32 %v2247, %v2762
  %v2815 = vmax.f32 %v2249, %v2764
  %v2816 = vmax.f32 %v2253, %v2768
  %v2817 = vmax.f32 %v2255, %v2770
  %v2818 = vmax.f32 %v2257, %v2772
  %v2819 = vmax.f32 %v2259, %v2774
  %v2820 = vmax.f32 %v2263, %v2778
  %v2821 = vmax.f32 %v2265, %v2780
  %v2822 = vmax.f32 %v2267, %v2782
  %v2823 = vmax.f32 %v2269, %v2784
  %v2824 = vmax.f32 %v2273, %v2788
  %v2825 = vmax.f32 %v2275, %v2790
  %v2826 = vmax.f32 %v2277, %v2792
  %v2827 = vmax.f32 %v2279, %v2794
  %v2828 = vmax.f32 %v2283, %v2798
  %v2829 = vmax.f32 %v2285, %v2800
  %v2830 = vld [vmem:[%s4] sm:$0xff]
  %v2831 = vld [vmem:[%s4 + $0x8] sm:$0xf]
  %v2832 = vld [vmem:[%s4 + $0xc] sm:$0xff]
  %v2833 = vld [vmem:[%s4 + $0x14] sm:$0xf]
  %v2834 = vld [vmem:[%s4 + $0x18] sm:$0xff]
  %v2835 = vld [vmem:[%s4 + $0x20] sm:$0xf]
  %v2836 = vld [vmem:[%s4 + $0x24] sm:$0xff]
  %v2837 = vld [vmem:[%s4 + $0x2c] sm:$0xf]
  %v2838 = vld [vmem:[%s4 + $0x30] sm:$0xff]
  %v2839 = vld [vmem:[%s4 + $0x38] sm:$0xf]
  %v2840 = vld [vmem:[%s4 + $0x3c] sm:$0xff]
  %v2841 = vld [vmem:[%s4 + $0x44] sm:$0xf]
  %v2842 = vld [vmem:[%s4 + $0x48] sm:$0xff]
  %v2843 = vld [vmem:[%s4 + $0x50] sm:$0xf]
  %v2844 = vld [vmem:[%s4 + $0x54] sm:$0xff]
  %v2845 = vld [vmem:[%s4 + $0x5c] sm:$0xf]
  %v2846 = vld [vmem:[%s4 + $0x60] sm:$0xff]
  %v2847 = vld [vmem:[%s4 + $0x68] sm:$0xf]
  %v2848 = vld [vmem:[%s4 + $0x6c] sm:$0xff]
  %v2849 = vld [vmem:[%s4 + $0x74] sm:$0xf]
  %v2850 = vld [vmem:[%s4 + $0x78] sm:$0xff]
  %v2851 = vld [vmem:[%s4 + $0x80] sm:$0xf]
  %v2852 = vld [vmem:[%s4 + $0x84] sm:$0xff]
  %v2853 = vld [vmem:[%s4 + $0x8c] sm:$0xf]
  %v2854 = vld [vmem:[%s4 + $0x90] sm:$0xff]
  %v2855 = vld [vmem:[%s4 + $0x98] sm:$0xf]
  %v2856 = vld [vmem:[%s4 + $0x9c] sm:$0xff]
  %v2857 = vld [vmem:[%s4 + $0xa4] sm:$0xf]
  %v2858 = vld [vmem:[%s4 + $0xa8] sm:$0xff]
  %v2859 = vld [vmem:[%s4 + $0xb0] sm:$0xf]
  %v2860 = vld [vmem:[%s4 + $0xb4] sm:$0xff]
  %v2861 = vld [vmem:[%s4 + $0xbc] sm:$0xf]
  %v2862 = vld [vmem:[%s4 + $0xc0] sm:$0xff]
  %v2863 = vld [vmem:[%s4 + $0xc8] sm:$0xf]
  %v2864 = vld [vmem:[%s4 + $0xcc] sm:$0xff]
  %v2865 = vld [vmem:[%s4 + $0xd4] sm:$0xf]
  %v2866 = vld [vmem:[%s4 + $0xd8] sm:$0xff]
  %v2867 = vld [vmem:[%s4 + $0xe0] sm:$0xf]
  %v2868 = vld [vmem:[%s4 + $0xe4] sm:$0xff]
  %v2869 = vld [vmem:[%s4 + $0xec] sm:$0xf]
  %v2870 = vld [vmem:[%s4 + $0xf0] sm:$0xff]
  %v2871 = vld [vmem:[%s4 + $0xf8] sm:$0xf]
  %v2872 = vld [vmem:[%s4 + $0xfc] sm:$0xff]
  %v2873 = vld [vmem:[%s4 + $0x104] sm:$0xf]
  %v2874 = vld [vmem:[%s4 + $0x108] sm:$0xff]
  %v2875 = vld [vmem:[%s4 + $0x110] sm:$0xf]
  %v2876 = vld [vmem:[%s4 + $0x114] sm:$0xff]
  %v2877 = vld [vmem:[%s4 + $0x11c] sm:$0xf]
  %v2878 = vld [vmem:[%s4 + $0x120] sm:$0xff]
  %v2879 = vld [vmem:[%s4 + $0x128] sm:$0xf]
  %v2880 = vld [vmem:[%s4 + $0x12c] sm:$0xff]
  %v2881 = vld [vmem:[%s4 + $0x134] sm:$0xf]
  %v2882 = vpack.c.bf16 %v2806, %v2804
  %v2883 = vpack.c.bf16 %v2807, %v2805
  %v2884 = vpack.c.bf16 %v2810, %v2808
  %v2885 = vpack.c.bf16 %v2811, %v2809
  %v2886 = vpack.c.bf16 %v2814, %v2812
  %v2887 = vpack.c.bf16 %v2815, %v2813
  %v2888 = vpack.c.bf16 %v2818, %v2816
  %v2889 = vpack.c.bf16 %v2819, %v2817
  %v2890 = vpack.c.bf16 %v2822, %v2820
  %v2891 = vpack.c.bf16 %v2823, %v2821
  %v2892 = vpack.c.bf16 %v2824, %v2824
  %v2893 = vpack.c.bf16 %v2825, %v2825
  %s2894 = scalar_lea.vmem %s4, 312
  %v2895 = vld [vmem:[%s2894] sm:$0xff]
  %v2896 = vld [vmem:[%s2894 + $0x8] sm:$0xf]
  %v2897 = vld [vmem:[%s2894 + $0xc] sm:$0xff]
  %v2898 = vld [vmem:[%s2894 + $0x14] sm:$0xf]
  %v2899 = vld [vmem:[%s2894 + $0x18] sm:$0xff]
  %v2900 = vld [vmem:[%s2894 + $0x20] sm:$0xf]
  %v2901 = vld [vmem:[%s2894 + $0x24] sm:$0xff]
  %v2902 = vld [vmem:[%s2894 + $0x2c] sm:$0xf]
  %v2903 = vld [vmem:[%s2894 + $0x30] sm:$0xff]
  %v2904 = vld [vmem:[%s2894 + $0x38] sm:$0xf]
  %v2905 = vld [vmem:[%s2894 + $0x3c] sm:$0xff]
  %v2906 = vld [vmem:[%s2894 + $0x44] sm:$0xf]
  %v2907 = vld [vmem:[%s2894 + $0x48] sm:$0xff]
  %v2908 = vld [vmem:[%s2894 + $0x50] sm:$0xf]
  %v2909 = vld [vmem:[%s2894 + $0x54] sm:$0xff]
  %v2910 = vld [vmem:[%s2894 + $0x5c] sm:$0xf]
  %v2911 = vld [vmem:[%s2894 + $0x60] sm:$0xff]
  %v2912 = vld [vmem:[%s2894 + $0x68] sm:$0xf]
  %v2913 = vld [vmem:[%s2894 + $0x6c] sm:$0xff]
  %v2914 = vld [vmem:[%s2894 + $0x74] sm:$0xf]
  %v2915 = vld [vmem:[%s2894 + $0x78] sm:$0xff]
  %v2916 = vld [vmem:[%s2894 + $0x80] sm:$0xf]
  %v2917 = vld [vmem:[%s2894 + $0x84] sm:$0xff]
  %v2918 = vld [vmem:[%s2894 + $0x8c] sm:$0xf]
  %v2919 = vld [vmem:[%s2894 + $0x90] sm:$0xff]
  %v2920 = vld [vmem:[%s2894 + $0x98] sm:$0xf]
  %v2921 = vld [vmem:[%s2894 + $0x9c] sm:$0xff]
  %v2922 = vld [vmem:[%s2894 + $0xa4] sm:$0xf]
  %v2923 = vld [vmem:[%s2894 + $0xa8] sm:$0xff]
  %v2924 = vld [vmem:[%s2894 + $0xb0] sm:$0xf]
  %v2925 = vld [vmem:[%s2894 + $0xb4] sm:$0xff]
  %v2926 = vld [vmem:[%s2894 + $0xbc] sm:$0xf]
  %v2927 = vld [vmem:[%s2894 + $0xc0] sm:$0xff]
  %v2928 = vld [vmem:[%s2894 + $0xc8] sm:$0xf]
  %v2929 = vld [vmem:[%s2894 + $0xcc] sm:$0xff]
  %v2930 = vld [vmem:[%s2894 + $0xd4] sm:$0xf]
  %v2931 = vld [vmem:[%s2894 + $0xd8] sm:$0xff]
  %v2932 = vld [vmem:[%s2894 + $0xe0] sm:$0xf]
  %v2933 = vld [vmem:[%s2894 + $0xe4] sm:$0xff]
  %v2934 = vld [vmem:[%s2894 + $0xec] sm:$0xf]
  %v2935 = vld [vmem:[%s2894 + $0xf0] sm:$0xff]
  %v2936 = vld [vmem:[%s2894 + $0xf8] sm:$0xf]
  %v2937 = vld [vmem:[%s2894 + $0xfc] sm:$0xff]
  %v2938 = vld [vmem:[%s2894 + $0x104] sm:$0xf]
  %v2939 = vld [vmem:[%s2894 + $0x108] sm:$0xff]
  %v2940 = vld [vmem:[%s2894 + $0x110] sm:$0xf]
  %v2941 = vld [vmem:[%s2894 + $0x114] sm:$0xff]
  %v2942 = vld [vmem:[%s2894 + $0x11c] sm:$0xf]
  %v2943 = vld [vmem:[%s2894 + $0x120] sm:$0xff]
  %v2944 = vld [vmem:[%s2894 + $0x128] sm:$0xf]
  %v2945 = vld [vmem:[%s2894 + $0x12c] sm:$0xff]
  %v2946 = vld [vmem:[%s2894 + $0x134] sm:$0xf]
  %v2947 = vpack.c.bf16 %v2808, %v2806
  %v2948 = vpack.c.bf16 %v2809, %v2807
  %v2949 = vpack.c.bf16 %v2812, %v2810
  %v2950 = vpack.c.bf16 %v2813, %v2811
  %v2951 = vpack.c.bf16 %v2816, %v2814
  %v2952 = vpack.c.bf16 %v2817, %v2815
  %v2953 = vpack.c.bf16 %v2820, %v2818
  %v2954 = vpack.c.bf16 %v2821, %v2819
  %v2955 = vpack.c.bf16 %v2824, %v2822
  %v2956 = vpack.c.bf16 %v2825, %v2823
  %v2957 = vpack.c.bf16 %v2826, %v2826
  %v2958 = vpack.c.bf16 %v2827, %v2827
  %v3011 = vunpack.c.l.b16 %v2895
  %v3012 = vunpack.c.h.b16 %v2895
  %v3013 = vunpack.c.l.b16 %v2896
  %v3014 = vunpack.c.l.b16 %v2897
  %v3015 = vunpack.c.h.b16 %v2897
  %v3016 = vunpack.c.l.b16 %v2898
  %v3017 = vunpack.c.l.b16 %v2899
  %v3018 = vunpack.c.h.b16 %v2899
  %v3019 = vunpack.c.l.b16 %v2900
  %v3020 = vunpack.c.l.b16 %v2901
  %v3021 = vunpack.c.h.b16 %v2901
  %v3022 = vunpack.c.l.b16 %v2902
  %v3023 = vunpack.c.l.b16 %v2903
  %v3024 = vunpack.c.h.b16 %v2903
  %v3025 = vunpack.c.l.b16 %v2904
  %v3026 = vunpack.c.l.b16 %v2905
  %v3027 = vunpack.c.h.b16 %v2905
  %v3028 = vunpack.c.l.b16 %v2906
  %v3029 = vunpack.c.l.b16 %v2907
  %v3030 = vunpack.c.h.b16 %v2907
  %v3031 = vunpack.c.l.b16 %v2908
  %v3032 = vunpack.c.l.b16 %v2909
  %v3033 = vunpack.c.h.b16 %v2909
  %v3034 = vunpack.c.l.b16 %v2910
  %v3035 = vunpack.c.l.b16 %v2911
  %v3036 = vunpack.c.h.b16 %v2911
  %v3037 = vunpack.c.l.b16 %v2912
  %v3038 = vunpack.c.l.b16 %v2913
  %v3039 = vunpack.c.h.b16 %v2913
  %v3040 = vunpack.c.l.b16 %v2914
  %v3041 = vunpack.c.l.b16 %v2915
  %v3042 = vunpack.c.h.b16 %v2915
  %v3043 = vunpack.c.l.b16 %v2916
  %v3044 = vunpack.c.l.b16 %v2917
  %v3045 = vunpack.c.h.b16 %v2917
  %v3046 = vunpack.c.l.b16 %v2918
  %v3047 = vunpack.c.l.b16 %v2919
  %v3048 = vunpack.c.h.b16 %v2919
  %v3049 = vunpack.c.l.b16 %v2920
  %v3050 = vunpack.c.l.b16 %v2921
  %v3051 = vunpack.c.h.b16 %v2921
  %v3052 = vunpack.c.l.b16 %v2922
  %v3053 = vunpack.c.l.b16 %v2923
  %v3054 = vunpack.c.h.b16 %v2923
  %v3055 = vunpack.c.l.b16 %v2924
  %v3056 = vunpack.c.l.b16 %v2925
  %v3057 = vunpack.c.h.b16 %v2925
  %v3058 = vunpack.c.l.b16 %v2926
  %v3059 = vunpack.c.l.b16 %v2927
  %v3060 = vunpack.c.h.b16 %v2927
  %v3061 = vunpack.c.l.b16 %v2928
  %v3062 = vunpack.c.l.b16 %v2929
  %v3063 = vunpack.c.h.b16 %v2929
  %v3064 = vunpack.c.l.b16 %v2930
  %v3065 = vunpack.c.l.b16 %v2931
  %v3066 = vunpack.c.h.b16 %v2931
  %v3067 = vunpack.c.l.b16 %v2932
  %v3068 = vunpack.c.l.b16 %v2933
  %v3069 = vunpack.c.h.b16 %v2933
  %v3070 = vunpack.c.l.b16 %v2934
  %v3071 = vunpack.c.l.b16 %v2935
  %v3072 = vunpack.c.h.b16 %v2935
  %v3073 = vunpack.c.l.b16 %v2936
  %v3074 = vunpack.c.l.b16 %v2937
  %v3075 = vunpack.c.h.b16 %v2937
  %v3076 = vunpack.c.l.b16 %v2938
  %v3077 = vunpack.c.l.b16 %v2939
  %v3078 = vunpack.c.h.b16 %v2939
  %v3079 = vunpack.c.l.b16 %v2940
  %v3080 = vunpack.c.l.b16 %v2941
  %v3081 = vunpack.c.h.b16 %v2941
  %v3082 = vunpack.c.l.b16 %v2942
  %v3083 = vunpack.c.l.b16 %v2943
  %v3084 = vunpack.c.h.b16 %v2943
  %v3085 = vunpack.c.l.b16 %v2944
  %v3086 = vunpack.c.l.b16 %v2945
  %v3087 = vunpack.c.h.b16 %v2945
  %v3088 = vunpack.c.l.b16 %v2946
  %v3089 = vpack.c.b16 %v3014, %v3011
  %v3090 = vpack.c.b16 %v3015, %v3012
  %v3091 = vpack.c.b16 %v3016, %v3013
  %v3092 = vpack.c.b16 %v3020, %v3017
  %v3093 = vpack.c.b16 %v3021, %v3018
  %v3094 = vpack.c.b16 %v3022, %v3019
  %v3095 = vpack.c.b16 %v3026, %v3023
  %v3096 = vpack.c.b16 %v3027, %v3024
  %v3097 = vpack.c.b16 %v3028, %v3025
  %v3098 = vpack.c.b16 %v3032, %v3029
  %v3099 = vpack.c.b16 %v3033, %v3030
  %v3100 = vpack.c.b16 %v3034, %v3031
  %v3101 = vpack.c.b16 %v3038, %v3035
  %v3102 = vpack.c.b16 %v3039, %v3036
  %v3103 = vpack.c.b16 %v3040, %v3037
  %v3104 = vpack.c.b16 %v3044, %v3041
  %v3105 = vpack.c.b16 %v3045, %v3042
  %v3106 = vpack.c.b16 %v3046, %v3043
  %v3107 = vpack.c.b16 %v3050, %v3047
  %v3108 = vpack.c.b16 %v3051, %v3048
  %v3109 = vpack.c.b16 %v3052, %v3049
  %v3110 = vpack.c.b16 %v3056, %v3053
  %v3111 = vpack.c.b16 %v3057, %v3054
  %v3112 = vpack.c.b16 %v3058, %v3055
  %v3113 = vpack.c.b16 %v3062, %v3059
  %v3114 = vpack.c.b16 %v3063, %v3060
  %v3115 = vpack.c.b16 %v3064, %v3061
  %v3116 = vpack.c.b16 %v3068, %v3065
  %v3117 = vpack.c.b16 %v3069, %v3066
  %v3118 = vpack.c.b16 %v3070, %v3067
  %v3119 = vpack.c.b16 %v3074, %v3071
  %v3120 = vpack.c.b16 %v3075, %v3072
  %v3121 = vpack.c.b16 %v3076, %v3073
  %v3122 = vpack.c.b16 %v3080, %v3077
  %v3123 = vpack.c.b16 %v3081, %v3078
  %v3124 = vpack.c.b16 %v3082, %v3079
  %v3125 = vpack.c.b16 %v3086, %v3083
  %v3126 = vpack.c.b16 %v3087, %v3084
  %v3127 = vpack.c.b16 %v3088, %v3085
  %vm3167 = vcmask 654336
  %v3169 = vsel %vm3167, %v2948, 0
  %v3172 = vsel %vm3167, %v2950, 0
  %v3175 = vsel %vm3167, %v2952, 0
  %v3178 = vsel %vm3167, %v2954, 0
  %v3181 = vsel %vm3167, %v2956, 0
  %v3184 = vsel %vm3167, %v2958, 0
  %3186 = vmatprep.subr.bf16.mxu0 %v3090
  %3187 = vmatpush1.bf16.msra.mxu0 %v3089
  %3188 = vmatprep.subr.bf16.mxu0 %v3093
  %3189 = vmatpush1.bf16.msra.mxu0 %v3092
  %3190 = vmatprep.subr.bf16.mxu0 %v3096
  %3191 = vmatpush1.bf16.msra.mxu0 %v3095
  %3192 = vmatprep.subr.bf16.mxu0 %v3099
  %3193 = vmatpush1.bf16.msra.mxu0 %v3098
  %3194 = vmatprep.subr.bf16.mxu0 %v3102
  %3195 = vmatpush1.bf16.msra.mxu0 %v3101
  %3196 = vmatprep.subr.bf16.mxu0 %v3105
  %3197 = vmatpush1.bf16.msra.mxu0 %v3104
  %3198 = vmatprep.subr.bf16.mxu0 %v3108
  %3199 = vmatpush1.bf16.msra.mxu0 %v3107
  %3200 = vmatprep.subr.bf16.mxu0 %v3111
  %3201 = vmatpush1.bf16.msra.mxu0 %v3110
  %3202 = vmatprep.subr.bf16.mxu0 %v3114
  %3203 = vmatpush1.bf16.msra.mxu0 %v3113
  %3204 = vmatprep.subr.bf16.mxu0 %v3117
  %3205 = vmatpush1.bf16.msra.mxu0 %v3116
  %3206 = vmatprep.subr.bf16.mxu0 %v3120
  %3207 = vmatpush1.bf16.msra.mxu0 %v3119
  %3208 = vmatprep.subr.bf16.mxu0 %v3123
  %3209 = vmatpush1.bf16.msra.mxu0 %v3122
  %3210 = vmatprep.subr.bf16.mxu0 %v3126
  %3211 = vmatpush1.bf16.msra.mxu0 %v3125
  %3212 = vmatprep.subr.bf16.mxu0 0
  %3213 = vmatpush1.bf16.msra.mxu0 0
  %3214 = vmatprep.subr.bf16.mxu0 0
  %3215 = vmatpush1.bf16.msra.mxu0 0
  %3216 = vmatprep.subr.bf16.mxu0 0
  %3217 = vmatpush1.bf16.msra.mxu0 0
  %3218 = vmatprep.mubr.bf16.mxu0 %v3169
  %3219 = vmatmul.mubr.bf16.gmra.mrb[0].mxu0 %v2947
  %v3220 = vpop.f32.mrb[0].mxu0
  %v3221 = vadd.f32 0.0, %v3220
  %v3222 = vpop.f32.mrb[0].mxu0
  %v3223 = vadd.f32 0.0, %v3222
  %v3224 = vpop.f32.mrb[0].mxu0
  %v3225 = vadd.f32 0.0, %v3224
  %v3226 = vpop.f32.mrb[0].mxu0
  %v3227 = vadd.f32 0.0, %v3226
  %3228 = vmatprep.mubr.bf16.mxu0 %v3172
  %3229 = vmatmul.mubr.bf16.gmra.mrb[0].mxu0 %v2949
  %v3230 = vpop.f32.mrb[0].mxu0
  %v3231 = vadd.f32 0.0, %v3230
  %v3232 = vpop.f32.mrb[0].mxu0
  %v3233 = vadd.f32 0.0, %v3232
  %v3234 = vpop.f32.mrb[0].mxu0
  %v3235 = vadd.f32 0.0, %v3234
  %v3236 = vpop.f32.mrb[0].mxu0
  %v3237 = vadd.f32 0.0, %v3236
  %3238 = vmatprep.mubr.bf16.mxu0 %v3175
  %3239 = vmatmul.mubr.bf16.gmra.mrb[0].mxu0 %v2951
  %v3240 = vpop.f32.mrb[0].mxu0
  %v3241 = vadd.f32 0.0, %v3240
  %v3242 = vpop.f32.mrb[0].mxu0
  %v3243 = vadd.f32 0.0, %v3242
  %v3244 = vpop.f32.mrb[0].mxu0
  %v3245 = vadd.f32 0.0, %v3244
  %v3246 = vpop.f32.mrb[0].mxu0
  %v3247 = vadd.f32 0.0, %v3246
  %3248 = vmatprep.mubr.bf16.mxu0 %v3178
  %3249 = vmatmul.mubr.bf16.gmra.mrb[0].mxu0 %v2953
  %v3250 = vpop.f32.mrb[0].mxu0
  %v3251 = vadd.f32 0.0, %v3250
  %v3252 = vpop.f32.mrb[0].mxu0
  %v3253 = vadd.f32 0.0, %v3252
  %v3254 = vpop.f32.mrb[0].mxu0
  %v3255 = vadd.f32 0.0, %v3254
  %v3256 = vpop.f32.mrb[0].mxu0
  %v3257 = vadd.f32 0.0, %v3256
  %3258 = vmatprep.mubr.bf16.mxu0 %v3181
  %3259 = vmatmul.mubr.bf16.gmra.mrb[0].mxu0 %v2955
  %v3260 = vpop.f32.mrb[0].mxu0
  %v3261 = vadd.f32 0.0, %v3260
  %v3262 = vpop.f32.mrb[0].mxu0
  %v3263 = vadd.f32 0.0, %v3262
  %v3264 = vpop.f32.mrb[0].mxu0
  %v3265 = vadd.f32 0.0, %v3264
  %v3266 = vpop.f32.mrb[0].mxu0
  %v3267 = vadd.f32 0.0, %v3266
  %3268 = vmatprep.mubr.bf16.mxu0 %v3184
  %3269 = vmatmul.mubr.bf16.gmra.mrb[0].mxu0 %v2957
  %v3270 = vpop.f32.mrb[0].mxu0
  %v3271 = vpop.f32.mrb[0].mxu0
  %v3272 = vpop.f32.mrb[0].mxu0
  %v3273 = vpop.f32.mrb[0].mxu0
  %3274 = vdwg.mxu0
  %3275 = vmatprep.subr.bf16.mxu0 0
  %3276 = vmatpush1.bf16.msra.mxu0 %v3091
  %3277 = vmatprep.subr.bf16.mxu0 0
  %3278 = vmatpush1.bf16.msra.mxu0 %v3094
  %3279 = vmatprep.subr.bf16.mxu0 0
  %3280 = vmatpush1.bf16.msra.mxu0 %v3097
  %3281 = vmatprep.subr.bf16.mxu0 0
  %3282 = vmatpush1.bf16.msra.mxu0 %v3100
  %3283 = vmatprep.subr.bf16.mxu0 0
  %3284 = vmatpush1.bf16.msra.mxu0 %v3103
  %3285 = vmatprep.subr.bf16.mxu0 0
  %3286 = vmatpush1.bf16.msra.mxu0 %v3106
  %3287 = vmatprep.subr.bf16.mxu0 0
  %3288 = vmatpush1.bf16.msra.mxu0 %v3109
  %3289 = vmatprep.subr.bf16.mxu0 0
  %3290 = vmatpush1.bf16.msra.mxu0 %v3112
  %3291 = vmatprep.subr.bf16.mxu0 0
  %3292 = vmatpush1.bf16.msra.mxu0 %v3115
  %3293 = vmatprep.subr.bf16.mxu0 0
  %3294 = vmatpush1.bf16.msra.mxu0 %v3118
  %3295 = vmatprep.subr.bf16.mxu0 0
  %3296 = vmatpush1.bf16.msra.mxu0 %v3121
  %3297 = vmatprep.subr.bf16.mxu0 0
  %3298 = vmatpush1.bf16.msra.mxu0 %v3124
  %3299 = vmatprep.subr.bf16.mxu0 0
  %3300 = vmatpush1.bf16.msra.mxu0 %v3127
  %3301 = vmatprep.subr.bf16.mxu0 0
  %3302 = vmatpush1.bf16.msra.mxu0 0
  %3303 = vmatprep.subr.bf16.mxu0 0
  %3304 = vmatpush1.bf16.msra.mxu0 0
  %3305 = vmatprep.subr.bf16.mxu0 0
  %3306 = vmatpush1.bf16.msra.mxu0 0
  %3307 = vmatprep.mubr.bf16.mxu0 %v3169
  %3308 = vmatmul.mubr.bf16.gmra.mrb[0].mxu0 %v2947
  %v3309 = vpop.f32.mrb[0].mxu0
  %v3310 = vadd.f32 0.0, %v3309
  %v3311 = vpop.f32.mrb[0].mxu0
  %v3312 = vpop.f32.mrb[0].mxu0
  %v3313 = vadd.f32 0.0, %v3312
  %v3314 = vpop.f32.mrb[0].mxu0
  %3315 = vmatprep.mubr.bf16.mxu0 %v3172
  %3316 = vmatmul.mubr.bf16.gmra.mrb[0].mxu0 %v2949
  %v3317 = vpop.f32.mrb[0].mxu0
  %v3318 = vadd.f32 0.0, %v3317
  %v3319 = vpop.f32.mrb[0].mxu0
  %v3320 = vpop.f32.mrb[0].mxu0
  %v3321 = vadd.f32 0.0, %v3320
  %v3322 = vpop.f32.mrb[0].mxu0
  %3323 = vmatprep.mubr.bf16.mxu0 %v3175
  %3324 = vmatmul.mubr.bf16.gmra.mrb[0].mxu0 %v2951
  %v3325 = vpop.f32.mrb[0].mxu0
  %v3326 = vadd.f32 0.0, %v3325
  %v3327 = vpop.f32.mrb[0].mxu0
  %v3328 = vpop.f32.mrb[0].mxu0
  %v3329 = vadd.f32 0.0, %v3328
  %v3330 = vpop.f32.mrb[0].mxu0
  %3331 = vmatprep.mubr.bf16.mxu0 %v3178
  %3332 = vmatmul.mubr.bf16.gmra.mrb[0].mxu0 %v2953
  %v3333 = vpop.f32.mrb[0].mxu0
  %v3334 = vadd.f32 0.0, %v3333
  %v3335 = vpop.f32.mrb[0].mxu0
  %v3336 = vpop.f32.mrb[0].mxu0
  %v3337 = vadd.f32 0.0, %v3336
  %v3338 = vpop.f32.mrb[0].mxu0
  %3339 = vmatprep.mubr.bf16.mxu0 %v3181
  %3340 = vmatmul.mubr.bf16.gmra.mrb[0].mxu0 %v2955
  %v3341 = vpop.f32.mrb[0].mxu0
  %v3342 = vadd.f32 0.0, %v3341
  %v3343 = vpop.f32.mrb[0].mxu0
  %v3344 = vpop.f32.mrb[0].mxu0
  %v3345 = vadd.f32 0.0, %v3344
  %v3346 = vpop.f32.mrb[0].mxu0
  %3347 = vmatprep.mubr.bf16.mxu0 %v3184
  %3348 = vmatmul.mubr.bf16.gmra.mrb[0].mxu0 %v2957
  %v3349 = vpop.f32.mrb[0].mxu0
  %v3350 = vpop.f32.mrb[0].mxu0
  %v3351 = vpop.f32.mrb[0].mxu0
  %v3352 = vpop.f32.mrb[0].mxu0
  %3353 = vdwg.mxu0
  %v3406 = vunpack.c.l.b16 %v2830
  %v3407 = vunpack.c.h.b16 %v2830
  %v3408 = vunpack.c.l.b16 %v2831
  %v3409 = vunpack.c.l.b16 %v2832
  %v3410 = vunpack.c.h.b16 %v2832
  %v3411 = vunpack.c.l.b16 %v2833
  %v3412 = vunpack.c.l.b16 %v2834
  %v3413 = vunpack.c.h.b16 %v2834
  %v3414 = vunpack.c.l.b16 %v2835
  %v3415 = vunpack.c.l.b16 %v2836
  %v3416 = vunpack.c.h.b16 %v2836
  %v3417 = vunpack.c.l.b16 %v2837
  %v3418 = vunpack.c.l.b16 %v2838
  %v3419 = vunpack.c.h.b16 %v2838
  %v3420 = vunpack.c.l.b16 %v2839
  %v3421 = vunpack.c.l.b16 %v2840
  %v3422 = vunpack.c.h.b16 %v2840
  %v3423 = vunpack.c.l.b16 %v2841
  %v3424 = vunpack.c.l.b16 %v2842
  %v3425 = vunpack.c.h.b16 %v2842
  %v3426 = vunpack.c.l.b16 %v2843
  %v3427 = vunpack.c.l.b16 %v2844
  %v3428 = vunpack.c.h.b16 %v2844
  %v3429 = vunpack.c.l.b16 %v2845
  %v3430 = vunpack.c.l.b16 %v2846
  %v3431 = vunpack.c.h.b16 %v2846
  %v3432 = vunpack.c.l.b16 %v2847
  %v3433 = vunpack.c.l.b16 %v2848
  %v3434 = vunpack.c.h.b16 %v2848
  %v3435 = vunpack.c.l.b16 %v2849
  %v3436 = vunpack.c.l.b16 %v2850
  %v3437 = vunpack.c.h.b16 %v2850
  %v3438 = vunpack.c.l.b16 %v2851
  %v3439 = vunpack.c.l.b16 %v2852
  %v3440 = vunpack.c.h.b16 %v2852
  %v3441 = vunpack.c.l.b16 %v2853
  %v3442 = vunpack.c.l.b16 %v2854
  %v3443 = vunpack.c.h.b16 %v2854
  %v3444 = vunpack.c.l.b16 %v2855
  %v3445 = vunpack.c.l.b16 %v2856
  %v3446 = vunpack.c.h.b16 %v2856
  %v3447 = vunpack.c.l.b16 %v2857
  %v3448 = vunpack.c.l.b16 %v2858
  %v3449 = vunpack.c.h.b16 %v2858
  %v3450 = vunpack.c.l.b16 %v2859
  %v3451 = vunpack.c.l.b16 %v2860
  %v3452 = vunpack.c.h.b16 %v2860
  %v3453 = vunpack.c.l.b16 %v2861
  %v3454 = vunpack.c.l.b16 %v2862
  %v3455 = vunpack.c.h.b16 %v2862
  %v3456 = vunpack.c.l.b16 %v2863
  %v3457 = vunpack.c.l.b16 %v2864
  %v3458 = vunpack.c.h.b16 %v2864
  %v3459 = vunpack.c.l.b16 %v2865
  %v3460 = vunpack.c.l.b16 %v2866
  %v3461 = vunpack.c.h.b16 %v2866
  %v3462 = vunpack.c.l.b16 %v2867
  %v3463 = vunpack.c.l.b16 %v2868
  %v3464 = vunpack.c.h.b16 %v2868
  %v3465 = vunpack.c.l.b16 %v2869
  %v3466 = vunpack.c.l.b16 %v2870
  %v3467 = vunpack.c.h.b16 %v2870
  %v3468 = vunpack.c.l.b16 %v2871
  %v3469 = vunpack.c.l.b16 %v2872
  %v3470 = vunpack.c.h.b16 %v2872
  %v3471 = vunpack.c.l.b16 %v2873
  %v3472 = vunpack.c.l.b16 %v2874
  %v3473 = vunpack.c.h.b16 %v2874
  %v3474 = vunpack.c.l.b16 %v2875
  %v3475 = vunpack.c.l.b16 %v2876
  %v3476 = vunpack.c.h.b16 %v2876
  %v3477 = vunpack.c.l.b16 %v2877
  %v3478 = vunpack.c.l.b16 %v2878
  %v3479 = vunpack.c.h.b16 %v2878
  %v3480 = vunpack.c.l.b16 %v2879
  %v3481 = vunpack.c.l.b16 %v2880
  %v3482 = vunpack.c.h.b16 %v2880
  %v3483 = vunpack.c.l.b16 %v2881
  %v3484 = vpack.c.b16 %v3409, %v3406
  %v3485 = vpack.c.b16 %v3410, %v3407
  %v3486 = vpack.c.b16 %v3411, %v3408
  %v3487 = vpack.c.b16 %v3415, %v3412
  %v3488 = vpack.c.b16 %v3416, %v3413
  %v3489 = vpack.c.b16 %v3417, %v3414
  %v3490 = vpack.c.b16 %v3421, %v3418
  %v3491 = vpack.c.b16 %v3422, %v3419
  %v3492 = vpack.c.b16 %v3423, %v3420
  %v3493 = vpack.c.b16 %v3427, %v3424
  %v3494 = vpack.c.b16 %v3428, %v3425
  %v3495 = vpack.c.b16 %v3429, %v3426
  %v3496 = vpack.c.b16 %v3433, %v3430
  %v3497 = vpack.c.b16 %v3434, %v3431
  %v3498 = vpack.c.b16 %v3435, %v3432
  %v3499 = vpack.c.b16 %v3439, %v3436
  %v3500 = vpack.c.b16 %v3440, %v3437
  %v3501 = vpack.c.b16 %v3441, %v3438
  %v3502 = vpack.c.b16 %v3445, %v3442
  %v3503 = vpack.c.b16 %v3446, %v3443
  %v3504 = vpack.c.b16 %v3447, %v3444
  %v3505 = vpack.c.b16 %v3451, %v3448
  %v3506 = vpack.c.b16 %v3452, %v3449
  %v3507 = vpack.c.b16 %v3453, %v3450
  %v3508 = vpack.c.b16 %v3457, %v3454
  %v3509 = vpack.c.b16 %v3458, %v3455
  %v3510 = vpack.c.b16 %v3459, %v3456
  %v3511 = vpack.c.b16 %v3463, %v3460
  %v3512 = vpack.c.b16 %v3464, %v3461
  %v3513 = vpack.c.b16 %v3465, %v3462
  %v3514 = vpack.c.b16 %v3469, %v3466
  %v3515 = vpack.c.b16 %v3470, %v3467
  %v3516 = vpack.c.b16 %v3471, %v3468
  %v3517 = vpack.c.b16 %v3475, %v3472
  %v3518 = vpack.c.b16 %v3476, %v3473
  %v3519 = vpack.c.b16 %v3477, %v3474
  %v3520 = vpack.c.b16 %v3481, %v3478
  %v3521 = vpack.c.b16 %v3482, %v3479
  %v3522 = vpack.c.b16 %v3483, %v3480
  %v3563 = vsel %vm3167, %v2883, 0
  %v3566 = vsel %vm3167, %v2885, 0
  %v3569 = vsel %vm3167, %v2887, 0
  %v3572 = vsel %vm3167, %v2889, 0
  %v3575 = vsel %vm3167, %v2891, 0
  %v3578 = vsel %vm3167, %v2893, 0
  %3580 = vmatprep.subr.bf16.mxu0 %v3485
  %3581 = vmatpush1.bf16.msra.mxu0 %v3484
  %3582 = vmatprep.subr.bf16.mxu0 %v3488
  %3583 = vmatpush1.bf16.msra.mxu0 %v3487
  %3584 = vmatprep.subr.bf16.mxu0 %v3491
  %3585 = vmatpush1.bf16.msra.mxu0 %v3490
  %3586 = vmatprep.subr.bf16.mxu0 %v3494
  %3587 = vmatpush1.bf16.msra.mxu0 %v3493
  %3588 = vmatprep.subr.bf16.mxu0 %v3497
  %3589 = vmatpush1.bf16.msra.mxu0 %v3496
  %3590 = vmatprep.subr.bf16.mxu0 %v3500
  %3591 = vmatpush1.bf16.msra.mxu0 %v3499
  %3592 = vmatprep.subr.bf16.mxu0 %v3503
  %3593 = vmatpush1.bf16.msra.mxu0 %v3502
  %3594 = vmatprep.subr.bf16.mxu0 %v3506
  %3595 = vmatpush1.bf16.msra.mxu0 %v3505
  %3596 = vmatprep.subr.bf16.mxu0 %v3509
  %3597 = vmatpush1.bf16.msra.mxu0 %v3508
  %3598 = vmatprep.subr.bf16.mxu0 %v3512
  %3599 = vmatpush1.bf16.msra.mxu0 %v3511
  %3600 = vmatprep.subr.bf16.mxu0 %v3515
  %3601 = vmatpush1.bf16.msra.mxu0 %v3514
  %3602 = vmatprep.subr.bf16.mxu0 %v3518
  %3603 = vmatpush1.bf16.msra.mxu0 %v3517
  %3604 = vmatprep.subr.bf16.mxu0 %v3521
  %3605 = vmatpush1.bf16.msra.mxu0 %v3520
  %3606 = vmatprep.subr.bf16.mxu0 0
  %3607 = vmatpush1.bf16.msra.mxu0 0
  %3608 = vmatprep.subr.bf16.mxu0 0
  %3609 = vmatpush1.bf16.msra.mxu0 0
  %3610 = vmatprep.subr.bf16.mxu0 0
  %3611 = vmatpush1.bf16.msra.mxu0 0
  %3612 = vmatprep.mubr.bf16.mxu0 %v3563
  %3613 = vmatmul.mubr.bf16.gmra.mrb[0].mxu0 %v2882
  %v3614 = vpop.f32.mrb[0].mxu0
  %v3615 = vadd.f32 %v3221, %v3614
  %v3616 = vpop.f32.mrb[0].mxu0
  %v3617 = vadd.f32 %v3223, %v3616
  %v3618 = vpop.f32.mrb[0].mxu0
  %v3619 = vadd.f32 %v3225, %v3618
  %v3620 = vpop.f32.mrb[0].mxu0
  %v3621 = vadd.f32 %v3227, %v3620
  %3622 = vmatprep.mubr.bf16.mxu0 %v3566
  %3623 = vmatmul.mubr.bf16.gmra.mrb[0].mxu0 %v2884
  %v3624 = vpop.f32.mrb[0].mxu0
  %v3625 = vadd.f32 %v3231, %v3624
  %v3626 = vpop.f32.mrb[0].mxu0
  %v3627 = vadd.f32 %v3233, %v3626
  %v3628 = vpop.f32.mrb[0].mxu0
  %v3629 = vadd.f32 %v3235, %v3628
  %v3630 = vpop.f32.mrb[0].mxu0
  %v3631 = vadd.f32 %v3237, %v3630
  %3632 = vmatprep.mubr.bf16.mxu0 %v3569
  %3633 = vmatmul.mubr.bf16.gmra.mrb[0].mxu0 %v2886
  %v3634 = vpop.f32.mrb[0].mxu0
  %v3635 = vadd.f32 %v3241, %v3634
  %v3636 = vpop.f32.mrb[0].mxu0
  %v3637 = vadd.f32 %v3243, %v3636
  %v3638 = vpop.f32.mrb[0].mxu0
  %v3639 = vadd.f32 %v3245, %v3638
  %v3640 = vpop.f32.mrb[0].mxu0
  %v3641 = vadd.f32 %v3247, %v3640
  %3642 = vmatprep.mubr.bf16.mxu0 %v3572
  %3643 = vmatmul.mubr.bf16.gmra.mrb[0].mxu0 %v2888
  %v3644 = vpop.f32.mrb[0].mxu0
  %v3645 = vadd.f32 %v3251, %v3644
  %v3646 = vpop.f32.mrb[0].mxu0
  %v3647 = vadd.f32 %v3253, %v3646
  %v3648 = vpop.f32.mrb[0].mxu0
  %v3649 = vadd.f32 %v3255, %v3648
  %v3650 = vpop.f32.mrb[0].mxu0
  %v3651 = vadd.f32 %v3257, %v3650
  %3652 = vmatprep.mubr.bf16.mxu0 %v3575
  %3653 = vmatmul.mubr.bf16.gmra.mrb[0].mxu0 %v2890
  %v3654 = vpop.f32.mrb[0].mxu0
  %v3655 = vadd.f32 %v3261, %v3654
  %v3656 = vpop.f32.mrb[0].mxu0
  %v3657 = vadd.f32 %v3263, %v3656
  %v3658 = vpop.f32.mrb[0].mxu0
  %v3659 = vadd.f32 %v3265, %v3658
  %v3660 = vpop.f32.mrb[0].mxu0
  %v3661 = vadd.f32 %v3267, %v3660
  %3662 = vmatprep.mubr.bf16.mxu0 %v3578
  %3663 = vmatmul.mubr.bf16.gmra.mrb[0].mxu0 %v2892
  %v3664 = vpop.f32.mrb[0].mxu0
  %v3665 = vpop.f32.mrb[0].mxu0
  %v3666 = vpop.f32.mrb[0].mxu0
  %v3667 = vpop.f32.mrb[0].mxu0
  %3668 = vdwg.mxu0
  %3669 = vmatprep.subr.bf16.mxu0 0
  %3670 = vmatpush1.bf16.msra.mxu0 %v3486
  %3671 = vmatprep.subr.bf16.mxu0 0
  %3672 = vmatpush1.bf16.msra.mxu0 %v3489
  %3673 = vmatprep.subr.bf16.mxu0 0
  %3674 = vmatpush1.bf16.msra.mxu0 %v3492
  %3675 = vmatprep.subr.bf16.mxu0 0
  %3676 = vmatpush1.bf16.msra.mxu0 %v3495
  %3677 = vmatprep.subr.bf16.mxu0 0
  %3678 = vmatpush1.bf16.msra.mxu0 %v3498
  %3679 = vmatprep.subr.bf16.mxu0 0
  %3680 = vmatpush1.bf16.msra.mxu0 %v3501
  %3681 = vmatprep.subr.bf16.mxu0 0
  %3682 = vmatpush1.bf16.msra.mxu0 %v3504
  %3683 = vmatprep.subr.bf16.mxu0 0
  %3684 = vmatpush1.bf16.msra.mxu0 %v3507
  %3685 = vmatprep.subr.bf16.mxu0 0
  %3686 = vmatpush1.bf16.msra.mxu0 %v3510
  %3687 = vmatprep.subr.bf16.mxu0 0
  %3688 = vmatpush1.bf16.msra.mxu0 %v3513
  %3689 = vmatprep.subr.bf16.mxu0 0
  %3690 = vmatpush1.bf16.msra.mxu0 %v3516
  %3691 = vmatprep.subr.bf16.mxu0 0
  %3692 = vmatpush1.bf16.msra.mxu0 %v3519
  %3693 = vmatprep.subr.bf16.mxu0 0
  %3694 = vmatpush1.bf16.msra.mxu0 %v3522
  %3695 = vmatprep.subr.bf16.mxu0 0
  %3696 = vmatpush1.bf16.msra.mxu0 0
  %3697 = vmatprep.subr.bf16.mxu0 0
  %3698 = vmatpush1.bf16.msra.mxu0 0
  %3699 = vmatprep.subr.bf16.mxu0 0
  %3700 = vmatpush1.bf16.msra.mxu0 0
  %3701 = vmatprep.mubr.bf16.mxu0 %v3563
  %3702 = vmatmul.mubr.bf16.gmra.mrb[0].mxu0 %v2882
  %v3703 = vpop.f32.mrb[0].mxu0
  %v3704 = vadd.f32 %v3310, %v3703
  %v3705 = vpop.f32.mrb[0].mxu0
  %v3706 = vpop.f32.mrb[0].mxu0
  %v3707 = vadd.f32 %v3313, %v3706
  %v3708 = vpop.f32.mrb[0].mxu0
  %3709 = vmatprep.mubr.bf16.mxu0 %v3566
  %3710 = vmatmul.mubr.bf16.gmra.mrb[0].mxu0 %v2884
  %v3711 = vpop.f32.mrb[0].mxu0
  %v3712 = vadd.f32 %v3318, %v3711
  %v3713 = vpop.f32.mrb[0].mxu0
  %v3714 = vpop.f32.mrb[0].mxu0
  %v3715 = vadd.f32 %v3321, %v3714
  %v3716 = vpop.f32.mrb[0].mxu0
  %3717 = vmatprep.mubr.bf16.mxu0 %v3569
  %3718 = vmatmul.mubr.bf16.gmra.mrb[0].mxu0 %v2886
  %v3719 = vpop.f32.mrb[0].mxu0
  %v3720 = vadd.f32 %v3326, %v3719
  %v3721 = vpop.f32.mrb[0].mxu0
  %v3722 = vpop.f32.mrb[0].mxu0
  %v3723 = vadd.f32 %v3329, %v3722
  %v3724 = vpop.f32.mrb[0].mxu0
  %3725 = vmatprep.mubr.bf16.mxu0 %v3572
  %3726 = vmatmul.mubr.bf16.gmra.mrb[0].mxu0 %v2888
  %v3727 = vpop.f32.mrb[0].mxu0
  %v3728 = vadd.f32 %v3334, %v3727
  %v3729 = vpop.f32.mrb[0].mxu0
  %v3730 = vpop.f32.mrb[0].mxu0
  %v3731 = vadd.f32 %v3337, %v3730
  %v3732 = vpop.f32.mrb[0].mxu0
  %3733 = vmatprep.mubr.bf16.mxu0 %v3575
  %3734 = vmatmul.mubr.bf16.gmra.mrb[0].mxu0 %v2890
  %v3735 = vpop.f32.mrb[0].mxu0
  %v3736 = vadd.f32 %v3342, %v3735
  %v3737 = vpop.f32.mrb[0].mxu0
  %v3738 = vpop.f32.mrb[0].mxu0
  %v3739 = vadd.f32 %v3345, %v3738
  %v3740 = vpop.f32.mrb[0].mxu0
  %3741 = vmatprep.mubr.bf16.mxu0 %v3578
  %3742 = vmatmul.mubr.bf16.gmra.mrb[0].mxu0 %v2892
  %v3743 = vpop.f32.mrb[0].mxu0
  %v3744 = vpop.f32.mrb[0].mxu0
  %v3745 = vpop.f32.mrb[0].mxu0
  %v3746 = vpop.f32.mrb[0].mxu0
  %3747 = vdwg.mxu0
  %s3748 = scalar_lea.vmem %s4, 624
  %v3749 = vld [vmem:[%s3748] sm:$0xff]
  %v3750 = vld [vmem:[%s3748 + $0x8] sm:$0xf]
  %v3751 = vld [vmem:[%s3748 + $0xc] sm:$0xff]
  %v3752 = vld [vmem:[%s3748 + $0x14] sm:$0xf]
  %v3753 = vld [vmem:[%s3748 + $0x18] sm:$0xff]
  %v3754 = vld [vmem:[%s3748 + $0x20] sm:$0xf]
  %v3755 = vld [vmem:[%s3748 + $0x24] sm:$0xff]
  %v3756 = vld [vmem:[%s3748 + $0x2c] sm:$0xf]
  %v3757 = vld [vmem:[%s3748 + $0x30] sm:$0xff]
  %v3758 = vld [vmem:[%s3748 + $0x38] sm:$0xf]
  %v3759 = vld [vmem:[%s3748 + $0x3c] sm:$0xff]
  %v3760 = vld [vmem:[%s3748 + $0x44] sm:$0xf]
  %v3761 = vld [vmem:[%s3748 + $0x48] sm:$0xff]
  %v3762 = vld [vmem:[%s3748 + $0x50] sm:$0xf]
  %v3763 = vld [vmem:[%s3748 + $0x54] sm:$0xff]
  %v3764 = vld [vmem:[%s3748 + $0x5c] sm:$0xf]
  %v3765 = vld [vmem:[%s3748 + $0x60] sm:$0xff]
  %v3766 = vld [vmem:[%s3748 + $0x68] sm:$0xf]
  %v3767 = vld [vmem:[%s3748 + $0x6c] sm:$0xff]
  %v3768 = vld [vmem:[%s3748 + $0x74] sm:$0xf]
  %v3769 = vld [vmem:[%s3748 + $0x78] sm:$0xff]
  %v3770 = vld [vmem:[%s3748 + $0x80] sm:$0xf]
  %v3771 = vld [vmem:[%s3748 + $0x84] sm:$0xff]
  %v3772 = vld [vmem:[%s3748 + $0x8c] sm:$0xf]
  %v3773 = vld [vmem:[%s3748 + $0x90] sm:$0xff]
  %v3774 = vld [vmem:[%s3748 + $0x98] sm:$0xf]
  %v3775 = vld [vmem:[%s3748 + $0x9c] sm:$0xff]
  %v3776 = vld [vmem:[%s3748 + $0xa4] sm:$0xf]
  %v3777 = vld [vmem:[%s3748 + $0xa8] sm:$0xff]
  %v3778 = vld [vmem:[%s3748 + $0xb0] sm:$0xf]
  %v3779 = vld [vmem:[%s3748 + $0xb4] sm:$0xff]
  %v3780 = vld [vmem:[%s3748 + $0xbc] sm:$0xf]
  %v3781 = vld [vmem:[%s3748 + $0xc0] sm:$0xff]
  %v3782 = vld [vmem:[%s3748 + $0xc8] sm:$0xf]
  %v3783 = vld [vmem:[%s3748 + $0xcc] sm:$0xff]
  %v3784 = vld [vmem:[%s3748 + $0xd4] sm:$0xf]
  %v3785 = vld [vmem:[%s3748 + $0xd8] sm:$0xff]
  %v3786 = vld [vmem:[%s3748 + $0xe0] sm:$0xf]
  %v3787 = vld [vmem:[%s3748 + $0xe4] sm:$0xff]
  %v3788 = vld [vmem:[%s3748 + $0xec] sm:$0xf]
  %v3789 = vld [vmem:[%s3748 + $0xf0] sm:$0xff]
  %v3790 = vld [vmem:[%s3748 + $0xf8] sm:$0xf]
  %v3791 = vld [vmem:[%s3748 + $0xfc] sm:$0xff]
  %v3792 = vld [vmem:[%s3748 + $0x104] sm:$0xf]
  %v3793 = vld [vmem:[%s3748 + $0x108] sm:$0xff]
  %v3794 = vld [vmem:[%s3748 + $0x110] sm:$0xf]
  %v3795 = vld [vmem:[%s3748 + $0x114] sm:$0xff]
  %v3796 = vld [vmem:[%s3748 + $0x11c] sm:$0xf]
  %v3797 = vld [vmem:[%s3748 + $0x120] sm:$0xff]
  %v3798 = vld [vmem:[%s3748 + $0x128] sm:$0xf]
  %v3799 = vld [vmem:[%s3748 + $0x12c] sm:$0xff]
  %v3800 = vld [vmem:[%s3748 + $0x134] sm:$0xf]
  %v3801 = vpack.c.bf16 %v2826, %v2824
  %v3802 = vpack.c.bf16 %v2827, %v2825
  %v3803 = vpack.c.bf16 %v2828, %v2828
  %v3804 = vpack.c.bf16 %v2829, %v2829
  %v3857 = vunpack.c.l.b16 %v3749
  %v3858 = vunpack.c.h.b16 %v3749
  %v3859 = vunpack.c.l.b16 %v3750
  %v3860 = vunpack.c.l.b16 %v3751
  %v3861 = vunpack.c.h.b16 %v3751
  %v3862 = vunpack.c.l.b16 %v3752
  %v3863 = vunpack.c.l.b16 %v3753
  %v3864 = vunpack.c.h.b16 %v3753
  %v3865 = vunpack.c.l.b16 %v3754
  %v3866 = vunpack.c.l.b16 %v3755
  %v3867 = vunpack.c.h.b16 %v3755
  %v3868 = vunpack.c.l.b16 %v3756
  %v3869 = vunpack.c.l.b16 %v3757
  %v3870 = vunpack.c.h.b16 %v3757
  %v3871 = vunpack.c.l.b16 %v3758
  %v3872 = vunpack.c.l.b16 %v3759
  %v3873 = vunpack.c.h.b16 %v3759
  %v3874 = vunpack.c.l.b16 %v3760
  %v3875 = vunpack.c.l.b16 %v3761
  %v3876 = vunpack.c.h.b16 %v3761
  %v3877 = vunpack.c.l.b16 %v3762
  %v3878 = vunpack.c.l.b16 %v3763
  %v3879 = vunpack.c.h.b16 %v3763
  %v3880 = vunpack.c.l.b16 %v3764
  %v3881 = vunpack.c.l.b16 %v3765
  %v3882 = vunpack.c.h.b16 %v3765
  %v3883 = vunpack.c.l.b16 %v3766
  %v3884 = vunpack.c.l.b16 %v3767
  %v3885 = vunpack.c.h.b16 %v3767
  %v3886 = vunpack.c.l.b16 %v3768
  %v3887 = vunpack.c.l.b16 %v3769
  %v3888 = vunpack.c.h.b16 %v3769
  %v3889 = vunpack.c.l.b16 %v3770
  %v3890 = vunpack.c.l.b16 %v3771
  %v3891 = vunpack.c.h.b16 %v3771
  %v3892 = vunpack.c.l.b16 %v3772
  %v3893 = vunpack.c.l.b16 %v3773
  %v3894 = vunpack.c.h.b16 %v3773
  %v3895 = vunpack.c.l.b16 %v3774
  %v3896 = vunpack.c.l.b16 %v3775
  %v3897 = vunpack.c.h.b16 %v3775
  %v3898 = vunpack.c.l.b16 %v3776
  %v3899 = vunpack.c.l.b16 %v3777
  %v3900 = vunpack.c.h.b16 %v3777
  %v3901 = vunpack.c.l.b16 %v3778
  %v3902 = vunpack.c.l.b16 %v3779
  %v3903 = vunpack.c.h.b16 %v3779
  %v3904 = vunpack.c.l.b16 %v3780
  %v3905 = vunpack.c.l.b16 %v3781
  %v3906 = vunpack.c.h.b16 %v3781
  %v3907 = vunpack.c.l.b16 %v3782
  %v3908 = vunpack.c.l.b16 %v3783
  %v3909 = vunpack.c.h.b16 %v3783
  %v3910 = vunpack.c.l.b16 %v3784
  %v3911 = vunpack.c.l.b16 %v3785
  %v3912 = vunpack.c.h.b16 %v3785
  %v3913 = vunpack.c.l.b16 %v3786
  %v3914 = vunpack.c.l.b16 %v3787
  %v3915 = vunpack.c.h.b16 %v3787
  %v3916 = vunpack.c.l.b16 %v3788
  %v3917 = vunpack.c.l.b16 %v3789
  %v3918 = vunpack.c.h.b16 %v3789
  %v3919 = vunpack.c.l.b16 %v3790
  %v3920 = vunpack.c.l.b16 %v3791
  %v3921 = vunpack.c.h.b16 %v3791
  %v3922 = vunpack.c.l.b16 %v3792
  %v3923 = vunpack.c.l.b16 %v3793
  %v3924 = vunpack.c.h.b16 %v3793
  %v3925 = vunpack.c.l.b16 %v3794
  %v3926 = vunpack.c.l.b16 %v3795
  %v3927 = vunpack.c.h.b16 %v3795
  %v3928 = vunpack.c.l.b16 %v3796
  %v3929 = vunpack.c.l.b16 %v3797
  %v3930 = vunpack.c.h.b16 %v3797
  %v3931 = vunpack.c.l.b16 %v3798
  %v3932 = vunpack.c.l.b16 %v3799
  %v3933 = vunpack.c.h.b16 %v3799
  %v3934 = vunpack.c.l.b16 %v3800
  %v3935 = vpack.c.b16 %v3860, %v3857
  %v3936 = vpack.c.b16 %v3861, %v3858
  %v3937 = vpack.c.b16 %v3862, %v3859
  %v3938 = vpack.c.b16 %v3866, %v3863
  %v3939 = vpack.c.b16 %v3867, %v3864
  %v3940 = vpack.c.b16 %v3868, %v3865
  %v3941 = vpack.c.b16 %v3872, %v3869
  %v3942 = vpack.c.b16 %v3873, %v3870
  %v3943 = vpack.c.b16 %v3874, %v3871
  %v3944 = vpack.c.b16 %v3878, %v3875
  %v3945 = vpack.c.b16 %v3879, %v3876
  %v3946 = vpack.c.b16 %v3880, %v3877
  %v3947 = vpack.c.b16 %v3884, %v3881
  %v3948 = vpack.c.b16 %v3885, %v3882
  %v3949 = vpack.c.b16 %v3886, %v3883
  %v3950 = vpack.c.b16 %v3890, %v3887
  %v3951 = vpack.c.b16 %v3891, %v3888
  %v3952 = vpack.c.b16 %v3892, %v3889
  %v3953 = vpack.c.b16 %v3896, %v3893
  %v3954 = vpack.c.b16 %v3897, %v3894
  %v3955 = vpack.c.b16 %v3898, %v3895
  %v3956 = vpack.c.b16 %v3902, %v3899
  %v3957 = vpack.c.b16 %v3903, %v3900
  %v3958 = vpack.c.b16 %v3904, %v3901
  %v3959 = vpack.c.b16 %v3908, %v3905
  %v3960 = vpack.c.b16 %v3909, %v3906
  %v3961 = vpack.c.b16 %v3910, %v3907
  %v3962 = vpack.c.b16 %v3914, %v3911
  %v3963 = vpack.c.b16 %v3915, %v3912
  %v3964 = vpack.c.b16 %v3916, %v3913
  %v3965 = vpack.c.b16 %v3920, %v3917
  %v3966 = vpack.c.b16 %v3921, %v3918
  %v3967 = vpack.c.b16 %v3922, %v3919
  %v3968 = vpack.c.b16 %v3926, %v3923
  %v3969 = vpack.c.b16 %v3927, %v3924
  %v3970 = vpack.c.b16 %v3928, %v3925
  %v3971 = vpack.c.b16 %v3932, %v3929
  %v3972 = vpack.c.b16 %v3933, %v3930
  %v3973 = vpack.c.b16 %v3934, %v3931
  %v4014 = vsel %vm3167, %v3802, 0
  %v4017 = vsel %vm3167, %v3804, 0
  %4019 = vmatprep.subr.bf16.mxu0 %v3936
  %4020 = vmatpush1.bf16.msra.mxu0 %v3935
  %4021 = vmatprep.subr.bf16.mxu0 %v3939
  %4022 = vmatpush1.bf16.msra.mxu0 %v3938
  %4023 = vmatprep.subr.bf16.mxu0 %v3942
  %4024 = vmatpush1.bf16.msra.mxu0 %v3941
  %4025 = vmatprep.subr.bf16.mxu0 %v3945
  %4026 = vmatpush1.bf16.msra.mxu0 %v3944
  %4027 = vmatprep.subr.bf16.mxu0 %v3948
  %4028 = vmatpush1.bf16.msra.mxu0 %v3947
  %4029 = vmatprep.subr.bf16.mxu0 %v3951
  %4030 = vmatpush1.bf16.msra.mxu0 %v3950
  %4031 = vmatprep.subr.bf16.mxu0 %v3954
  %4032 = vmatpush1.bf16.msra.mxu0 %v3953
  %4033 = vmatprep.subr.bf16.mxu0 %v3957
  %4034 = vmatpush1.bf16.msra.mxu0 %v3956
  %4035 = vmatprep.subr.bf16.mxu0 %v3960
  %4036 = vmatpush1.bf16.msra.mxu0 %v3959
  %4037 = vmatprep.subr.bf16.mxu0 %v3963
  %4038 = vmatpush1.bf16.msra.mxu0 %v3962
  %4039 = vmatprep.subr.bf16.mxu0 %v3966
  %4040 = vmatpush1.bf16.msra.mxu0 %v3965
  %4041 = vmatprep.subr.bf16.mxu0 %v3969
  %4042 = vmatpush1.bf16.msra.mxu0 %v3968
  %4043 = vmatprep.subr.bf16.mxu0 %v3972
  %4044 = vmatpush1.bf16.msra.mxu0 %v3971
  %4045 = vmatprep.subr.bf16.mxu0 0
  %4046 = vmatpush1.bf16.msra.mxu0 0
  %4047 = vmatprep.subr.bf16.mxu0 0
  %4048 = vmatpush1.bf16.msra.mxu0 0
  %4049 = vmatprep.subr.bf16.mxu0 0
  %4050 = vmatpush1.bf16.msra.mxu0 0
  %4051 = vmatprep.mubr.bf16.mxu0 %v3566
  %4052 = vmatmul.mubr.bf16.gmra.mrb[0].mxu0 %v2884
  %v4053 = vpop.f32.mrb[0].mxu0
  %v4054 = vadd.f32 0.0, %v4053
  %v4055 = vpop.f32.mrb[0].mxu0
  %v4056 = vadd.f32 0.0, %v4055
  %v4057 = vpop.f32.mrb[0].mxu0
  %v4058 = vadd.f32 0.0, %v4057
  %v4059 = vpop.f32.mrb[0].mxu0
  %v4060 = vadd.f32 0.0, %v4059
  %4061 = vmatprep.mubr.bf16.mxu0 %v3569
  %4062 = vmatmul.mubr.bf16.gmra.mrb[0].mxu0 %v2886
  %v4063 = vpop.f32.mrb[0].mxu0
  %v4064 = vadd.f32 0.0, %v4063
  %v4065 = vpop.f32.mrb[0].mxu0
  %v4066 = vadd.f32 0.0, %v4065
  %v4067 = vpop.f32.mrb[0].mxu0
  %v4068 = vadd.f32 0.0, %v4067
  %v4069 = vpop.f32.mrb[0].mxu0
  %v4070 = vadd.f32 0.0, %v4069
  %4071 = vmatprep.mubr.bf16.mxu0 %v3572
  %4072 = vmatmul.mubr.bf16.gmra.mrb[0].mxu0 %v2888
  %v4073 = vpop.f32.mrb[0].mxu0
  %v4074 = vadd.f32 0.0, %v4073
  %v4075 = vpop.f32.mrb[0].mxu0
  %v4076 = vadd.f32 0.0, %v4075
  %v4077 = vpop.f32.mrb[0].mxu0
  %v4078 = vadd.f32 0.0, %v4077
  %v4079 = vpop.f32.mrb[0].mxu0
  %v4080 = vadd.f32 0.0, %v4079
  %4081 = vmatprep.mubr.bf16.mxu0 %v3575
  %4082 = vmatmul.mubr.bf16.gmra.mrb[0].mxu0 %v2890
  %v4083 = vpop.f32.mrb[0].mxu0
  %v4084 = vadd.f32 0.0, %v4083
  %v4085 = vpop.f32.mrb[0].mxu0
  %v4086 = vadd.f32 0.0, %v4085
  %v4087 = vpop.f32.mrb[0].mxu0
  %v4088 = vadd.f32 0.0, %v4087
  %v4089 = vpop.f32.mrb[0].mxu0
  %v4090 = vadd.f32 0.0, %v4089
  %4091 = vmatprep.mubr.bf16.mxu0 %v4014
  %4092 = vmatmul.mubr.bf16.gmra.mrb[0].mxu0 %v3801
  %v4093 = vpop.f32.mrb[0].mxu0
  %v4094 = vadd.f32 0.0, %v4093
  %v4095 = vpop.f32.mrb[0].mxu0
  %v4096 = vadd.f32 0.0, %v4095
  %v4097 = vpop.f32.mrb[0].mxu0
  %v4098 = vadd.f32 0.0, %v4097
  %v4099 = vpop.f32.mrb[0].mxu0
  %v4100 = vadd.f32 0.0, %v4099
  %4101 = vmatprep.mubr.bf16.mxu0 %v4017
  %4102 = vmatmul.mubr.bf16.gmra.mrb[0].mxu0 %v3803
  %v4103 = vpop.f32.mrb[0].mxu0
  %v4104 = vpop.f32.mrb[0].mxu0
  %v4105 = vpop.f32.mrb[0].mxu0
  %v4106 = vpop.f32.mrb[0].mxu0
  %4107 = vdwg.mxu0
  %4108 = vmatprep.subr.bf16.mxu0 0
  %4109 = vmatpush1.bf16.msra.mxu0 %v3937
  %4110 = vmatprep.subr.bf16.mxu0 0
  %4111 = vmatpush1.bf16.msra.mxu0 %v3940
  %4112 = vmatprep.subr.bf16.mxu0 0
  %4113 = vmatpush1.bf16.msra.mxu0 %v3943
  %4114 = vmatprep.subr.bf16.mxu0 0
  %4115 = vmatpush1.bf16.msra.mxu0 %v3946
  %4116 = vmatprep.subr.bf16.mxu0 0
  %4117 = vmatpush1.bf16.msra.mxu0 %v3949
  %4118 = vmatprep.subr.bf16.mxu0 0
  %4119 = vmatpush1.bf16.msra.mxu0 %v3952
  %4120 = vmatprep.subr.bf16.mxu0 0
  %4121 = vmatpush1.bf16.msra.mxu0 %v3955
  %4122 = vmatprep.subr.bf16.mxu0 0
  %4123 = vmatpush1.bf16.msra.mxu0 %v3958
  %4124 = vmatprep.subr.bf16.mxu0 0
  %4125 = vmatpush1.bf16.msra.mxu0 %v3961
  %4126 = vmatprep.subr.bf16.mxu0 0
  %4127 = vmatpush1.bf16.msra.mxu0 %v3964
  %4128 = vmatprep.subr.bf16.mxu0 0
  %4129 = vmatpush1.bf16.msra.mxu0 %v3967
  %4130 = vmatprep.subr.bf16.mxu0 0
  %4131 = vmatpush1.bf16.msra.mxu0 %v3970
  %4132 = vmatprep.subr.bf16.mxu0 0
  %4133 = vmatpush1.bf16.msra.mxu0 %v3973
  %4134 = vmatprep.subr.bf16.mxu0 0
  %4135 = vmatpush1.bf16.msra.mxu0 0
  %4136 = vmatprep.subr.bf16.mxu0 0
  %4137 = vmatpush1.bf16.msra.mxu0 0
  %4138 = vmatprep.subr.bf16.mxu0 0
  %4139 = vmatpush1.bf16.msra.mxu0 0
  %4140 = vmatprep.mubr.bf16.mxu0 %v3566
  %4141 = vmatmul.mubr.bf16.gmra.mrb[0].mxu0 %v2884
  %v4142 = vpop.f32.mrb[0].mxu0
  %v4143 = vadd.f32 0.0, %v4142
  %v4144 = vpop.f32.mrb[0].mxu0
  %v4145 = vpop.f32.mrb[0].mxu0
  %v4146 = vadd.f32 0.0, %v4145
  %v4147 = vpop.f32.mrb[0].mxu0
  %4148 = vmatprep.mubr.bf16.mxu0 %v3569
  %4149 = vmatmul.mubr.bf16.gmra.mrb[0].mxu0 %v2886
  %v4150 = vpop.f32.mrb[0].mxu0
  %v4151 = vadd.f32 0.0, %v4150
  %v4152 = vpop.f32.mrb[0].mxu0
  %v4153 = vpop.f32.mrb[0].mxu0
  %v4154 = vadd.f32 0.0, %v4153
  %v4155 = vpop.f32.mrb[0].mxu0
  %4156 = vmatprep.mubr.bf16.mxu0 %v3572
  %4157 = vmatmul.mubr.bf16.gmra.mrb[0].mxu0 %v2888
  %v4158 = vpop.f32.mrb[0].mxu0
  %v4159 = vadd.f32 0.0, %v4158
  %v4160 = vpop.f32.mrb[0].mxu0
  %v4161 = vpop.f32.mrb[0].mxu0
  %v4162 = vadd.f32 0.0, %v4161
  %v4163 = vpop.f32.mrb[0].mxu0
  %4164 = vmatprep.mubr.bf16.mxu0 %v3575
  %4165 = vmatmul.mubr.bf16.gmra.mrb[0].mxu0 %v2890
  %v4166 = vpop.f32.mrb[0].mxu0
  %v4167 = vadd.f32 0.0, %v4166
  %v4168 = vpop.f32.mrb[0].mxu0
  %v4169 = vpop.f32.mrb[0].mxu0
  %v4170 = vadd.f32 0.0, %v4169
  %v4171 = vpop.f32.mrb[0].mxu0
  %4172 = vmatprep.mubr.bf16.mxu0 %v4014
  %4173 = vmatmul.mubr.bf16.gmra.mrb[0].mxu0 %v3801
  %v4174 = vpop.f32.mrb[0].mxu0
  %v4175 = vadd.f32 0.0, %v4174
  %v4176 = vpop.f32.mrb[0].mxu0
  %v4177 = vpop.f32.mrb[0].mxu0
  %v4178 = vadd.f32 0.0, %v4177
  %v4179 = vpop.f32.mrb[0].mxu0
  %4180 = vmatprep.mubr.bf16.mxu0 %v4017
  %4181 = vmatmul.mubr.bf16.gmra.mrb[0].mxu0 %v3803
  %v4182 = vpop.f32.mrb[0].mxu0
  %v4183 = vpop.f32.mrb[0].mxu0
  %v4184 = vpop.f32.mrb[0].mxu0
  %v4185 = vpop.f32.mrb[0].mxu0
  %4186 = vdwg.mxu0
  %v4187 = vadd.f32 %v3615, %v4054
  %v4188 = vadd.f32 %v3617, %v4056
  %v4189 = vadd.f32 %v3704, %v4143
  %v4190 = vadd.f32 %v3619, %v4058
  %v4191 = vadd.f32 %v3621, %v4060
  %v4192 = vadd.f32 %v3707, %v4146
  %v4193 = vadd.f32 %v3625, %v4064
  %v4194 = vadd.f32 %v3627, %v4066
  %v4195 = vadd.f32 %v3712, %v4151
  %v4196 = vadd.f32 %v3629, %v4068
  %v4197 = vadd.f32 %v3631, %v4070
  %v4198 = vadd.f32 %v3715, %v4154
  %v4199 = vadd.f32 %v3635, %v4074
  %v4200 = vadd.f32 %v3637, %v4076
  %v4201 = vadd.f32 %v3720, %v4159
  %v4202 = vadd.f32 %v3639, %v4078
  %v4203 = vadd.f32 %v3641, %v4080
  %v4204 = vadd.f32 %v3723, %v4162
  %v4205 = vadd.f32 %v3645, %v4084
  %v4206 = vadd.f32 %v3647, %v4086
  %v4207 = vadd.f32 %v3728, %v4167
  %v4208 = vadd.f32 %v3649, %v4088
  %v4209 = vadd.f32 %v3651, %v4090
  %v4210 = vadd.f32 %v3731, %v4170
  %v4211 = vadd.f32 %v3655, %v4094
  %v4212 = vadd.f32 %v3657, %v4096
  %v4213 = vadd.f32 %v3736, %v4175
  %v4214 = vadd.f32 %v3659, %v4098
  %v4215 = vadd.f32 %v3661, %v4100
  %v4216 = vadd.f32 %v3739, %v4178
  %v4217 = vld [vmem:[%s5] sm:$0x7]
  %v4219 = vlaneseq
  %v4220 = vshrl.u32 %v4219, 7
  %v4221 = vsub.s32 0, %v4220
  %v4222 = vrot.slane %v4217, %v4221
  %v4223 = vlaneseq
  %v4224 = vshrl.u32 %v4223, 7
  %v4225 = vsub.s32 1, %v4224
  %v4226 = vrot.slane %v4217, %v4225
  %v4227 = vlaneseq
  %v4228 = vshrl.u32 %v4227, 7
  %v4229 = vsub.s32 2, %v4228
  %v4230 = vrot.slane %v4217, %v4229
  %v4234 = vadd.f32 %v4187, %v4222
  %v4235 = vadd.f32 %v4188, %v4226
  %v4236 = vadd.f32 %v4189, %v4230
  %v4237 = vadd.f32 %v4190, %v4222
  %v4238 = vadd.f32 %v4191, %v4226
  %v4239 = vadd.f32 %v4192, %v4230
  %v4240 = vadd.f32 %v4193, %v4222
  %v4241 = vadd.f32 %v4194, %v4226
  %v4242 = vadd.f32 %v4195, %v4230
  %v4243 = vadd.f32 %v4196, %v4222
  %v4244 = vadd.f32 %v4197, %v4226
  %v4245 = vadd.f32 %v4198, %v4230
  %v4246 = vadd.f32 %v4199, %v4222
  %v4247 = vadd.f32 %v4200, %v4226
  %v4248 = vadd.f32 %v4201, %v4230
  %v4249 = vadd.f32 %v4202, %v4222
  %v4250 = vadd.f32 %v4203, %v4226
  %v4251 = vadd.f32 %v4204, %v4230
  %v4252 = vadd.f32 %v4205, %v4222
  %v4253 = vadd.f32 %v4206, %v4226
  %v4254 = vadd.f32 %v4207, %v4230
  %v4255 = vadd.f32 %v4208, %v4222
  %v4256 = vadd.f32 %v4209, %v4226
  %v4257 = vadd.f32 %v4210, %v4230
  %v4258 = vadd.f32 %v4211, %v4222
  %v4259 = vadd.f32 %v4212, %v4226
  %v4260 = vadd.f32 %v4213, %v4230
  %v4261 = vadd.f32 %v4214, %v4222
  %v4262 = vadd.f32 %v4215, %v4226
  %v4263 = vadd.f32 %v4216, %v4230
  %v4264 = vmax.f32 %v4234, 0.0
  %v4265 = vmax.f32 %v4235, 0.0
  %v4266 = vmax.f32 %v4236, 0.0
  %v4267 = vmax.f32 %v4237, 0.0
  %v4268 = vmax.f32 %v4238, 0.0
  %v4269 = vmax.f32 %v4239, 0.0
  %v4270 = vmax.f32 %v4240, 0.0
  %v4271 = vmax.f32 %v4241, 0.0
  %v4272 = vmax.f32 %v4242, 0.0
  %v4273 = vmax.f32 %v4243, 0.0
  %v4274 = vmax.f32 %v4244, 0.0
  %v4275 = vmax.f32 %v4245, 0.0
  %v4276 = vmax.f32 %v4246, 0.0
  %v4277 = vmax.f32 %v4247, 0.0
  %v4278 = vmax.f32 %v4248, 0.0
  %v4279 = vmax.f32 %v4249, 0.0
  %v4280 = vmax.f32 %v4250, 0.0
  %v4281 = vmax.f32 %v4251, 0.0
  %v4282 = vmax.f32 %v4252, 0.0
  %v4283 = vmax.f32 %v4253, 0.0
  %v4284 = vmax.f32 %v4254, 0.0
  %v4285 = vmax.f32 %v4255, 0.0
  %v4286 = vmax.f32 %v4256, 0.0
  %v4287 = vmax.f32 %v4257, 0.0
  %v4288 = vmax.f32 %v4258, 0.0
  %v4289 = vmax.f32 %v4259, 0.0
  %v4290 = vmax.f32 %v4260, 0.0
  %v4291 = vmax.f32 %v4261, 0.0
  %v4292 = vmax.f32 %v4262, 0.0
  %v4293 = vmax.f32 %v4263, 0.0
  %v4294 = vmax.f32 %v4264, %v4267
  %v4295 = vmax.f32 %v4265, %v4268
  %v4296 = vmax.f32 %v4266, %v4269
  %v4297 = vmax.f32 %v4270, %v4273
  %v4298 = vmax.f32 %v4271, %v4274
  %v4299 = vmax.f32 %v4272, %v4275
  %v4300 = vmax.f32 %v4276, %v4279
  %v4301 = vmax.f32 %v4277, %v4280
  %v4302 = vmax.f32 %v4278, %v4281
  %v4303 = vmax.f32 %v4282, %v4285
  %v4304 = vmax.f32 %v4283, %v4286
  %v4305 = vmax.f32 %v4284, %v4287
  %v4306 = vmax.f32 %v4288, %v4291
  %v4307 = vmax.f32 %v4289, %v4292
  %v4308 = vmax.f32 %v4290, %v4293
  %v4309 = vld [vmem:[%s6] sm:$0xff]
  %v4310 = vld [vmem:[%s6 + $0x8] sm:$0xff]
  %v4311 = vld [vmem:[%s6 + $0x10] sm:$0xff]
  %v4312 = vld [vmem:[%s6 + $0x18] sm:$0xff]
  %v4313 = vld [vmem:[%s6 + $0x20] sm:$0xff]
  %v4314 = vld [vmem:[%s6 + $0x28] sm:$0xff]
  %v4315 = vld [vmem:[%s6 + $0x30] sm:$0xff]
  %v4316 = vld [vmem:[%s6 + $0x38] sm:$0xff]
  %v4317 = vld [vmem:[%s6 + $0x40] sm:$0xff]
  %v4318 = vld [vmem:[%s6 + $0x48] sm:$0xff]
  %v4319 = vld [vmem:[%s6 + $0x50] sm:$0xff]
  %v4320 = vld [vmem:[%s6 + $0x58] sm:$0xff]
  %v4321 = vld [vmem:[%s6 + $0x60] sm:$0xff]
  %v4322 = vld [vmem:[%s6 + $0x68] sm:$0xff]
  %v4323 = vld [vmem:[%s6 + $0x70] sm:$0xff]
  %v4324 = vld [vmem:[%s6 + $0x78] sm:$0xff]
  %v4325 = vld [vmem:[%s6 + $0x80] sm:$0xff]
  %v4326 = vld [vmem:[%s6 + $0x88] sm:$0xff]
  %v4327 = vld [vmem:[%s6 + $0x90] sm:$0xff]
  %v4328 = vld [vmem:[%s6 + $0x98] sm:$0xff]
  %v4329 = vld [vmem:[%s6 + $0xa0] sm:$0xff]
  %v4330 = vld [vmem:[%s6 + $0xa8] sm:$0xff]
  %v4331 = vld [vmem:[%s6 + $0xb0] sm:$0xff]
  %v4332 = vld [vmem:[%s6 + $0xb8] sm:$0xff]
  %v4333 = vld [vmem:[%s6 + $0xc0] sm:$0xff]
  %v4334 = vld [vmem:[%s6 + $0xc8] sm:$0xff]
  %v4335 = vld [vmem:[%s6 + $0xd0] sm:$0xff]
  %v4336 = vld [vmem:[%s6 + $0xd8] sm:$0xff]
  %v4337 = vld [vmem:[%s6 + $0xe0] sm:$0xff]
  %v4338 = vld [vmem:[%s6 + $0xe8] sm:$0xff]
  %v4339 = vld [vmem:[%s6 + $0xf0] sm:$0xff]
  %v4340 = vld [vmem:[%s6 + $0xf8] sm:$0xff]
  %v4341 = vld [vmem:[%s6 + $0x100] sm:$0xff]
  %v4342 = vld [vmem:[%s6 + $0x108] sm:$0xff]
  %v4343 = vld [vmem:[%s6 + $0x110] sm:$0xff]
  %v4344 = vld [vmem:[%s6 + $0x118] sm:$0xff]
  %v4345 = vld [vmem:[%s6 + $0x120] sm:$0xff]
  %v4346 = vld [vmem:[%s6 + $0x128] sm:$0xff]
  %v4347 = vld [vmem:[%s6 + $0x130] sm:$0xff]
  %v4348 = vld [vmem:[%s6 + $0x138] sm:$0xff]
  %v4349 = vld [vmem:[%s6 + $0x140] sm:$0xff]
  %v4350 = vld [vmem:[%s6 + $0x148] sm:$0xff]
  %v4351 = vld [vmem:[%s6 + $0x150] sm:$0xff]
  %v4352 = vld [vmem:[%s6 + $0x158] sm:$0xff]
  %v4353 = vpack.c.bf16 %v4297, %v4294
  %v4354 = vpack.c.bf16 %v4298, %v4295
  %v4355 = vpack.c.bf16 %v4299, %v4296
  %v4356 = vpack.c.bf16 %v4303, %v4300
  %v4357 = vpack.c.bf16 %v4304, %v4301
  %v4358 = vpack.c.bf16 %v4305, %v4302
  %v4359 = vpack.c.bf16 %v4306, %v4306
  %v4360 = vpack.c.bf16 %v4307, %v4307
  %v4361 = vpack.c.bf16 %v4308, %v4308
  %v4406 = vunpack.c.l.b16 %v4309
  %v4407 = vunpack.c.h.b16 %v4309
  %v4408 = vunpack.c.l.b16 %v4310
  %v4409 = vunpack.c.h.b16 %v4310
  %v4410 = vunpack.c.l.b16 %v4311
  %v4411 = vunpack.c.h.b16 %v4311
  %v4412 = vunpack.c.l.b16 %v4312
  %v4413 = vunpack.c.h.b16 %v4312
  %v4414 = vunpack.c.l.b16 %v4313
  %v4415 = vunpack.c.h.b16 %v4313
  %v4416 = vunpack.c.l.b16 %v4314
  %v4417 = vunpack.c.h.b16 %v4314
  %v4418 = vunpack.c.l.b16 %v4315
  %v4419 = vunpack.c.h.b16 %v4315
  %v4420 = vunpack.c.l.b16 %v4316
  %v4421 = vunpack.c.h.b16 %v4316
  %v4422 = vunpack.c.l.b16 %v4317
  %v4423 = vunpack.c.h.b16 %v4317
  %v4424 = vunpack.c.l.b16 %v4318
  %v4425 = vunpack.c.h.b16 %v4318
  %v4426 = vunpack.c.l.b16 %v4319
  %v4427 = vunpack.c.h.b16 %v4319
  %v4428 = vunpack.c.l.b16 %v4320
  %v4429 = vunpack.c.h.b16 %v4320
  %v4430 = vunpack.c.l.b16 %v4321
  %v4431 = vunpack.c.h.b16 %v4321
  %v4432 = vunpack.c.l.b16 %v4322
  %v4433 = vunpack.c.h.b16 %v4322
  %v4434 = vunpack.c.l.b16 %v4323
  %v4435 = vunpack.c.h.b16 %v4323
  %v4436 = vunpack.c.l.b16 %v4324
  %v4437 = vunpack.c.h.b16 %v4324
  %v4438 = vunpack.c.l.b16 %v4325
  %v4439 = vunpack.c.h.b16 %v4325
  %v4440 = vunpack.c.l.b16 %v4326
  %v4441 = vunpack.c.h.b16 %v4326
  %v4442 = vunpack.c.l.b16 %v4327
  %v4443 = vunpack.c.h.b16 %v4327
  %v4444 = vunpack.c.l.b16 %v4328
  %v4445 = vunpack.c.h.b16 %v4328
  %v4446 = vunpack.c.l.b16 %v4329
  %v4447 = vunpack.c.h.b16 %v4329
  %v4448 = vunpack.c.l.b16 %v4330
  %v4449 = vunpack.c.h.b16 %v4330
  %v4450 = vunpack.c.l.b16 %v4331
  %v4451 = vunpack.c.h.b16 %v4331
  %v4452 = vunpack.c.l.b16 %v4332
  %v4453 = vunpack.c.h.b16 %v4332
  %v4454 = vunpack.c.l.b16 %v4333
  %v4455 = vunpack.c.h.b16 %v4333
  %v4456 = vunpack.c.l.b16 %v4334
  %v4457 = vunpack.c.h.b16 %v4334
  %v4458 = vunpack.c.l.b16 %v4335
  %v4459 = vunpack.c.h.b16 %v4335
  %v4460 = vunpack.c.l.b16 %v4336
  %v4461 = vunpack.c.h.b16 %v4336
  %v4462 = vunpack.c.l.b16 %v4337
  %v4463 = vunpack.c.h.b16 %v4337
  %v4464 = vunpack.c.l.b16 %v4338
  %v4465 = vunpack.c.h.b16 %v4338
  %v4466 = vunpack.c.l.b16 %v4339
  %v4467 = vunpack.c.h.b16 %v4339
  %v4468 = vunpack.c.l.b16 %v4340
  %v4469 = vunpack.c.h.b16 %v4340
  %v4470 = vunpack.c.l.b16 %v4341
  %v4471 = vunpack.c.h.b16 %v4341
  %v4472 = vunpack.c.l.b16 %v4342
  %v4473 = vunpack.c.h.b16 %v4342
  %v4474 = vunpack.c.l.b16 %v4343
  %v4475 = vunpack.c.h.b16 %v4343
  %v4476 = vunpack.c.l.b16 %v4344
  %v4477 = vunpack.c.h.b16 %v4344
  %v4478 = vunpack.c.l.b16 %v4345
  %v4479 = vunpack.c.h.b16 %v4345
  %v4480 = vunpack.c.l.b16 %v4346
  %v4481 = vunpack.c.h.b16 %v4346
  %v4482 = vunpack.c.l.b16 %v4347
  %v4483 = vunpack.c.h.b16 %v4347
  %v4484 = vunpack.c.l.b16 %v4348
  %v4485 = vunpack.c.h.b16 %v4348
  %v4486 = vunpack.c.l.b16 %v4349
  %v4487 = vunpack.c.h.b16 %v4349
  %v4488 = vunpack.c.l.b16 %v4350
  %v4489 = vunpack.c.h.b16 %v4350
  %v4490 = vunpack.c.l.b16 %v4351
  %v4491 = vunpack.c.h.b16 %v4351
  %v4492 = vunpack.c.l.b16 %v4352
  %v4493 = vunpack.c.h.b16 %v4352
  %v4494 = vpack.c.b16 %v4408, %v4406
  %v4495 = vpack.c.b16 %v4409, %v4407
  %v4496 = vpack.c.b16 %v4412, %v4410
  %v4497 = vpack.c.b16 %v4413, %v4411
  %v4498 = vpack.c.b16 %v4416, %v4414
  %v4499 = vpack.c.b16 %v4417, %v4415
  %v4500 = vpack.c.b16 %v4420, %v4418
  %v4501 = vpack.c.b16 %v4421, %v4419
  %v4502 = vpack.c.b16 %v4424, %v4422
  %v4503 = vpack.c.b16 %v4425, %v4423
  %v4504 = vpack.c.b16 %v4428, %v4426
  %v4505 = vpack.c.b16 %v4429, %v4427
  %v4506 = vpack.c.b16 %v4432, %v4430
  %v4507 = vpack.c.b16 %v4433, %v4431
  %v4508 = vpack.c.b16 %v4436, %v4434
  %v4509 = vpack.c.b16 %v4437, %v4435
  %v4510 = vpack.c.b16 %v4440, %v4438
  %v4511 = vpack.c.b16 %v4441, %v4439
  %v4512 = vpack.c.b16 %v4444, %v4442
  %v4513 = vpack.c.b16 %v4445, %v4443
  %v4514 = vpack.c.b16 %v4448, %v4446
  %v4515 = vpack.c.b16 %v4449, %v4447
  %v4516 = vpack.c.b16 %v4452, %v4450
  %v4517 = vpack.c.b16 %v4453, %v4451
  %v4518 = vpack.c.b16 %v4456, %v4454
  %v4519 = vpack.c.b16 %v4457, %v4455
  %v4520 = vpack.c.b16 %v4460, %v4458
  %v4521 = vpack.c.b16 %v4461, %v4459
  %v4522 = vpack.c.b16 %v4464, %v4462
  %v4523 = vpack.c.b16 %v4465, %v4463
  %v4524 = vpack.c.b16 %v4468, %v4466
  %v4525 = vpack.c.b16 %v4469, %v4467
  %v4526 = vpack.c.b16 %v4472, %v4470
  %v4527 = vpack.c.b16 %v4473, %v4471
  %v4528 = vpack.c.b16 %v4476, %v4474
  %v4529 = vpack.c.b16 %v4477, %v4475
  %v4530 = vpack.c.b16 %v4480, %v4478
  %v4531 = vpack.c.b16 %v4481, %v4479
  %v4532 = vpack.c.b16 %v4484, %v4482
  %v4533 = vpack.c.b16 %v4485, %v4483
  %v4534 = vpack.c.b16 %v4488, %v4486
  %v4535 = vpack.c.b16 %v4489, %v4487
  %v4536 = vpack.c.b16 %v4492, %v4490
  %v4537 = vpack.c.b16 %v4493, %v4491
  %vm4582 = vcmask 785408
  %v4584 = vsel %vm4582, %v4355, 0
  %v4587 = vsel %vm4582, %v4358, 0
  %v4590 = vsel %vm4582, %v4361, 0
  %4592 = vmatprep.subr.bf16.mxu0 %v4495
  %4593 = vmatpush1.bf16.msra.mxu0 %v4494
  %4594 = vmatprep.subr.bf16.mxu0 %v4497
  %4595 = vmatpush1.bf16.msra.mxu0 %v4496
  %4596 = vmatprep.subr.bf16.mxu0 %v4499
  %4597 = vmatpush1.bf16.msra.mxu0 %v4498
  %4598 = vmatprep.subr.bf16.mxu0 %v4501
  %4599 = vmatpush1.bf16.msra.mxu0 %v4500
  %4600 = vmatprep.subr.bf16.mxu0 %v4503
  %4601 = vmatpush1.bf16.msra.mxu0 %v4502
  %4602 = vmatprep.subr.bf16.mxu0 %v4505
  %4603 = vmatpush1.bf16.msra.mxu0 %v4504
  %4604 = vmatprep.subr.bf16.mxu0 %v4507
  %4605 = vmatpush1.bf16.msra.mxu0 %v4506
  %4606 = vmatprep.subr.bf16.mxu0 %v4509
  %4607 = vmatpush1.bf16.msra.mxu0 %v4508
  %4608 = vmatprep.subr.bf16.mxu0 %v4511
  %4609 = vmatpush1.bf16.msra.mxu0 %v4510
  %4610 = vmatprep.subr.bf16.mxu0 %v4513
  %4611 = vmatpush1.bf16.msra.mxu0 %v4512
  %4612 = vmatprep.subr.bf16.mxu0 %v4515
  %4613 = vmatpush1.bf16.msra.mxu0 %v4514
  %4614 = vmatprep.subr.bf16.mxu0 %v4517
  %4615 = vmatpush1.bf16.msra.mxu0 %v4516
  %4616 = vmatprep.subr.bf16.mxu0 %v4519
  %4617 = vmatpush1.bf16.msra.mxu0 %v4518
  %4618 = vmatprep.subr.bf16.mxu0 %v4521
  %4619 = vmatpush1.bf16.msra.mxu0 %v4520
  %4620 = vmatprep.subr.bf16.mxu0 %v4523
  %4621 = vmatpush1.bf16.msra.mxu0 %v4522
  %4622 = vmatprep.subr.bf16.mxu0 %v4525
  %4623 = vmatpush1.bf16.msra.mxu0 %v4524
  %4624 = vmatprep.mubr.bf16.mxu0 %v4354
  %4625 = vmatmul.mubr.bf16.gmra.mrb[0].mxu0 %v4353
  %v4626 = vpop.f32.mrb[0].mxu0
  %v4627 = vadd.f32 0.0, %v4626
  %v4628 = vpop.f32.mrb[0].mxu0
  %v4629 = vadd.f32 0.0, %v4628
  %v4630 = vpop.f32.mrb[0].mxu0
  %v4631 = vadd.f32 0.0, %v4630
  %v4632 = vpop.f32.mrb[0].mxu0
  %v4633 = vadd.f32 0.0, %v4632
  %4634 = vmatprep.mubr.bf16.mxu0 %v4357
  %4635 = vmatmul.mubr.bf16.gmra.mrb[0].mxu0 %v4356
  %v4636 = vpop.f32.mrb[0].mxu0
  %v4637 = vadd.f32 0.0, %v4636
  %v4638 = vpop.f32.mrb[0].mxu0
  %v4639 = vadd.f32 0.0, %v4638
  %v4640 = vpop.f32.mrb[0].mxu0
  %v4641 = vadd.f32 0.0, %v4640
  %v4642 = vpop.f32.mrb[0].mxu0
  %v4643 = vadd.f32 0.0, %v4642
  %4644 = vmatprep.mubr.bf16.mxu0 %v4360
  %4645 = vmatmul.mubr.bf16.gmra.mrb[0].mxu0 %v4359
  %v4646 = vpop.f32.mrb[0].mxu0
  %v4647 = vadd.f32 0.0, %v4646
  %v4648 = vpop.f32.mrb[0].mxu0
  %v4649 = vadd.f32 0.0, %v4648
  %v4650 = vpop.f32.mrb[0].mxu0
  %v4651 = vpop.f32.mrb[0].mxu0
  %4652 = vdwg.mxu0
  %4653 = vmatprep.subr.bf16.mxu0 %v4527
  %4654 = vmatpush1.bf16.msra.mxu0 %v4526
  %4655 = vmatprep.subr.bf16.mxu0 %v4529
  %4656 = vmatpush1.bf16.msra.mxu0 %v4528
  %4657 = vmatprep.subr.bf16.mxu0 %v4531
  %4658 = vmatpush1.bf16.msra.mxu0 %v4530
  %4659 = vmatprep.subr.bf16.mxu0 %v4533
  %4660 = vmatpush1.bf16.msra.mxu0 %v4532
  %4661 = vmatprep.subr.bf16.mxu0 %v4535
  %4662 = vmatpush1.bf16.msra.mxu0 %v4534
  %4663 = vmatprep.subr.bf16.mxu0 %v4537
  %4664 = vmatpush1.bf16.msra.mxu0 %v4536
  %4665 = vmatprep.subr.bf16.mxu0 0
  %4666 = vmatpush1.bf16.msra.mxu0 0
  %4667 = vmatprep.subr.bf16.mxu0 0
  %4668 = vmatpush1.bf16.msra.mxu0 0
  %4669 = vmatprep.subr.bf16.mxu0 0
  %4670 = vmatpush1.bf16.msra.mxu0 0
  %4671 = vmatprep.subr.bf16.mxu0 0
  %4672 = vmatpush1.bf16.msra.mxu0 0
  %4673 = vmatprep.subr.bf16.mxu0 0
  %4674 = vmatpush1.bf16.msra.mxu0 0
  %4675 = vmatprep.subr.bf16.mxu0 0
  %4676 = vmatpush1.bf16.msra.mxu0 0
  %4677 = vmatprep.subr.bf16.mxu0 0
  %4678 = vmatpush1.bf16.msra.mxu0 0
  %4679 = vmatprep.subr.bf16.mxu0 0
  %4680 = vmatpush1.bf16.msra.mxu0 0
  %4681 = vmatprep.subr.bf16.mxu0 0
  %4682 = vmatpush1.bf16.msra.mxu0 0
  %4683 = vmatprep.subr.bf16.mxu0 0
  %4684 = vmatpush1.bf16.msra.mxu0 0
  %4685 = vmatprep.mubr.bf16.mxu0 0
  %4686 = vmatmul.mubr.bf16.gmra.mrb[0].mxu0 %v4584
  %v4687 = vpop.f32.mrb[0].mxu0
  %v4688 = vadd.f32 %v4627, %v4687
  %v4689 = vpop.f32.mrb[0].mxu0
  %v4690 = vadd.f32 %v4629, %v4689
  %v4691 = vpop.f32.mrb[0].mxu0
  %v4692 = vadd.f32 %v4631, %v4691
  %v4693 = vpop.f32.mrb[0].mxu0
  %v4694 = vadd.f32 %v4633, %v4693
  %4695 = vmatprep.mubr.bf16.mxu0 0
  %4696 = vmatmul.mubr.bf16.gmra.mrb[0].mxu0 %v4587
  %v4697 = vpop.f32.mrb[0].mxu0
  %v4698 = vadd.f32 %v4637, %v4697
  %v4699 = vpop.f32.mrb[0].mxu0
  %v4700 = vadd.f32 %v4639, %v4699
  %v4701 = vpop.f32.mrb[0].mxu0
  %v4702 = vadd.f32 %v4641, %v4701
  %v4703 = vpop.f32.mrb[0].mxu0
  %v4704 = vadd.f32 %v4643, %v4703
  %4705 = vmatprep.mubr.bf16.mxu0 0
  %4706 = vmatmul.mubr.bf16.gmra.mrb[0].mxu0 %v4590
  %v4707 = vpop.f32.mrb[0].mxu0
  %v4708 = vadd.f32 %v4647, %v4707
  %v4709 = vpop.f32.mrb[0].mxu0
  %v4710 = vadd.f32 %v4649, %v4709
  %v4711 = vpop.f32.mrb[0].mxu0
  %v4712 = vpop.f32.mrb[0].mxu0
  %4713 = vdwg.mxu0
  %s4714 = scalar_lea.vmem %s6, 352
  %v4715 = vld [vmem:[%s4714] sm:$0xff]
  %v4716 = vld [vmem:[%s4714 + $0x8] sm:$0xff]
  %v4717 = vld [vmem:[%s4714 + $0x10] sm:$0xff]
  %v4718 = vld [vmem:[%s4714 + $0x18] sm:$0xff]
  %v4719 = vld [vmem:[%s4714 + $0x20] sm:$0xff]
  %v4720 = vld [vmem:[%s4714 + $0x28] sm:$0xff]
  %v4721 = vld [vmem:[%s4714 + $0x30] sm:$0xff]
  %v4722 = vld [vmem:[%s4714 + $0x38] sm:$0xff]
  %v4723 = vld [vmem:[%s4714 + $0x40] sm:$0xff]
  %v4724 = vld [vmem:[%s4714 + $0x48] sm:$0xff]
  %v4725 = vld [vmem:[%s4714 + $0x50] sm:$0xff]
  %v4726 = vld [vmem:[%s4714 + $0x58] sm:$0xff]
  %v4727 = vld [vmem:[%s4714 + $0x60] sm:$0xff]
  %v4728 = vld [vmem:[%s4714 + $0x68] sm:$0xff]
  %v4729 = vld [vmem:[%s4714 + $0x70] sm:$0xff]
  %v4730 = vld [vmem:[%s4714 + $0x78] sm:$0xff]
  %v4731 = vld [vmem:[%s4714 + $0x80] sm:$0xff]
  %v4732 = vld [vmem:[%s4714 + $0x88] sm:$0xff]
  %v4733 = vld [vmem:[%s4714 + $0x90] sm:$0xff]
  %v4734 = vld [vmem:[%s4714 + $0x98] sm:$0xff]
  %v4735 = vld [vmem:[%s4714 + $0xa0] sm:$0xff]
  %v4736 = vld [vmem:[%s4714 + $0xa8] sm:$0xff]
  %v4737 = vld [vmem:[%s4714 + $0xb0] sm:$0xff]
  %v4738 = vld [vmem:[%s4714 + $0xb8] sm:$0xff]
  %v4739 = vld [vmem:[%s4714 + $0xc0] sm:$0xff]
  %v4740 = vld [vmem:[%s4714 + $0xc8] sm:$0xff]
  %v4741 = vld [vmem:[%s4714 + $0xd0] sm:$0xff]
  %v4742 = vld [vmem:[%s4714 + $0xd8] sm:$0xff]
  %v4743 = vld [vmem:[%s4714 + $0xe0] sm:$0xff]
  %v4744 = vld [vmem:[%s4714 + $0xe8] sm:$0xff]
  %v4745 = vld [vmem:[%s4714 + $0xf0] sm:$0xff]
  %v4746 = vld [vmem:[%s4714 + $0xf8] sm:$0xff]
  %v4747 = vld [vmem:[%s4714 + $0x100] sm:$0xff]
  %v4748 = vld [vmem:[%s4714 + $0x108] sm:$0xff]
  %v4749 = vld [vmem:[%s4714 + $0x110] sm:$0xff]
  %v4750 = vld [vmem:[%s4714 + $0x118] sm:$0xff]
  %v4751 = vld [vmem:[%s4714 + $0x120] sm:$0xff]
  %v4752 = vld [vmem:[%s4714 + $0x128] sm:$0xff]
  %v4753 = vld [vmem:[%s4714 + $0x130] sm:$0xff]
  %v4754 = vld [vmem:[%s4714 + $0x138] sm:$0xff]
  %v4755 = vld [vmem:[%s4714 + $0x140] sm:$0xff]
  %v4756 = vld [vmem:[%s4714 + $0x148] sm:$0xff]
  %v4757 = vld [vmem:[%s4714 + $0x150] sm:$0xff]
  %v4758 = vld [vmem:[%s4714 + $0x158] sm:$0xff]
  %v4803 = vunpack.c.l.b16 %v4715
  %v4804 = vunpack.c.h.b16 %v4715
  %v4805 = vunpack.c.l.b16 %v4716
  %v4806 = vunpack.c.h.b16 %v4716
  %v4807 = vunpack.c.l.b16 %v4717
  %v4808 = vunpack.c.h.b16 %v4717
  %v4809 = vunpack.c.l.b16 %v4718
  %v4810 = vunpack.c.h.b16 %v4718
  %v4811 = vunpack.c.l.b16 %v4719
  %v4812 = vunpack.c.h.b16 %v4719
  %v4813 = vunpack.c.l.b16 %v4720
  %v4814 = vunpack.c.h.b16 %v4720
  %v4815 = vunpack.c.l.b16 %v4721
  %v4816 = vunpack.c.h.b16 %v4721
  %v4817 = vunpack.c.l.b16 %v4722
  %v4818 = vunpack.c.h.b16 %v4722
  %v4819 = vunpack.c.l.b16 %v4723
  %v4820 = vunpack.c.h.b16 %v4723
  %v4821 = vunpack.c.l.b16 %v4724
  %v4822 = vunpack.c.h.b16 %v4724
  %v4823 = vunpack.c.l.b16 %v4725
  %v4824 = vunpack.c.h.b16 %v4725
  %v4825 = vunpack.c.l.b16 %v4726
  %v4826 = vunpack.c.h.b16 %v4726
  %v4827 = vunpack.c.l.b16 %v4727
  %v4828 = vunpack.c.h.b16 %v4727
  %v4829 = vunpack.c.l.b16 %v4728
  %v4830 = vunpack.c.h.b16 %v4728
  %v4831 = vunpack.c.l.b16 %v4729
  %v4832 = vunpack.c.h.b16 %v4729
  %v4833 = vunpack.c.l.b16 %v4730
  %v4834 = vunpack.c.h.b16 %v4730
  %v4835 = vunpack.c.l.b16 %v4731
  %v4836 = vunpack.c.h.b16 %v4731
  %v4837 = vunpack.c.l.b16 %v4732
  %v4838 = vunpack.c.h.b16 %v4732
  %v4839 = vunpack.c.l.b16 %v4733
  %v4840 = vunpack.c.h.b16 %v4733
  %v4841 = vunpack.c.l.b16 %v4734
  %v4842 = vunpack.c.h.b16 %v4734
  %v4843 = vunpack.c.l.b16 %v4735
  %v4844 = vunpack.c.h.b16 %v4735
  %v4845 = vunpack.c.l.b16 %v4736
  %v4846 = vunpack.c.h.b16 %v4736
  %v4847 = vunpack.c.l.b16 %v4737
  %v4848 = vunpack.c.h.b16 %v4737
  %v4849 = vunpack.c.l.b16 %v4738
  %v4850 = vunpack.c.h.b16 %v4738
  %v4851 = vunpack.c.l.b16 %v4739
  %v4852 = vunpack.c.h.b16 %v4739
  %v4853 = vunpack.c.l.b16 %v4740
  %v4854 = vunpack.c.h.b16 %v4740
  %v4855 = vunpack.c.l.b16 %v4741
  %v4856 = vunpack.c.h.b16 %v4741
  %v4857 = vunpack.c.l.b16 %v4742
  %v4858 = vunpack.c.h.b16 %v4742
  %v4859 = vunpack.c.l.b16 %v4743
  %v4860 = vunpack.c.h.b16 %v4743
  %v4861 = vunpack.c.l.b16 %v4744
  %v4862 = vunpack.c.h.b16 %v4744
  %v4863 = vunpack.c.l.b16 %v4745
  %v4864 = vunpack.c.h.b16 %v4745
  %v4865 = vunpack.c.l.b16 %v4746
  %v4866 = vunpack.c.h.b16 %v4746
  %v4867 = vunpack.c.l.b16 %v4747
  %v4868 = vunpack.c.h.b16 %v4747
  %v4869 = vunpack.c.l.b16 %v4748
  %v4870 = vunpack.c.h.b16 %v4748
  %v4871 = vunpack.c.l.b16 %v4749
  %v4872 = vunpack.c.h.b16 %v4749
  %v4873 = vunpack.c.l.b16 %v4750
  %v4874 = vunpack.c.h.b16 %v4750
  %v4875 = vunpack.c.l.b16 %v4751
  %v4876 = vunpack.c.h.b16 %v4751
  %v4877 = vunpack.c.l.b16 %v4752
  %v4878 = vunpack.c.h.b16 %v4752
  %v4879 = vunpack.c.l.b16 %v4753
  %v4880 = vunpack.c.h.b16 %v4753
  %v4881 = vunpack.c.l.b16 %v4754
  %v4882 = vunpack.c.h.b16 %v4754
  %v4883 = vunpack.c.l.b16 %v4755
  %v4884 = vunpack.c.h.b16 %v4755
  %v4885 = vunpack.c.l.b16 %v4756
  %v4886 = vunpack.c.h.b16 %v4756
  %v4887 = vunpack.c.l.b16 %v4757
  %v4888 = vunpack.c.h.b16 %v4757
  %v4889 = vunpack.c.l.b16 %v4758
  %v4890 = vunpack.c.h.b16 %v4758
  %v4891 = vpack.c.b16 %v4805, %v4803
  %v4892 = vpack.c.b16 %v4806, %v4804
  %v4893 = vpack.c.b16 %v4809, %v4807
  %v4894 = vpack.c.b16 %v4810, %v4808
  %v4895 = vpack.c.b16 %v4813, %v4811
  %v4896 = vpack.c.b16 %v4814, %v4812
  %v4897 = vpack.c.b16 %v4817, %v4815
  %v4898 = vpack.c.b16 %v4818, %v4816
  %v4899 = vpack.c.b16 %v4821, %v4819
  %v4900 = vpack.c.b16 %v4822, %v4820
  %v4901 = vpack.c.b16 %v4825, %v4823
  %v4902 = vpack.c.b16 %v4826, %v4824
  %v4903 = vpack.c.b16 %v4829, %v4827
  %v4904 = vpack.c.b16 %v4830, %v4828
  %v4905 = vpack.c.b16 %v4833, %v4831
  %v4906 = vpack.c.b16 %v4834, %v4832
  %v4907 = vpack.c.b16 %v4837, %v4835
  %v4908 = vpack.c.b16 %v4838, %v4836
  %v4909 = vpack.c.b16 %v4841, %v4839
  %v4910 = vpack.c.b16 %v4842, %v4840
  %v4911 = vpack.c.b16 %v4845, %v4843
  %v4912 = vpack.c.b16 %v4846, %v4844
  %v4913 = vpack.c.b16 %v4849, %v4847
  %v4914 = vpack.c.b16 %v4850, %v4848
  %v4915 = vpack.c.b16 %v4853, %v4851
  %v4916 = vpack.c.b16 %v4854, %v4852
  %v4917 = vpack.c.b16 %v4857, %v4855
  %v4918 = vpack.c.b16 %v4858, %v4856
  %v4919 = vpack.c.b16 %v4861, %v4859
  %v4920 = vpack.c.b16 %v4862, %v4860
  %v4921 = vpack.c.b16 %v4865, %v4863
  %v4922 = vpack.c.b16 %v4866, %v4864
  %v4923 = vpack.c.b16 %v4869, %v4867
  %v4924 = vpack.c.b16 %v4870, %v4868
  %v4925 = vpack.c.b16 %v4873, %v4871
  %v4926 = vpack.c.b16 %v4874, %v4872
  %v4927 = vpack.c.b16 %v4877, %v4875
  %v4928 = vpack.c.b16 %v4878, %v4876
  %v4929 = vpack.c.b16 %v4881, %v4879
  %v4930 = vpack.c.b16 %v4882, %v4880
  %v4931 = vpack.c.b16 %v4885, %v4883
  %v4932 = vpack.c.b16 %v4886, %v4884
  %v4933 = vpack.c.b16 %v4889, %v4887
  %v4934 = vpack.c.b16 %v4890, %v4888
  %4979 = vmatprep.subr.bf16.mxu0 %v4892
  %4980 = vmatpush1.bf16.msra.mxu0 %v4891
  %4981 = vmatprep.subr.bf16.mxu0 %v4894
  %4982 = vmatpush1.bf16.msra.mxu0 %v4893
  %4983 = vmatprep.subr.bf16.mxu0 %v4896
  %4984 = vmatpush1.bf16.msra.mxu0 %v4895
  %4985 = vmatprep.subr.bf16.mxu0 %v4898
  %4986 = vmatpush1.bf16.msra.mxu0 %v4897
  %4987 = vmatprep.subr.bf16.mxu0 %v4900
  %4988 = vmatpush1.bf16.msra.mxu0 %v4899
  %4989 = vmatprep.subr.bf16.mxu0 %v4902
  %4990 = vmatpush1.bf16.msra.mxu0 %v4901
  %4991 = vmatprep.subr.bf16.mxu0 %v4904
  %4992 = vmatpush1.bf16.msra.mxu0 %v4903
  %4993 = vmatprep.subr.bf16.mxu0 %v4906
  %4994 = vmatpush1.bf16.msra.mxu0 %v4905
  %4995 = vmatprep.subr.bf16.mxu0 %v4908
  %4996 = vmatpush1.bf16.msra.mxu0 %v4907
  %4997 = vmatprep.subr.bf16.mxu0 %v4910
  %4998 = vmatpush1.bf16.msra.mxu0 %v4909
  %4999 = vmatprep.subr.bf16.mxu0 %v4912
  %5000 = vmatpush1.bf16.msra.mxu0 %v4911
  %5001 = vmatprep.subr.bf16.mxu0 %v4914
  %5002 = vmatpush1.bf16.msra.mxu0 %v4913
  %5003 = vmatprep.subr.bf16.mxu0 %v4916
  %5004 = vmatpush1.bf16.msra.mxu0 %v4915
  %5005 = vmatprep.subr.bf16.mxu0 %v4918
  %5006 = vmatpush1.bf16.msra.mxu0 %v4917
  %5007 = vmatprep.subr.bf16.mxu0 %v4920
  %5008 = vmatpush1.bf16.msra.mxu0 %v4919
  %5009 = vmatprep.subr.bf16.mxu0 %v4922
  %5010 = vmatpush1.bf16.msra.mxu0 %v4921
  %5011 = vmatprep.mubr.bf16.mxu0 %v4354
  %5012 = vmatmul.mubr.bf16.gmra.mrb[0].mxu0 %v4353
  %v5013 = vpop.f32.mrb[0].mxu0
  %v5014 = vadd.f32 0.0, %v5013
  %v5015 = vpop.f32.mrb[0].mxu0
  %v5016 = vadd.f32 0.0, %v5015
  %v5017 = vpop.f32.mrb[0].mxu0
  %v5018 = vadd.f32 0.0, %v5017
  %v5019 = vpop.f32.mrb[0].mxu0
  %v5020 = vadd.f32 0.0, %v5019
  %5021 = vmatprep.mubr.bf16.mxu0 %v4357
  %5022 = vmatmul.mubr.bf16.gmra.mrb[0].mxu0 %v4356
  %v5023 = vpop.f32.mrb[0].mxu0
  %v5024 = vadd.f32 0.0, %v5023
  %v5025 = vpop.f32.mrb[0].mxu0
  %v5026 = vadd.f32 0.0, %v5025
  %v5027 = vpop.f32.mrb[0].mxu0
  %v5028 = vadd.f32 0.0, %v5027
  %v5029 = vpop.f32.mrb[0].mxu0
  %v5030 = vadd.f32 0.0, %v5029
  %5031 = vmatprep.mubr.bf16.mxu0 %v4360
  %5032 = vmatmul.mubr.bf16.gmra.mrb[0].mxu0 %v4359
  %v5033 = vpop.f32.mrb[0].mxu0
  %v5034 = vadd.f32 0.0, %v5033
  %v5035 = vpop.f32.mrb[0].mxu0
  %v5036 = vadd.f32 0.0, %v5035
  %v5037 = vpop.f32.mrb[0].mxu0
  %v5038 = vpop.f32.mrb[0].mxu0
  %5039 = vdwg.mxu0
  %5040 = vmatprep.subr.bf16.mxu0 %v4924
  %5041 = vmatpush1.bf16.msra.mxu0 %v4923
  %5042 = vmatprep.subr.bf16.mxu0 %v4926
  %5043 = vmatpush1.bf16.msra.mxu0 %v4925
  %5044 = vmatprep.subr.bf16.mxu0 %v4928
  %5045 = vmatpush1.bf16.msra.mxu0 %v4927
  %5046 = vmatprep.subr.bf16.mxu0 %v4930
  %5047 = vmatpush1.bf16.msra.mxu0 %v4929
  %5048 = vmatprep.subr.bf16.mxu0 %v4932
  %5049 = vmatpush1.bf16.msra.mxu0 %v4931
  %5050 = vmatprep.subr.bf16.mxu0 %v4934
  %5051 = vmatpush1.bf16.msra.mxu0 %v4933
  %5052 = vmatprep.subr.bf16.mxu0 0
  %5053 = vmatpush1.bf16.msra.mxu0 0
  %5054 = vmatprep.subr.bf16.mxu0 0
  %5055 = vmatpush1.bf16.msra.mxu0 0
  %5056 = vmatprep.subr.bf16.mxu0 0
  %5057 = vmatpush1.bf16.msra.mxu0 0
  %5058 = vmatprep.subr.bf16.mxu0 0
  %5059 = vmatpush1.bf16.msra.mxu0 0
  %5060 = vmatprep.subr.bf16.mxu0 0
  %5061 = vmatpush1.bf16.msra.mxu0 0
  %5062 = vmatprep.subr.bf16.mxu0 0
  %5063 = vmatpush1.bf16.msra.mxu0 0
  %5064 = vmatprep.subr.bf16.mxu0 0
  %5065 = vmatpush1.bf16.msra.mxu0 0
  %5066 = vmatprep.subr.bf16.mxu0 0
  %5067 = vmatpush1.bf16.msra.mxu0 0
  %5068 = vmatprep.subr.bf16.mxu0 0
  %5069 = vmatpush1.bf16.msra.mxu0 0
  %5070 = vmatprep.subr.bf16.mxu0 0
  %5071 = vmatpush1.bf16.msra.mxu0 0
  %5072 = vmatprep.mubr.bf16.mxu0 0
  %5073 = vmatmul.mubr.bf16.gmra.mrb[0].mxu0 %v4584
  %v5074 = vpop.f32.mrb[0].mxu0
  %v5075 = vadd.f32 %v5014, %v5074
  %v5076 = vpop.f32.mrb[0].mxu0
  %v5077 = vadd.f32 %v5016, %v5076
  %v5078 = vpop.f32.mrb[0].mxu0
  %v5079 = vadd.f32 %v5018, %v5078
  %v5080 = vpop.f32.mrb[0].mxu0
  %v5081 = vadd.f32 %v5020, %v5080
  %5082 = vmatprep.mubr.bf16.mxu0 0
  %5083 = vmatmul.mubr.bf16.gmra.mrb[0].mxu0 %v4587
  %v5084 = vpop.f32.mrb[0].mxu0
  %v5085 = vadd.f32 %v5024, %v5084
  %v5086 = vpop.f32.mrb[0].mxu0
  %v5087 = vadd.f32 %v5026, %v5086
  %v5088 = vpop.f32.mrb[0].mxu0
  %v5089 = vadd.f32 %v5028, %v5088
  %v5090 = vpop.f32.mrb[0].mxu0
  %v5091 = vadd.f32 %v5030, %v5090
  %5092 = vmatprep.mubr.bf16.mxu0 0
  %5093 = vmatmul.mubr.bf16.gmra.mrb[0].mxu0 %v4590
  %v5094 = vpop.f32.mrb[0].mxu0
  %v5095 = vadd.f32 %v5034, %v5094
  %v5096 = vpop.f32.mrb[0].mxu0
  %v5097 = vadd.f32 %v5036, %v5096
  %v5098 = vpop.f32.mrb[0].mxu0
  %v5099 = vpop.f32.mrb[0].mxu0
  %5100 = vdwg.mxu0
  %v5101 = vmax.f32 %v4688, %v5075
  %v5102 = vmax.f32 %v4690, %v5077
  %v5103 = vmax.f32 %v4692, %v5079
  %v5104 = vmax.f32 %v4694, %v5081
  %v5105 = vmax.f32 %v4698, %v5085
  %v5106 = vmax.f32 %v4700, %v5087
  %v5107 = vmax.f32 %v4702, %v5089
  %v5108 = vmax.f32 %v4704, %v5091
  %v5109 = vmax.f32 %v4708, %v5095
  %v5110 = vmax.f32 %v4710, %v5097
  %v5111 = vld [vmem:[%s7] sm:$0xff]
  %v5112 = vld [vmem:[%s7 + $0x8] sm:$0xff]
  %v5113 = vld [vmem:[%s7 + $0x10] sm:$0xff]
  %v5114 = vld [vmem:[%s7 + $0x18] sm:$0xff]
  %v5115 = vld [vmem:[%s7 + $0x20] sm:$0xff]
  %v5116 = vld [vmem:[%s7 + $0x28] sm:$0xff]
  %v5117 = vld [vmem:[%s7 + $0x30] sm:$0xff]
  %v5118 = vld [vmem:[%s7 + $0x38] sm:$0xff]
  %v5119 = vld [vmem:[%s7 + $0x40] sm:$0xff]
  %v5120 = vld [vmem:[%s7 + $0x48] sm:$0xff]
  %v5121 = vld [vmem:[%s7 + $0x50] sm:$0xff]
  %v5122 = vld [vmem:[%s7 + $0x58] sm:$0xff]
  %v5123 = vld [vmem:[%s7 + $0x60] sm:$0xff]
  %v5124 = vld [vmem:[%s7 + $0x68] sm:$0xff]
  %v5125 = vld [vmem:[%s7 + $0x70] sm:$0xff]
  %v5126 = vld [vmem:[%s7 + $0x78] sm:$0xff]
  %v5127 = vld [vmem:[%s7 + $0x80] sm:$0xff]
  %v5128 = vld [vmem:[%s7 + $0x88] sm:$0xff]
  %v5129 = vld [vmem:[%s7 + $0x90] sm:$0xff]
  %v5130 = vld [vmem:[%s7 + $0x98] sm:$0xff]
  %v5131 = vld [vmem:[%s7 + $0xa0] sm:$0xff]
  %v5132 = vld [vmem:[%s7 + $0xa8] sm:$0xff]
  %v5133 = vld [vmem:[%s7 + $0xb0] sm:$0xff]
  %v5134 = vld [vmem:[%s7 + $0xb8] sm:$0xff]
  %v5135 = vld [vmem:[%s7 + $0xc0] sm:$0xff]
  %v5136 = vld [vmem:[%s7 + $0xc8] sm:$0xff]
  %v5137 = vld [vmem:[%s7 + $0xd0] sm:$0xff]
  %v5138 = vld [vmem:[%s7 + $0xd8] sm:$0xff]
  %v5139 = vld [vmem:[%s7 + $0xe0] sm:$0xff]
  %v5140 = vld [vmem:[%s7 + $0xe8] sm:$0xff]
  %v5141 = vld [vmem:[%s7 + $0xf0] sm:$0xff]
  %v5142 = vld [vmem:[%s7 + $0xf8] sm:$0xff]
  %v5143 = vld [vmem:[%s7 + $0x100] sm:$0xff]
  %v5144 = vld [vmem:[%s7 + $0x108] sm:$0xff]
  %v5145 = vld [vmem:[%s7 + $0x110] sm:$0xff]
  %v5146 = vld [vmem:[%s7 + $0x118] sm:$0xff]
  %v5147 = vld [vmem:[%s7 + $0x120] sm:$0xff]
  %v5148 = vld [vmem:[%s7 + $0x128] sm:$0xff]
  %v5149 = vld [vmem:[%s7 + $0x130] sm:$0xff]
  %v5150 = vld [vmem:[%s7 + $0x138] sm:$0xff]
  %v5151 = vpack.c.bf16 %v5101, %v5101
  %v5152 = vpack.c.bf16 %v5102, %v5102
  %s5153 = scalar_lea.vmem %s7, 320
  %v5154 = vld [vmem:[%s5153] sm:$0xff]
  %v5155 = vld [vmem:[%s5153 + $0x8] sm:$0xff]
  %v5156 = vld [vmem:[%s5153 + $0x10] sm:$0xff]
  %v5157 = vld [vmem:[%s5153 + $0x18] sm:$0xff]
  %v5158 = vld [vmem:[%s5153 + $0x20] sm:$0xff]
  %v5159 = vld [vmem:[%s5153 + $0x28] sm:$0xff]
  %v5160 = vld [vmem:[%s5153 + $0x30] sm:$0xff]
  %v5161 = vld [vmem:[%s5153 + $0x38] sm:$0xff]
  %v5162 = vld [vmem:[%s5153 + $0x40] sm:$0xff]
  %v5163 = vld [vmem:[%s5153 + $0x48] sm:$0xff]
  %v5164 = vld [vmem:[%s5153 + $0x50] sm:$0xff]
  %v5165 = vld [vmem:[%s5153 + $0x58] sm:$0xff]
  %v5166 = vld [vmem:[%s5153 + $0x60] sm:$0xff]
  %v5167 = vld [vmem:[%s5153 + $0x68] sm:$0xff]
  %v5168 = vld [vmem:[%s5153 + $0x70] sm:$0xff]
  %v5169 = vld [vmem:[%s5153 + $0x78] sm:$0xff]
  %v5170 = vld [vmem:[%s5153 + $0x80] sm:$0xff]
  %v5171 = vld [vmem:[%s5153 + $0x88] sm:$0xff]
  %v5172 = vld [vmem:[%s5153 + $0x90] sm:$0xff]
  %v5173 = vld [vmem:[%s5153 + $0x98] sm:$0xff]
  %v5174 = vld [vmem:[%s5153 + $0xa0] sm:$0xff]
  %v5175 = vld [vmem:[%s5153 + $0xa8] sm:$0xff]
  %v5176 = vld [vmem:[%s5153 + $0xb0] sm:$0xff]
  %v5177 = vld [vmem:[%s5153 + $0xb8] sm:$0xff]
  %v5178 = vld [vmem:[%s5153 + $0xc0] sm:$0xff]
  %v5179 = vld [vmem:[%s5153 + $0xc8] sm:$0xff]
  %v5180 = vld [vmem:[%s5153 + $0xd0] sm:$0xff]
  %v5181 = vld [vmem:[%s5153 + $0xd8] sm:$0xff]
  %v5182 = vld [vmem:[%s5153 + $0xe0] sm:$0xff]
  %v5183 = vld [vmem:[%s5153 + $0xe8] sm:$0xff]
  %v5184 = vld [vmem:[%s5153 + $0xf0] sm:$0xff]
  %v5185 = vld [vmem:[%s5153 + $0xf8] sm:$0xff]
  %v5186 = vld [vmem:[%s5153 + $0x100] sm:$0xff]
  %v5187 = vld [vmem:[%s5153 + $0x108] sm:$0xff]
  %v5188 = vld [vmem:[%s5153 + $0x110] sm:$0xff]
  %v5189 = vld [vmem:[%s5153 + $0x118] sm:$0xff]
  %v5190 = vld [vmem:[%s5153 + $0x120] sm:$0xff]
  %v5191 = vld [vmem:[%s5153 + $0x128] sm:$0xff]
  %v5192 = vld [vmem:[%s5153 + $0x130] sm:$0xff]
  %v5193 = vld [vmem:[%s5153 + $0x138] sm:$0xff]
  %v5194 = vpack.c.bf16 %v5103, %v5103
  %v5195 = vpack.c.bf16 %v5104, %v5104
  %v5236 = vunpack.c.l.b16 %v5154
  %v5237 = vunpack.c.h.b16 %v5154
  %v5238 = vunpack.c.l.b16 %v5155
  %v5239 = vunpack.c.h.b16 %v5155
  %v5240 = vunpack.c.l.b16 %v5156
  %v5241 = vunpack.c.h.b16 %v5156
  %v5242 = vunpack.c.l.b16 %v5157
  %v5243 = vunpack.c.h.b16 %v5157
  %v5244 = vunpack.c.l.b16 %v5158
  %v5245 = vunpack.c.h.b16 %v5158
  %v5246 = vunpack.c.l.b16 %v5159
  %v5247 = vunpack.c.h.b16 %v5159
  %v5248 = vunpack.c.l.b16 %v5160
  %v5249 = vunpack.c.h.b16 %v5160
  %v5250 = vunpack.c.l.b16 %v5161
  %v5251 = vunpack.c.h.b16 %v5161
  %v5252 = vunpack.c.l.b16 %v5162
  %v5253 = vunpack.c.h.b16 %v5162
  %v5254 = vunpack.c.l.b16 %v5163
  %v5255 = vunpack.c.h.b16 %v5163
  %v5256 = vunpack.c.l.b16 %v5164
  %v5257 = vunpack.c.h.b16 %v5164
  %v5258 = vunpack.c.l.b16 %v5165
  %v5259 = vunpack.c.h.b16 %v5165
  %v5260 = vunpack.c.l.b16 %v5166
  %v5261 = vunpack.c.h.b16 %v5166
  %v5262 = vunpack.c.l.b16 %v5167
  %v5263 = vunpack.c.h.b16 %v5167
  %v5264 = vunpack.c.l.b16 %v5168
  %v5265 = vunpack.c.h.b16 %v5168
  %v5266 = vunpack.c.l.b16 %v5169
  %v5267 = vunpack.c.h.b16 %v5169
  %v5268 = vunpack.c.l.b16 %v5170
  %v5269 = vunpack.c.h.b16 %v5170
  %v5270 = vunpack.c.l.b16 %v5171
  %v5271 = vunpack.c.h.b16 %v5171
  %v5272 = vunpack.c.l.b16 %v5172
  %v5273 = vunpack.c.h.b16 %v5172
  %v5274 = vunpack.c.l.b16 %v5173
  %v5275 = vunpack.c.h.b16 %v5173
  %v5276 = vunpack.c.l.b16 %v5174
  %v5277 = vunpack.c.h.b16 %v5174
  %v5278 = vunpack.c.l.b16 %v5175
  %v5279 = vunpack.c.h.b16 %v5175
  %v5280 = vunpack.c.l.b16 %v5176
  %v5281 = vunpack.c.h.b16 %v5176
  %v5282 = vunpack.c.l.b16 %v5177
  %v5283 = vunpack.c.h.b16 %v5177
  %v5284 = vunpack.c.l.b16 %v5178
  %v5285 = vunpack.c.h.b16 %v5178
  %v5286 = vunpack.c.l.b16 %v5179
  %v5287 = vunpack.c.h.b16 %v5179
  %v5288 = vunpack.c.l.b16 %v5180
  %v5289 = vunpack.c.h.b16 %v5180
  %v5290 = vunpack.c.l.b16 %v5181
  %v5291 = vunpack.c.h.b16 %v5181
  %v5292 = vunpack.c.l.b16 %v5182
  %v5293 = vunpack.c.h.b16 %v5182
  %v5294 = vunpack.c.l.b16 %v5183
  %v5295 = vunpack.c.h.b16 %v5183
  %v5296 = vunpack.c.l.b16 %v5184
  %v5297 = vunpack.c.h.b16 %v5184
  %v5298 = vunpack.c.l.b16 %v5185
  %v5299 = vunpack.c.h.b16 %v5185
  %v5300 = vunpack.c.l.b16 %v5186
  %v5301 = vunpack.c.h.b16 %v5186
  %v5302 = vunpack.c.l.b16 %v5187
  %v5303 = vunpack.c.h.b16 %v5187
  %v5304 = vunpack.c.l.b16 %v5188
  %v5305 = vunpack.c.h.b16 %v5188
  %v5306 = vunpack.c.l.b16 %v5189
  %v5307 = vunpack.c.h.b16 %v5189
  %v5308 = vunpack.c.l.b16 %v5190
  %v5309 = vunpack.c.h.b16 %v5190
  %v5310 = vunpack.c.l.b16 %v5191
  %v5311 = vunpack.c.h.b16 %v5191
  %v5312 = vunpack.c.l.b16 %v5192
  %v5313 = vunpack.c.h.b16 %v5192
  %v5314 = vunpack.c.l.b16 %v5193
  %v5315 = vunpack.c.h.b16 %v5193
  %v5316 = vpack.c.b16 %v5240, %v5236
  %v5317 = vpack.c.b16 %v5241, %v5237
  %v5318 = vpack.c.b16 %v5242, %v5238
  %v5319 = vpack.c.b16 %v5243, %v5239
  %v5320 = vpack.c.b16 %v5248, %v5244
  %v5321 = vpack.c.b16 %v5249, %v5245
  %v5322 = vpack.c.b16 %v5250, %v5246
  %v5323 = vpack.c.b16 %v5251, %v5247
  %v5324 = vpack.c.b16 %v5256, %v5252
  %v5325 = vpack.c.b16 %v5257, %v5253
  %v5326 = vpack.c.b16 %v5258, %v5254
  %v5327 = vpack.c.b16 %v5259, %v5255
  %v5328 = vpack.c.b16 %v5264, %v5260
  %v5329 = vpack.c.b16 %v5265, %v5261
  %v5330 = vpack.c.b16 %v5266, %v5262
  %v5331 = vpack.c.b16 %v5267, %v5263
  %v5332 = vpack.c.b16 %v5272, %v5268
  %v5333 = vpack.c.b16 %v5273, %v5269
  %v5334 = vpack.c.b16 %v5274, %v5270
  %v5335 = vpack.c.b16 %v5275, %v5271
  %v5336 = vpack.c.b16 %v5280, %v5276
  %v5337 = vpack.c.b16 %v5281, %v5277
  %v5338 = vpack.c.b16 %v5282, %v5278
  %v5339 = vpack.c.b16 %v5283, %v5279
  %v5340 = vpack.c.b16 %v5288, %v5284
  %v5341 = vpack.c.b16 %v5289, %v5285
  %v5342 = vpack.c.b16 %v5290, %v5286
  %v5343 = vpack.c.b16 %v5291, %v5287
  %v5344 = vpack.c.b16 %v5296, %v5292
  %v5345 = vpack.c.b16 %v5297, %v5293
  %v5346 = vpack.c.b16 %v5298, %v5294
  %v5347 = vpack.c.b16 %v5299, %v5295
  %v5348 = vpack.c.b16 %v5304, %v5300
  %v5349 = vpack.c.b16 %v5305, %v5301
  %v5350 = vpack.c.b16 %v5306, %v5302
  %v5351 = vpack.c.b16 %v5307, %v5303
  %v5352 = vpack.c.b16 %v5312, %v5308
  %v5353 = vpack.c.b16 %v5313, %v5309
  %v5354 = vpack.c.b16 %v5314, %v5310
  %v5355 = vpack.c.b16 %v5315, %v5311
  %v5397 = vsel %vm2065, %v5195, 0
  %5399 = vmatprep.subr.bf16.mxu0 %v5317
  %5400 = vmatpush1.bf16.msra.mxu0 %v5316
  %5401 = vmatprep.subr.bf16.mxu0 %v5321
  %5402 = vmatpush1.bf16.msra.mxu0 %v5320
  %5403 = vmatprep.subr.bf16.mxu0 %v5325
  %5404 = vmatpush1.bf16.msra.mxu0 %v5324
  %5405 = vmatprep.subr.bf16.mxu0 %v5329
  %5406 = vmatpush1.bf16.msra.mxu0 %v5328
  %5407 = vmatprep.subr.bf16.mxu0 %v5333
  %5408 = vmatpush1.bf16.msra.mxu0 %v5332
  %5409 = vmatprep.subr.bf16.mxu0 %v5337
  %5410 = vmatpush1.bf16.msra.mxu0 %v5336
  %5411 = vmatprep.subr.bf16.mxu0 %v5341
  %5412 = vmatpush1.bf16.msra.mxu0 %v5340
  %5413 = vmatprep.subr.bf16.mxu0 %v5345
  %5414 = vmatpush1.bf16.msra.mxu0 %v5344
  %5415 = vmatprep.subr.bf16.mxu0 %v5349
  %5416 = vmatpush1.bf16.msra.mxu0 %v5348
  %5417 = vmatprep.subr.bf16.mxu0 %v5353
  %5418 = vmatpush1.bf16.msra.mxu0 %v5352
  %5419 = vmatprep.subr.bf16.mxu0 0
  %5420 = vmatpush1.bf16.msra.mxu0 0
  %5421 = vmatprep.subr.bf16.mxu0 0
  %5422 = vmatpush1.bf16.msra.mxu0 0
  %5423 = vmatprep.subr.bf16.mxu0 0
  %5424 = vmatpush1.bf16.msra.mxu0 0
  %5425 = vmatprep.subr.bf16.mxu0 0
  %5426 = vmatpush1.bf16.msra.mxu0 0
  %5427 = vmatprep.subr.bf16.mxu0 0
  %5428 = vmatpush1.bf16.msra.mxu0 0
  %5429 = vmatprep.subr.bf16.mxu0 0
  %5430 = vmatpush1.bf16.msra.mxu0 0
  %5431 = vmatprep.mubr.bf16.mxu0 %v5397
  %5432 = vmatmul.mubr.bf16.gmra.mrb[0].mxu0 %v5194
  %v5433 = vpop.f32.mrb[0].mxu0
  %v5434 = vadd.f32 0.0, %v5433
  %v5435 = vpop.f32.mrb[0].mxu0
  %v5436 = vadd.f32 0.0, %v5435
  %v5437 = vpop.f32.mrb[0].mxu0
  %v5438 = vpop.f32.mrb[0].mxu0
  %5439 = vdwg.mxu0
  %5440 = vmatprep.subr.bf16.mxu0 %v5319
  %5441 = vmatpush1.bf16.msra.mxu0 %v5318
  %5442 = vmatprep.subr.bf16.mxu0 %v5323
  %5443 = vmatpush1.bf16.msra.mxu0 %v5322
  %5444 = vmatprep.subr.bf16.mxu0 %v5327
  %5445 = vmatpush1.bf16.msra.mxu0 %v5326
  %5446 = vmatprep.subr.bf16.mxu0 %v5331
  %5447 = vmatpush1.bf16.msra.mxu0 %v5330
  %5448 = vmatprep.subr.bf16.mxu0 %v5335
  %5449 = vmatpush1.bf16.msra.mxu0 %v5334
  %5450 = vmatprep.subr.bf16.mxu0 %v5339
  %5451 = vmatpush1.bf16.msra.mxu0 %v5338
  %5452 = vmatprep.subr.bf16.mxu0 %v5343
  %5453 = vmatpush1.bf16.msra.mxu0 %v5342
  %5454 = vmatprep.subr.bf16.mxu0 %v5347
  %5455 = vmatpush1.bf16.msra.mxu0 %v5346
  %5456 = vmatprep.subr.bf16.mxu0 %v5351
  %5457 = vmatpush1.bf16.msra.mxu0 %v5350
  %5458 = vmatprep.subr.bf16.mxu0 %v5355
  %5459 = vmatpush1.bf16.msra.mxu0 %v5354
  %5460 = vmatprep.subr.bf16.mxu0 0
  %5461 = vmatpush1.bf16.msra.mxu0 0
  %5462 = vmatprep.subr.bf16.mxu0 0
  %5463 = vmatpush1.bf16.msra.mxu0 0
  %5464 = vmatprep.subr.bf16.mxu0 0
  %5465 = vmatpush1.bf16.msra.mxu0 0
  %5466 = vmatprep.subr.bf16.mxu0 0
  %5467 = vmatpush1.bf16.msra.mxu0 0
  %5468 = vmatprep.subr.bf16.mxu0 0
  %5469 = vmatpush1.bf16.msra.mxu0 0
  %5470 = vmatprep.subr.bf16.mxu0 0
  %5471 = vmatpush1.bf16.msra.mxu0 0
  %5472 = vmatprep.mubr.bf16.mxu0 %v5397
  %5473 = vmatmul.mubr.bf16.gmra.mrb[0].mxu0 %v5194
  %v5474 = vpop.f32.mrb[0].mxu0
  %v5475 = vadd.f32 0.0, %v5474
  %v5476 = vpop.f32.mrb[0].mxu0
  %v5477 = vadd.f32 0.0, %v5476
  %v5478 = vpop.f32.mrb[0].mxu0
  %v5479 = vpop.f32.mrb[0].mxu0
  %5480 = vdwg.mxu0
  %v5521 = vunpack.c.l.b16 %v5111
  %v5522 = vunpack.c.h.b16 %v5111
  %v5523 = vunpack.c.l.b16 %v5112
  %v5524 = vunpack.c.h.b16 %v5112
  %v5525 = vunpack.c.l.b16 %v5113
  %v5526 = vunpack.c.h.b16 %v5113
  %v5527 = vunpack.c.l.b16 %v5114
  %v5528 = vunpack.c.h.b16 %v5114
  %v5529 = vunpack.c.l.b16 %v5115
  %v5530 = vunpack.c.h.b16 %v5115
  %v5531 = vunpack.c.l.b16 %v5116
  %v5532 = vunpack.c.h.b16 %v5116
  %v5533 = vunpack.c.l.b16 %v5117
  %v5534 = vunpack.c.h.b16 %v5117
  %v5535 = vunpack.c.l.b16 %v5118
  %v5536 = vunpack.c.h.b16 %v5118
  %v5537 = vunpack.c.l.b16 %v5119
  %v5538 = vunpack.c.h.b16 %v5119
  %v5539 = vunpack.c.l.b16 %v5120
  %v5540 = vunpack.c.h.b16 %v5120
  %v5541 = vunpack.c.l.b16 %v5121
  %v5542 = vunpack.c.h.b16 %v5121
  %v5543 = vunpack.c.l.b16 %v5122
  %v5544 = vunpack.c.h.b16 %v5122
  %v5545 = vunpack.c.l.b16 %v5123
  %v5546 = vunpack.c.h.b16 %v5123
  %v5547 = vunpack.c.l.b16 %v5124
  %v5548 = vunpack.c.h.b16 %v5124
  %v5549 = vunpack.c.l.b16 %v5125
  %v5550 = vunpack.c.h.b16 %v5125
  %v5551 = vunpack.c.l.b16 %v5126
  %v5552 = vunpack.c.h.b16 %v5126
  %v5553 = vunpack.c.l.b16 %v5127
  %v5554 = vunpack.c.h.b16 %v5127
  %v5555 = vunpack.c.l.b16 %v5128
  %v5556 = vunpack.c.h.b16 %v5128
  %v5557 = vunpack.c.l.b16 %v5129
  %v5558 = vunpack.c.h.b16 %v5129
  %v5559 = vunpack.c.l.b16 %v5130
  %v5560 = vunpack.c.h.b16 %v5130
  %v5561 = vunpack.c.l.b16 %v5131
  %v5562 = vunpack.c.h.b16 %v5131
  %v5563 = vunpack.c.l.b16 %v5132
  %v5564 = vunpack.c.h.b16 %v5132
  %v5565 = vunpack.c.l.b16 %v5133
  %v5566 = vunpack.c.h.b16 %v5133
  %v5567 = vunpack.c.l.b16 %v5134
  %v5568 = vunpack.c.h.b16 %v5134
  %v5569 = vunpack.c.l.b16 %v5135
  %v5570 = vunpack.c.h.b16 %v5135
  %v5571 = vunpack.c.l.b16 %v5136
  %v5572 = vunpack.c.h.b16 %v5136
  %v5573 = vunpack.c.l.b16 %v5137
  %v5574 = vunpack.c.h.b16 %v5137
  %v5575 = vunpack.c.l.b16 %v5138
  %v5576 = vunpack.c.h.b16 %v5138
  %v5577 = vunpack.c.l.b16 %v5139
  %v5578 = vunpack.c.h.b16 %v5139
  %v5579 = vunpack.c.l.b16 %v5140
  %v5580 = vunpack.c.h.b16 %v5140
  %v5581 = vunpack.c.l.b16 %v5141
  %v5582 = vunpack.c.h.b16 %v5141
  %v5583 = vunpack.c.l.b16 %v5142
  %v5584 = vunpack.c.h.b16 %v5142
  %v5585 = vunpack.c.l.b16 %v5143
  %v5586 = vunpack.c.h.b16 %v5143
  %v5587 = vunpack.c.l.b16 %v5144
  %v5588 = vunpack.c.h.b16 %v5144
  %v5589 = vunpack.c.l.b16 %v5145
  %v5590 = vunpack.c.h.b16 %v5145
  %v5591 = vunpack.c.l.b16 %v5146
  %v5592 = vunpack.c.h.b16 %v5146
  %v5593 = vunpack.c.l.b16 %v5147
  %v5594 = vunpack.c.h.b16 %v5147
  %v5595 = vunpack.c.l.b16 %v5148
  %v5596 = vunpack.c.h.b16 %v5148
  %v5597 = vunpack.c.l.b16 %v5149
  %v5598 = vunpack.c.h.b16 %v5149
  %v5599 = vunpack.c.l.b16 %v5150
  %v5600 = vunpack.c.h.b16 %v5150
  %v5601 = vpack.c.b16 %v5525, %v5521
  %v5602 = vpack.c.b16 %v5526, %v5522
  %v5603 = vpack.c.b16 %v5527, %v5523
  %v5604 = vpack.c.b16 %v5528, %v5524
  %v5605 = vpack.c.b16 %v5533, %v5529
  %v5606 = vpack.c.b16 %v5534, %v5530
  %v5607 = vpack.c.b16 %v5535, %v5531
  %v5608 = vpack.c.b16 %v5536, %v5532
  %v5609 = vpack.c.b16 %v5541, %v5537
  %v5610 = vpack.c.b16 %v5542, %v5538
  %v5611 = vpack.c.b16 %v5543, %v5539
  %v5612 = vpack.c.b16 %v5544, %v5540
  %v5613 = vpack.c.b16 %v5549, %v5545
  %v5614 = vpack.c.b16 %v5550, %v5546
  %v5615 = vpack.c.b16 %v5551, %v5547
  %v5616 = vpack.c.b16 %v5552, %v5548
  %v5617 = vpack.c.b16 %v5557, %v5553
  %v5618 = vpack.c.b16 %v5558, %v5554
  %v5619 = vpack.c.b16 %v5559, %v5555
  %v5620 = vpack.c.b16 %v5560, %v5556
  %v5621 = vpack.c.b16 %v5565, %v5561
  %v5622 = vpack.c.b16 %v5566, %v5562
  %v5623 = vpack.c.b16 %v5567, %v5563
  %v5624 = vpack.c.b16 %v5568, %v5564
  %v5625 = vpack.c.b16 %v5573, %v5569
  %v5626 = vpack.c.b16 %v5574, %v5570
  %v5627 = vpack.c.b16 %v5575, %v5571
  %v5628 = vpack.c.b16 %v5576, %v5572
  %v5629 = vpack.c.b16 %v5581, %v5577
  %v5630 = vpack.c.b16 %v5582, %v5578
  %v5631 = vpack.c.b16 %v5583, %v5579
  %v5632 = vpack.c.b16 %v5584, %v5580
  %v5633 = vpack.c.b16 %v5589, %v5585
  %v5634 = vpack.c.b16 %v5590, %v5586
  %v5635 = vpack.c.b16 %v5591, %v5587
  %v5636 = vpack.c.b16 %v5592, %v5588
  %v5637 = vpack.c.b16 %v5597, %v5593
  %v5638 = vpack.c.b16 %v5598, %v5594
  %v5639 = vpack.c.b16 %v5599, %v5595
  %v5640 = vpack.c.b16 %v5600, %v5596
  %v5682 = vsel %vm2065, %v5152, 0
  %5684 = vmatprep.subr.bf16.mxu0 %v5602
  %5685 = vmatpush1.bf16.msra.mxu0 %v5601
  %5686 = vmatprep.subr.bf16.mxu0 %v5606
  %5687 = vmatpush1.bf16.msra.mxu0 %v5605
  %5688 = vmatprep.subr.bf16.mxu0 %v5610
  %5689 = vmatpush1.bf16.msra.mxu0 %v5609
  %5690 = vmatprep.subr.bf16.mxu0 %v5614
  %5691 = vmatpush1.bf16.msra.mxu0 %v5613
  %5692 = vmatprep.subr.bf16.mxu0 %v5618
  %5693 = vmatpush1.bf16.msra.mxu0 %v5617
  %5694 = vmatprep.subr.bf16.mxu0 %v5622
  %5695 = vmatpush1.bf16.msra.mxu0 %v5621
  %5696 = vmatprep.subr.bf16.mxu0 %v5626
  %5697 = vmatpush1.bf16.msra.mxu0 %v5625
  %5698 = vmatprep.subr.bf16.mxu0 %v5630
  %5699 = vmatpush1.bf16.msra.mxu0 %v5629
  %5700 = vmatprep.subr.bf16.mxu0 %v5634
  %5701 = vmatpush1.bf16.msra.mxu0 %v5633
  %5702 = vmatprep.subr.bf16.mxu0 %v5638
  %5703 = vmatpush1.bf16.msra.mxu0 %v5637
  %5704 = vmatprep.subr.bf16.mxu0 0
  %5705 = vmatpush1.bf16.msra.mxu0 0
  %5706 = vmatprep.subr.bf16.mxu0 0
  %5707 = vmatpush1.bf16.msra.mxu0 0
  %5708 = vmatprep.subr.bf16.mxu0 0
  %5709 = vmatpush1.bf16.msra.mxu0 0
  %5710 = vmatprep.subr.bf16.mxu0 0
  %5711 = vmatpush1.bf16.msra.mxu0 0
  %5712 = vmatprep.subr.bf16.mxu0 0
  %5713 = vmatpush1.bf16.msra.mxu0 0
  %5714 = vmatprep.subr.bf16.mxu0 0
  %5715 = vmatpush1.bf16.msra.mxu0 0
  %5716 = vmatprep.mubr.bf16.mxu0 %v5682
  %5717 = vmatmul.mubr.bf16.gmra.mrb[0].mxu0 %v5151
  %v5718 = vpop.f32.mrb[0].mxu0
  %v5719 = vadd.f32 %v5434, %v5718
  %v5720 = vpop.f32.mrb[0].mxu0
  %v5721 = vadd.f32 %v5436, %v5720
  %v5722 = vpop.f32.mrb[0].mxu0
  %v5723 = vpop.f32.mrb[0].mxu0
  %5724 = vdwg.mxu0
  %5725 = vmatprep.subr.bf16.mxu0 %v5604
  %5726 = vmatpush1.bf16.msra.mxu0 %v5603
  %5727 = vmatprep.subr.bf16.mxu0 %v5608
  %5728 = vmatpush1.bf16.msra.mxu0 %v5607
  %5729 = vmatprep.subr.bf16.mxu0 %v5612
  %5730 = vmatpush1.bf16.msra.mxu0 %v5611
  %5731 = vmatprep.subr.bf16.mxu0 %v5616
  %5732 = vmatpush1.bf16.msra.mxu0 %v5615
  %5733 = vmatprep.subr.bf16.mxu0 %v5620
  %5734 = vmatpush1.bf16.msra.mxu0 %v5619
  %5735 = vmatprep.subr.bf16.mxu0 %v5624
  %5736 = vmatpush1.bf16.msra.mxu0 %v5623
  %5737 = vmatprep.subr.bf16.mxu0 %v5628
  %5738 = vmatpush1.bf16.msra.mxu0 %v5627
  %5739 = vmatprep.subr.bf16.mxu0 %v5632
  %5740 = vmatpush1.bf16.msra.mxu0 %v5631
  %5741 = vmatprep.subr.bf16.mxu0 %v5636
  %5742 = vmatpush1.bf16.msra.mxu0 %v5635
  %5743 = vmatprep.subr.bf16.mxu0 %v5640
  %5744 = vmatpush1.bf16.msra.mxu0 %v5639
  %5745 = vmatprep.subr.bf16.mxu0 0
  %5746 = vmatpush1.bf16.msra.mxu0 0
  %5747 = vmatprep.subr.bf16.mxu0 0
  %5748 = vmatpush1.bf16.msra.mxu0 0
  %5749 = vmatprep.subr.bf16.mxu0 0
  %5750 = vmatpush1.bf16.msra.mxu0 0
  %5751 = vmatprep.subr.bf16.mxu0 0
  %5752 = vmatpush1.bf16.msra.mxu0 0
  %5753 = vmatprep.subr.bf16.mxu0 0
  %5754 = vmatpush1.bf16.msra.mxu0 0
  %5755 = vmatprep.subr.bf16.mxu0 0
  %5756 = vmatpush1.bf16.msra.mxu0 0
  %5757 = vmatprep.mubr.bf16.mxu0 %v5682
  %5758 = vmatmul.mubr.bf16.gmra.mrb[0].mxu0 %v5151
  %v5759 = vpop.f32.mrb[0].mxu0
  %v5760 = vadd.f32 %v5475, %v5759
  %v5761 = vpop.f32.mrb[0].mxu0
  %v5762 = vadd.f32 %v5477, %v5761
  %v5763 = vpop.f32.mrb[0].mxu0
  %v5764 = vpop.f32.mrb[0].mxu0
  %5765 = vdwg.mxu0
  %s5766 = scalar_lea.vmem %s7, 640
  %v5767 = vld [vmem:[%s5766] sm:$0xff]
  %v5768 = vld [vmem:[%s5766 + $0x8] sm:$0xff]
  %v5769 = vld [vmem:[%s5766 + $0x10] sm:$0xff]
  %v5770 = vld [vmem:[%s5766 + $0x18] sm:$0xff]
  %v5771 = vld [vmem:[%s5766 + $0x20] sm:$0xff]
  %v5772 = vld [vmem:[%s5766 + $0x28] sm:$0xff]
  %v5773 = vld [vmem:[%s5766 + $0x30] sm:$0xff]
  %v5774 = vld [vmem:[%s5766 + $0x38] sm:$0xff]
  %v5775 = vld [vmem:[%s5766 + $0x40] sm:$0xff]
  %v5776 = vld [vmem:[%s5766 + $0x48] sm:$0xff]
  %v5777 = vld [vmem:[%s5766 + $0x50] sm:$0xff]
  %v5778 = vld [vmem:[%s5766 + $0x58] sm:$0xff]
  %v5779 = vld [vmem:[%s5766 + $0x60] sm:$0xff]
  %v5780 = vld [vmem:[%s5766 + $0x68] sm:$0xff]
  %v5781 = vld [vmem:[%s5766 + $0x70] sm:$0xff]
  %v5782 = vld [vmem:[%s5766 + $0x78] sm:$0xff]
  %v5783 = vld [vmem:[%s5766 + $0x80] sm:$0xff]
  %v5784 = vld [vmem:[%s5766 + $0x88] sm:$0xff]
  %v5785 = vld [vmem:[%s5766 + $0x90] sm:$0xff]
  %v5786 = vld [vmem:[%s5766 + $0x98] sm:$0xff]
  %v5787 = vld [vmem:[%s5766 + $0xa0] sm:$0xff]
  %v5788 = vld [vmem:[%s5766 + $0xa8] sm:$0xff]
  %v5789 = vld [vmem:[%s5766 + $0xb0] sm:$0xff]
  %v5790 = vld [vmem:[%s5766 + $0xb8] sm:$0xff]
  %v5791 = vld [vmem:[%s5766 + $0xc0] sm:$0xff]
  %v5792 = vld [vmem:[%s5766 + $0xc8] sm:$0xff]
  %v5793 = vld [vmem:[%s5766 + $0xd0] sm:$0xff]
  %v5794 = vld [vmem:[%s5766 + $0xd8] sm:$0xff]
  %v5795 = vld [vmem:[%s5766 + $0xe0] sm:$0xff]
  %v5796 = vld [vmem:[%s5766 + $0xe8] sm:$0xff]
  %v5797 = vld [vmem:[%s5766 + $0xf0] sm:$0xff]
  %v5798 = vld [vmem:[%s5766 + $0xf8] sm:$0xff]
  %v5799 = vld [vmem:[%s5766 + $0x100] sm:$0xff]
  %v5800 = vld [vmem:[%s5766 + $0x108] sm:$0xff]
  %v5801 = vld [vmem:[%s5766 + $0x110] sm:$0xff]
  %v5802 = vld [vmem:[%s5766 + $0x118] sm:$0xff]
  %v5803 = vld [vmem:[%s5766 + $0x120] sm:$0xff]
  %v5804 = vld [vmem:[%s5766 + $0x128] sm:$0xff]
  %v5805 = vld [vmem:[%s5766 + $0x130] sm:$0xff]
  %v5806 = vld [vmem:[%s5766 + $0x138] sm:$0xff]
  %v5807 = vpack.c.bf16 %v5105, %v5105
  %v5808 = vpack.c.bf16 %v5106, %v5106
  %v5849 = vunpack.c.l.b16 %v5767
  %v5850 = vunpack.c.h.b16 %v5767
  %v5851 = vunpack.c.l.b16 %v5768
  %v5852 = vunpack.c.h.b16 %v5768
  %v5853 = vunpack.c.l.b16 %v5769
  %v5854 = vunpack.c.h.b16 %v5769
  %v5855 = vunpack.c.l.b16 %v5770
  %v5856 = vunpack.c.h.b16 %v5770
  %v5857 = vunpack.c.l.b16 %v5771
  %v5858 = vunpack.c.h.b16 %v5771
  %v5859 = vunpack.c.l.b16 %v5772
  %v5860 = vunpack.c.h.b16 %v5772
  %v5861 = vunpack.c.l.b16 %v5773
  %v5862 = vunpack.c.h.b16 %v5773
  %v5863 = vunpack.c.l.b16 %v5774
  %v5864 = vunpack.c.h.b16 %v5774
  %v5865 = vunpack.c.l.b16 %v5775
  %v5866 = vunpack.c.h.b16 %v5775
  %v5867 = vunpack.c.l.b16 %v5776
  %v5868 = vunpack.c.h.b16 %v5776
  %v5869 = vunpack.c.l.b16 %v5777
  %v5870 = vunpack.c.h.b16 %v5777
  %v5871 = vunpack.c.l.b16 %v5778
  %v5872 = vunpack.c.h.b16 %v5778
  %v5873 = vunpack.c.l.b16 %v5779
  %v5874 = vunpack.c.h.b16 %v5779
  %v5875 = vunpack.c.l.b16 %v5780
  %v5876 = vunpack.c.h.b16 %v5780
  %v5877 = vunpack.c.l.b16 %v5781
  %v5878 = vunpack.c.h.b16 %v5781
  %v5879 = vunpack.c.l.b16 %v5782
  %v5880 = vunpack.c.h.b16 %v5782
  %v5881 = vunpack.c.l.b16 %v5783
  %v5882 = vunpack.c.h.b16 %v5783
  %v5883 = vunpack.c.l.b16 %v5784
  %v5884 = vunpack.c.h.b16 %v5784
  %v5885 = vunpack.c.l.b16 %v5785
  %v5886 = vunpack.c.h.b16 %v5785
  %v5887 = vunpack.c.l.b16 %v5786
  %v5888 = vunpack.c.h.b16 %v5786
  %v5889 = vunpack.c.l.b16 %v5787
  %v5890 = vunpack.c.h.b16 %v5787
  %v5891 = vunpack.c.l.b16 %v5788
  %v5892 = vunpack.c.h.b16 %v5788
  %v5893 = vunpack.c.l.b16 %v5789
  %v5894 = vunpack.c.h.b16 %v5789
  %v5895 = vunpack.c.l.b16 %v5790
  %v5896 = vunpack.c.h.b16 %v5790
  %v5897 = vunpack.c.l.b16 %v5791
  %v5898 = vunpack.c.h.b16 %v5791
  %v5899 = vunpack.c.l.b16 %v5792
  %v5900 = vunpack.c.h.b16 %v5792
  %v5901 = vunpack.c.l.b16 %v5793
  %v5902 = vunpack.c.h.b16 %v5793
  %v5903 = vunpack.c.l.b16 %v5794
  %v5904 = vunpack.c.h.b16 %v5794
  %v5905 = vunpack.c.l.b16 %v5795
  %v5906 = vunpack.c.h.b16 %v5795
  %v5907 = vunpack.c.l.b16 %v5796
  %v5908 = vunpack.c.h.b16 %v5796
  %v5909 = vunpack.c.l.b16 %v5797
  %v5910 = vunpack.c.h.b16 %v5797
  %v5911 = vunpack.c.l.b16 %v5798
  %v5912 = vunpack.c.h.b16 %v5798
  %v5913 = vunpack.c.l.b16 %v5799
  %v5914 = vunpack.c.h.b16 %v5799
  %v5915 = vunpack.c.l.b16 %v5800
  %v5916 = vunpack.c.h.b16 %v5800
  %v5917 = vunpack.c.l.b16 %v5801
  %v5918 = vunpack.c.h.b16 %v5801
  %v5919 = vunpack.c.l.b16 %v5802
  %v5920 = vunpack.c.h.b16 %v5802
  %v5921 = vunpack.c.l.b16 %v5803
  %v5922 = vunpack.c.h.b16 %v5803
  %v5923 = vunpack.c.l.b16 %v5804
  %v5924 = vunpack.c.h.b16 %v5804
  %v5925 = vunpack.c.l.b16 %v5805
  %v5926 = vunpack.c.h.b16 %v5805
  %v5927 = vunpack.c.l.b16 %v5806
  %v5928 = vunpack.c.h.b16 %v5806
  %v5929 = vpack.c.b16 %v5853, %v5849
  %v5930 = vpack.c.b16 %v5854, %v5850
  %v5931 = vpack.c.b16 %v5855, %v5851
  %v5932 = vpack.c.b16 %v5856, %v5852
  %v5933 = vpack.c.b16 %v5861, %v5857
  %v5934 = vpack.c.b16 %v5862, %v5858
  %v5935 = vpack.c.b16 %v5863, %v5859
  %v5936 = vpack.c.b16 %v5864, %v5860
  %v5937 = vpack.c.b16 %v5869, %v5865
  %v5938 = vpack.c.b16 %v5870, %v5866
  %v5939 = vpack.c.b16 %v5871, %v5867
  %v5940 = vpack.c.b16 %v5872, %v5868
  %v5941 = vpack.c.b16 %v5877, %v5873
  %v5942 = vpack.c.b16 %v5878, %v5874
  %v5943 = vpack.c.b16 %v5879, %v5875
  %v5944 = vpack.c.b16 %v5880, %v5876
  %v5945 = vpack.c.b16 %v5885, %v5881
  %v5946 = vpack.c.b16 %v5886, %v5882
  %v5947 = vpack.c.b16 %v5887, %v5883
  %v5948 = vpack.c.b16 %v5888, %v5884
  %v5949 = vpack.c.b16 %v5893, %v5889
  %v5950 = vpack.c.b16 %v5894, %v5890
  %v5951 = vpack.c.b16 %v5895, %v5891
  %v5952 = vpack.c.b16 %v5896, %v5892
  %v5953 = vpack.c.b16 %v5901, %v5897
  %v5954 = vpack.c.b16 %v5902, %v5898
  %v5955 = vpack.c.b16 %v5903, %v5899
  %v5956 = vpack.c.b16 %v5904, %v5900
  %v5957 = vpack.c.b16 %v5909, %v5905
  %v5958 = vpack.c.b16 %v5910, %v5906
  %v5959 = vpack.c.b16 %v5911, %v5907
  %v5960 = vpack.c.b16 %v5912, %v5908
  %v5961 = vpack.c.b16 %v5917, %v5913
  %v5962 = vpack.c.b16 %v5918, %v5914
  %v5963 = vpack.c.b16 %v5919, %v5915
  %v5964 = vpack.c.b16 %v5920, %v5916
  %v5965 = vpack.c.b16 %v5925, %v5921
  %v5966 = vpack.c.b16 %v5926, %v5922
  %v5967 = vpack.c.b16 %v5927, %v5923
  %v5968 = vpack.c.b16 %v5928, %v5924
  %v6010 = vsel %vm2065, %v5808, 0
  %6012 = vmatprep.subr.bf16.mxu0 %v5930
  %6013 = vmatpush1.bf16.msra.mxu0 %v5929
  %6014 = vmatprep.subr.bf16.mxu0 %v5934
  %6015 = vmatpush1.bf16.msra.mxu0 %v5933
  %6016 = vmatprep.subr.bf16.mxu0 %v5938
  %6017 = vmatpush1.bf16.msra.mxu0 %v5937
  %6018 = vmatprep.subr.bf16.mxu0 %v5942
  %6019 = vmatpush1.bf16.msra.mxu0 %v5941
  %6020 = vmatprep.subr.bf16.mxu0 %v5946
  %6021 = vmatpush1.bf16.msra.mxu0 %v5945
  %6022 = vmatprep.subr.bf16.mxu0 %v5950
  %6023 = vmatpush1.bf16.msra.mxu0 %v5949
  %6024 = vmatprep.subr.bf16.mxu0 %v5954
  %6025 = vmatpush1.bf16.msra.mxu0 %v5953
  %6026 = vmatprep.subr.bf16.mxu0 %v5958
  %6027 = vmatpush1.bf16.msra.mxu0 %v5957
  %6028 = vmatprep.subr.bf16.mxu0 %v5962
  %6029 = vmatpush1.bf16.msra.mxu0 %v5961
  %6030 = vmatprep.subr.bf16.mxu0 %v5966
  %6031 = vmatpush1.bf16.msra.mxu0 %v5965
  %6032 = vmatprep.subr.bf16.mxu0 0
  %6033 = vmatpush1.bf16.msra.mxu0 0
  %6034 = vmatprep.subr.bf16.mxu0 0
  %6035 = vmatpush1.bf16.msra.mxu0 0
  %6036 = vmatprep.subr.bf16.mxu0 0
  %6037 = vmatpush1.bf16.msra.mxu0 0
  %6038 = vmatprep.subr.bf16.mxu0 0
  %6039 = vmatpush1.bf16.msra.mxu0 0
  %6040 = vmatprep.subr.bf16.mxu0 0
  %6041 = vmatpush1.bf16.msra.mxu0 0
  %6042 = vmatprep.subr.bf16.mxu0 0
  %6043 = vmatpush1.bf16.msra.mxu0 0
  %6044 = vmatprep.mubr.bf16.mxu0 %v6010
  %6045 = vmatmul.mubr.bf16.gmra.mrb[0].mxu0 %v5807
  %v6046 = vpop.f32.mrb[0].mxu0
  %v6047 = vadd.f32 0.0, %v6046
  %v6048 = vpop.f32.mrb[0].mxu0
  %v6049 = vadd.f32 0.0, %v6048
  %v6050 = vpop.f32.mrb[0].mxu0
  %v6051 = vpop.f32.mrb[0].mxu0
  %6052 = vdwg.mxu0
  %6053 = vmatprep.subr.bf16.mxu0 %v5932
  %6054 = vmatpush1.bf16.msra.mxu0 %v5931
  %6055 = vmatprep.subr.bf16.mxu0 %v5936
  %6056 = vmatpush1.bf16.msra.mxu0 %v5935
  %6057 = vmatprep.subr.bf16.mxu0 %v5940
  %6058 = vmatpush1.bf16.msra.mxu0 %v5939
  %6059 = vmatprep.subr.bf16.mxu0 %v5944
  %6060 = vmatpush1.bf16.msra.mxu0 %v5943
  %6061 = vmatprep.subr.bf16.mxu0 %v5948
  %6062 = vmatpush1.bf16.msra.mxu0 %v5947
  %6063 = vmatprep.subr.bf16.mxu0 %v5952
  %6064 = vmatpush1.bf16.msra.mxu0 %v5951
  %6065 = vmatprep.subr.bf16.mxu0 %v5956
  %6066 = vmatpush1.bf16.msra.mxu0 %v5955
  %6067 = vmatprep.subr.bf16.mxu0 %v5960
  %6068 = vmatpush1.bf16.msra.mxu0 %v5959
  %6069 = vmatprep.subr.bf16.mxu0 %v5964
  %6070 = vmatpush1.bf16.msra.mxu0 %v5963
  %6071 = vmatprep.subr.bf16.mxu0 %v5968
  %6072 = vmatpush1.bf16.msra.mxu0 %v5967
  %6073 = vmatprep.subr.bf16.mxu0 0
  %6074 = vmatpush1.bf16.msra.mxu0 0
  %6075 = vmatprep.subr.bf16.mxu0 0
  %6076 = vmatpush1.bf16.msra.mxu0 0
  %6077 = vmatprep.subr.bf16.mxu0 0
  %6078 = vmatpush1.bf16.msra.mxu0 0
  %6079 = vmatprep.subr.bf16.mxu0 0
  %6080 = vmatpush1.bf16.msra.mxu0 0
  %6081 = vmatprep.subr.bf16.mxu0 0
  %6082 = vmatpush1.bf16.msra.mxu0 0
  %6083 = vmatprep.subr.bf16.mxu0 0
  %6084 = vmatpush1.bf16.msra.mxu0 0
  %6085 = vmatprep.mubr.bf16.mxu0 %v6010
  %6086 = vmatmul.mubr.bf16.gmra.mrb[0].mxu0 %v5807
  %v6087 = vpop.f32.mrb[0].mxu0
  %v6088 = vadd.f32 0.0, %v6087
  %v6089 = vpop.f32.mrb[0].mxu0
  %v6090 = vadd.f32 0.0, %v6089
  %v6091 = vpop.f32.mrb[0].mxu0
  %v6092 = vpop.f32.mrb[0].mxu0
  %6093 = vdwg.mxu0
  %v6094 = vadd.f32 %v5719, %v6047
  %v6095 = vadd.f32 %v5721, %v6049
  %v6096 = vadd.f32 %v5760, %v6088
  %v6097 = vadd.f32 %v5762, %v6090
  %s6098 = scalar_lea.vmem %s7, 960
  %v6099 = vld [vmem:[%s6098] sm:$0xff]
  %v6100 = vld [vmem:[%s6098 + $0x8] sm:$0xff]
  %v6101 = vld [vmem:[%s6098 + $0x10] sm:$0xff]
  %v6102 = vld [vmem:[%s6098 + $0x18] sm:$0xff]
  %v6103 = vld [vmem:[%s6098 + $0x20] sm:$0xff]
  %v6104 = vld [vmem:[%s6098 + $0x28] sm:$0xff]
  %v6105 = vld [vmem:[%s6098 + $0x30] sm:$0xff]
  %v6106 = vld [vmem:[%s6098 + $0x38] sm:$0xff]
  %v6107 = vld [vmem:[%s6098 + $0x40] sm:$0xff]
  %v6108 = vld [vmem:[%s6098 + $0x48] sm:$0xff]
  %v6109 = vld [vmem:[%s6098 + $0x50] sm:$0xff]
  %v6110 = vld [vmem:[%s6098 + $0x58] sm:$0xff]
  %v6111 = vld [vmem:[%s6098 + $0x60] sm:$0xff]
  %v6112 = vld [vmem:[%s6098 + $0x68] sm:$0xff]
  %v6113 = vld [vmem:[%s6098 + $0x70] sm:$0xff]
  %v6114 = vld [vmem:[%s6098 + $0x78] sm:$0xff]
  %v6115 = vld [vmem:[%s6098 + $0x80] sm:$0xff]
  %v6116 = vld [vmem:[%s6098 + $0x88] sm:$0xff]
  %v6117 = vld [vmem:[%s6098 + $0x90] sm:$0xff]
  %v6118 = vld [vmem:[%s6098 + $0x98] sm:$0xff]
  %v6119 = vld [vmem:[%s6098 + $0xa0] sm:$0xff]
  %v6120 = vld [vmem:[%s6098 + $0xa8] sm:$0xff]
  %v6121 = vld [vmem:[%s6098 + $0xb0] sm:$0xff]
  %v6122 = vld [vmem:[%s6098 + $0xb8] sm:$0xff]
  %v6123 = vld [vmem:[%s6098 + $0xc0] sm:$0xff]
  %v6124 = vld [vmem:[%s6098 + $0xc8] sm:$0xff]
  %v6125 = vld [vmem:[%s6098 + $0xd0] sm:$0xff]
  %v6126 = vld [vmem:[%s6098 + $0xd8] sm:$0xff]
  %v6127 = vld [vmem:[%s6098 + $0xe0] sm:$0xff]
  %v6128 = vld [vmem:[%s6098 + $0xe8] sm:$0xff]
  %v6129 = vld [vmem:[%s6098 + $0xf0] sm:$0xff]
  %v6130 = vld [vmem:[%s6098 + $0xf8] sm:$0xff]
  %v6131 = vld [vmem:[%s6098 + $0x100] sm:$0xff]
  %v6132 = vld [vmem:[%s6098 + $0x108] sm:$0xff]
  %v6133 = vld [vmem:[%s6098 + $0x110] sm:$0xff]
  %v6134 = vld [vmem:[%s6098 + $0x118] sm:$0xff]
  %v6135 = vld [vmem:[%s6098 + $0x120] sm:$0xff]
  %v6136 = vld [vmem:[%s6098 + $0x128] sm:$0xff]
  %v6137 = vld [vmem:[%s6098 + $0x130] sm:$0xff]
  %v6138 = vld [vmem:[%s6098 + $0x138] sm:$0xff]
  %v6139 = vpack.c.bf16 %v5107, %v5107
  %v6140 = vpack.c.bf16 %v5108, %v5108
  %v6181 = vunpack.c.l.b16 %v6099
  %v6182 = vunpack.c.h.b16 %v6099
  %v6183 = vunpack.c.l.b16 %v6100
  %v6184 = vunpack.c.h.b16 %v6100
  %v6185 = vunpack.c.l.b16 %v6101
  %v6186 = vunpack.c.h.b16 %v6101
  %v6187 = vunpack.c.l.b16 %v6102
  %v6188 = vunpack.c.h.b16 %v6102
  %v6189 = vunpack.c.l.b16 %v6103
  %v6190 = vunpack.c.h.b16 %v6103
  %v6191 = vunpack.c.l.b16 %v6104
  %v6192 = vunpack.c.h.b16 %v6104
  %v6193 = vunpack.c.l.b16 %v6105
  %v6194 = vunpack.c.h.b16 %v6105
  %v6195 = vunpack.c.l.b16 %v6106
  %v6196 = vunpack.c.h.b16 %v6106
  %v6197 = vunpack.c.l.b16 %v6107
  %v6198 = vunpack.c.h.b16 %v6107
  %v6199 = vunpack.c.l.b16 %v6108
  %v6200 = vunpack.c.h.b16 %v6108
  %v6201 = vunpack.c.l.b16 %v6109
  %v6202 = vunpack.c.h.b16 %v6109
  %v6203 = vunpack.c.l.b16 %v6110
  %v6204 = vunpack.c.h.b16 %v6110
  %v6205 = vunpack.c.l.b16 %v6111
  %v6206 = vunpack.c.h.b16 %v6111
  %v6207 = vunpack.c.l.b16 %v6112
  %v6208 = vunpack.c.h.b16 %v6112
  %v6209 = vunpack.c.l.b16 %v6113
  %v6210 = vunpack.c.h.b16 %v6113
  %v6211 = vunpack.c.l.b16 %v6114
  %v6212 = vunpack.c.h.b16 %v6114
  %v6213 = vunpack.c.l.b16 %v6115
  %v6214 = vunpack.c.h.b16 %v6115
  %v6215 = vunpack.c.l.b16 %v6116
  %v6216 = vunpack.c.h.b16 %v6116
  %v6217 = vunpack.c.l.b16 %v6117
  %v6218 = vunpack.c.h.b16 %v6117
  %v6219 = vunpack.c.l.b16 %v6118
  %v6220 = vunpack.c.h.b16 %v6118
  %v6221 = vunpack.c.l.b16 %v6119
  %v6222 = vunpack.c.h.b16 %v6119
  %v6223 = vunpack.c.l.b16 %v6120
  %v6224 = vunpack.c.h.b16 %v6120
  %v6225 = vunpack.c.l.b16 %v6121
  %v6226 = vunpack.c.h.b16 %v6121
  %v6227 = vunpack.c.l.b16 %v6122
  %v6228 = vunpack.c.h.b16 %v6122
  %v6229 = vunpack.c.l.b16 %v6123
  %v6230 = vunpack.c.h.b16 %v6123
  %v6231 = vunpack.c.l.b16 %v6124
  %v6232 = vunpack.c.h.b16 %v6124
  %v6233 = vunpack.c.l.b16 %v6125
  %v6234 = vunpack.c.h.b16 %v6125
  %v6235 = vunpack.c.l.b16 %v6126
  %v6236 = vunpack.c.h.b16 %v6126
  %v6237 = vunpack.c.l.b16 %v6127
  %v6238 = vunpack.c.h.b16 %v6127
  %v6239 = vunpack.c.l.b16 %v6128
  %v6240 = vunpack.c.h.b16 %v6128
  %v6241 = vunpack.c.l.b16 %v6129
  %v6242 = vunpack.c.h.b16 %v6129
  %v6243 = vunpack.c.l.b16 %v6130
  %v6244 = vunpack.c.h.b16 %v6130
  %v6245 = vunpack.c.l.b16 %v6131
  %v6246 = vunpack.c.h.b16 %v6131
  %v6247 = vunpack.c.l.b16 %v6132
  %v6248 = vunpack.c.h.b16 %v6132
  %v6249 = vunpack.c.l.b16 %v6133
  %v6250 = vunpack.c.h.b16 %v6133
  %v6251 = vunpack.c.l.b16 %v6134
  %v6252 = vunpack.c.h.b16 %v6134
  %v6253 = vunpack.c.l.b16 %v6135
  %v6254 = vunpack.c.h.b16 %v6135
  %v6255 = vunpack.c.l.b16 %v6136
  %v6256 = vunpack.c.h.b16 %v6136
  %v6257 = vunpack.c.l.b16 %v6137
  %v6258 = vunpack.c.h.b16 %v6137
  %v6259 = vunpack.c.l.b16 %v6138
  %v6260 = vunpack.c.h.b16 %v6138
  %v6261 = vpack.c.b16 %v6185, %v6181
  %v6262 = vpack.c.b16 %v6186, %v6182
  %v6263 = vpack.c.b16 %v6187, %v6183
  %v6264 = vpack.c.b16 %v6188, %v6184
  %v6265 = vpack.c.b16 %v6193, %v6189
  %v6266 = vpack.c.b16 %v6194, %v6190
  %v6267 = vpack.c.b16 %v6195, %v6191
  %v6268 = vpack.c.b16 %v6196, %v6192
  %v6269 = vpack.c.b16 %v6201, %v6197
  %v6270 = vpack.c.b16 %v6202, %v6198
  %v6271 = vpack.c.b16 %v6203, %v6199
  %v6272 = vpack.c.b16 %v6204, %v6200
  %v6273 = vpack.c.b16 %v6209, %v6205
  %v6274 = vpack.c.b16 %v6210, %v6206
  %v6275 = vpack.c.b16 %v6211, %v6207
  %v6276 = vpack.c.b16 %v6212, %v6208
  %v6277 = vpack.c.b16 %v6217, %v6213
  %v6278 = vpack.c.b16 %v6218, %v6214
  %v6279 = vpack.c.b16 %v6219, %v6215
  %v6280 = vpack.c.b16 %v6220, %v6216
  %v6281 = vpack.c.b16 %v6225, %v6221
  %v6282 = vpack.c.b16 %v6226, %v6222
  %v6283 = vpack.c.b16 %v6227, %v6223
  %v6284 = vpack.c.b16 %v6228, %v6224
  %v6285 = vpack.c.b16 %v6233, %v6229
  %v6286 = vpack.c.b16 %v6234, %v6230
  %v6287 = vpack.c.b16 %v6235, %v6231
  %v6288 = vpack.c.b16 %v6236, %v6232
  %v6289 = vpack.c.b16 %v6241, %v6237
  %v6290 = vpack.c.b16 %v6242, %v6238
  %v6291 = vpack.c.b16 %v6243, %v6239
  %v6292 = vpack.c.b16 %v6244, %v6240
  %v6293 = vpack.c.b16 %v6249, %v6245
  %v6294 = vpack.c.b16 %v6250, %v6246
  %v6295 = vpack.c.b16 %v6251, %v6247
  %v6296 = vpack.c.b16 %v6252, %v6248
  %v6297 = vpack.c.b16 %v6257, %v6253
  %v6298 = vpack.c.b16 %v6258, %v6254
  %v6299 = vpack.c.b16 %v6259, %v6255
  %v6300 = vpack.c.b16 %v6260, %v6256
  %v6342 = vsel %vm2065, %v6140, 0
  %6344 = vmatprep.subr.bf16.mxu0 %v6262
  %6345 = vmatpush1.bf16.msra.mxu0 %v6261
  %6346 = vmatprep.subr.bf16.mxu0 %v6266
  %6347 = vmatpush1.bf16.msra.mxu0 %v6265
  %6348 = vmatprep.subr.bf16.mxu0 %v6270
  %6349 = vmatpush1.bf16.msra.mxu0 %v6269
  %6350 = vmatprep.subr.bf16.mxu0 %v6274
  %6351 = vmatpush1.bf16.msra.mxu0 %v6273
  %6352 = vmatprep.subr.bf16.mxu0 %v6278
  %6353 = vmatpush1.bf16.msra.mxu0 %v6277
  %6354 = vmatprep.subr.bf16.mxu0 %v6282
  %6355 = vmatpush1.bf16.msra.mxu0 %v6281
  %6356 = vmatprep.subr.bf16.mxu0 %v6286
  %6357 = vmatpush1.bf16.msra.mxu0 %v6285
  %6358 = vmatprep.subr.bf16.mxu0 %v6290
  %6359 = vmatpush1.bf16.msra.mxu0 %v6289
  %6360 = vmatprep.subr.bf16.mxu0 %v6294
  %6361 = vmatpush1.bf16.msra.mxu0 %v6293
  %6362 = vmatprep.subr.bf16.mxu0 %v6298
  %6363 = vmatpush1.bf16.msra.mxu0 %v6297
  %6364 = vmatprep.subr.bf16.mxu0 0
  %6365 = vmatpush1.bf16.msra.mxu0 0
  %6366 = vmatprep.subr.bf16.mxu0 0
  %6367 = vmatpush1.bf16.msra.mxu0 0
  %6368 = vmatprep.subr.bf16.mxu0 0
  %6369 = vmatpush1.bf16.msra.mxu0 0
  %6370 = vmatprep.subr.bf16.mxu0 0
  %6371 = vmatpush1.bf16.msra.mxu0 0
  %6372 = vmatprep.subr.bf16.mxu0 0
  %6373 = vmatpush1.bf16.msra.mxu0 0
  %6374 = vmatprep.subr.bf16.mxu0 0
  %6375 = vmatpush1.bf16.msra.mxu0 0
  %6376 = vmatprep.mubr.bf16.mxu0 %v6342
  %6377 = vmatmul.mubr.bf16.gmra.mrb[0].mxu0 %v6139
  %v6378 = vpop.f32.mrb[0].mxu0
  %v6379 = vadd.f32 0.0, %v6378
  %v6380 = vpop.f32.mrb[0].mxu0
  %v6381 = vadd.f32 0.0, %v6380
  %v6382 = vpop.f32.mrb[0].mxu0
  %v6383 = vpop.f32.mrb[0].mxu0
  %6384 = vdwg.mxu0
  %6385 = vmatprep.subr.bf16.mxu0 %v6264
  %6386 = vmatpush1.bf16.msra.mxu0 %v6263
  %6387 = vmatprep.subr.bf16.mxu0 %v6268
  %6388 = vmatpush1.bf16.msra.mxu0 %v6267
  %6389 = vmatprep.subr.bf16.mxu0 %v6272
  %6390 = vmatpush1.bf16.msra.mxu0 %v6271
  %6391 = vmatprep.subr.bf16.mxu0 %v6276
  %6392 = vmatpush1.bf16.msra.mxu0 %v6275
  %6393 = vmatprep.subr.bf16.mxu0 %v6280
  %6394 = vmatpush1.bf16.msra.mxu0 %v6279
  %6395 = vmatprep.subr.bf16.mxu0 %v6284
  %6396 = vmatpush1.bf16.msra.mxu0 %v6283
  %6397 = vmatprep.subr.bf16.mxu0 %v6288
  %6398 = vmatpush1.bf16.msra.mxu0 %v6287
  %6399 = vmatprep.subr.bf16.mxu0 %v6292
  %6400 = vmatpush1.bf16.msra.mxu0 %v6291
  %6401 = vmatprep.subr.bf16.mxu0 %v6296
  %6402 = vmatpush1.bf16.msra.mxu0 %v6295
  %6403 = vmatprep.subr.bf16.mxu0 %v6300
  %6404 = vmatpush1.bf16.msra.mxu0 %v6299
  %6405 = vmatprep.subr.bf16.mxu0 0
  %6406 = vmatpush1.bf16.msra.mxu0 0
  %6407 = vmatprep.subr.bf16.mxu0 0
  %6408 = vmatpush1.bf16.msra.mxu0 0
  %6409 = vmatprep.subr.bf16.mxu0 0
  %6410 = vmatpush1.bf16.msra.mxu0 0
  %6411 = vmatprep.subr.bf16.mxu0 0
  %6412 = vmatpush1.bf16.msra.mxu0 0
  %6413 = vmatprep.subr.bf16.mxu0 0
  %6414 = vmatpush1.bf16.msra.mxu0 0
  %6415 = vmatprep.subr.bf16.mxu0 0
  %6416 = vmatpush1.bf16.msra.mxu0 0
  %6417 = vmatprep.mubr.bf16.mxu0 %v6342
  %6418 = vmatmul.mubr.bf16.gmra.mrb[0].mxu0 %v6139
  %v6419 = vpop.f32.mrb[0].mxu0
  %v6420 = vadd.f32 0.0, %v6419
  %v6421 = vpop.f32.mrb[0].mxu0
  %v6422 = vadd.f32 0.0, %v6421
  %v6423 = vpop.f32.mrb[0].mxu0
  %v6424 = vpop.f32.mrb[0].mxu0
  %6425 = vdwg.mxu0
  %v6426 = vadd.f32 %v6094, %v6379
  %v6427 = vadd.f32 %v6095, %v6381
  %v6428 = vadd.f32 %v6096, %v6420
  %v6429 = vadd.f32 %v6097, %v6422
  %s6430 = scalar_lea.vmem %s7, 1280
  %v6431 = vld [vmem:[%s6430] sm:$0xff]
  %v6432 = vld [vmem:[%s6430 + $0x8] sm:$0xff]
  %v6433 = vld [vmem:[%s6430 + $0x10] sm:$0xff]
  %v6434 = vld [vmem:[%s6430 + $0x18] sm:$0xff]
  %v6435 = vld [vmem:[%s6430 + $0x20] sm:$0xff]
  %v6436 = vld [vmem:[%s6430 + $0x28] sm:$0xff]
  %v6437 = vld [vmem:[%s6430 + $0x30] sm:$0xff]
  %v6438 = vld [vmem:[%s6430 + $0x38] sm:$0xff]
  %v6439 = vld [vmem:[%s6430 + $0x40] sm:$0xff]
  %v6440 = vld [vmem:[%s6430 + $0x48] sm:$0xff]
  %v6441 = vld [vmem:[%s6430 + $0x50] sm:$0xff]
  %v6442 = vld [vmem:[%s6430 + $0x58] sm:$0xff]
  %v6443 = vld [vmem:[%s6430 + $0x60] sm:$0xff]
  %v6444 = vld [vmem:[%s6430 + $0x68] sm:$0xff]
  %v6445 = vld [vmem:[%s6430 + $0x70] sm:$0xff]
  %v6446 = vld [vmem:[%s6430 + $0x78] sm:$0xff]
  %v6447 = vld [vmem:[%s6430 + $0x80] sm:$0xff]
  %v6448 = vld [vmem:[%s6430 + $0x88] sm:$0xff]
  %v6449 = vld [vmem:[%s6430 + $0x90] sm:$0xff]
  %v6450 = vld [vmem:[%s6430 + $0x98] sm:$0xff]
  %v6451 = vld [vmem:[%s6430 + $0xa0] sm:$0xff]
  %v6452 = vld [vmem:[%s6430 + $0xa8] sm:$0xff]
  %v6453 = vld [vmem:[%s6430 + $0xb0] sm:$0xff]
  %v6454 = vld [vmem:[%s6430 + $0xb8] sm:$0xff]
  %v6455 = vld [vmem:[%s6430 + $0xc0] sm:$0xff]
  %v6456 = vld [vmem:[%s6430 + $0xc8] sm:$0xff]
  %v6457 = vld [vmem:[%s6430 + $0xd0] sm:$0xff]
  %v6458 = vld [vmem:[%s6430 + $0xd8] sm:$0xff]
  %v6459 = vld [vmem:[%s6430 + $0xe0] sm:$0xff]
  %v6460 = vld [vmem:[%s6430 + $0xe8] sm:$0xff]
  %v6461 = vld [vmem:[%s6430 + $0xf0] sm:$0xff]
  %v6462 = vld [vmem:[%s6430 + $0xf8] sm:$0xff]
  %v6463 = vld [vmem:[%s6430 + $0x100] sm:$0xff]
  %v6464 = vld [vmem:[%s6430 + $0x108] sm:$0xff]
  %v6465 = vld [vmem:[%s6430 + $0x110] sm:$0xff]
  %v6466 = vld [vmem:[%s6430 + $0x118] sm:$0xff]
  %v6467 = vld [vmem:[%s6430 + $0x120] sm:$0xff]
  %v6468 = vld [vmem:[%s6430 + $0x128] sm:$0xff]
  %v6469 = vld [vmem:[%s6430 + $0x130] sm:$0xff]
  %v6470 = vld [vmem:[%s6430 + $0x138] sm:$0xff]
  %v6471 = vpack.c.bf16 %v5109, %v5109
  %v6472 = vpack.c.bf16 %v5110, %v5110
  %v6513 = vunpack.c.l.b16 %v6431
  %v6514 = vunpack.c.h.b16 %v6431
  %v6515 = vunpack.c.l.b16 %v6432
  %v6516 = vunpack.c.h.b16 %v6432
  %v6517 = vunpack.c.l.b16 %v6433
  %v6518 = vunpack.c.h.b16 %v6433
  %v6519 = vunpack.c.l.b16 %v6434
  %v6520 = vunpack.c.h.b16 %v6434
  %v6521 = vunpack.c.l.b16 %v6435
  %v6522 = vunpack.c.h.b16 %v6435
  %v6523 = vunpack.c.l.b16 %v6436
  %v6524 = vunpack.c.h.b16 %v6436
  %v6525 = vunpack.c.l.b16 %v6437
  %v6526 = vunpack.c.h.b16 %v6437
  %v6527 = vunpack.c.l.b16 %v6438
  %v6528 = vunpack.c.h.b16 %v6438
  %v6529 = vunpack.c.l.b16 %v6439
  %v6530 = vunpack.c.h.b16 %v6439
  %v6531 = vunpack.c.l.b16 %v6440
  %v6532 = vunpack.c.h.b16 %v6440
  %v6533 = vunpack.c.l.b16 %v6441
  %v6534 = vunpack.c.h.b16 %v6441
  %v6535 = vunpack.c.l.b16 %v6442
  %v6536 = vunpack.c.h.b16 %v6442
  %v6537 = vunpack.c.l.b16 %v6443
  %v6538 = vunpack.c.h.b16 %v6443
  %v6539 = vunpack.c.l.b16 %v6444
  %v6540 = vunpack.c.h.b16 %v6444
  %v6541 = vunpack.c.l.b16 %v6445
  %v6542 = vunpack.c.h.b16 %v6445
  %v6543 = vunpack.c.l.b16 %v6446
  %v6544 = vunpack.c.h.b16 %v6446
  %v6545 = vunpack.c.l.b16 %v6447
  %v6546 = vunpack.c.h.b16 %v6447
  %v6547 = vunpack.c.l.b16 %v6448
  %v6548 = vunpack.c.h.b16 %v6448
  %v6549 = vunpack.c.l.b16 %v6449
  %v6550 = vunpack.c.h.b16 %v6449
  %v6551 = vunpack.c.l.b16 %v6450
  %v6552 = vunpack.c.h.b16 %v6450
  %v6553 = vunpack.c.l.b16 %v6451
  %v6554 = vunpack.c.h.b16 %v6451
  %v6555 = vunpack.c.l.b16 %v6452
  %v6556 = vunpack.c.h.b16 %v6452
  %v6557 = vunpack.c.l.b16 %v6453
  %v6558 = vunpack.c.h.b16 %v6453
  %v6559 = vunpack.c.l.b16 %v6454
  %v6560 = vunpack.c.h.b16 %v6454
  %v6561 = vunpack.c.l.b16 %v6455
  %v6562 = vunpack.c.h.b16 %v6455
  %v6563 = vunpack.c.l.b16 %v6456
  %v6564 = vunpack.c.h.b16 %v6456
  %v6565 = vunpack.c.l.b16 %v6457
  %v6566 = vunpack.c.h.b16 %v6457
  %v6567 = vunpack.c.l.b16 %v6458
  %v6568 = vunpack.c.h.b16 %v6458
  %v6569 = vunpack.c.l.b16 %v6459
  %v6570 = vunpack.c.h.b16 %v6459
  %v6571 = vunpack.c.l.b16 %v6460
  %v6572 = vunpack.c.h.b16 %v6460
  %v6573 = vunpack.c.l.b16 %v6461
  %v6574 = vunpack.c.h.b16 %v6461
  %v6575 = vunpack.c.l.b16 %v6462
  %v6576 = vunpack.c.h.b16 %v6462
  %v6577 = vunpack.c.l.b16 %v6463
  %v6578 = vunpack.c.h.b16 %v6463
  %v6579 = vunpack.c.l.b16 %v6464
  %v6580 = vunpack.c.h.b16 %v6464
  %v6581 = vunpack.c.l.b16 %v6465
  %v6582 = vunpack.c.h.b16 %v6465
  %v6583 = vunpack.c.l.b16 %v6466
  %v6584 = vunpack.c.h.b16 %v6466
  %v6585 = vunpack.c.l.b16 %v6467
  %v6586 = vunpack.c.h.b16 %v6467
  %v6587 = vunpack.c.l.b16 %v6468
  %v6588 = vunpack.c.h.b16 %v6468
  %v6589 = vunpack.c.l.b16 %v6469
  %v6590 = vunpack.c.h.b16 %v6469
  %v6591 = vunpack.c.l.b16 %v6470
  %v6592 = vunpack.c.h.b16 %v6470
  %v6593 = vpack.c.b16 %v6517, %v6513
  %v6594 = vpack.c.b16 %v6518, %v6514
  %v6595 = vpack.c.b16 %v6519, %v6515
  %v6596 = vpack.c.b16 %v6520, %v6516
  %v6597 = vpack.c.b16 %v6525, %v6521
  %v6598 = vpack.c.b16 %v6526, %v6522
  %v6599 = vpack.c.b16 %v6527, %v6523
  %v6600 = vpack.c.b16 %v6528, %v6524
  %v6601 = vpack.c.b16 %v6533, %v6529
  %v6602 = vpack.c.b16 %v6534, %v6530
  %v6603 = vpack.c.b16 %v6535, %v6531
  %v6604 = vpack.c.b16 %v6536, %v6532
  %v6605 = vpack.c.b16 %v6541, %v6537
  %v6606 = vpack.c.b16 %v6542, %v6538
  %v6607 = vpack.c.b16 %v6543, %v6539
  %v6608 = vpack.c.b16 %v6544, %v6540
  %v6609 = vpack.c.b16 %v6549, %v6545
  %v6610 = vpack.c.b16 %v6550, %v6546
  %v6611 = vpack.c.b16 %v6551, %v6547
  %v6612 = vpack.c.b16 %v6552, %v6548
  %v6613 = vpack.c.b16 %v6557, %v6553
  %v6614 = vpack.c.b16 %v6558, %v6554
  %v6615 = vpack.c.b16 %v6559, %v6555
  %v6616 = vpack.c.b16 %v6560, %v6556
  %v6617 = vpack.c.b16 %v6565, %v6561
  %v6618 = vpack.c.b16 %v6566, %v6562
  %v6619 = vpack.c.b16 %v6567, %v6563
  %v6620 = vpack.c.b16 %v6568, %v6564
  %v6621 = vpack.c.b16 %v6573, %v6569
  %v6622 = vpack.c.b16 %v6574, %v6570
  %v6623 = vpack.c.b16 %v6575, %v6571
  %v6624 = vpack.c.b16 %v6576, %v6572
  %v6625 = vpack.c.b16 %v6581, %v6577
  %v6626 = vpack.c.b16 %v6582, %v6578
  %v6627 = vpack.c.b16 %v6583, %v6579
  %v6628 = vpack.c.b16 %v6584, %v6580
  %v6629 = vpack.c.b16 %v6589, %v6585
  %v6630 = vpack.c.b16 %v6590, %v6586
  %v6631 = vpack.c.b16 %v6591, %v6587
  %v6632 = vpack.c.b16 %v6592, %v6588
  %v6674 = vsel %vm2065, %v6472, 0
  %6676 = vmatprep.subr.bf16.mxu0 %v6594
  %6677 = vmatpush1.bf16.msra.mxu0 %v6593
  %6678 = vmatprep.subr.bf16.mxu0 %v6598
  %6679 = vmatpush1.bf16.msra.mxu0 %v6597
  %6680 = vmatprep.subr.bf16.mxu0 %v6602
  %6681 = vmatpush1.bf16.msra.mxu0 %v6601
  %6682 = vmatprep.subr.bf16.mxu0 %v6606
  %6683 = vmatpush1.bf16.msra.mxu0 %v6605
  %6684 = vmatprep.subr.bf16.mxu0 %v6610
  %6685 = vmatpush1.bf16.msra.mxu0 %v6609
  %6686 = vmatprep.subr.bf16.mxu0 %v6614
  %6687 = vmatpush1.bf16.msra.mxu0 %v6613
  %6688 = vmatprep.subr.bf16.mxu0 %v6618
  %6689 = vmatpush1.bf16.msra.mxu0 %v6617
  %6690 = vmatprep.subr.bf16.mxu0 %v6622
  %6691 = vmatpush1.bf16.msra.mxu0 %v6621
  %6692 = vmatprep.subr.bf16.mxu0 %v6626
  %6693 = vmatpush1.bf16.msra.mxu0 %v6625
  %6694 = vmatprep.subr.bf16.mxu0 %v6630
  %6695 = vmatpush1.bf16.msra.mxu0 %v6629
  %6696 = vmatprep.subr.bf16.mxu0 0
  %6697 = vmatpush1.bf16.msra.mxu0 0
  %6698 = vmatprep.subr.bf16.mxu0 0
  %6699 = vmatpush1.bf16.msra.mxu0 0
  %6700 = vmatprep.subr.bf16.mxu0 0
  %6701 = vmatpush1.bf16.msra.mxu0 0
  %6702 = vmatprep.subr.bf16.mxu0 0
  %6703 = vmatpush1.bf16.msra.mxu0 0
  %6704 = vmatprep.subr.bf16.mxu0 0
  %6705 = vmatpush1.bf16.msra.mxu0 0
  %6706 = vmatprep.subr.bf16.mxu0 0
  %6707 = vmatpush1.bf16.msra.mxu0 0
  %6708 = vmatprep.mubr.bf16.mxu0 %v6674
  %6709 = vmatmul.mubr.bf16.gmra.mrb[0].mxu0 %v6471
  %v6710 = vpop.f32.mrb[0].mxu0
  %v6711 = vadd.f32 0.0, %v6710
  %v6712 = vpop.f32.mrb[0].mxu0
  %v6713 = vadd.f32 0.0, %v6712
  %v6714 = vpop.f32.mrb[0].mxu0
  %v6715 = vpop.f32.mrb[0].mxu0
  %6716 = vdwg.mxu0
  %6717 = vmatprep.subr.bf16.mxu0 %v6596
  %6718 = vmatpush1.bf16.msra.mxu0 %v6595
  %6719 = vmatprep.subr.bf16.mxu0 %v6600
  %6720 = vmatpush1.bf16.msra.mxu0 %v6599
  %6721 = vmatprep.subr.bf16.mxu0 %v6604
  %6722 = vmatpush1.bf16.msra.mxu0 %v6603
  %6723 = vmatprep.subr.bf16.mxu0 %v6608
  %6724 = vmatpush1.bf16.msra.mxu0 %v6607
  %6725 = vmatprep.subr.bf16.mxu0 %v6612
  %6726 = vmatpush1.bf16.msra.mxu0 %v6611
  %6727 = vmatprep.subr.bf16.mxu0 %v6616
  %6728 = vmatpush1.bf16.msra.mxu0 %v6615
  %6729 = vmatprep.subr.bf16.mxu0 %v6620
  %6730 = vmatpush1.bf16.msra.mxu0 %v6619
  %6731 = vmatprep.subr.bf16.mxu0 %v6624
  %6732 = vmatpush1.bf16.msra.mxu0 %v6623
  %6733 = vmatprep.subr.bf16.mxu0 %v6628
  %6734 = vmatpush1.bf16.msra.mxu0 %v6627
  %6735 = vmatprep.subr.bf16.mxu0 %v6632
  %6736 = vmatpush1.bf16.msra.mxu0 %v6631
  %6737 = vmatprep.subr.bf16.mxu0 0
  %6738 = vmatpush1.bf16.msra.mxu0 0
  %6739 = vmatprep.subr.bf16.mxu0 0
  %6740 = vmatpush1.bf16.msra.mxu0 0
  %6741 = vmatprep.subr.bf16.mxu0 0
  %6742 = vmatpush1.bf16.msra.mxu0 0
  %6743 = vmatprep.subr.bf16.mxu0 0
  %6744 = vmatpush1.bf16.msra.mxu0 0
  %6745 = vmatprep.subr.bf16.mxu0 0
  %6746 = vmatpush1.bf16.msra.mxu0 0
  %6747 = vmatprep.subr.bf16.mxu0 0
  %6748 = vmatpush1.bf16.msra.mxu0 0
  %6749 = vmatprep.mubr.bf16.mxu0 %v6674
  %6750 = vmatmul.mubr.bf16.gmra.mrb[0].mxu0 %v6471
  %v6751 = vpop.f32.mrb[0].mxu0
  %v6752 = vadd.f32 0.0, %v6751
  %v6753 = vpop.f32.mrb[0].mxu0
  %v6754 = vadd.f32 0.0, %v6753
  %v6755 = vpop.f32.mrb[0].mxu0
  %v6756 = vpop.f32.mrb[0].mxu0
  %6757 = vdwg.mxu0
  %v6758 = vadd.f32 %v6426, %v6711
  %v6759 = vadd.f32 %v6427, %v6713
  %v6760 = vadd.f32 %v6428, %v6752
  %v6761 = vadd.f32 %v6429, %v6754
  %v6762 = vld [vmem:[%s8] sm:$0xf]
  %v6764 = vlaneseq
  %v6765 = vshrl.u32 %v6764, 7
  %v6766 = vsub.s32 0, %v6765
  %v6767 = vrot.slane %v6762, %v6766
  %v6768 = vlaneseq
  %v6769 = vshrl.u32 %v6768, 7
  %v6770 = vsub.s32 1, %v6769
  %v6771 = vrot.slane %v6762, %v6770
  %v6772 = vlaneseq
  %v6773 = vshrl.u32 %v6772, 7
  %v6774 = vsub.s32 2, %v6773
  %v6775 = vrot.slane %v6762, %v6774
  %v6776 = vlaneseq
  %v6777 = vshrl.u32 %v6776, 7
  %v6778 = vsub.s32 3, %v6777
  %v6779 = vrot.slane %v6762, %v6778
  %v6784 = vadd.f32 %v6758, %v6767
  %v6785 = vadd.f32 %v6759, %v6771
  %v6786 = vadd.f32 %v6760, %v6775
  %v6787 = vadd.f32 %v6761, %v6779
  %v6788 = vmax.f32 %v6784, 0.0
  %v6789 = vmax.f32 %v6785, 0.0
  %v6790 = vmax.f32 %v6786, 0.0
  %v6791 = vmax.f32 %v6787, 0.0
  %v6792 = vld [vmem:[%s9] sm:$0xff]
  %v6793 = vld [vmem:[%s9 + $0x8] sm:$0xff]
  %v6794 = vld [vmem:[%s9 + $0x10] sm:$0xff]
  %v6795 = vld [vmem:[%s9 + $0x18] sm:$0xff]
  %v6796 = vld [vmem:[%s9 + $0x20] sm:$0xff]
  %v6797 = vld [vmem:[%s9 + $0x28] sm:$0xff]
  %v6798 = vld [vmem:[%s9 + $0x30] sm:$0xff]
  %v6799 = vld [vmem:[%s9 + $0x38] sm:$0xff]
  %v6800 = vld [vmem:[%s9 + $0x40] sm:$0xff]
  %v6801 = vld [vmem:[%s9 + $0x48] sm:$0xff]
  %v6802 = vld [vmem:[%s9 + $0x50] sm:$0xff]
  %v6803 = vld [vmem:[%s9 + $0x58] sm:$0xff]
  %v6804 = vld [vmem:[%s9 + $0x60] sm:$0xff]
  %v6805 = vld [vmem:[%s9 + $0x68] sm:$0xff]
  %v6806 = vld [vmem:[%s9 + $0x70] sm:$0xff]
  %v6807 = vld [vmem:[%s9 + $0x78] sm:$0xff]
  %v6808 = vld [vmem:[%s9 + $0x80] sm:$0xff]
  %v6809 = vld [vmem:[%s9 + $0x88] sm:$0xff]
  %v6810 = vld [vmem:[%s9 + $0x90] sm:$0xff]
  %v6811 = vld [vmem:[%s9 + $0x98] sm:$0xff]
  %v6812 = vld [vmem:[%s9 + $0xa0] sm:$0xff]
  %v6813 = vld [vmem:[%s9 + $0xa8] sm:$0xff]
  %v6814 = vld [vmem:[%s9 + $0xb0] sm:$0xff]
  %v6815 = vld [vmem:[%s9 + $0xb8] sm:$0xff]
  %v6816 = vld [vmem:[%s9 + $0xc0] sm:$0xff]
  %v6817 = vld [vmem:[%s9 + $0xc8] sm:$0xff]
  %v6818 = vld [vmem:[%s9 + $0xd0] sm:$0xff]
  %v6819 = vld [vmem:[%s9 + $0xd8] sm:$0xff]
  %v6820 = vld [vmem:[%s9 + $0xe0] sm:$0xff]
  %v6821 = vld [vmem:[%s9 + $0xe8] sm:$0xff]
  %v6822 = vld [vmem:[%s9 + $0xf0] sm:$0xff]
  %v6823 = vld [vmem:[%s9 + $0xf8] sm:$0xff]
  %v6824 = vld [vmem:[%s9 + $0x100] sm:$0xff]
  %v6825 = vld [vmem:[%s9 + $0x108] sm:$0xff]
  %v6826 = vld [vmem:[%s9 + $0x110] sm:$0xff]
  %v6827 = vld [vmem:[%s9 + $0x118] sm:$0xff]
  %v6828 = vld [vmem:[%s9 + $0x120] sm:$0xff]
  %v6829 = vld [vmem:[%s9 + $0x128] sm:$0xff]
  %v6830 = vld [vmem:[%s9 + $0x130] sm:$0xff]
  %v6831 = vld [vmem:[%s9 + $0x138] sm:$0xff]
  %v6832 = vld [vmem:[%s9 + $0x140] sm:$0xff]
  %v6833 = vld [vmem:[%s9 + $0x148] sm:$0xff]
  %v6834 = vld [vmem:[%s9 + $0x150] sm:$0xff]
  %v6835 = vld [vmem:[%s9 + $0x158] sm:$0xff]
  %v6836 = vld [vmem:[%s9 + $0x160] sm:$0xff]
  %v6837 = vld [vmem:[%s9 + $0x168] sm:$0xff]
  %v6838 = vld [vmem:[%s9 + $0x170] sm:$0xff]
  %v6839 = vld [vmem:[%s9 + $0x178] sm:$0xff]
  %v6840 = vld [vmem:[%s9 + $0x180] sm:$0xff]
  %v6841 = vld [vmem:[%s9 + $0x188] sm:$0xff]
  %v6842 = vld [vmem:[%s9 + $0x190] sm:$0xff]
  %v6843 = vld [vmem:[%s9 + $0x198] sm:$0xff]
  %v6844 = vld [vmem:[%s9 + $0x1a0] sm:$0xff]
  %v6845 = vld [vmem:[%s9 + $0x1a8] sm:$0xff]
  %v6846 = vld [vmem:[%s9 + $0x1b0] sm:$0xff]
  %v6847 = vld [vmem:[%s9 + $0x1b8] sm:$0xff]
  %v6848 = vld [vmem:[%s9 + $0x1c0] sm:$0xff]
  %v6849 = vld [vmem:[%s9 + $0x1c8] sm:$0xff]
  %v6850 = vld [vmem:[%s9 + $0x1d0] sm:$0xff]
  %v6851 = vld [vmem:[%s9 + $0x1d8] sm:$0xff]
  %v6852 = vld [vmem:[%s9 + $0x1e0] sm:$0xff]
  %v6853 = vld [vmem:[%s9 + $0x1e8] sm:$0xff]
  %v6854 = vld [vmem:[%s9 + $0x1f0] sm:$0xff]
  %v6855 = vld [vmem:[%s9 + $0x1f8] sm:$0xff]
  %v6856 = vpack.c.bf16 %v6788, %v6788
  %v6857 = vpack.c.bf16 %v6789, %v6789
  %v6858 = vpack.c.bf16 %v6790, %v6790
  %v6859 = vpack.c.bf16 %v6791, %v6791
  %v6860 = vld [vmem:[%s10] sm:$0x3]
  %v6862 = vlaneseq
  %v6863 = vshrl.u32 %v6862, 7
  %v6864 = vsub.s32 0, %v6863
  %v6865 = vrot.slane %v6860, %v6864
  %v6866 = vlaneseq
  %v6867 = vshrl.u32 %v6866, 7
  %v6868 = vsub.s32 1, %v6867
  %v6869 = vrot.slane %v6860, %v6868
  %v6936 = vunpack.c.l.b16 %v6792
  %v6937 = vunpack.c.h.b16 %v6792
  %v6938 = vunpack.c.l.b16 %v6793
  %v6939 = vunpack.c.h.b16 %v6793
  %v6940 = vunpack.c.l.b16 %v6794
  %v6941 = vunpack.c.h.b16 %v6794
  %v6942 = vunpack.c.l.b16 %v6795
  %v6943 = vunpack.c.h.b16 %v6795
  %v6944 = vunpack.c.l.b16 %v6796
  %v6945 = vunpack.c.h.b16 %v6796
  %v6946 = vunpack.c.l.b16 %v6797
  %v6947 = vunpack.c.h.b16 %v6797
  %v6948 = vunpack.c.l.b16 %v6798
  %v6949 = vunpack.c.h.b16 %v6798
  %v6950 = vunpack.c.l.b16 %v6799
  %v6951 = vunpack.c.h.b16 %v6799
  %v6952 = vunpack.c.l.b16 %v6800
  %v6953 = vunpack.c.h.b16 %v6800
  %v6954 = vunpack.c.l.b16 %v6801
  %v6955 = vunpack.c.h.b16 %v6801
  %v6956 = vunpack.c.l.b16 %v6802
  %v6957 = vunpack.c.h.b16 %v6802
  %v6958 = vunpack.c.l.b16 %v6803
  %v6959 = vunpack.c.h.b16 %v6803
  %v6960 = vunpack.c.l.b16 %v6804
  %v6961 = vunpack.c.h.b16 %v6804
  %v6962 = vunpack.c.l.b16 %v6805
  %v6963 = vunpack.c.h.b16 %v6805
  %v6964 = vunpack.c.l.b16 %v6806
  %v6965 = vunpack.c.h.b16 %v6806
  %v6966 = vunpack.c.l.b16 %v6807
  %v6967 = vunpack.c.h.b16 %v6807
  %v6968 = vunpack.c.l.b16 %v6808
  %v6969 = vunpack.c.h.b16 %v6808
  %v6970 = vunpack.c.l.b16 %v6809
  %v6971 = vunpack.c.h.b16 %v6809
  %v6972 = vunpack.c.l.b16 %v6810
  %v6973 = vunpack.c.h.b16 %v6810
  %v6974 = vunpack.c.l.b16 %v6811
  %v6975 = vunpack.c.h.b16 %v6811
  %v6976 = vunpack.c.l.b16 %v6812
  %v6977 = vunpack.c.h.b16 %v6812
  %v6978 = vunpack.c.l.b16 %v6813
  %v6979 = vunpack.c.h.b16 %v6813
  %v6980 = vunpack.c.l.b16 %v6814
  %v6981 = vunpack.c.h.b16 %v6814
  %v6982 = vunpack.c.l.b16 %v6815
  %v6983 = vunpack.c.h.b16 %v6815
  %v6984 = vunpack.c.l.b16 %v6816
  %v6985 = vunpack.c.h.b16 %v6816
  %v6986 = vunpack.c.l.b16 %v6817
  %v6987 = vunpack.c.h.b16 %v6817
  %v6988 = vunpack.c.l.b16 %v6818
  %v6989 = vunpack.c.h.b16 %v6818
  %v6990 = vunpack.c.l.b16 %v6819
  %v6991 = vunpack.c.h.b16 %v6819
  %v6992 = vunpack.c.l.b16 %v6820
  %v6993 = vunpack.c.h.b16 %v6820
  %v6994 = vunpack.c.l.b16 %v6821
  %v6995 = vunpack.c.h.b16 %v6821
  %v6996 = vunpack.c.l.b16 %v6822
  %v6997 = vunpack.c.h.b16 %v6822
  %v6998 = vunpack.c.l.b16 %v6823
  %v6999 = vunpack.c.h.b16 %v6823
  %v7000 = vunpack.c.l.b16 %v6824
  %v7001 = vunpack.c.h.b16 %v6824
  %v7002 = vunpack.c.l.b16 %v6825
  %v7003 = vunpack.c.h.b16 %v6825
  %v7004 = vunpack.c.l.b16 %v6826
  %v7005 = vunpack.c.h.b16 %v6826
  %v7006 = vunpack.c.l.b16 %v6827
  %v7007 = vunpack.c.h.b16 %v6827
  %v7008 = vunpack.c.l.b16 %v6828
  %v7009 = vunpack.c.h.b16 %v6828
  %v7010 = vunpack.c.l.b16 %v6829
  %v7011 = vunpack.c.h.b16 %v6829
  %v7012 = vunpack.c.l.b16 %v6830
  %v7013 = vunpack.c.h.b16 %v6830
  %v7014 = vunpack.c.l.b16 %v6831
  %v7015 = vunpack.c.h.b16 %v6831
  %v7016 = vunpack.c.l.b16 %v6832
  %v7017 = vunpack.c.h.b16 %v6832
  %v7018 = vunpack.c.l.b16 %v6833
  %v7019 = vunpack.c.h.b16 %v6833
  %v7020 = vunpack.c.l.b16 %v6834
  %v7021 = vunpack.c.h.b16 %v6834
  %v7022 = vunpack.c.l.b16 %v6835
  %v7023 = vunpack.c.h.b16 %v6835
  %v7024 = vunpack.c.l.b16 %v6836
  %v7025 = vunpack.c.h.b16 %v6836
  %v7026 = vunpack.c.l.b16 %v6837
  %v7027 = vunpack.c.h.b16 %v6837
  %v7028 = vunpack.c.l.b16 %v6838
  %v7029 = vunpack.c.h.b16 %v6838
  %v7030 = vunpack.c.l.b16 %v6839
  %v7031 = vunpack.c.h.b16 %v6839
  %v7032 = vunpack.c.l.b16 %v6840
  %v7033 = vunpack.c.h.b16 %v6840
  %v7034 = vunpack.c.l.b16 %v6841
  %v7035 = vunpack.c.h.b16 %v6841
  %v7036 = vunpack.c.l.b16 %v6842
  %v7037 = vunpack.c.h.b16 %v6842
  %v7038 = vunpack.c.l.b16 %v6843
  %v7039 = vunpack.c.h.b16 %v6843
  %v7040 = vunpack.c.l.b16 %v6844
  %v7041 = vunpack.c.h.b16 %v6844
  %v7042 = vunpack.c.l.b16 %v6845
  %v7043 = vunpack.c.h.b16 %v6845
  %v7044 = vunpack.c.l.b16 %v6846
  %v7045 = vunpack.c.h.b16 %v6846
  %v7046 = vunpack.c.l.b16 %v6847
  %v7047 = vunpack.c.h.b16 %v6847
  %v7048 = vunpack.c.l.b16 %v6848
  %v7049 = vunpack.c.h.b16 %v6848
  %v7050 = vunpack.c.l.b16 %v6849
  %v7051 = vunpack.c.h.b16 %v6849
  %v7052 = vunpack.c.l.b16 %v6850
  %v7053 = vunpack.c.h.b16 %v6850
  %v7054 = vunpack.c.l.b16 %v6851
  %v7055 = vunpack.c.h.b16 %v6851
  %v7056 = vunpack.c.l.b16 %v6852
  %v7057 = vunpack.c.h.b16 %v6852
  %v7058 = vunpack.c.l.b16 %v6853
  %v7059 = vunpack.c.h.b16 %v6853
  %v7060 = vunpack.c.l.b16 %v6854
  %v7061 = vunpack.c.h.b16 %v6854
  %v7062 = vunpack.c.l.b16 %v6855
  %v7063 = vunpack.c.h.b16 %v6855
  %v7064 = vpack.c.b16 %v6938, %v6936
  %v7065 = vpack.c.b16 %v6939, %v6937
  %v7066 = vpack.c.b16 %v6942, %v6940
  %v7067 = vpack.c.b16 %v6943, %v6941
  %v7068 = vpack.c.b16 %v6946, %v6944
  %v7069 = vpack.c.b16 %v6947, %v6945
  %v7070 = vpack.c.b16 %v6950, %v6948
  %v7071 = vpack.c.b16 %v6951, %v6949
  %v7072 = vpack.c.b16 %v6954, %v6952
  %v7073 = vpack.c.b16 %v6955, %v6953
  %v7074 = vpack.c.b16 %v6958, %v6956
  %v7075 = vpack.c.b16 %v6959, %v6957
  %v7076 = vpack.c.b16 %v6962, %v6960
  %v7077 = vpack.c.b16 %v6963, %v6961
  %v7078 = vpack.c.b16 %v6966, %v6964
  %v7079 = vpack.c.b16 %v6967, %v6965
  %v7080 = vpack.c.b16 %v6970, %v6968
  %v7081 = vpack.c.b16 %v6971, %v6969
  %v7082 = vpack.c.b16 %v6974, %v6972
  %v7083 = vpack.c.b16 %v6975, %v6973
  %v7084 = vpack.c.b16 %v6978, %v6976
  %v7085 = vpack.c.b16 %v6979, %v6977
  %v7086 = vpack.c.b16 %v6982, %v6980
  %v7087 = vpack.c.b16 %v6983, %v6981
  %v7088 = vpack.c.b16 %v6986, %v6984
  %v7089 = vpack.c.b16 %v6987, %v6985
  %v7090 = vpack.c.b16 %v6990, %v6988
  %v7091 = vpack.c.b16 %v6991, %v6989
  %v7092 = vpack.c.b16 %v6994, %v6992
  %v7093 = vpack.c.b16 %v6995, %v6993
  %v7094 = vpack.c.b16 %v6998, %v6996
  %v7095 = vpack.c.b16 %v6999, %v6997
  %v7096 = vpack.c.b16 %v7002, %v7000
  %v7097 = vpack.c.b16 %v7003, %v7001
  %v7098 = vpack.c.b16 %v7006, %v7004
  %v7099 = vpack.c.b16 %v7007, %v7005
  %v7100 = vpack.c.b16 %v7010, %v7008
  %v7101 = vpack.c.b16 %v7011, %v7009
  %v7102 = vpack.c.b16 %v7014, %v7012
  %v7103 = vpack.c.b16 %v7015, %v7013
  %v7104 = vpack.c.b16 %v7018, %v7016
  %v7105 = vpack.c.b16 %v7019, %v7017
  %v7106 = vpack.c.b16 %v7022, %v7020
  %v7107 = vpack.c.b16 %v7023, %v7021
  %v7108 = vpack.c.b16 %v7026, %v7024
  %v7109 = vpack.c.b16 %v7027, %v7025
  %v7110 = vpack.c.b16 %v7030, %v7028
  %v7111 = vpack.c.b16 %v7031, %v7029
  %v7112 = vpack.c.b16 %v7034, %v7032
  %v7113 = vpack.c.b16 %v7035, %v7033
  %v7114 = vpack.c.b16 %v7038, %v7036
  %v7115 = vpack.c.b16 %v7039, %v7037
  %v7116 = vpack.c.b16 %v7042, %v7040
  %v7117 = vpack.c.b16 %v7043, %v7041
  %v7118 = vpack.c.b16 %v7046, %v7044
  %v7119 = vpack.c.b16 %v7047, %v7045
  %v7120 = vpack.c.b16 %v7050, %v7048
  %v7121 = vpack.c.b16 %v7051, %v7049
  %v7122 = vpack.c.b16 %v7054, %v7052
  %v7123 = vpack.c.b16 %v7055, %v7053
  %v7124 = vpack.c.b16 %v7058, %v7056
  %v7125 = vpack.c.b16 %v7059, %v7057
  %v7126 = vpack.c.b16 %v7062, %v7060
  %v7127 = vpack.c.b16 %v7063, %v7061
  %7192 = vmatprep.subr.bf16.mxu0 %v7065
  %7193 = vmatpush1.bf16.msra.mxu0 %v7064
  %7194 = vmatprep.subr.bf16.mxu0 %v7067
  %7195 = vmatpush1.bf16.msra.mxu0 %v7066
  %7196 = vmatprep.subr.bf16.mxu0 %v7069
  %7197 = vmatpush1.bf16.msra.mxu0 %v7068
  %7198 = vmatprep.subr.bf16.mxu0 %v7071
  %7199 = vmatpush1.bf16.msra.mxu0 %v7070
  %7200 = vmatprep.subr.bf16.mxu0 %v7073
  %7201 = vmatpush1.bf16.msra.mxu0 %v7072
  %7202 = vmatprep.subr.bf16.mxu0 %v7075
  %7203 = vmatpush1.bf16.msra.mxu0 %v7074
  %7204 = vmatprep.subr.bf16.mxu0 %v7077
  %7205 = vmatpush1.bf16.msra.mxu0 %v7076
  %7206 = vmatprep.subr.bf16.mxu0 %v7079
  %7207 = vmatpush1.bf16.msra.mxu0 %v7078
  %7208 = vmatprep.subr.bf16.mxu0 %v7081
  %7209 = vmatpush1.bf16.msra.mxu0 %v7080
  %7210 = vmatprep.subr.bf16.mxu0 %v7083
  %7211 = vmatpush1.bf16.msra.mxu0 %v7082
  %7212 = vmatprep.subr.bf16.mxu0 %v7085
  %7213 = vmatpush1.bf16.msra.mxu0 %v7084
  %7214 = vmatprep.subr.bf16.mxu0 %v7087
  %7215 = vmatpush1.bf16.msra.mxu0 %v7086
  %7216 = vmatprep.subr.bf16.mxu0 %v7089
  %7217 = vmatpush1.bf16.msra.mxu0 %v7088
  %7218 = vmatprep.subr.bf16.mxu0 %v7091
  %7219 = vmatpush1.bf16.msra.mxu0 %v7090
  %7220 = vmatprep.subr.bf16.mxu0 %v7093
  %7221 = vmatpush1.bf16.msra.mxu0 %v7092
  %7222 = vmatprep.subr.bf16.mxu0 %v7095
  %7223 = vmatpush1.bf16.msra.mxu0 %v7094
  %7224 = vmatprep.mubr.bf16.mxu0 %v6857
  %7225 = vmatmul.mubr.bf16.gmra.mrb[0].mxu0 %v6856
  %v7226 = vpop.f32.mrb[0].mxu0
  %v7227 = vadd.f32 %v6865, %v7226
  %v7228 = vpop.f32.mrb[0].mxu0
  %v7229 = vadd.f32 %v6869, %v7228
  %v7230 = vpop.f32.mrb[0].mxu0
  %v7231 = vpop.f32.mrb[0].mxu0
  %7232 = vdwg.mxu0
  %7233 = vmatprep.subr.bf16.mxu0 %v7097
  %7234 = vmatpush1.bf16.msra.mxu0 %v7096
  %7235 = vmatprep.subr.bf16.mxu0 %v7099
  %7236 = vmatpush1.bf16.msra.mxu0 %v7098
  %7237 = vmatprep.subr.bf16.mxu0 %v7101
  %7238 = vmatpush1.bf16.msra.mxu0 %v7100
  %7239 = vmatprep.subr.bf16.mxu0 %v7103
  %7240 = vmatpush1.bf16.msra.mxu0 %v7102
  %7241 = vmatprep.subr.bf16.mxu0 %v7105
  %7242 = vmatpush1.bf16.msra.mxu0 %v7104
  %7243 = vmatprep.subr.bf16.mxu0 %v7107
  %7244 = vmatpush1.bf16.msra.mxu0 %v7106
  %7245 = vmatprep.subr.bf16.mxu0 %v7109
  %7246 = vmatpush1.bf16.msra.mxu0 %v7108
  %7247 = vmatprep.subr.bf16.mxu0 %v7111
  %7248 = vmatpush1.bf16.msra.mxu0 %v7110
  %7249 = vmatprep.subr.bf16.mxu0 %v7113
  %7250 = vmatpush1.bf16.msra.mxu0 %v7112
  %7251 = vmatprep.subr.bf16.mxu0 %v7115
  %7252 = vmatpush1.bf16.msra.mxu0 %v7114
  %7253 = vmatprep.subr.bf16.mxu0 %v7117
  %7254 = vmatpush1.bf16.msra.mxu0 %v7116
  %7255 = vmatprep.subr.bf16.mxu0 %v7119
  %7256 = vmatpush1.bf16.msra.mxu0 %v7118
  %7257 = vmatprep.subr.bf16.mxu0 %v7121
  %7258 = vmatpush1.bf16.msra.mxu0 %v7120
  %7259 = vmatprep.subr.bf16.mxu0 %v7123
  %7260 = vmatpush1.bf16.msra.mxu0 %v7122
  %7261 = vmatprep.subr.bf16.mxu0 %v7125
  %7262 = vmatpush1.bf16.msra.mxu0 %v7124
  %7263 = vmatprep.subr.bf16.mxu0 %v7127
  %7264 = vmatpush1.bf16.msra.mxu0 %v7126
  %7265 = vmatprep.mubr.bf16.mxu0 %v6859
  %7266 = vmatmul.mubr.bf16.gmra.mrb[0].mxu0 %v6858
  %v7267 = vpop.f32.mrb[0].mxu0
  %v7268 = vadd.f32 %v7227, %v7267
  %v7269 = vpop.f32.mrb[0].mxu0
  %v7270 = vadd.f32 %v7229, %v7269
  %v7271 = vpop.f32.mrb[0].mxu0
  %v7272 = vpop.f32.mrb[0].mxu0
  %7273 = vdwg.mxu0
  %v7274 = vmax.f32 %v7268, 0.0
  %v7275 = vmax.f32 %v7270, 0.0
  %s7276 = scalar_lea.vmem %s9, 512
  %v7277 = vld [vmem:[%s7276] sm:$0xff]
  %v7278 = vld [vmem:[%s7276 + $0x8] sm:$0xff]
  %v7279 = vld [vmem:[%s7276 + $0x10] sm:$0xff]
  %v7280 = vld [vmem:[%s7276 + $0x18] sm:$0xff]
  %v7281 = vld [vmem:[%s7276 + $0x20] sm:$0xff]
  %v7282 = vld [vmem:[%s7276 + $0x28] sm:$0xff]
  %v7283 = vld [vmem:[%s7276 + $0x30] sm:$0xff]
  %v7284 = vld [vmem:[%s7276 + $0x38] sm:$0xff]
  %v7285 = vld [vmem:[%s7276 + $0x40] sm:$0xff]
  %v7286 = vld [vmem:[%s7276 + $0x48] sm:$0xff]
  %v7287 = vld [vmem:[%s7276 + $0x50] sm:$0xff]
  %v7288 = vld [vmem:[%s7276 + $0x58] sm:$0xff]
  %v7289 = vld [vmem:[%s7276 + $0x60] sm:$0xff]
  %v7290 = vld [vmem:[%s7276 + $0x68] sm:$0xff]
  %v7291 = vld [vmem:[%s7276 + $0x70] sm:$0xff]
  %v7292 = vld [vmem:[%s7276 + $0x78] sm:$0xff]
  %v7293 = vld [vmem:[%s7276 + $0x80] sm:$0xff]
  %v7294 = vld [vmem:[%s7276 + $0x88] sm:$0xff]
  %v7295 = vld [vmem:[%s7276 + $0x90] sm:$0xff]
  %v7296 = vld [vmem:[%s7276 + $0x98] sm:$0xff]
  %v7297 = vld [vmem:[%s7276 + $0xa0] sm:$0xff]
  %v7298 = vld [vmem:[%s7276 + $0xa8] sm:$0xff]
  %v7299 = vld [vmem:[%s7276 + $0xb0] sm:$0xff]
  %v7300 = vld [vmem:[%s7276 + $0xb8] sm:$0xff]
  %v7301 = vld [vmem:[%s7276 + $0xc0] sm:$0xff]
  %v7302 = vld [vmem:[%s7276 + $0xc8] sm:$0xff]
  %v7303 = vld [vmem:[%s7276 + $0xd0] sm:$0xff]
  %v7304 = vld [vmem:[%s7276 + $0xd8] sm:$0xff]
  %v7305 = vld [vmem:[%s7276 + $0xe0] sm:$0xff]
  %v7306 = vld [vmem:[%s7276 + $0xe8] sm:$0xff]
  %v7307 = vld [vmem:[%s7276 + $0xf0] sm:$0xff]
  %v7308 = vld [vmem:[%s7276 + $0xf8] sm:$0xff]
  %v7309 = vld [vmem:[%s7276 + $0x100] sm:$0xff]
  %v7310 = vld [vmem:[%s7276 + $0x108] sm:$0xff]
  %v7311 = vld [vmem:[%s7276 + $0x110] sm:$0xff]
  %v7312 = vld [vmem:[%s7276 + $0x118] sm:$0xff]
  %v7313 = vld [vmem:[%s7276 + $0x120] sm:$0xff]
  %v7314 = vld [vmem:[%s7276 + $0x128] sm:$0xff]
  %v7315 = vld [vmem:[%s7276 + $0x130] sm:$0xff]
  %v7316 = vld [vmem:[%s7276 + $0x138] sm:$0xff]
  %v7317 = vld [vmem:[%s7276 + $0x140] sm:$0xff]
  %v7318 = vld [vmem:[%s7276 + $0x148] sm:$0xff]
  %v7319 = vld [vmem:[%s7276 + $0x150] sm:$0xff]
  %v7320 = vld [vmem:[%s7276 + $0x158] sm:$0xff]
  %v7321 = vld [vmem:[%s7276 + $0x160] sm:$0xff]
  %v7322 = vld [vmem:[%s7276 + $0x168] sm:$0xff]
  %v7323 = vld [vmem:[%s7276 + $0x170] sm:$0xff]
  %v7324 = vld [vmem:[%s7276 + $0x178] sm:$0xff]
  %v7325 = vld [vmem:[%s7276 + $0x180] sm:$0xff]
  %v7326 = vld [vmem:[%s7276 + $0x188] sm:$0xff]
  %v7327 = vld [vmem:[%s7276 + $0x190] sm:$0xff]
  %v7328 = vld [vmem:[%s7276 + $0x198] sm:$0xff]
  %v7329 = vld [vmem:[%s7276 + $0x1a0] sm:$0xff]
  %v7330 = vld [vmem:[%s7276 + $0x1a8] sm:$0xff]
  %v7331 = vld [vmem:[%s7276 + $0x1b0] sm:$0xff]
  %v7332 = vld [vmem:[%s7276 + $0x1b8] sm:$0xff]
  %v7333 = vld [vmem:[%s7276 + $0x1c0] sm:$0xff]
  %v7334 = vld [vmem:[%s7276 + $0x1c8] sm:$0xff]
  %v7335 = vld [vmem:[%s7276 + $0x1d0] sm:$0xff]
  %v7336 = vld [vmem:[%s7276 + $0x1d8] sm:$0xff]
  %v7337 = vld [vmem:[%s7276 + $0x1e0] sm:$0xff]
  %v7338 = vld [vmem:[%s7276 + $0x1e8] sm:$0xff]
  %v7339 = vld [vmem:[%s7276 + $0x1f0] sm:$0xff]
  %v7340 = vld [vmem:[%s7276 + $0x1f8] sm:$0xff]
  %s7341 = scalar_lea.vmem %s10, 2
  %v7342 = vld [vmem:[%s7341] sm:$0x3]
  %v7344 = vlaneseq
  %v7345 = vshrl.u32 %v7344, 7
  %v7346 = vsub.s32 0, %v7345
  %v7347 = vrot.slane %v7342, %v7346
  %v7348 = vlaneseq
  %v7349 = vshrl.u32 %v7348, 7
  %v7350 = vsub.s32 1, %v7349
  %v7351 = vrot.slane %v7342, %v7350
  %v7418 = vunpack.c.l.b16 %v7277
  %v7419 = vunpack.c.h.b16 %v7277
  %v7420 = vunpack.c.l.b16 %v7278
  %v7421 = vunpack.c.h.b16 %v7278
  %v7422 = vunpack.c.l.b16 %v7279
  %v7423 = vunpack.c.h.b16 %v7279
  %v7424 = vunpack.c.l.b16 %v7280
  %v7425 = vunpack.c.h.b16 %v7280
  %v7426 = vunpack.c.l.b16 %v7281
  %v7427 = vunpack.c.h.b16 %v7281
  %v7428 = vunpack.c.l.b16 %v7282
  %v7429 = vunpack.c.h.b16 %v7282
  %v7430 = vunpack.c.l.b16 %v7283
  %v7431 = vunpack.c.h.b16 %v7283
  %v7432 = vunpack.c.l.b16 %v7284
  %v7433 = vunpack.c.h.b16 %v7284
  %v7434 = vunpack.c.l.b16 %v7285
  %v7435 = vunpack.c.h.b16 %v7285
  %v7436 = vunpack.c.l.b16 %v7286
  %v7437 = vunpack.c.h.b16 %v7286
  %v7438 = vunpack.c.l.b16 %v7287
  %v7439 = vunpack.c.h.b16 %v7287
  %v7440 = vunpack.c.l.b16 %v7288
  %v7441 = vunpack.c.h.b16 %v7288
  %v7442 = vunpack.c.l.b16 %v7289
  %v7443 = vunpack.c.h.b16 %v7289
  %v7444 = vunpack.c.l.b16 %v7290
  %v7445 = vunpack.c.h.b16 %v7290
  %v7446 = vunpack.c.l.b16 %v7291
  %v7447 = vunpack.c.h.b16 %v7291
  %v7448 = vunpack.c.l.b16 %v7292
  %v7449 = vunpack.c.h.b16 %v7292
  %v7450 = vunpack.c.l.b16 %v7293
  %v7451 = vunpack.c.h.b16 %v7293
  %v7452 = vunpack.c.l.b16 %v7294
  %v7453 = vunpack.c.h.b16 %v7294
  %v7454 = vunpack.c.l.b16 %v7295
  %v7455 = vunpack.c.h.b16 %v7295
  %v7456 = vunpack.c.l.b16 %v7296
  %v7457 = vunpack.c.h.b16 %v7296
  %v7458 = vunpack.c.l.b16 %v7297
  %v7459 = vunpack.c.h.b16 %v7297
  %v7460 = vunpack.c.l.b16 %v7298
  %v7461 = vunpack.c.h.b16 %v7298
  %v7462 = vunpack.c.l.b16 %v7299
  %v7463 = vunpack.c.h.b16 %v7299
  %v7464 = vunpack.c.l.b16 %v7300
  %v7465 = vunpack.c.h.b16 %v7300
  %v7466 = vunpack.c.l.b16 %v7301
  %v7467 = vunpack.c.h.b16 %v7301
  %v7468 = vunpack.c.l.b16 %v7302
  %v7469 = vunpack.c.h.b16 %v7302
  %v7470 = vunpack.c.l.b16 %v7303
  %v7471 = vunpack.c.h.b16 %v7303
  %v7472 = vunpack.c.l.b16 %v7304
  %v7473 = vunpack.c.h.b16 %v7304
  %v7474 = vunpack.c.l.b16 %v7305
  %v7475 = vunpack.c.h.b16 %v7305
  %v7476 = vunpack.c.l.b16 %v7306
  %v7477 = vunpack.c.h.b16 %v7306
  %v7478 = vunpack.c.l.b16 %v7307
  %v7479 = vunpack.c.h.b16 %v7307
  %v7480 = vunpack.c.l.b16 %v7308
  %v7481 = vunpack.c.h.b16 %v7308
  %v7482 = vunpack.c.l.b16 %v7309
  %v7483 = vunpack.c.h.b16 %v7309
  %v7484 = vunpack.c.l.b16 %v7310
  %v7485 = vunpack.c.h.b16 %v7310
  %v7486 = vunpack.c.l.b16 %v7311
  %v7487 = vunpack.c.h.b16 %v7311
  %v7488 = vunpack.c.l.b16 %v7312
  %v7489 = vunpack.c.h.b16 %v7312
  %v7490 = vunpack.c.l.b16 %v7313
  %v7491 = vunpack.c.h.b16 %v7313
  %v7492 = vunpack.c.l.b16 %v7314
  %v7493 = vunpack.c.h.b16 %v7314
  %v7494 = vunpack.c.l.b16 %v7315
  %v7495 = vunpack.c.h.b16 %v7315
  %v7496 = vunpack.c.l.b16 %v7316
  %v7497 = vunpack.c.h.b16 %v7316
  %v7498 = vunpack.c.l.b16 %v7317
  %v7499 = vunpack.c.h.b16 %v7317
  %v7500 = vunpack.c.l.b16 %v7318
  %v7501 = vunpack.c.h.b16 %v7318
  %v7502 = vunpack.c.l.b16 %v7319
  %v7503 = vunpack.c.h.b16 %v7319
  %v7504 = vunpack.c.l.b16 %v7320
  %v7505 = vunpack.c.h.b16 %v7320
  %v7506 = vunpack.c.l.b16 %v7321
  %v7507 = vunpack.c.h.b16 %v7321
  %v7508 = vunpack.c.l.b16 %v7322
  %v7509 = vunpack.c.h.b16 %v7322
  %v7510 = vunpack.c.l.b16 %v7323
  %v7511 = vunpack.c.h.b16 %v7323
  %v7512 = vunpack.c.l.b16 %v7324
  %v7513 = vunpack.c.h.b16 %v7324
  %v7514 = vunpack.c.l.b16 %v7325
  %v7515 = vunpack.c.h.b16 %v7325
  %v7516 = vunpack.c.l.b16 %v7326
  %v7517 = vunpack.c.h.b16 %v7326
  %v7518 = vunpack.c.l.b16 %v7327
  %v7519 = vunpack.c.h.b16 %v7327
  %v7520 = vunpack.c.l.b16 %v7328
  %v7521 = vunpack.c.h.b16 %v7328
  %v7522 = vunpack.c.l.b16 %v7329
  %v7523 = vunpack.c.h.b16 %v7329
  %v7524 = vunpack.c.l.b16 %v7330
  %v7525 = vunpack.c.h.b16 %v7330
  %v7526 = vunpack.c.l.b16 %v7331
  %v7527 = vunpack.c.h.b16 %v7331
  %v7528 = vunpack.c.l.b16 %v7332
  %v7529 = vunpack.c.h.b16 %v7332
  %v7530 = vunpack.c.l.b16 %v7333
  %v7531 = vunpack.c.h.b16 %v7333
  %v7532 = vunpack.c.l.b16 %v7334
  %v7533 = vunpack.c.h.b16 %v7334
  %v7534 = vunpack.c.l.b16 %v7335
  %v7535 = vunpack.c.h.b16 %v7335
  %v7536 = vunpack.c.l.b16 %v7336
  %v7537 = vunpack.c.h.b16 %v7336
  %v7538 = vunpack.c.l.b16 %v7337
  %v7539 = vunpack.c.h.b16 %v7337
  %v7540 = vunpack.c.l.b16 %v7338
  %v7541 = vunpack.c.h.b16 %v7338
  %v7542 = vunpack.c.l.b16 %v7339
  %v7543 = vunpack.c.h.b16 %v7339
  %v7544 = vunpack.c.l.b16 %v7340
  %v7545 = vunpack.c.h.b16 %v7340
  %v7546 = vpack.c.b16 %v7420, %v7418
  %v7547 = vpack.c.b16 %v7421, %v7419
  %v7548 = vpack.c.b16 %v7424, %v7422
  %v7549 = vpack.c.b16 %v7425, %v7423
  %v7550 = vpack.c.b16 %v7428, %v7426
  %v7551 = vpack.c.b16 %v7429, %v7427
  %v7552 = vpack.c.b16 %v7432, %v7430
  %v7553 = vpack.c.b16 %v7433, %v7431
  %v7554 = vpack.c.b16 %v7436, %v7434
  %v7555 = vpack.c.b16 %v7437, %v7435
  %v7556 = vpack.c.b16 %v7440, %v7438
  %v7557 = vpack.c.b16 %v7441, %v7439
  %v7558 = vpack.c.b16 %v7444, %v7442
  %v7559 = vpack.c.b16 %v7445, %v7443
  %v7560 = vpack.c.b16 %v7448, %v7446
  %v7561 = vpack.c.b16 %v7449, %v7447
  %v7562 = vpack.c.b16 %v7452, %v7450
  %v7563 = vpack.c.b16 %v7453, %v7451
  %v7564 = vpack.c.b16 %v7456, %v7454
  %v7565 = vpack.c.b16 %v7457, %v7455
  %v7566 = vpack.c.b16 %v7460, %v7458
  %v7567 = vpack.c.b16 %v7461, %v7459
  %v7568 = vpack.c.b16 %v7464, %v7462
  %v7569 = vpack.c.b16 %v7465, %v7463
  %v7570 = vpack.c.b16 %v7468, %v7466
  %v7571 = vpack.c.b16 %v7469, %v7467
  %v7572 = vpack.c.b16 %v7472, %v7470
  %v7573 = vpack.c.b16 %v7473, %v7471
  %v7574 = vpack.c.b16 %v7476, %v7474
  %v7575 = vpack.c.b16 %v7477, %v7475
  %v7576 = vpack.c.b16 %v7480, %v7478
  %v7577 = vpack.c.b16 %v7481, %v7479
  %v7578 = vpack.c.b16 %v7484, %v7482
  %v7579 = vpack.c.b16 %v7485, %v7483
  %v7580 = vpack.c.b16 %v7488, %v7486
  %v7581 = vpack.c.b16 %v7489, %v7487
  %v7582 = vpack.c.b16 %v7492, %v7490
  %v7583 = vpack.c.b16 %v7493, %v7491
  %v7584 = vpack.c.b16 %v7496, %v7494
  %v7585 = vpack.c.b16 %v7497, %v7495
  %v7586 = vpack.c.b16 %v7500, %v7498
  %v7587 = vpack.c.b16 %v7501, %v7499
  %v7588 = vpack.c.b16 %v7504, %v7502
  %v7589 = vpack.c.b16 %v7505, %v7503
  %v7590 = vpack.c.b16 %v7508, %v7506
  %v7591 = vpack.c.b16 %v7509, %v7507
  %v7592 = vpack.c.b16 %v7512, %v7510
  %v7593 = vpack.c.b16 %v7513, %v7511
  %v7594 = vpack.c.b16 %v7516, %v7514
  %v7595 = vpack.c.b16 %v7517, %v7515
  %v7596 = vpack.c.b16 %v7520, %v7518
  %v7597 = vpack.c.b16 %v7521, %v7519
  %v7598 = vpack.c.b16 %v7524, %v7522
  %v7599 = vpack.c.b16 %v7525, %v7523
  %v7600 = vpack.c.b16 %v7528, %v7526
  %v7601 = vpack.c.b16 %v7529, %v7527
  %v7602 = vpack.c.b16 %v7532, %v7530
  %v7603 = vpack.c.b16 %v7533, %v7531
  %v7604 = vpack.c.b16 %v7536, %v7534
  %v7605 = vpack.c.b16 %v7537, %v7535
  %v7606 = vpack.c.b16 %v7540, %v7538
  %v7607 = vpack.c.b16 %v7541, %v7539
  %v7608 = vpack.c.b16 %v7544, %v7542
  %v7609 = vpack.c.b16 %v7545, %v7543
  %7674 = vmatprep.subr.bf16.mxu0 %v7547
  %7675 = vmatpush1.bf16.msra.mxu0 %v7546
  %7676 = vmatprep.subr.bf16.mxu0 %v7549
  %7677 = vmatpush1.bf16.msra.mxu0 %v7548
  %7678 = vmatprep.subr.bf16.mxu0 %v7551
  %7679 = vmatpush1.bf16.msra.mxu0 %v7550
  %7680 = vmatprep.subr.bf16.mxu0 %v7553
  %7681 = vmatpush1.bf16.msra.mxu0 %v7552
  %7682 = vmatprep.subr.bf16.mxu0 %v7555
  %7683 = vmatpush1.bf16.msra.mxu0 %v7554
  %7684 = vmatprep.subr.bf16.mxu0 %v7557
  %7685 = vmatpush1.bf16.msra.mxu0 %v7556
  %7686 = vmatprep.subr.bf16.mxu0 %v7559
  %7687 = vmatpush1.bf16.msra.mxu0 %v7558
  %7688 = vmatprep.subr.bf16.mxu0 %v7561
  %7689 = vmatpush1.bf16.msra.mxu0 %v7560
  %7690 = vmatprep.subr.bf16.mxu0 %v7563
  %7691 = vmatpush1.bf16.msra.mxu0 %v7562
  %7692 = vmatprep.subr.bf16.mxu0 %v7565
  %7693 = vmatpush1.bf16.msra.mxu0 %v7564
  %7694 = vmatprep.subr.bf16.mxu0 %v7567
  %7695 = vmatpush1.bf16.msra.mxu0 %v7566
  %7696 = vmatprep.subr.bf16.mxu0 %v7569
  %7697 = vmatpush1.bf16.msra.mxu0 %v7568
  %7698 = vmatprep.subr.bf16.mxu0 %v7571
  %7699 = vmatpush1.bf16.msra.mxu0 %v7570
  %7700 = vmatprep.subr.bf16.mxu0 %v7573
  %7701 = vmatpush1.bf16.msra.mxu0 %v7572
  %7702 = vmatprep.subr.bf16.mxu0 %v7575
  %7703 = vmatpush1.bf16.msra.mxu0 %v7574
  %7704 = vmatprep.subr.bf16.mxu0 %v7577
  %7705 = vmatpush1.bf16.msra.mxu0 %v7576
  %7706 = vmatprep.mubr.bf16.mxu0 %v6857
  %7707 = vmatmul.mubr.bf16.gmra.mrb[0].mxu0 %v6856
  %v7708 = vpop.f32.mrb[0].mxu0
  %v7709 = vadd.f32 %v7347, %v7708
  %v7710 = vpop.f32.mrb[0].mxu0
  %v7711 = vadd.f32 %v7351, %v7710
  %v7712 = vpop.f32.mrb[0].mxu0
  %v7713 = vpop.f32.mrb[0].mxu0
  %7714 = vdwg.mxu0
  %7715 = vmatprep.subr.bf16.mxu0 %v7579
  %7716 = vmatpush1.bf16.msra.mxu0 %v7578
  %7717 = vmatprep.subr.bf16.mxu0 %v7581
  %7718 = vmatpush1.bf16.msra.mxu0 %v7580
  %7719 = vmatprep.subr.bf16.mxu0 %v7583
  %7720 = vmatpush1.bf16.msra.mxu0 %v7582
  %7721 = vmatprep.subr.bf16.mxu0 %v7585
  %7722 = vmatpush1.bf16.msra.mxu0 %v7584
  %7723 = vmatprep.subr.bf16.mxu0 %v7587
  %7724 = vmatpush1.bf16.msra.mxu0 %v7586
  %7725 = vmatprep.subr.bf16.mxu0 %v7589
  %7726 = vmatpush1.bf16.msra.mxu0 %v7588
  %7727 = vmatprep.subr.bf16.mxu0 %v7591
  %7728 = vmatpush1.bf16.msra.mxu0 %v7590
  %7729 = vmatprep.subr.bf16.mxu0 %v7593
  %7730 = vmatpush1.bf16.msra.mxu0 %v7592
  %7731 = vmatprep.subr.bf16.mxu0 %v7595
  %7732 = vmatpush1.bf16.msra.mxu0 %v7594
  %7733 = vmatprep.subr.bf16.mxu0 %v7597
  %7734 = vmatpush1.bf16.msra.mxu0 %v7596
  %7735 = vmatprep.subr.bf16.mxu0 %v7599
  %7736 = vmatpush1.bf16.msra.mxu0 %v7598
  %7737 = vmatprep.subr.bf16.mxu0 %v7601
  %7738 = vmatpush1.bf16.msra.mxu0 %v7600
  %7739 = vmatprep.subr.bf16.mxu0 %v7603
  %7740 = vmatpush1.bf16.msra.mxu0 %v7602
  %7741 = vmatprep.subr.bf16.mxu0 %v7605
  %7742 = vmatpush1.bf16.msra.mxu0 %v7604
  %7743 = vmatprep.subr.bf16.mxu0 %v7607
  %7744 = vmatpush1.bf16.msra.mxu0 %v7606
  %7745 = vmatprep.subr.bf16.mxu0 %v7609
  %7746 = vmatpush1.bf16.msra.mxu0 %v7608
  %7747 = vmatprep.mubr.bf16.mxu0 %v6859
  %7748 = vmatmul.mubr.bf16.gmra.mrb[0].mxu0 %v6858
  %v7749 = vpop.f32.mrb[0].mxu0
  %v7750 = vadd.f32 %v7709, %v7749
  %v7751 = vpop.f32.mrb[0].mxu0
  %v7752 = vadd.f32 %v7711, %v7751
  %v7753 = vpop.f32.mrb[0].mxu0
  %v7754 = vpop.f32.mrb[0].mxu0
  %7755 = vdwg.mxu0
  %v7756 = vmax.f32 %v7750, 0.0
  %v7757 = vmax.f32 %v7752, 0.0
  %s7758 = scalar_lea.vmem %s9, 1024
  %v7759 = vld [vmem:[%s7758] sm:$0xff]
  %v7760 = vld [vmem:[%s7758 + $0x8] sm:$0xff]
  %v7761 = vld [vmem:[%s7758 + $0x10] sm:$0xff]
  %v7762 = vld [vmem:[%s7758 + $0x18] sm:$0xff]
  %v7763 = vld [vmem:[%s7758 + $0x20] sm:$0xff]
  %v7764 = vld [vmem:[%s7758 + $0x28] sm:$0xff]
  %v7765 = vld [vmem:[%s7758 + $0x30] sm:$0xff]
  %v7766 = vld [vmem:[%s7758 + $0x38] sm:$0xff]
  %v7767 = vld [vmem:[%s7758 + $0x40] sm:$0xff]
  %v7768 = vld [vmem:[%s7758 + $0x48] sm:$0xff]
  %v7769 = vld [vmem:[%s7758 + $0x50] sm:$0xff]
  %v7770 = vld [vmem:[%s7758 + $0x58] sm:$0xff]
  %v7771 = vld [vmem:[%s7758 + $0x60] sm:$0xff]
  %v7772 = vld [vmem:[%s7758 + $0x68] sm:$0xff]
  %v7773 = vld [vmem:[%s7758 + $0x70] sm:$0xff]
  %v7774 = vld [vmem:[%s7758 + $0x78] sm:$0xff]
  %v7775 = vld [vmem:[%s7758 + $0x80] sm:$0xff]
  %v7776 = vld [vmem:[%s7758 + $0x88] sm:$0xff]
  %v7777 = vld [vmem:[%s7758 + $0x90] sm:$0xff]
  %v7778 = vld [vmem:[%s7758 + $0x98] sm:$0xff]
  %v7779 = vld [vmem:[%s7758 + $0xa0] sm:$0xff]
  %v7780 = vld [vmem:[%s7758 + $0xa8] sm:$0xff]
  %v7781 = vld [vmem:[%s7758 + $0xb0] sm:$0xff]
  %v7782 = vld [vmem:[%s7758 + $0xb8] sm:$0xff]
  %v7783 = vld [vmem:[%s7758 + $0xc0] sm:$0xff]
  %v7784 = vld [vmem:[%s7758 + $0xc8] sm:$0xff]
  %v7785 = vld [vmem:[%s7758 + $0xd0] sm:$0xff]
  %v7786 = vld [vmem:[%s7758 + $0xd8] sm:$0xff]
  %v7787 = vld [vmem:[%s7758 + $0xe0] sm:$0xff]
  %v7788 = vld [vmem:[%s7758 + $0xe8] sm:$0xff]
  %v7789 = vld [vmem:[%s7758 + $0xf0] sm:$0xff]
  %v7790 = vld [vmem:[%s7758 + $0xf8] sm:$0xff]
  %v7791 = vld [vmem:[%s7758 + $0x100] sm:$0xff]
  %v7792 = vld [vmem:[%s7758 + $0x108] sm:$0xff]
  %v7793 = vld [vmem:[%s7758 + $0x110] sm:$0xff]
  %v7794 = vld [vmem:[%s7758 + $0x118] sm:$0xff]
  %v7795 = vld [vmem:[%s7758 + $0x120] sm:$0xff]
  %v7796 = vld [vmem:[%s7758 + $0x128] sm:$0xff]
  %v7797 = vld [vmem:[%s7758 + $0x130] sm:$0xff]
  %v7798 = vld [vmem:[%s7758 + $0x138] sm:$0xff]
  %v7799 = vld [vmem:[%s7758 + $0x140] sm:$0xff]
  %v7800 = vld [vmem:[%s7758 + $0x148] sm:$0xff]
  %v7801 = vld [vmem:[%s7758 + $0x150] sm:$0xff]
  %v7802 = vld [vmem:[%s7758 + $0x158] sm:$0xff]
  %v7803 = vld [vmem:[%s7758 + $0x160] sm:$0xff]
  %v7804 = vld [vmem:[%s7758 + $0x168] sm:$0xff]
  %v7805 = vld [vmem:[%s7758 + $0x170] sm:$0xff]
  %v7806 = vld [vmem:[%s7758 + $0x178] sm:$0xff]
  %v7807 = vld [vmem:[%s7758 + $0x180] sm:$0xff]
  %v7808 = vld [vmem:[%s7758 + $0x188] sm:$0xff]
  %v7809 = vld [vmem:[%s7758 + $0x190] sm:$0xff]
  %v7810 = vld [vmem:[%s7758 + $0x198] sm:$0xff]
  %v7811 = vld [vmem:[%s7758 + $0x1a0] sm:$0xff]
  %v7812 = vld [vmem:[%s7758 + $0x1a8] sm:$0xff]
  %v7813 = vld [vmem:[%s7758 + $0x1b0] sm:$0xff]
  %v7814 = vld [vmem:[%s7758 + $0x1b8] sm:$0xff]
  %v7815 = vld [vmem:[%s7758 + $0x1c0] sm:$0xff]
  %v7816 = vld [vmem:[%s7758 + $0x1c8] sm:$0xff]
  %v7817 = vld [vmem:[%s7758 + $0x1d0] sm:$0xff]
  %v7818 = vld [vmem:[%s7758 + $0x1d8] sm:$0xff]
  %v7819 = vld [vmem:[%s7758 + $0x1e0] sm:$0xff]
  %v7820 = vld [vmem:[%s7758 + $0x1e8] sm:$0xff]
  %v7821 = vld [vmem:[%s7758 + $0x1f0] sm:$0xff]
  %v7822 = vld [vmem:[%s7758 + $0x1f8] sm:$0xff]
  %s7823 = scalar_lea.vmem %s10, 4
  %v7824 = vld [vmem:[%s7823] sm:$0x3]
  %v7826 = vlaneseq
  %v7827 = vshrl.u32 %v7826, 7
  %v7828 = vsub.s32 0, %v7827
  %v7829 = vrot.slane %v7824, %v7828
  %v7830 = vlaneseq
  %v7831 = vshrl.u32 %v7830, 7
  %v7832 = vsub.s32 1, %v7831
  %v7833 = vrot.slane %v7824, %v7832
  %v7900 = vunpack.c.l.b16 %v7759
  %v7901 = vunpack.c.h.b16 %v7759
  %v7902 = vunpack.c.l.b16 %v7760
  %v7903 = vunpack.c.h.b16 %v7760
  %v7904 = vunpack.c.l.b16 %v7761
  %v7905 = vunpack.c.h.b16 %v7761
  %v7906 = vunpack.c.l.b16 %v7762
  %v7907 = vunpack.c.h.b16 %v7762
  %v7908 = vunpack.c.l.b16 %v7763
  %v7909 = vunpack.c.h.b16 %v7763
  %v7910 = vunpack.c.l.b16 %v7764
  %v7911 = vunpack.c.h.b16 %v7764
  %v7912 = vunpack.c.l.b16 %v7765
  %v7913 = vunpack.c.h.b16 %v7765
  %v7914 = vunpack.c.l.b16 %v7766
  %v7915 = vunpack.c.h.b16 %v7766
  %v7916 = vunpack.c.l.b16 %v7767
  %v7917 = vunpack.c.h.b16 %v7767
  %v7918 = vunpack.c.l.b16 %v7768
  %v7919 = vunpack.c.h.b16 %v7768
  %v7920 = vunpack.c.l.b16 %v7769
  %v7921 = vunpack.c.h.b16 %v7769
  %v7922 = vunpack.c.l.b16 %v7770
  %v7923 = vunpack.c.h.b16 %v7770
  %v7924 = vunpack.c.l.b16 %v7771
  %v7925 = vunpack.c.h.b16 %v7771
  %v7926 = vunpack.c.l.b16 %v7772
  %v7927 = vunpack.c.h.b16 %v7772
  %v7928 = vunpack.c.l.b16 %v7773
  %v7929 = vunpack.c.h.b16 %v7773
  %v7930 = vunpack.c.l.b16 %v7774
  %v7931 = vunpack.c.h.b16 %v7774
  %v7932 = vunpack.c.l.b16 %v7775
  %v7933 = vunpack.c.h.b16 %v7775
  %v7934 = vunpack.c.l.b16 %v7776
  %v7935 = vunpack.c.h.b16 %v7776
  %v7936 = vunpack.c.l.b16 %v7777
  %v7937 = vunpack.c.h.b16 %v7777
  %v7938 = vunpack.c.l.b16 %v7778
  %v7939 = vunpack.c.h.b16 %v7778
  %v7940 = vunpack.c.l.b16 %v7779
  %v7941 = vunpack.c.h.b16 %v7779
  %v7942 = vunpack.c.l.b16 %v7780
  %v7943 = vunpack.c.h.b16 %v7780
  %v7944 = vunpack.c.l.b16 %v7781
  %v7945 = vunpack.c.h.b16 %v7781
  %v7946 = vunpack.c.l.b16 %v7782
  %v7947 = vunpack.c.h.b16 %v7782
  %v7948 = vunpack.c.l.b16 %v7783
  %v7949 = vunpack.c.h.b16 %v7783
  %v7950 = vunpack.c.l.b16 %v7784
  %v7951 = vunpack.c.h.b16 %v7784
  %v7952 = vunpack.c.l.b16 %v7785
  %v7953 = vunpack.c.h.b16 %v7785
  %v7954 = vunpack.c.l.b16 %v7786
  %v7955 = vunpack.c.h.b16 %v7786
  %v7956 = vunpack.c.l.b16 %v7787
  %v7957 = vunpack.c.h.b16 %v7787
  %v7958 = vunpack.c.l.b16 %v7788
  %v7959 = vunpack.c.h.b16 %v7788
  %v7960 = vunpack.c.l.b16 %v7789
  %v7961 = vunpack.c.h.b16 %v7789
  %v7962 = vunpack.c.l.b16 %v7790
  %v7963 = vunpack.c.h.b16 %v7790
  %v7964 = vunpack.c.l.b16 %v7791
  %v7965 = vunpack.c.h.b16 %v7791
  %v7966 = vunpack.c.l.b16 %v7792
  %v7967 = vunpack.c.h.b16 %v7792
  %v7968 = vunpack.c.l.b16 %v7793
  %v7969 = vunpack.c.h.b16 %v7793
  %v7970 = vunpack.c.l.b16 %v7794
  %v7971 = vunpack.c.h.b16 %v7794
  %v7972 = vunpack.c.l.b16 %v7795
  %v7973 = vunpack.c.h.b16 %v7795
  %v7974 = vunpack.c.l.b16 %v7796
  %v7975 = vunpack.c.h.b16 %v7796
  %v7976 = vunpack.c.l.b16 %v7797
  %v7977 = vunpack.c.h.b16 %v7797
  %v7978 = vunpack.c.l.b16 %v7798
  %v7979 = vunpack.c.h.b16 %v7798
  %v7980 = vunpack.c.l.b16 %v7799
  %v7981 = vunpack.c.h.b16 %v7799
  %v7982 = vunpack.c.l.b16 %v7800
  %v7983 = vunpack.c.h.b16 %v7800
  %v7984 = vunpack.c.l.b16 %v7801
  %v7985 = vunpack.c.h.b16 %v7801
  %v7986 = vunpack.c.l.b16 %v7802
  %v7987 = vunpack.c.h.b16 %v7802
  %v7988 = vunpack.c.l.b16 %v7803
  %v7989 = vunpack.c.h.b16 %v7803
  %v7990 = vunpack.c.l.b16 %v7804
  %v7991 = vunpack.c.h.b16 %v7804
  %v7992 = vunpack.c.l.b16 %v7805
  %v7993 = vunpack.c.h.b16 %v7805
  %v7994 = vunpack.c.l.b16 %v7806
  %v7995 = vunpack.c.h.b16 %v7806
  %v7996 = vunpack.c.l.b16 %v7807
  %v7997 = vunpack.c.h.b16 %v7807
  %v7998 = vunpack.c.l.b16 %v7808
  %v7999 = vunpack.c.h.b16 %v7808
  %v8000 = vunpack.c.l.b16 %v7809
  %v8001 = vunpack.c.h.b16 %v7809
  %v8002 = vunpack.c.l.b16 %v7810
  %v8003 = vunpack.c.h.b16 %v7810
  %v8004 = vunpack.c.l.b16 %v7811
  %v8005 = vunpack.c.h.b16 %v7811
  %v8006 = vunpack.c.l.b16 %v7812
  %v8007 = vunpack.c.h.b16 %v7812
  %v8008 = vunpack.c.l.b16 %v7813
  %v8009 = vunpack.c.h.b16 %v7813
  %v8010 = vunpack.c.l.b16 %v7814
  %v8011 = vunpack.c.h.b16 %v7814
  %v8012 = vunpack.c.l.b16 %v7815
  %v8013 = vunpack.c.h.b16 %v7815
  %v8014 = vunpack.c.l.b16 %v7816
  %v8015 = vunpack.c.h.b16 %v7816
  %v8016 = vunpack.c.l.b16 %v7817
  %v8017 = vunpack.c.h.b16 %v7817
  %v8018 = vunpack.c.l.b16 %v7818
  %v8019 = vunpack.c.h.b16 %v7818
  %v8020 = vunpack.c.l.b16 %v7819
  %v8021 = vunpack.c.h.b16 %v7819
  %v8022 = vunpack.c.l.b16 %v7820
  %v8023 = vunpack.c.h.b16 %v7820
  %v8024 = vunpack.c.l.b16 %v7821
  %v8025 = vunpack.c.h.b16 %v7821
  %v8026 = vunpack.c.l.b16 %v7822
  %v8027 = vunpack.c.h.b16 %v7822
  %v8028 = vpack.c.b16 %v7902, %v7900
  %v8029 = vpack.c.b16 %v7903, %v7901
  %v8030 = vpack.c.b16 %v7906, %v7904
  %v8031 = vpack.c.b16 %v7907, %v7905
  %v8032 = vpack.c.b16 %v7910, %v7908
  %v8033 = vpack.c.b16 %v7911, %v7909
  %v8034 = vpack.c.b16 %v7914, %v7912
  %v8035 = vpack.c.b16 %v7915, %v7913
  %v8036 = vpack.c.b16 %v7918, %v7916
  %v8037 = vpack.c.b16 %v7919, %v7917
  %v8038 = vpack.c.b16 %v7922, %v7920
  %v8039 = vpack.c.b16 %v7923, %v7921
  %v8040 = vpack.c.b16 %v7926, %v7924
  %v8041 = vpack.c.b16 %v7927, %v7925
  %v8042 = vpack.c.b16 %v7930, %v7928
  %v8043 = vpack.c.b16 %v7931, %v7929
  %v8044 = vpack.c.b16 %v7934, %v7932
  %v8045 = vpack.c.b16 %v7935, %v7933
  %v8046 = vpack.c.b16 %v7938, %v7936
  %v8047 = vpack.c.b16 %v7939, %v7937
  %v8048 = vpack.c.b16 %v7942, %v7940
  %v8049 = vpack.c.b16 %v7943, %v7941
  %v8050 = vpack.c.b16 %v7946, %v7944
  %v8051 = vpack.c.b16 %v7947, %v7945
  %v8052 = vpack.c.b16 %v7950, %v7948
  %v8053 = vpack.c.b16 %v7951, %v7949
  %v8054 = vpack.c.b16 %v7954, %v7952
  %v8055 = vpack.c.b16 %v7955, %v7953
  %v8056 = vpack.c.b16 %v7958, %v7956
  %v8057 = vpack.c.b16 %v7959, %v7957
  %v8058 = vpack.c.b16 %v7962, %v7960
  %v8059 = vpack.c.b16 %v7963, %v7961
  %v8060 = vpack.c.b16 %v7966, %v7964
  %v8061 = vpack.c.b16 %v7967, %v7965
  %v8062 = vpack.c.b16 %v7970, %v7968
  %v8063 = vpack.c.b16 %v7971, %v7969
  %v8064 = vpack.c.b16 %v7974, %v7972
  %v8065 = vpack.c.b16 %v7975, %v7973
  %v8066 = vpack.c.b16 %v7978, %v7976
  %v8067 = vpack.c.b16 %v7979, %v7977
  %v8068 = vpack.c.b16 %v7982, %v7980
  %v8069 = vpack.c.b16 %v7983, %v7981
  %v8070 = vpack.c.b16 %v7986, %v7984
  %v8071 = vpack.c.b16 %v7987, %v7985
  %v8072 = vpack.c.b16 %v7990, %v7988
  %v8073 = vpack.c.b16 %v7991, %v7989
  %v8074 = vpack.c.b16 %v7994, %v7992
  %v8075 = vpack.c.b16 %v7995, %v7993
  %v8076 = vpack.c.b16 %v7998, %v7996
  %v8077 = vpack.c.b16 %v7999, %v7997
  %v8078 = vpack.c.b16 %v8002, %v8000
  %v8079 = vpack.c.b16 %v8003, %v8001
  %v8080 = vpack.c.b16 %v8006, %v8004
  %v8081 = vpack.c.b16 %v8007, %v8005
  %v8082 = vpack.c.b16 %v8010, %v8008
  %v8083 = vpack.c.b16 %v8011, %v8009
  %v8084 = vpack.c.b16 %v8014, %v8012
  %v8085 = vpack.c.b16 %v8015, %v8013
  %v8086 = vpack.c.b16 %v8018, %v8016
  %v8087 = vpack.c.b16 %v8019, %v8017
  %v8088 = vpack.c.b16 %v8022, %v8020
  %v8089 = vpack.c.b16 %v8023, %v8021
  %v8090 = vpack.c.b16 %v8026, %v8024
  %v8091 = vpack.c.b16 %v8027, %v8025
  %8156 = vmatprep.subr.bf16.mxu0 %v8029
  %8157 = vmatpush1.bf16.msra.mxu0 %v8028
  %8158 = vmatprep.subr.bf16.mxu0 %v8031
  %8159 = vmatpush1.bf16.msra.mxu0 %v8030
  %8160 = vmatprep.subr.bf16.mxu0 %v8033
  %8161 = vmatpush1.bf16.msra.mxu0 %v8032
  %8162 = vmatprep.subr.bf16.mxu0 %v8035
  %8163 = vmatpush1.bf16.msra.mxu0 %v8034
  %8164 = vmatprep.subr.bf16.mxu0 %v8037
  %8165 = vmatpush1.bf16.msra.mxu0 %v8036
  %8166 = vmatprep.subr.bf16.mxu0 %v8039
  %8167 = vmatpush1.bf16.msra.mxu0 %v8038
  %8168 = vmatprep.subr.bf16.mxu0 %v8041
  %8169 = vmatpush1.bf16.msra.mxu0 %v8040
  %8170 = vmatprep.subr.bf16.mxu0 %v8043
  %8171 = vmatpush1.bf16.msra.mxu0 %v8042
  %8172 = vmatprep.subr.bf16.mxu0 %v8045
  %8173 = vmatpush1.bf16.msra.mxu0 %v8044
  %8174 = vmatprep.subr.bf16.mxu0 %v8047
  %8175 = vmatpush1.bf16.msra.mxu0 %v8046
  %8176 = vmatprep.subr.bf16.mxu0 %v8049
  %8177 = vmatpush1.bf16.msra.mxu0 %v8048
  %8178 = vmatprep.subr.bf16.mxu0 %v8051
  %8179 = vmatpush1.bf16.msra.mxu0 %v8050
  %8180 = vmatprep.subr.bf16.mxu0 %v8053
  %8181 = vmatpush1.bf16.msra.mxu0 %v8052
  %8182 = vmatprep.subr.bf16.mxu0 %v8055
  %8183 = vmatpush1.bf16.msra.mxu0 %v8054
  %8184 = vmatprep.subr.bf16.mxu0 %v8057
  %8185 = vmatpush1.bf16.msra.mxu0 %v8056
  %8186 = vmatprep.subr.bf16.mxu0 %v8059
  %8187 = vmatpush1.bf16.msra.mxu0 %v8058
  %8188 = vmatprep.mubr.bf16.mxu0 %v6857
  %8189 = vmatmul.mubr.bf16.gmra.mrb[0].mxu0 %v6856
  %v8190 = vpop.f32.mrb[0].mxu0
  %v8191 = vadd.f32 %v7829, %v8190
  %v8192 = vpop.f32.mrb[0].mxu0
  %v8193 = vadd.f32 %v7833, %v8192
  %v8194 = vpop.f32.mrb[0].mxu0
  %v8195 = vpop.f32.mrb[0].mxu0
  %8196 = vdwg.mxu0
  %8197 = vmatprep.subr.bf16.mxu0 %v8061
  %8198 = vmatpush1.bf16.msra.mxu0 %v8060
  %8199 = vmatprep.subr.bf16.mxu0 %v8063
  %8200 = vmatpush1.bf16.msra.mxu0 %v8062
  %8201 = vmatprep.subr.bf16.mxu0 %v8065
  %8202 = vmatpush1.bf16.msra.mxu0 %v8064
  %8203 = vmatprep.subr.bf16.mxu0 %v8067
  %8204 = vmatpush1.bf16.msra.mxu0 %v8066
  %8205 = vmatprep.subr.bf16.mxu0 %v8069
  %8206 = vmatpush1.bf16.msra.mxu0 %v8068
  %8207 = vmatprep.subr.bf16.mxu0 %v8071
  %8208 = vmatpush1.bf16.msra.mxu0 %v8070
  %8209 = vmatprep.subr.bf16.mxu0 %v8073
  %8210 = vmatpush1.bf16.msra.mxu0 %v8072
  %8211 = vmatprep.subr.bf16.mxu0 %v8075
  %8212 = vmatpush1.bf16.msra.mxu0 %v8074
  %8213 = vmatprep.subr.bf16.mxu0 %v8077
  %8214 = vmatpush1.bf16.msra.mxu0 %v8076
  %8215 = vmatprep.subr.bf16.mxu0 %v8079
  %8216 = vmatpush1.bf16.msra.mxu0 %v8078
  %8217 = vmatprep.subr.bf16.mxu0 %v8081
  %8218 = vmatpush1.bf16.msra.mxu0 %v8080
  %8219 = vmatprep.subr.bf16.mxu0 %v8083
  %8220 = vmatpush1.bf16.msra.mxu0 %v8082
  %8221 = vmatprep.subr.bf16.mxu0 %v8085
  %8222 = vmatpush1.bf16.msra.mxu0 %v8084
  %8223 = vmatprep.subr.bf16.mxu0 %v8087
  %8224 = vmatpush1.bf16.msra.mxu0 %v8086
  %8225 = vmatprep.subr.bf16.mxu0 %v8089
  %8226 = vmatpush1.bf16.msra.mxu0 %v8088
  %8227 = vmatprep.subr.bf16.mxu0 %v8091
  %8228 = vmatpush1.bf16.msra.mxu0 %v8090
  %8229 = vmatprep.mubr.bf16.mxu0 %v6859
  %8230 = vmatmul.mubr.bf16.gmra.mrb[0].mxu0 %v6858
  %v8231 = vpop.f32.mrb[0].mxu0
  %v8232 = vadd.f32 %v8191, %v8231
  %v8233 = vpop.f32.mrb[0].mxu0
  %v8234 = vadd.f32 %v8193, %v8233
  %v8235 = vpop.f32.mrb[0].mxu0
  %v8236 = vpop.f32.mrb[0].mxu0
  %8237 = vdwg.mxu0
  %v8238 = vmax.f32 %v8232, 0.0
  %v8239 = vmax.f32 %v8234, 0.0
  %s8240 = scalar_lea.vmem %s9, 1536
  %v8241 = vld [vmem:[%s8240] sm:$0xff]
  %v8242 = vld [vmem:[%s8240 + $0x8] sm:$0xff]
  %v8243 = vld [vmem:[%s8240 + $0x10] sm:$0xff]
  %v8244 = vld [vmem:[%s8240 + $0x18] sm:$0xff]
  %v8245 = vld [vmem:[%s8240 + $0x20] sm:$0xff]
  %v8246 = vld [vmem:[%s8240 + $0x28] sm:$0xff]
  %v8247 = vld [vmem:[%s8240 + $0x30] sm:$0xff]
  %v8248 = vld [vmem:[%s8240 + $0x38] sm:$0xff]
  %v8249 = vld [vmem:[%s8240 + $0x40] sm:$0xff]
  %v8250 = vld [vmem:[%s8240 + $0x48] sm:$0xff]
  %v8251 = vld [vmem:[%s8240 + $0x50] sm:$0xff]
  %v8252 = vld [vmem:[%s8240 + $0x58] sm:$0xff]
  %v8253 = vld [vmem:[%s8240 + $0x60] sm:$0xff]
  %v8254 = vld [vmem:[%s8240 + $0x68] sm:$0xff]
  %v8255 = vld [vmem:[%s8240 + $0x70] sm:$0xff]
  %v8256 = vld [vmem:[%s8240 + $0x78] sm:$0xff]
  %v8257 = vld [vmem:[%s8240 + $0x80] sm:$0xff]
  %v8258 = vld [vmem:[%s8240 + $0x88] sm:$0xff]
  %v8259 = vld [vmem:[%s8240 + $0x90] sm:$0xff]
  %v8260 = vld [vmem:[%s8240 + $0x98] sm:$0xff]
  %v8261 = vld [vmem:[%s8240 + $0xa0] sm:$0xff]
  %v8262 = vld [vmem:[%s8240 + $0xa8] sm:$0xff]
  %v8263 = vld [vmem:[%s8240 + $0xb0] sm:$0xff]
  %v8264 = vld [vmem:[%s8240 + $0xb8] sm:$0xff]
  %v8265 = vld [vmem:[%s8240 + $0xc0] sm:$0xff]
  %v8266 = vld [vmem:[%s8240 + $0xc8] sm:$0xff]
  %v8267 = vld [vmem:[%s8240 + $0xd0] sm:$0xff]
  %v8268 = vld [vmem:[%s8240 + $0xd8] sm:$0xff]
  %v8269 = vld [vmem:[%s8240 + $0xe0] sm:$0xff]
  %v8270 = vld [vmem:[%s8240 + $0xe8] sm:$0xff]
  %v8271 = vld [vmem:[%s8240 + $0xf0] sm:$0xff]
  %v8272 = vld [vmem:[%s8240 + $0xf8] sm:$0xff]
  %v8273 = vld [vmem:[%s8240 + $0x100] sm:$0xff]
  %v8274 = vld [vmem:[%s8240 + $0x108] sm:$0xff]
  %v8275 = vld [vmem:[%s8240 + $0x110] sm:$0xff]
  %v8276 = vld [vmem:[%s8240 + $0x118] sm:$0xff]
  %v8277 = vld [vmem:[%s8240 + $0x120] sm:$0xff]
  %v8278 = vld [vmem:[%s8240 + $0x128] sm:$0xff]
  %v8279 = vld [vmem:[%s8240 + $0x130] sm:$0xff]
  %v8280 = vld [vmem:[%s8240 + $0x138] sm:$0xff]
  %v8281 = vld [vmem:[%s8240 + $0x140] sm:$0xff]
  %v8282 = vld [vmem:[%s8240 + $0x148] sm:$0xff]
  %v8283 = vld [vmem:[%s8240 + $0x150] sm:$0xff]
  %v8284 = vld [vmem:[%s8240 + $0x158] sm:$0xff]
  %v8285 = vld [vmem:[%s8240 + $0x160] sm:$0xff]
  %v8286 = vld [vmem:[%s8240 + $0x168] sm:$0xff]
  %v8287 = vld [vmem:[%s8240 + $0x170] sm:$0xff]
  %v8288 = vld [vmem:[%s8240 + $0x178] sm:$0xff]
  %v8289 = vld [vmem:[%s8240 + $0x180] sm:$0xff]
  %v8290 = vld [vmem:[%s8240 + $0x188] sm:$0xff]
  %v8291 = vld [vmem:[%s8240 + $0x190] sm:$0xff]
  %v8292 = vld [vmem:[%s8240 + $0x198] sm:$0xff]
  %v8293 = vld [vmem:[%s8240 + $0x1a0] sm:$0xff]
  %v8294 = vld [vmem:[%s8240 + $0x1a8] sm:$0xff]
  %v8295 = vld [vmem:[%s8240 + $0x1b0] sm:$0xff]
  %v8296 = vld [vmem:[%s8240 + $0x1b8] sm:$0xff]
  %v8297 = vld [vmem:[%s8240 + $0x1c0] sm:$0xff]
  %v8298 = vld [vmem:[%s8240 + $0x1c8] sm:$0xff]
  %v8299 = vld [vmem:[%s8240 + $0x1d0] sm:$0xff]
  %v8300 = vld [vmem:[%s8240 + $0x1d8] sm:$0xff]
  %v8301 = vld [vmem:[%s8240 + $0x1e0] sm:$0xff]
  %v8302 = vld [vmem:[%s8240 + $0x1e8] sm:$0xff]
  %v8303 = vld [vmem:[%s8240 + $0x1f0] sm:$0xff]
  %v8304 = vld [vmem:[%s8240 + $0x1f8] sm:$0xff]
  %s8305 = scalar_lea.vmem %s10, 6
  %v8306 = vld [vmem:[%s8305] sm:$0x3]
  %v8308 = vlaneseq
  %v8309 = vshrl.u32 %v8308, 7
  %v8310 = vsub.s32 0, %v8309
  %v8311 = vrot.slane %v8306, %v8310
  %v8312 = vlaneseq
  %v8313 = vshrl.u32 %v8312, 7
  %v8314 = vsub.s32 1, %v8313
  %v8315 = vrot.slane %v8306, %v8314
  %v8382 = vunpack.c.l.b16 %v8241
  %v8383 = vunpack.c.h.b16 %v8241
  %v8384 = vunpack.c.l.b16 %v8242
  %v8385 = vunpack.c.h.b16 %v8242
  %v8386 = vunpack.c.l.b16 %v8243
  %v8387 = vunpack.c.h.b16 %v8243
  %v8388 = vunpack.c.l.b16 %v8244
  %v8389 = vunpack.c.h.b16 %v8244
  %v8390 = vunpack.c.l.b16 %v8245
  %v8391 = vunpack.c.h.b16 %v8245
  %v8392 = vunpack.c.l.b16 %v8246
  %v8393 = vunpack.c.h.b16 %v8246
  %v8394 = vunpack.c.l.b16 %v8247
  %v8395 = vunpack.c.h.b16 %v8247
  %v8396 = vunpack.c.l.b16 %v8248
  %v8397 = vunpack.c.h.b16 %v8248
  %v8398 = vunpack.c.l.b16 %v8249
  %v8399 = vunpack.c.h.b16 %v8249
  %v8400 = vunpack.c.l.b16 %v8250
  %v8401 = vunpack.c.h.b16 %v8250
  %v8402 = vunpack.c.l.b16 %v8251
  %v8403 = vunpack.c.h.b16 %v8251
  %v8404 = vunpack.c.l.b16 %v8252
  %v8405 = vunpack.c.h.b16 %v8252
  %v8406 = vunpack.c.l.b16 %v8253
  %v8407 = vunpack.c.h.b16 %v8253
  %v8408 = vunpack.c.l.b16 %v8254
  %v8409 = vunpack.c.h.b16 %v8254
  %v8410 = vunpack.c.l.b16 %v8255
  %v8411 = vunpack.c.h.b16 %v8255
  %v8412 = vunpack.c.l.b16 %v8256
  %v8413 = vunpack.c.h.b16 %v8256
  %v8414 = vunpack.c.l.b16 %v8257
  %v8415 = vunpack.c.h.b16 %v8257
  %v8416 = vunpack.c.l.b16 %v8258
  %v8417 = vunpack.c.h.b16 %v8258
  %v8418 = vunpack.c.l.b16 %v8259
  %v8419 = vunpack.c.h.b16 %v8259
  %v8420 = vunpack.c.l.b16 %v8260
  %v8421 = vunpack.c.h.b16 %v8260
  %v8422 = vunpack.c.l.b16 %v8261
  %v8423 = vunpack.c.h.b16 %v8261
  %v8424 = vunpack.c.l.b16 %v8262
  %v8425 = vunpack.c.h.b16 %v8262
  %v8426 = vunpack.c.l.b16 %v8263
  %v8427 = vunpack.c.h.b16 %v8263
  %v8428 = vunpack.c.l.b16 %v8264
  %v8429 = vunpack.c.h.b16 %v8264
  %v8430 = vunpack.c.l.b16 %v8265
  %v8431 = vunpack.c.h.b16 %v8265
  %v8432 = vunpack.c.l.b16 %v8266
  %v8433 = vunpack.c.h.b16 %v8266
  %v8434 = vunpack.c.l.b16 %v8267
  %v8435 = vunpack.c.h.b16 %v8267
  %v8436 = vunpack.c.l.b16 %v8268
  %v8437 = vunpack.c.h.b16 %v8268
  %v8438 = vunpack.c.l.b16 %v8269
  %v8439 = vunpack.c.h.b16 %v8269
  %v8440 = vunpack.c.l.b16 %v8270
  %v8441 = vunpack.c.h.b16 %v8270
  %v8442 = vunpack.c.l.b16 %v8271
  %v8443 = vunpack.c.h.b16 %v8271
  %v8444 = vunpack.c.l.b16 %v8272
  %v8445 = vunpack.c.h.b16 %v8272
  %v8446 = vunpack.c.l.b16 %v8273
  %v8447 = vunpack.c.h.b16 %v8273
  %v8448 = vunpack.c.l.b16 %v8274
  %v8449 = vunpack.c.h.b16 %v8274
  %v8450 = vunpack.c.l.b16 %v8275
  %v8451 = vunpack.c.h.b16 %v8275
  %v8452 = vunpack.c.l.b16 %v8276
  %v8453 = vunpack.c.h.b16 %v8276
  %v8454 = vunpack.c.l.b16 %v8277
  %v8455 = vunpack.c.h.b16 %v8277
  %v8456 = vunpack.c.l.b16 %v8278
  %v8457 = vunpack.c.h.b16 %v8278
  %v8458 = vunpack.c.l.b16 %v8279
  %v8459 = vunpack.c.h.b16 %v8279
  %v8460 = vunpack.c.l.b16 %v8280
  %v8461 = vunpack.c.h.b16 %v8280
  %v8462 = vunpack.c.l.b16 %v8281
  %v8463 = vunpack.c.h.b16 %v8281
  %v8464 = vunpack.c.l.b16 %v8282
  %v8465 = vunpack.c.h.b16 %v8282
  %v8466 = vunpack.c.l.b16 %v8283
  %v8467 = vunpack.c.h.b16 %v8283
  %v8468 = vunpack.c.l.b16 %v8284
  %v8469 = vunpack.c.h.b16 %v8284
  %v8470 = vunpack.c.l.b16 %v8285
  %v8471 = vunpack.c.h.b16 %v8285
  %v8472 = vunpack.c.l.b16 %v8286
  %v8473 = vunpack.c.h.b16 %v8286
  %v8474 = vunpack.c.l.b16 %v8287
  %v8475 = vunpack.c.h.b16 %v8287
  %v8476 = vunpack.c.l.b16 %v8288
  %v8477 = vunpack.c.h.b16 %v8288
  %v8478 = vunpack.c.l.b16 %v8289
  %v8479 = vunpack.c.h.b16 %v8289
  %v8480 = vunpack.c.l.b16 %v8290
  %v8481 = vunpack.c.h.b16 %v8290
  %v8482 = vunpack.c.l.b16 %v8291
  %v8483 = vunpack.c.h.b16 %v8291
  %v8484 = vunpack.c.l.b16 %v8292
  %v8485 = vunpack.c.h.b16 %v8292
  %v8486 = vunpack.c.l.b16 %v8293
  %v8487 = vunpack.c.h.b16 %v8293
  %v8488 = vunpack.c.l.b16 %v8294
  %v8489 = vunpack.c.h.b16 %v8294
  %v8490 = vunpack.c.l.b16 %v8295
  %v8491 = vunpack.c.h.b16 %v8295
  %v8492 = vunpack.c.l.b16 %v8296
  %v8493 = vunpack.c.h.b16 %v8296
  %v8494 = vunpack.c.l.b16 %v8297
  %v8495 = vunpack.c.h.b16 %v8297
  %v8496 = vunpack.c.l.b16 %v8298
  %v8497 = vunpack.c.h.b16 %v8298
  %v8498 = vunpack.c.l.b16 %v8299
  %v8499 = vunpack.c.h.b16 %v8299
  %v8500 = vunpack.c.l.b16 %v8300
  %v8501 = vunpack.c.h.b16 %v8300
  %v8502 = vunpack.c.l.b16 %v8301
  %v8503 = vunpack.c.h.b16 %v8301
  %v8504 = vunpack.c.l.b16 %v8302
  %v8505 = vunpack.c.h.b16 %v8302
  %v8506 = vunpack.c.l.b16 %v8303
  %v8507 = vunpack.c.h.b16 %v8303
  %v8508 = vunpack.c.l.b16 %v8304
  %v8509 = vunpack.c.h.b16 %v8304
  %v8510 = vpack.c.b16 %v8384, %v8382
  %v8511 = vpack.c.b16 %v8385, %v8383
  %v8512 = vpack.c.b16 %v8388, %v8386
  %v8513 = vpack.c.b16 %v8389, %v8387
  %v8514 = vpack.c.b16 %v8392, %v8390
  %v8515 = vpack.c.b16 %v8393, %v8391
  %v8516 = vpack.c.b16 %v8396, %v8394
  %v8517 = vpack.c.b16 %v8397, %v8395
  %v8518 = vpack.c.b16 %v8400, %v8398
  %v8519 = vpack.c.b16 %v8401, %v8399
  %v8520 = vpack.c.b16 %v8404, %v8402
  %v8521 = vpack.c.b16 %v8405, %v8403
  %v8522 = vpack.c.b16 %v8408, %v8406
  %v8523 = vpack.c.b16 %v8409, %v8407
  %v8524 = vpack.c.b16 %v8412, %v8410
  %v8525 = vpack.c.b16 %v8413, %v8411
  %v8526 = vpack.c.b16 %v8416, %v8414
  %v8527 = vpack.c.b16 %v8417, %v8415
  %v8528 = vpack.c.b16 %v8420, %v8418
  %v8529 = vpack.c.b16 %v8421, %v8419
  %v8530 = vpack.c.b16 %v8424, %v8422
  %v8531 = vpack.c.b16 %v8425, %v8423
  %v8532 = vpack.c.b16 %v8428, %v8426
  %v8533 = vpack.c.b16 %v8429, %v8427
  %v8534 = vpack.c.b16 %v8432, %v8430
  %v8535 = vpack.c.b16 %v8433, %v8431
  %v8536 = vpack.c.b16 %v8436, %v8434
  %v8537 = vpack.c.b16 %v8437, %v8435
  %v8538 = vpack.c.b16 %v8440, %v8438
  %v8539 = vpack.c.b16 %v8441, %v8439
  %v8540 = vpack.c.b16 %v8444, %v8442
  %v8541 = vpack.c.b16 %v8445, %v8443
  %v8542 = vpack.c.b16 %v8448, %v8446
  %v8543 = vpack.c.b16 %v8449, %v8447
  %v8544 = vpack.c.b16 %v8452, %v8450
  %v8545 = vpack.c.b16 %v8453, %v8451
  %v8546 = vpack.c.b16 %v8456, %v8454
  %v8547 = vpack.c.b16 %v8457, %v8455
  %v8548 = vpack.c.b16 %v8460, %v8458
  %v8549 = vpack.c.b16 %v8461, %v8459
  %v8550 = vpack.c.b16 %v8464, %v8462
  %v8551 = vpack.c.b16 %v8465, %v8463
  %v8552 = vpack.c.b16 %v8468, %v8466
  %v8553 = vpack.c.b16 %v8469, %v8467
  %v8554 = vpack.c.b16 %v8472, %v8470
  %v8555 = vpack.c.b16 %v8473, %v8471
  %v8556 = vpack.c.b16 %v8476, %v8474
  %v8557 = vpack.c.b16 %v8477, %v8475
  %v8558 = vpack.c.b16 %v8480, %v8478
  %v8559 = vpack.c.b16 %v8481, %v8479
  %v8560 = vpack.c.b16 %v8484, %v8482
  %v8561 = vpack.c.b16 %v8485, %v8483
  %v8562 = vpack.c.b16 %v8488, %v8486
  %v8563 = vpack.c.b16 %v8489, %v8487
  %v8564 = vpack.c.b16 %v8492, %v8490
  %v8565 = vpack.c.b16 %v8493, %v8491
  %v8566 = vpack.c.b16 %v8496, %v8494
  %v8567 = vpack.c.b16 %v8497, %v8495
  %v8568 = vpack.c.b16 %v8500, %v8498
  %v8569 = vpack.c.b16 %v8501, %v8499
  %v8570 = vpack.c.b16 %v8504, %v8502
  %v8571 = vpack.c.b16 %v8505, %v8503
  %v8572 = vpack.c.b16 %v8508, %v8506
  %v8573 = vpack.c.b16 %v8509, %v8507
  %8638 = vmatprep.subr.bf16.mxu0 %v8511
  %8639 = vmatpush1.bf16.msra.mxu0 %v8510
  %8640 = vmatprep.subr.bf16.mxu0 %v8513
  %8641 = vmatpush1.bf16.msra.mxu0 %v8512
  %8642 = vmatprep.subr.bf16.mxu0 %v8515
  %8643 = vmatpush1.bf16.msra.mxu0 %v8514
  %8644 = vmatprep.subr.bf16.mxu0 %v8517
  %8645 = vmatpush1.bf16.msra.mxu0 %v8516
  %8646 = vmatprep.subr.bf16.mxu0 %v8519
  %8647 = vmatpush1.bf16.msra.mxu0 %v8518
  %8648 = vmatprep.subr.bf16.mxu0 %v8521
  %8649 = vmatpush1.bf16.msra.mxu0 %v8520
  %8650 = vmatprep.subr.bf16.mxu0 %v8523
  %8651 = vmatpush1.bf16.msra.mxu0 %v8522
  %8652 = vmatprep.subr.bf16.mxu0 %v8525
  %8653 = vmatpush1.bf16.msra.mxu0 %v8524
  %8654 = vmatprep.subr.bf16.mxu0 %v8527
  %8655 = vmatpush1.bf16.msra.mxu0 %v8526
  %8656 = vmatprep.subr.bf16.mxu0 %v8529
  %8657 = vmatpush1.bf16.msra.mxu0 %v8528
  %8658 = vmatprep.subr.bf16.mxu0 %v8531
  %8659 = vmatpush1.bf16.msra.mxu0 %v8530
  %8660 = vmatprep.subr.bf16.mxu0 %v8533
  %8661 = vmatpush1.bf16.msra.mxu0 %v8532
  %8662 = vmatprep.subr.bf16.mxu0 %v8535
  %8663 = vmatpush1.bf16.msra.mxu0 %v8534
  %8664 = vmatprep.subr.bf16.mxu0 %v8537
  %8665 = vmatpush1.bf16.msra.mxu0 %v8536
  %8666 = vmatprep.subr.bf16.mxu0 %v8539
  %8667 = vmatpush1.bf16.msra.mxu0 %v8538
  %8668 = vmatprep.subr.bf16.mxu0 %v8541
  %8669 = vmatpush1.bf16.msra.mxu0 %v8540
  %8670 = vmatprep.mubr.bf16.mxu0 %v6857
  %8671 = vmatmul.mubr.bf16.gmra.mrb[0].mxu0 %v6856
  %v8672 = vpop.f32.mrb[0].mxu0
  %v8673 = vadd.f32 %v8311, %v8672
  %v8674 = vpop.f32.mrb[0].mxu0
  %v8675 = vadd.f32 %v8315, %v8674
  %v8676 = vpop.f32.mrb[0].mxu0
  %v8677 = vpop.f32.mrb[0].mxu0
  %8678 = vdwg.mxu0
  %8679 = vmatprep.subr.bf16.mxu0 %v8543
  %8680 = vmatpush1.bf16.msra.mxu0 %v8542
  %8681 = vmatprep.subr.bf16.mxu0 %v8545
  %8682 = vmatpush1.bf16.msra.mxu0 %v8544
  %8683 = vmatprep.subr.bf16.mxu0 %v8547
  %8684 = vmatpush1.bf16.msra.mxu0 %v8546
  %8685 = vmatprep.subr.bf16.mxu0 %v8549
  %8686 = vmatpush1.bf16.msra.mxu0 %v8548
  %8687 = vmatprep.subr.bf16.mxu0 %v8551
  %8688 = vmatpush1.bf16.msra.mxu0 %v8550
  %8689 = vmatprep.subr.bf16.mxu0 %v8553
  %8690 = vmatpush1.bf16.msra.mxu0 %v8552
  %8691 = vmatprep.subr.bf16.mxu0 %v8555
  %8692 = vmatpush1.bf16.msra.mxu0 %v8554
  %8693 = vmatprep.subr.bf16.mxu0 %v8557
  %8694 = vmatpush1.bf16.msra.mxu0 %v8556
  %8695 = vmatprep.subr.bf16.mxu0 %v8559
  %8696 = vmatpush1.bf16.msra.mxu0 %v8558
  %8697 = vmatprep.subr.bf16.mxu0 %v8561
  %8698 = vmatpush1.bf16.msra.mxu0 %v8560
  %8699 = vmatprep.subr.bf16.mxu0 %v8563
  %8700 = vmatpush1.bf16.msra.mxu0 %v8562
  %8701 = vmatprep.subr.bf16.mxu0 %v8565
  %8702 = vmatpush1.bf16.msra.mxu0 %v8564
  %8703 = vmatprep.subr.bf16.mxu0 %v8567
  %8704 = vmatpush1.bf16.msra.mxu0 %v8566
  %8705 = vmatprep.subr.bf16.mxu0 %v8569
  %8706 = vmatpush1.bf16.msra.mxu0 %v8568
  %8707 = vmatprep.subr.bf16.mxu0 %v8571
  %8708 = vmatpush1.bf16.msra.mxu0 %v8570
  %8709 = vmatprep.subr.bf16.mxu0 %v8573
  %8710 = vmatpush1.bf16.msra.mxu0 %v8572
  %8711 = vmatprep.mubr.bf16.mxu0 %v6859
  %8712 = vmatmul.mubr.bf16.gmra.mrb[0].mxu0 %v6858
  %v8713 = vpop.f32.mrb[0].mxu0
  %v8714 = vadd.f32 %v8673, %v8713
  %v8715 = vpop.f32.mrb[0].mxu0
  %v8716 = vadd.f32 %v8675, %v8715
  %v8717 = vpop.f32.mrb[0].mxu0
  %v8718 = vpop.f32.mrb[0].mxu0
  %8719 = vdwg.mxu0
  %v8720 = vmax.f32 %v8714, 0.0
  %v8721 = vmax.f32 %v8716, 0.0
  %s8722 = scalar_lea.vmem %s9, 2048
  %v8723 = vld [vmem:[%s8722] sm:$0xff]
  %v8724 = vld [vmem:[%s8722 + $0x8] sm:$0xff]
  %v8725 = vld [vmem:[%s8722 + $0x10] sm:$0xff]
  %v8726 = vld [vmem:[%s8722 + $0x18] sm:$0xff]
  %v8727 = vld [vmem:[%s8722 + $0x20] sm:$0xff]
  %v8728 = vld [vmem:[%s8722 + $0x28] sm:$0xff]
  %v8729 = vld [vmem:[%s8722 + $0x30] sm:$0xff]
  %v8730 = vld [vmem:[%s8722 + $0x38] sm:$0xff]
  %v8731 = vld [vmem:[%s8722 + $0x40] sm:$0xff]
  %v8732 = vld [vmem:[%s8722 + $0x48] sm:$0xff]
  %v8733 = vld [vmem:[%s8722 + $0x50] sm:$0xff]
  %v8734 = vld [vmem:[%s8722 + $0x58] sm:$0xff]
  %v8735 = vld [vmem:[%s8722 + $0x60] sm:$0xff]
  %v8736 = vld [vmem:[%s8722 + $0x68] sm:$0xff]
  %v8737 = vld [vmem:[%s8722 + $0x70] sm:$0xff]
  %v8738 = vld [vmem:[%s8722 + $0x78] sm:$0xff]
  %v8739 = vld [vmem:[%s8722 + $0x80] sm:$0xff]
  %v8740 = vld [vmem:[%s8722 + $0x88] sm:$0xff]
  %v8741 = vld [vmem:[%s8722 + $0x90] sm:$0xff]
  %v8742 = vld [vmem:[%s8722 + $0x98] sm:$0xff]
  %v8743 = vld [vmem:[%s8722 + $0xa0] sm:$0xff]
  %v8744 = vld [vmem:[%s8722 + $0xa8] sm:$0xff]
  %v8745 = vld [vmem:[%s8722 + $0xb0] sm:$0xff]
  %v8746 = vld [vmem:[%s8722 + $0xb8] sm:$0xff]
  %v8747 = vld [vmem:[%s8722 + $0xc0] sm:$0xff]
  %v8748 = vld [vmem:[%s8722 + $0xc8] sm:$0xff]
  %v8749 = vld [vmem:[%s8722 + $0xd0] sm:$0xff]
  %v8750 = vld [vmem:[%s8722 + $0xd8] sm:$0xff]
  %v8751 = vld [vmem:[%s8722 + $0xe0] sm:$0xff]
  %v8752 = vld [vmem:[%s8722 + $0xe8] sm:$0xff]
  %v8753 = vld [vmem:[%s8722 + $0xf0] sm:$0xff]
  %v8754 = vld [vmem:[%s8722 + $0xf8] sm:$0xff]
  %v8755 = vld [vmem:[%s8722 + $0x100] sm:$0xff]
  %v8756 = vld [vmem:[%s8722 + $0x108] sm:$0xff]
  %v8757 = vld [vmem:[%s8722 + $0x110] sm:$0xff]
  %v8758 = vld [vmem:[%s8722 + $0x118] sm:$0xff]
  %v8759 = vld [vmem:[%s8722 + $0x120] sm:$0xff]
  %v8760 = vld [vmem:[%s8722 + $0x128] sm:$0xff]
  %v8761 = vld [vmem:[%s8722 + $0x130] sm:$0xff]
  %v8762 = vld [vmem:[%s8722 + $0x138] sm:$0xff]
  %v8763 = vld [vmem:[%s8722 + $0x140] sm:$0xff]
  %v8764 = vld [vmem:[%s8722 + $0x148] sm:$0xff]
  %v8765 = vld [vmem:[%s8722 + $0x150] sm:$0xff]
  %v8766 = vld [vmem:[%s8722 + $0x158] sm:$0xff]
  %v8767 = vld [vmem:[%s8722 + $0x160] sm:$0xff]
  %v8768 = vld [vmem:[%s8722 + $0x168] sm:$0xff]
  %v8769 = vld [vmem:[%s8722 + $0x170] sm:$0xff]
  %v8770 = vld [vmem:[%s8722 + $0x178] sm:$0xff]
  %v8771 = vld [vmem:[%s8722 + $0x180] sm:$0xff]
  %v8772 = vld [vmem:[%s8722 + $0x188] sm:$0xff]
  %v8773 = vld [vmem:[%s8722 + $0x190] sm:$0xff]
  %v8774 = vld [vmem:[%s8722 + $0x198] sm:$0xff]
  %v8775 = vld [vmem:[%s8722 + $0x1a0] sm:$0xff]
  %v8776 = vld [vmem:[%s8722 + $0x1a8] sm:$0xff]
  %v8777 = vld [vmem:[%s8722 + $0x1b0] sm:$0xff]
  %v8778 = vld [vmem:[%s8722 + $0x1b8] sm:$0xff]
  %v8779 = vld [vmem:[%s8722 + $0x1c0] sm:$0xff]
  %v8780 = vld [vmem:[%s8722 + $0x1c8] sm:$0xff]
  %v8781 = vld [vmem:[%s8722 + $0x1d0] sm:$0xff]
  %v8782 = vld [vmem:[%s8722 + $0x1d8] sm:$0xff]
  %v8783 = vld [vmem:[%s8722 + $0x1e0] sm:$0xff]
  %v8784 = vld [vmem:[%s8722 + $0x1e8] sm:$0xff]
  %v8785 = vld [vmem:[%s8722 + $0x1f0] sm:$0xff]
  %v8786 = vld [vmem:[%s8722 + $0x1f8] sm:$0xff]
  %s8787 = scalar_lea.vmem %s10, 8
  %v8788 = vld [vmem:[%s8787] sm:$0x3]
  %v8790 = vlaneseq
  %v8791 = vshrl.u32 %v8790, 7
  %v8792 = vsub.s32 0, %v8791
  %v8793 = vrot.slane %v8788, %v8792
  %v8794 = vlaneseq
  %v8795 = vshrl.u32 %v8794, 7
  %v8796 = vsub.s32 1, %v8795
  %v8797 = vrot.slane %v8788, %v8796
  %v8864 = vunpack.c.l.b16 %v8723
  %v8865 = vunpack.c.h.b16 %v8723
  %v8866 = vunpack.c.l.b16 %v8724
  %v8867 = vunpack.c.h.b16 %v8724
  %v8868 = vunpack.c.l.b16 %v8725
  %v8869 = vunpack.c.h.b16 %v8725
  %v8870 = vunpack.c.l.b16 %v8726
  %v8871 = vunpack.c.h.b16 %v8726
  %v8872 = vunpack.c.l.b16 %v8727
  %v8873 = vunpack.c.h.b16 %v8727
  %v8874 = vunpack.c.l.b16 %v8728
  %v8875 = vunpack.c.h.b16 %v8728
  %v8876 = vunpack.c.l.b16 %v8729
  %v8877 = vunpack.c.h.b16 %v8729
  %v8878 = vunpack.c.l.b16 %v8730
  %v8879 = vunpack.c.h.b16 %v8730
  %v8880 = vunpack.c.l.b16 %v8731
  %v8881 = vunpack.c.h.b16 %v8731
  %v8882 = vunpack.c.l.b16 %v8732
  %v8883 = vunpack.c.h.b16 %v8732
  %v8884 = vunpack.c.l.b16 %v8733
  %v8885 = vunpack.c.h.b16 %v8733
  %v8886 = vunpack.c.l.b16 %v8734
  %v8887 = vunpack.c.h.b16 %v8734
  %v8888 = vunpack.c.l.b16 %v8735
  %v8889 = vunpack.c.h.b16 %v8735
  %v8890 = vunpack.c.l.b16 %v8736
  %v8891 = vunpack.c.h.b16 %v8736
  %v8892 = vunpack.c.l.b16 %v8737
  %v8893 = vunpack.c.h.b16 %v8737
  %v8894 = vunpack.c.l.b16 %v8738
  %v8895 = vunpack.c.h.b16 %v8738
  %v8896 = vunpack.c.l.b16 %v8739
  %v8897 = vunpack.c.h.b16 %v8739
  %v8898 = vunpack.c.l.b16 %v8740
  %v8899 = vunpack.c.h.b16 %v8740
  %v8900 = vunpack.c.l.b16 %v8741
  %v8901 = vunpack.c.h.b16 %v8741
  %v8902 = vunpack.c.l.b16 %v8742
  %v8903 = vunpack.c.h.b16 %v8742
  %v8904 = vunpack.c.l.b16 %v8743
  %v8905 = vunpack.c.h.b16 %v8743
  %v8906 = vunpack.c.l.b16 %v8744
  %v8907 = vunpack.c.h.b16 %v8744
  %v8908 = vunpack.c.l.b16 %v8745
  %v8909 = vunpack.c.h.b16 %v8745
  %v8910 = vunpack.c.l.b16 %v8746
  %v8911 = vunpack.c.h.b16 %v8746
  %v8912 = vunpack.c.l.b16 %v8747
  %v8913 = vunpack.c.h.b16 %v8747
  %v8914 = vunpack.c.l.b16 %v8748
  %v8915 = vunpack.c.h.b16 %v8748
  %v8916 = vunpack.c.l.b16 %v8749
  %v8917 = vunpack.c.h.b16 %v8749
  %v8918 = vunpack.c.l.b16 %v8750
  %v8919 = vunpack.c.h.b16 %v8750
  %v8920 = vunpack.c.l.b16 %v8751
  %v8921 = vunpack.c.h.b16 %v8751
  %v8922 = vunpack.c.l.b16 %v8752
  %v8923 = vunpack.c.h.b16 %v8752
  %v8924 = vunpack.c.l.b16 %v8753
  %v8925 = vunpack.c.h.b16 %v8753
  %v8926 = vunpack.c.l.b16 %v8754
  %v8927 = vunpack.c.h.b16 %v8754
  %v8928 = vunpack.c.l.b16 %v8755
  %v8929 = vunpack.c.h.b16 %v8755
  %v8930 = vunpack.c.l.b16 %v8756
  %v8931 = vunpack.c.h.b16 %v8756
  %v8932 = vunpack.c.l.b16 %v8757
  %v8933 = vunpack.c.h.b16 %v8757
  %v8934 = vunpack.c.l.b16 %v8758
  %v8935 = vunpack.c.h.b16 %v8758
  %v8936 = vunpack.c.l.b16 %v8759
  %v8937 = vunpack.c.h.b16 %v8759
  %v8938 = vunpack.c.l.b16 %v8760
  %v8939 = vunpack.c.h.b16 %v8760
  %v8940 = vunpack.c.l.b16 %v8761
  %v8941 = vunpack.c.h.b16 %v8761
  %v8942 = vunpack.c.l.b16 %v8762
  %v8943 = vunpack.c.h.b16 %v8762
  %v8944 = vunpack.c.l.b16 %v8763
  %v8945 = vunpack.c.h.b16 %v8763
  %v8946 = vunpack.c.l.b16 %v8764
  %v8947 = vunpack.c.h.b16 %v8764
  %v8948 = vunpack.c.l.b16 %v8765
  %v8949 = vunpack.c.h.b16 %v8765
  %v8950 = vunpack.c.l.b16 %v8766
  %v8951 = vunpack.c.h.b16 %v8766
  %v8952 = vunpack.c.l.b16 %v8767
  %v8953 = vunpack.c.h.b16 %v8767
  %v8954 = vunpack.c.l.b16 %v8768
  %v8955 = vunpack.c.h.b16 %v8768
  %v8956 = vunpack.c.l.b16 %v8769
  %v8957 = vunpack.c.h.b16 %v8769
  %v8958 = vunpack.c.l.b16 %v8770
  %v8959 = vunpack.c.h.b16 %v8770
  %v8960 = vunpack.c.l.b16 %v8771
  %v8961 = vunpack.c.h.b16 %v8771
  %v8962 = vunpack.c.l.b16 %v8772
  %v8963 = vunpack.c.h.b16 %v8772
  %v8964 = vunpack.c.l.b16 %v8773
  %v8965 = vunpack.c.h.b16 %v8773
  %v8966 = vunpack.c.l.b16 %v8774
  %v8967 = vunpack.c.h.b16 %v8774
  %v8968 = vunpack.c.l.b16 %v8775
  %v8969 = vunpack.c.h.b16 %v8775
  %v8970 = vunpack.c.l.b16 %v8776
  %v8971 = vunpack.c.h.b16 %v8776
  %v8972 = vunpack.c.l.b16 %v8777
  %v8973 = vunpack.c.h.b16 %v8777
  %v8974 = vunpack.c.l.b16 %v8778
  %v8975 = vunpack.c.h.b16 %v8778
  %v8976 = vunpack.c.l.b16 %v8779
  %v8977 = vunpack.c.h.b16 %v8779
  %v8978 = vunpack.c.l.b16 %v8780
  %v8979 = vunpack.c.h.b16 %v8780
  %v8980 = vunpack.c.l.b16 %v8781
  %v8981 = vunpack.c.h.b16 %v8781
  %v8982 = vunpack.c.l.b16 %v8782
  %v8983 = vunpack.c.h.b16 %v8782
  %v8984 = vunpack.c.l.b16 %v8783
  %v8985 = vunpack.c.h.b16 %v8783
  %v8986 = vunpack.c.l.b16 %v8784
  %v8987 = vunpack.c.h.b16 %v8784
  %v8988 = vunpack.c.l.b16 %v8785
  %v8989 = vunpack.c.h.b16 %v8785
  %v8990 = vunpack.c.l.b16 %v8786
  %v8991 = vunpack.c.h.b16 %v8786
  %v8992 = vpack.c.b16 %v8866, %v8864
  %v8993 = vpack.c.b16 %v8867, %v8865
  %v8994 = vpack.c.b16 %v8870, %v8868
  %v8995 = vpack.c.b16 %v8871, %v8869
  %v8996 = vpack.c.b16 %v8874, %v8872
  %v8997 = vpack.c.b16 %v8875, %v8873
  %v8998 = vpack.c.b16 %v8878, %v8876
  %v8999 = vpack.c.b16 %v8879, %v8877
  %v9000 = vpack.c.b16 %v8882, %v8880
  %v9001 = vpack.c.b16 %v8883, %v8881
  %v9002 = vpack.c.b16 %v8886, %v8884
  %v9003 = vpack.c.b16 %v8887, %v8885
  %v9004 = vpack.c.b16 %v8890, %v8888
  %v9005 = vpack.c.b16 %v8891, %v8889
  %v9006 = vpack.c.b16 %v8894, %v8892
  %v9007 = vpack.c.b16 %v8895, %v8893
  %v9008 = vpack.c.b16 %v8898, %v8896
  %v9009 = vpack.c.b16 %v8899, %v8897
  %v9010 = vpack.c.b16 %v8902, %v8900
  %v9011 = vpack.c.b16 %v8903, %v8901
  %v9012 = vpack.c.b16 %v8906, %v8904
  %v9013 = vpack.c.b16 %v8907, %v8905
  %v9014 = vpack.c.b16 %v8910, %v8908
  %v9015 = vpack.c.b16 %v8911, %v8909
  %v9016 = vpack.c.b16 %v8914, %v8912
  %v9017 = vpack.c.b16 %v8915, %v8913
  %v9018 = vpack.c.b16 %v8918, %v8916
  %v9019 = vpack.c.b16 %v8919, %v8917
  %v9020 = vpack.c.b16 %v8922, %v8920
  %v9021 = vpack.c.b16 %v8923, %v8921
  %v9022 = vpack.c.b16 %v8926, %v8924
  %v9023 = vpack.c.b16 %v8927, %v8925
  %v9024 = vpack.c.b16 %v8930, %v8928
  %v9025 = vpack.c.b16 %v8931, %v8929
  %v9026 = vpack.c.b16 %v8934, %v8932
  %v9027 = vpack.c.b16 %v8935, %v8933
  %v9028 = vpack.c.b16 %v8938, %v8936
  %v9029 = vpack.c.b16 %v8939, %v8937
  %v9030 = vpack.c.b16 %v8942, %v8940
  %v9031 = vpack.c.b16 %v8943, %v8941
  %v9032 = vpack.c.b16 %v8946, %v8944
  %v9033 = vpack.c.b16 %v8947, %v8945
  %v9034 = vpack.c.b16 %v8950, %v8948
  %v9035 = vpack.c.b16 %v8951, %v8949
  %v9036 = vpack.c.b16 %v8954, %v8952
  %v9037 = vpack.c.b16 %v8955, %v8953
  %v9038 = vpack.c.b16 %v8958, %v8956
  %v9039 = vpack.c.b16 %v8959, %v8957
  %v9040 = vpack.c.b16 %v8962, %v8960
  %v9041 = vpack.c.b16 %v8963, %v8961
  %v9042 = vpack.c.b16 %v8966, %v8964
  %v9043 = vpack.c.b16 %v8967, %v8965
  %v9044 = vpack.c.b16 %v8970, %v8968
  %v9045 = vpack.c.b16 %v8971, %v8969
  %v9046 = vpack.c.b16 %v8974, %v8972
  %v9047 = vpack.c.b16 %v8975, %v8973
  %v9048 = vpack.c.b16 %v8978, %v8976
  %v9049 = vpack.c.b16 %v8979, %v8977
  %v9050 = vpack.c.b16 %v8982, %v8980
  %v9051 = vpack.c.b16 %v8983, %v8981
  %v9052 = vpack.c.b16 %v8986, %v8984
  %v9053 = vpack.c.b16 %v8987, %v8985
  %v9054 = vpack.c.b16 %v8990, %v8988
  %v9055 = vpack.c.b16 %v8991, %v8989
  %9120 = vmatprep.subr.bf16.mxu0 %v8993
  %9121 = vmatpush1.bf16.msra.mxu0 %v8992
  %9122 = vmatprep.subr.bf16.mxu0 %v8995
  %9123 = vmatpush1.bf16.msra.mxu0 %v8994
  %9124 = vmatprep.subr.bf16.mxu0 %v8997
  %9125 = vmatpush1.bf16.msra.mxu0 %v8996
  %9126 = vmatprep.subr.bf16.mxu0 %v8999
  %9127 = vmatpush1.bf16.msra.mxu0 %v8998
  %9128 = vmatprep.subr.bf16.mxu0 %v9001
  %9129 = vmatpush1.bf16.msra.mxu0 %v9000
  %9130 = vmatprep.subr.bf16.mxu0 %v9003
  %9131 = vmatpush1.bf16.msra.mxu0 %v9002
  %9132 = vmatprep.subr.bf16.mxu0 %v9005
  %9133 = vmatpush1.bf16.msra.mxu0 %v9004
  %9134 = vmatprep.subr.bf16.mxu0 %v9007
  %9135 = vmatpush1.bf16.msra.mxu0 %v9006
  %9136 = vmatprep.subr.bf16.mxu0 %v9009
  %9137 = vmatpush1.bf16.msra.mxu0 %v9008
  %9138 = vmatprep.subr.bf16.mxu0 %v9011
  %9139 = vmatpush1.bf16.msra.mxu0 %v9010
  %9140 = vmatprep.subr.bf16.mxu0 %v9013
  %9141 = vmatpush1.bf16.msra.mxu0 %v9012
  %9142 = vmatprep.subr.bf16.mxu0 %v9015
  %9143 = vmatpush1.bf16.msra.mxu0 %v9014
  %9144 = vmatprep.subr.bf16.mxu0 %v9017
  %9145 = vmatpush1.bf16.msra.mxu0 %v9016
  %9146 = vmatprep.subr.bf16.mxu0 %v9019
  %9147 = vmatpush1.bf16.msra.mxu0 %v9018
  %9148 = vmatprep.subr.bf16.mxu0 %v9021
  %9149 = vmatpush1.bf16.msra.mxu0 %v9020
  %9150 = vmatprep.subr.bf16.mxu0 %v9023
  %9151 = vmatpush1.bf16.msra.mxu0 %v9022
  %9152 = vmatprep.mubr.bf16.mxu0 %v6857
  %9153 = vmatmul.mubr.bf16.gmra.mrb[0].mxu0 %v6856
  %v9154 = vpop.f32.mrb[0].mxu0
  %v9155 = vadd.f32 %v8793, %v9154
  %v9156 = vpop.f32.mrb[0].mxu0
  %v9157 = vadd.f32 %v8797, %v9156
  %v9158 = vpop.f32.mrb[0].mxu0
  %v9159 = vpop.f32.mrb[0].mxu0
  %9160 = vdwg.mxu0
  %9161 = vmatprep.subr.bf16.mxu0 %v9025
  %9162 = vmatpush1.bf16.msra.mxu0 %v9024
  %9163 = vmatprep.subr.bf16.mxu0 %v9027
  %9164 = vmatpush1.bf16.msra.mxu0 %v9026
  %9165 = vmatprep.subr.bf16.mxu0 %v9029
  %9166 = vmatpush1.bf16.msra.mxu0 %v9028
  %9167 = vmatprep.subr.bf16.mxu0 %v9031
  %9168 = vmatpush1.bf16.msra.mxu0 %v9030
  %9169 = vmatprep.subr.bf16.mxu0 %v9033
  %9170 = vmatpush1.bf16.msra.mxu0 %v9032
  %9171 = vmatprep.subr.bf16.mxu0 %v9035
  %9172 = vmatpush1.bf16.msra.mxu0 %v9034
  %9173 = vmatprep.subr.bf16.mxu0 %v9037
  %9174 = vmatpush1.bf16.msra.mxu0 %v9036
  %9175 = vmatprep.subr.bf16.mxu0 %v9039
  %9176 = vmatpush1.bf16.msra.mxu0 %v9038
  %9177 = vmatprep.subr.bf16.mxu0 %v9041
  %9178 = vmatpush1.bf16.msra.mxu0 %v9040
  %9179 = vmatprep.subr.bf16.mxu0 %v9043
  %9180 = vmatpush1.bf16.msra.mxu0 %v9042
  %9181 = vmatprep.subr.bf16.mxu0 %v9045
  %9182 = vmatpush1.bf16.msra.mxu0 %v9044
  %9183 = vmatprep.subr.bf16.mxu0 %v9047
  %9184 = vmatpush1.bf16.msra.mxu0 %v9046
  %9185 = vmatprep.subr.bf16.mxu0 %v9049
  %9186 = vmatpush1.bf16.msra.mxu0 %v9048
  %9187 = vmatprep.subr.bf16.mxu0 %v9051
  %9188 = vmatpush1.bf16.msra.mxu0 %v9050
  %9189 = vmatprep.subr.bf16.mxu0 %v9053
  %9190 = vmatpush1.bf16.msra.mxu0 %v9052
  %9191 = vmatprep.subr.bf16.mxu0 %v9055
  %9192 = vmatpush1.bf16.msra.mxu0 %v9054
  %9193 = vmatprep.mubr.bf16.mxu0 %v6859
  %9194 = vmatmul.mubr.bf16.gmra.mrb[0].mxu0 %v6858
  %v9195 = vpop.f32.mrb[0].mxu0
  %v9196 = vadd.f32 %v9155, %v9195
  %v9197 = vpop.f32.mrb[0].mxu0
  %v9198 = vadd.f32 %v9157, %v9197
  %v9199 = vpop.f32.mrb[0].mxu0
  %v9200 = vpop.f32.mrb[0].mxu0
  %9201 = vdwg.mxu0
  %v9202 = vmax.f32 %v9196, 0.0
  %v9203 = vmax.f32 %v9198, 0.0
  %v9204 = vld [vmem:[%s11] sm:$0xff]
  %v9205 = vld [vmem:[%s11 + $0x8] sm:$0xff]
  %v9206 = vld [vmem:[%s11 + $0x10] sm:$0xff]
  %v9207 = vld [vmem:[%s11 + $0x18] sm:$0xff]
  %v9208 = vld [vmem:[%s11 + $0x20] sm:$0xff]
  %v9209 = vld [vmem:[%s11 + $0x28] sm:$0xff]
  %v9210 = vld [vmem:[%s11 + $0x30] sm:$0xff]
  %v9211 = vld [vmem:[%s11 + $0x38] sm:$0xff]
  %v9212 = vld [vmem:[%s11 + $0x40] sm:$0xff]
  %v9213 = vld [vmem:[%s11 + $0x48] sm:$0xff]
  %v9214 = vld [vmem:[%s11 + $0x50] sm:$0xff]
  %v9215 = vld [vmem:[%s11 + $0x58] sm:$0xff]
  %v9216 = vld [vmem:[%s11 + $0x60] sm:$0xff]
  %v9217 = vld [vmem:[%s11 + $0x68] sm:$0xff]
  %v9218 = vld [vmem:[%s11 + $0x70] sm:$0xff]
  %v9219 = vld [vmem:[%s11 + $0x78] sm:$0xff]
  %v9220 = vld [vmem:[%s11 + $0x80] sm:$0xff]
  %v9221 = vld [vmem:[%s11 + $0x88] sm:$0xff]
  %v9222 = vld [vmem:[%s11 + $0x90] sm:$0xff]
  %v9223 = vld [vmem:[%s11 + $0x98] sm:$0xff]
  %v9224 = vpack.c.bf16 %v7756, %v7274
  %v9225 = vpack.c.bf16 %v7757, %v7275
  %v9226 = vpack.c.bf16 %v8720, %v8238
  %v9227 = vpack.c.bf16 %v8721, %v8239
  %v9228 = vpack.c.bf16 %v9202, %v9202
  %v9229 = vpack.c.bf16 %v9203, %v9203
  %v9250 = vunpack.c.l.b16 %v9204
  %v9251 = vunpack.c.h.b16 %v9204
  %v9252 = vunpack.c.l.b16 %v9205
  %v9253 = vunpack.c.h.b16 %v9205
  %v9254 = vunpack.c.l.b16 %v9206
  %v9255 = vunpack.c.h.b16 %v9206
  %v9256 = vunpack.c.l.b16 %v9207
  %v9257 = vunpack.c.h.b16 %v9207
  %v9258 = vunpack.c.l.b16 %v9208
  %v9259 = vunpack.c.h.b16 %v9208
  %v9260 = vunpack.c.l.b16 %v9209
  %v9261 = vunpack.c.h.b16 %v9209
  %v9262 = vunpack.c.l.b16 %v9210
  %v9263 = vunpack.c.h.b16 %v9210
  %v9264 = vunpack.c.l.b16 %v9211
  %v9265 = vunpack.c.h.b16 %v9211
  %v9266 = vunpack.c.l.b16 %v9212
  %v9267 = vunpack.c.h.b16 %v9212
  %v9268 = vunpack.c.l.b16 %v9213
  %v9269 = vunpack.c.h.b16 %v9213
  %v9270 = vunpack.c.l.b16 %v9214
  %v9271 = vunpack.c.h.b16 %v9214
  %v9272 = vunpack.c.l.b16 %v9215
  %v9273 = vunpack.c.h.b16 %v9215
  %v9274 = vunpack.c.l.b16 %v9216
  %v9275 = vunpack.c.h.b16 %v9216
  %v9276 = vunpack.c.l.b16 %v9217
  %v9277 = vunpack.c.h.b16 %v9217
  %v9278 = vunpack.c.l.b16 %v9218
  %v9279 = vunpack.c.h.b16 %v9218
  %v9280 = vunpack.c.l.b16 %v9219
  %v9281 = vunpack.c.h.b16 %v9219
  %v9282 = vunpack.c.l.b16 %v9220
  %v9283 = vunpack.c.h.b16 %v9220
  %v9284 = vunpack.c.l.b16 %v9221
  %v9285 = vunpack.c.h.b16 %v9221
  %v9286 = vunpack.c.l.b16 %v9222
  %v9287 = vunpack.c.h.b16 %v9222
  %v9288 = vunpack.c.l.b16 %v9223
  %v9289 = vunpack.c.h.b16 %v9223
  %v9290 = vpack.c.b16 %v9252, %v9250
  %v9291 = vpack.c.b16 %v9253, %v9251
  %v9292 = vpack.c.b16 %v9256, %v9254
  %v9293 = vpack.c.b16 %v9257, %v9255
  %v9294 = vpack.c.b16 %v9260, %v9258
  %v9295 = vpack.c.b16 %v9261, %v9259
  %v9296 = vpack.c.b16 %v9264, %v9262
  %v9297 = vpack.c.b16 %v9265, %v9263
  %v9298 = vpack.c.b16 %v9268, %v9266
  %v9299 = vpack.c.b16 %v9269, %v9267
  %v9300 = vpack.c.b16 %v9272, %v9270
  %v9301 = vpack.c.b16 %v9273, %v9271
  %v9302 = vpack.c.b16 %v9276, %v9274
  %v9303 = vpack.c.b16 %v9277, %v9275
  %v9304 = vpack.c.b16 %v9280, %v9278
  %v9305 = vpack.c.b16 %v9281, %v9279
  %v9306 = vpack.c.b16 %v9284, %v9282
  %v9307 = vpack.c.b16 %v9285, %v9283
  %v9308 = vpack.c.b16 %v9288, %v9286
  %v9309 = vpack.c.b16 %v9289, %v9287
  %v9331 = vsel %vm2065, %v9225, 0
  %v9334 = vsel %vm2065, %v9227, 0
  %v9337 = vsel %vm2065, %v9229, 0
  %9339 = vmatprep.subr.bf16.mxu0 %v9291
  %9340 = vmatpush1.bf16.msra.mxu0 %v9290
  %9341 = vmatprep.subr.bf16.mxu0 %v9293
  %9342 = vmatpush1.bf16.msra.mxu0 %v9292
  %9343 = vmatprep.subr.bf16.mxu0 %v9295
  %9344 = vmatpush1.bf16.msra.mxu0 %v9294
  %9345 = vmatprep.subr.bf16.mxu0 %v9297
  %9346 = vmatpush1.bf16.msra.mxu0 %v9296
  %9347 = vmatprep.subr.bf16.mxu0 %v9299
  %9348 = vmatpush1.bf16.msra.mxu0 %v9298
  %9349 = vmatprep.subr.bf16.mxu0 %v9301
  %9350 = vmatpush1.bf16.msra.mxu0 %v9300
  %9351 = vmatprep.subr.bf16.mxu0 %v9303
  %9352 = vmatpush1.bf16.msra.mxu0 %v9302
  %9353 = vmatprep.subr.bf16.mxu0 %v9305
  %9354 = vmatpush1.bf16.msra.mxu0 %v9304
  %9355 = vmatprep.subr.bf16.mxu0 %v9307
  %9356 = vmatpush1.bf16.msra.mxu0 %v9306
  %9357 = vmatprep.subr.bf16.mxu0 %v9309
  %9358 = vmatpush1.bf16.msra.mxu0 %v9308
  %9359 = vmatprep.subr.bf16.mxu0 0
  %9360 = vmatpush1.bf16.msra.mxu0 0
  %9361 = vmatprep.subr.bf16.mxu0 0
  %9362 = vmatpush1.bf16.msra.mxu0 0
  %9363 = vmatprep.subr.bf16.mxu0 0
  %9364 = vmatpush1.bf16.msra.mxu0 0
  %9365 = vmatprep.subr.bf16.mxu0 0
  %9366 = vmatpush1.bf16.msra.mxu0 0
  %9367 = vmatprep.subr.bf16.mxu0 0
  %9368 = vmatpush1.bf16.msra.mxu0 0
  %9369 = vmatprep.subr.bf16.mxu0 0
  %9370 = vmatpush1.bf16.msra.mxu0 0
  %9371 = vmatprep.mubr.bf16.mxu0 %v9331
  %9372 = vmatmul.mubr.bf16.gmra.mrb[0].mxu0 %v9224
  %v9373 = vpop.f32.mrb[0].mxu0
  %v9374 = vadd.f32 0.0, %v9373
  %v9375 = vpop.f32.mrb[0].mxu0
  %v9376 = vadd.f32 0.0, %v9375
  %v9377 = vpop.f32.mrb[0].mxu0
  %v9378 = vadd.f32 0.0, %v9377
  %v9379 = vpop.f32.mrb[0].mxu0
  %v9380 = vadd.f32 0.0, %v9379
  %9381 = vmatprep.mubr.bf16.mxu0 %v9334
  %9382 = vmatmul.mubr.bf16.gmra.mrb[0].mxu0 %v9226
  %v9383 = vpop.f32.mrb[0].mxu0
  %v9384 = vadd.f32 0.0, %v9383
  %v9385 = vpop.f32.mrb[0].mxu0
  %v9386 = vadd.f32 0.0, %v9385
  %v9387 = vpop.f32.mrb[0].mxu0
  %v9388 = vadd.f32 0.0, %v9387
  %v9389 = vpop.f32.mrb[0].mxu0
  %v9390 = vadd.f32 0.0, %v9389
  %9391 = vmatprep.mubr.bf16.mxu0 %v9337
  %9392 = vmatmul.mubr.bf16.gmra.mrb[0].mxu0 %v9228
  %v9393 = vpop.f32.mrb[0].mxu0
  %v9394 = vadd.f32 0.0, %v9393
  %v9395 = vpop.f32.mrb[0].mxu0
  %v9396 = vadd.f32 0.0, %v9395
  %v9397 = vpop.f32.mrb[0].mxu0
  %v9398 = vpop.f32.mrb[0].mxu0
  %9399 = vdwg.mxu0
  %s9400 = scalar_lea.vmem %s11, 160
  %v9401 = vld [vmem:[%s9400] sm:$0xff]
  %v9402 = vld [vmem:[%s9400 + $0x8] sm:$0xff]
  %v9403 = vld [vmem:[%s9400 + $0x10] sm:$0xff]
  %v9404 = vld [vmem:[%s9400 + $0x18] sm:$0xff]
  %v9405 = vld [vmem:[%s9400 + $0x20] sm:$0xff]
  %v9406 = vld [vmem:[%s9400 + $0x28] sm:$0xff]
  %v9407 = vld [vmem:[%s9400 + $0x30] sm:$0xff]
  %v9408 = vld [vmem:[%s9400 + $0x38] sm:$0xff]
  %v9409 = vld [vmem:[%s9400 + $0x40] sm:$0xff]
  %v9410 = vld [vmem:[%s9400 + $0x48] sm:$0xff]
  %v9411 = vld [vmem:[%s9400 + $0x50] sm:$0xff]
  %v9412 = vld [vmem:[%s9400 + $0x58] sm:$0xff]
  %v9413 = vld [vmem:[%s9400 + $0x60] sm:$0xff]
  %v9414 = vld [vmem:[%s9400 + $0x68] sm:$0xff]
  %v9415 = vld [vmem:[%s9400 + $0x70] sm:$0xff]
  %v9416 = vld [vmem:[%s9400 + $0x78] sm:$0xff]
  %v9417 = vld [vmem:[%s9400 + $0x80] sm:$0xff]
  %v9418 = vld [vmem:[%s9400 + $0x88] sm:$0xff]
  %v9419 = vld [vmem:[%s9400 + $0x90] sm:$0xff]
  %v9420 = vld [vmem:[%s9400 + $0x98] sm:$0xff]
  %v9441 = vunpack.c.l.b16 %v9401
  %v9442 = vunpack.c.h.b16 %v9401
  %v9443 = vunpack.c.l.b16 %v9402
  %v9444 = vunpack.c.h.b16 %v9402
  %v9445 = vunpack.c.l.b16 %v9403
  %v9446 = vunpack.c.h.b16 %v9403
  %v9447 = vunpack.c.l.b16 %v9404
  %v9448 = vunpack.c.h.b16 %v9404
  %v9449 = vunpack.c.l.b16 %v9405
  %v9450 = vunpack.c.h.b16 %v9405
  %v9451 = vunpack.c.l.b16 %v9406
  %v9452 = vunpack.c.h.b16 %v9406
  %v9453 = vunpack.c.l.b16 %v9407
  %v9454 = vunpack.c.h.b16 %v9407
  %v9455 = vunpack.c.l.b16 %v9408
  %v9456 = vunpack.c.h.b16 %v9408
  %v9457 = vunpack.c.l.b16 %v9409
  %v9458 = vunpack.c.h.b16 %v9409
  %v9459 = vunpack.c.l.b16 %v9410
  %v9460 = vunpack.c.h.b16 %v9410
  %v9461 = vunpack.c.l.b16 %v9411
  %v9462 = vunpack.c.h.b16 %v9411
  %v9463 = vunpack.c.l.b16 %v9412
  %v9464 = vunpack.c.h.b16 %v9412
  %v9465 = vunpack.c.l.b16 %v9413
  %v9466 = vunpack.c.h.b16 %v9413
  %v9467 = vunpack.c.l.b16 %v9414
  %v9468 = vunpack.c.h.b16 %v9414
  %v9469 = vunpack.c.l.b16 %v9415
  %v9470 = vunpack.c.h.b16 %v9415
  %v9471 = vunpack.c.l.b16 %v9416
  %v9472 = vunpack.c.h.b16 %v9416
  %v9473 = vunpack.c.l.b16 %v9417
  %v9474 = vunpack.c.h.b16 %v9417
  %v9475 = vunpack.c.l.b16 %v9418
  %v9476 = vunpack.c.h.b16 %v9418
  %v9477 = vunpack.c.l.b16 %v9419
  %v9478 = vunpack.c.h.b16 %v9419
  %v9479 = vunpack.c.l.b16 %v9420
  %v9480 = vunpack.c.h.b16 %v9420
  %v9481 = vpack.c.b16 %v9443, %v9441
  %v9482 = vpack.c.b16 %v9444, %v9442
  %v9483 = vpack.c.b16 %v9447, %v9445
  %v9484 = vpack.c.b16 %v9448, %v9446
  %v9485 = vpack.c.b16 %v9451, %v9449
  %v9486 = vpack.c.b16 %v9452, %v9450
  %v9487 = vpack.c.b16 %v9455, %v9453
  %v9488 = vpack.c.b16 %v9456, %v9454
  %v9489 = vpack.c.b16 %v9459, %v9457
  %v9490 = vpack.c.b16 %v9460, %v9458
  %v9491 = vpack.c.b16 %v9463, %v9461
  %v9492 = vpack.c.b16 %v9464, %v9462
  %v9493 = vpack.c.b16 %v9467, %v9465
  %v9494 = vpack.c.b16 %v9468, %v9466
  %v9495 = vpack.c.b16 %v9471, %v9469
  %v9496 = vpack.c.b16 %v9472, %v9470
  %v9497 = vpack.c.b16 %v9475, %v9473
  %v9498 = vpack.c.b16 %v9476, %v9474
  %v9499 = vpack.c.b16 %v9479, %v9477
  %v9500 = vpack.c.b16 %v9480, %v9478
  %9521 = vmatprep.subr.bf16.mxu0 %v9482
  %9522 = vmatpush1.bf16.msra.mxu0 %v9481
  %9523 = vmatprep.subr.bf16.mxu0 %v9484
  %9524 = vmatpush1.bf16.msra.mxu0 %v9483
  %9525 = vmatprep.subr.bf16.mxu0 %v9486
  %9526 = vmatpush1.bf16.msra.mxu0 %v9485
  %9527 = vmatprep.subr.bf16.mxu0 %v9488
  %9528 = vmatpush1.bf16.msra.mxu0 %v9487
  %9529 = vmatprep.subr.bf16.mxu0 %v9490
  %9530 = vmatpush1.bf16.msra.mxu0 %v9489
  %9531 = vmatprep.subr.bf16.mxu0 %v9492
  %9532 = vmatpush1.bf16.msra.mxu0 %v9491
  %9533 = vmatprep.subr.bf16.mxu0 %v9494
  %9534 = vmatpush1.bf16.msra.mxu0 %v9493
  %9535 = vmatprep.subr.bf16.mxu0 %v9496
  %9536 = vmatpush1.bf16.msra.mxu0 %v9495
  %9537 = vmatprep.subr.bf16.mxu0 %v9498
  %9538 = vmatpush1.bf16.msra.mxu0 %v9497
  %9539 = vmatprep.subr.bf16.mxu0 %v9500
  %9540 = vmatpush1.bf16.msra.mxu0 %v9499
  %9541 = vmatprep.subr.bf16.mxu0 0
  %9542 = vmatpush1.bf16.msra.mxu0 0
  %9543 = vmatprep.subr.bf16.mxu0 0
  %9544 = vmatpush1.bf16.msra.mxu0 0
  %9545 = vmatprep.subr.bf16.mxu0 0
  %9546 = vmatpush1.bf16.msra.mxu0 0
  %9547 = vmatprep.subr.bf16.mxu0 0
  %9548 = vmatpush1.bf16.msra.mxu0 0
  %9549 = vmatprep.subr.bf16.mxu0 0
  %9550 = vmatpush1.bf16.msra.mxu0 0
  %9551 = vmatprep.subr.bf16.mxu0 0
  %9552 = vmatpush1.bf16.msra.mxu0 0
  %9553 = vmatprep.mubr.bf16.mxu0 %v9331
  %9554 = vmatmul.mubr.bf16.gmra.mrb[0].mxu0 %v9224
  %v9555 = vpop.f32.mrb[0].mxu0
  %v9556 = vadd.f32 0.0, %v9555
  %v9557 = vpop.f32.mrb[0].mxu0
  %v9558 = vadd.f32 0.0, %v9557
  %v9559 = vpop.f32.mrb[0].mxu0
  %v9560 = vadd.f32 0.0, %v9559
  %v9561 = vpop.f32.mrb[0].mxu0
  %v9562 = vadd.f32 0.0, %v9561
  %9563 = vmatprep.mubr.bf16.mxu0 %v9334
  %9564 = vmatmul.mubr.bf16.gmra.mrb[0].mxu0 %v9226
  %v9565 = vpop.f32.mrb[0].mxu0
  %v9566 = vadd.f32 0.0, %v9565
  %v9567 = vpop.f32.mrb[0].mxu0
  %v9568 = vadd.f32 0.0, %v9567
  %v9569 = vpop.f32.mrb[0].mxu0
  %v9570 = vadd.f32 0.0, %v9569
  %v9571 = vpop.f32.mrb[0].mxu0
  %v9572 = vadd.f32 0.0, %v9571
  %9573 = vmatprep.mubr.bf16.mxu0 %v9337
  %9574 = vmatmul.mubr.bf16.gmra.mrb[0].mxu0 %v9228
  %v9575 = vpop.f32.mrb[0].mxu0
  %v9576 = vadd.f32 0.0, %v9575
  %v9577 = vpop.f32.mrb[0].mxu0
  %v9578 = vadd.f32 0.0, %v9577
  %v9579 = vpop.f32.mrb[0].mxu0
  %v9580 = vpop.f32.mrb[0].mxu0
  %9581 = vdwg.mxu0
  %s9582 = scalar_lea.vmem %s11, 320
  %v9583 = vld [vmem:[%s9582] sm:$0xff]
  %v9584 = vld [vmem:[%s9582 + $0x8] sm:$0xff]
  %v9585 = vld [vmem:[%s9582 + $0x10] sm:$0xff]
  %v9586 = vld [vmem:[%s9582 + $0x18] sm:$0xff]
  %v9587 = vld [vmem:[%s9582 + $0x20] sm:$0xff]
  %v9588 = vld [vmem:[%s9582 + $0x28] sm:$0xff]
  %v9589 = vld [vmem:[%s9582 + $0x30] sm:$0xff]
  %v9590 = vld [vmem:[%s9582 + $0x38] sm:$0xff]
  %v9591 = vld [vmem:[%s9582 + $0x40] sm:$0xff]
  %v9592 = vld [vmem:[%s9582 + $0x48] sm:$0xff]
  %v9593 = vld [vmem:[%s9582 + $0x50] sm:$0xff]
  %v9594 = vld [vmem:[%s9582 + $0x58] sm:$0xff]
  %v9595 = vld [vmem:[%s9582 + $0x60] sm:$0xff]
  %v9596 = vld [vmem:[%s9582 + $0x68] sm:$0xff]
  %v9597 = vld [vmem:[%s9582 + $0x70] sm:$0xff]
  %v9598 = vld [vmem:[%s9582 + $0x78] sm:$0xff]
  %v9599 = vld [vmem:[%s9582 + $0x80] sm:$0xff]
  %v9600 = vld [vmem:[%s9582 + $0x88] sm:$0xff]
  %v9601 = vld [vmem:[%s9582 + $0x90] sm:$0xff]
  %v9602 = vld [vmem:[%s9582 + $0x98] sm:$0xff]
  %v9623 = vunpack.c.l.b16 %v9583
  %v9624 = vunpack.c.h.b16 %v9583
  %v9625 = vunpack.c.l.b16 %v9584
  %v9626 = vunpack.c.h.b16 %v9584
  %v9627 = vunpack.c.l.b16 %v9585
  %v9628 = vunpack.c.h.b16 %v9585
  %v9629 = vunpack.c.l.b16 %v9586
  %v9630 = vunpack.c.h.b16 %v9586
  %v9631 = vunpack.c.l.b16 %v9587
  %v9632 = vunpack.c.h.b16 %v9587
  %v9633 = vunpack.c.l.b16 %v9588
  %v9634 = vunpack.c.h.b16 %v9588
  %v9635 = vunpack.c.l.b16 %v9589
  %v9636 = vunpack.c.h.b16 %v9589
  %v9637 = vunpack.c.l.b16 %v9590
  %v9638 = vunpack.c.h.b16 %v9590
  %v9639 = vunpack.c.l.b16 %v9591
  %v9640 = vunpack.c.h.b16 %v9591
  %v9641 = vunpack.c.l.b16 %v9592
  %v9642 = vunpack.c.h.b16 %v9592
  %v9643 = vunpack.c.l.b16 %v9593
  %v9644 = vunpack.c.h.b16 %v9593
  %v9645 = vunpack.c.l.b16 %v9594
  %v9646 = vunpack.c.h.b16 %v9594
  %v9647 = vunpack.c.l.b16 %v9595
  %v9648 = vunpack.c.h.b16 %v9595
  %v9649 = vunpack.c.l.b16 %v9596
  %v9650 = vunpack.c.h.b16 %v9596
  %v9651 = vunpack.c.l.b16 %v9597
  %v9652 = vunpack.c.h.b16 %v9597
  %v9653 = vunpack.c.l.b16 %v9598
  %v9654 = vunpack.c.h.b16 %v9598
  %v9655 = vunpack.c.l.b16 %v9599
  %v9656 = vunpack.c.h.b16 %v9599
  %v9657 = vunpack.c.l.b16 %v9600
  %v9658 = vunpack.c.h.b16 %v9600
  %v9659 = vunpack.c.l.b16 %v9601
  %v9660 = vunpack.c.h.b16 %v9601
  %v9661 = vunpack.c.l.b16 %v9602
  %v9662 = vunpack.c.h.b16 %v9602
  %v9663 = vpack.c.b16 %v9625, %v9623
  %v9664 = vpack.c.b16 %v9626, %v9624
  %v9665 = vpack.c.b16 %v9629, %v9627
  %v9666 = vpack.c.b16 %v9630, %v9628
  %v9667 = vpack.c.b16 %v9633, %v9631
  %v9668 = vpack.c.b16 %v9634, %v9632
  %v9669 = vpack.c.b16 %v9637, %v9635
  %v9670 = vpack.c.b16 %v9638, %v9636
  %v9671 = vpack.c.b16 %v9641, %v9639
  %v9672 = vpack.c.b16 %v9642, %v9640
  %v9673 = vpack.c.b16 %v9645, %v9643
  %v9674 = vpack.c.b16 %v9646, %v9644
  %v9675 = vpack.c.b16 %v9649, %v9647
  %v9676 = vpack.c.b16 %v9650, %v9648
  %v9677 = vpack.c.b16 %v9653, %v9651
  %v9678 = vpack.c.b16 %v9654, %v9652
  %v9679 = vpack.c.b16 %v9657, %v9655
  %v9680 = vpack.c.b16 %v9658, %v9656
  %v9681 = vpack.c.b16 %v9661, %v9659
  %v9682 = vpack.c.b16 %v9662, %v9660
  %9703 = vmatprep.subr.bf16.mxu0 %v9664
  %9704 = vmatpush1.bf16.msra.mxu0 %v9663
  %9705 = vmatprep.subr.bf16.mxu0 %v9666
  %9706 = vmatpush1.bf16.msra.mxu0 %v9665
  %9707 = vmatprep.subr.bf16.mxu0 %v9668
  %9708 = vmatpush1.bf16.msra.mxu0 %v9667
  %9709 = vmatprep.subr.bf16.mxu0 %v9670
  %9710 = vmatpush1.bf16.msra.mxu0 %v9669
  %9711 = vmatprep.subr.bf16.mxu0 %v9672
  %9712 = vmatpush1.bf16.msra.mxu0 %v9671
  %9713 = vmatprep.subr.bf16.mxu0 %v9674
  %9714 = vmatpush1.bf16.msra.mxu0 %v9673
  %9715 = vmatprep.subr.bf16.mxu0 %v9676
  %9716 = vmatpush1.bf16.msra.mxu0 %v9675
  %9717 = vmatprep.subr.bf16.mxu0 %v9678
  %9718 = vmatpush1.bf16.msra.mxu0 %v9677
  %9719 = vmatprep.subr.bf16.mxu0 %v9680
  %9720 = vmatpush1.bf16.msra.mxu0 %v9679
  %9721 = vmatprep.subr.bf16.mxu0 %v9682
  %9722 = vmatpush1.bf16.msra.mxu0 %v9681
  %9723 = vmatprep.subr.bf16.mxu0 0
  %9724 = vmatpush1.bf16.msra.mxu0 0
  %9725 = vmatprep.subr.bf16.mxu0 0
  %9726 = vmatpush1.bf16.msra.mxu0 0
  %9727 = vmatprep.subr.bf16.mxu0 0
  %9728 = vmatpush1.bf16.msra.mxu0 0
  %9729 = vmatprep.subr.bf16.mxu0 0
  %9730 = vmatpush1.bf16.msra.mxu0 0
  %9731 = vmatprep.subr.bf16.mxu0 0
  %9732 = vmatpush1.bf16.msra.mxu0 0
  %9733 = vmatprep.subr.bf16.mxu0 0
  %9734 = vmatpush1.bf16.msra.mxu0 0
  %9735 = vmatprep.mubr.bf16.mxu0 %v9331
  %9736 = vmatmul.mubr.bf16.gmra.mrb[0].mxu0 %v9224
  %v9737 = vpop.f32.mrb[0].mxu0
  %v9738 = vadd.f32 0.0, %v9737
  %v9739 = vpop.f32.mrb[0].mxu0
  %v9740 = vadd.f32 0.0, %v9739
  %v9741 = vpop.f32.mrb[0].mxu0
  %v9742 = vadd.f32 0.0, %v9741
  %v9743 = vpop.f32.mrb[0].mxu0
  %v9744 = vadd.f32 0.0, %v9743
  %9745 = vmatprep.mubr.bf16.mxu0 %v9334
  %9746 = vmatmul.mubr.bf16.gmra.mrb[0].mxu0 %v9226
  %v9747 = vpop.f32.mrb[0].mxu0
  %v9748 = vadd.f32 0.0, %v9747
  %v9749 = vpop.f32.mrb[0].mxu0
  %v9750 = vadd.f32 0.0, %v9749
  %v9751 = vpop.f32.mrb[0].mxu0
  %v9752 = vadd.f32 0.0, %v9751
  %v9753 = vpop.f32.mrb[0].mxu0
  %v9754 = vadd.f32 0.0, %v9753
  %9755 = vmatprep.mubr.bf16.mxu0 %v9337
  %9756 = vmatmul.mubr.bf16.gmra.mrb[0].mxu0 %v9228
  %v9757 = vpop.f32.mrb[0].mxu0
  %v9758 = vadd.f32 0.0, %v9757
  %v9759 = vpop.f32.mrb[0].mxu0
  %v9760 = vadd.f32 0.0, %v9759
  %v9761 = vpop.f32.mrb[0].mxu0
  %v9762 = vpop.f32.mrb[0].mxu0
  %9763 = vdwg.mxu0
  %s9764 = scalar_lea.vmem %s11, 480
  %v9765 = vld [vmem:[%s9764] sm:$0xff]
  %v9766 = vld [vmem:[%s9764 + $0x8] sm:$0xff]
  %v9767 = vld [vmem:[%s9764 + $0x10] sm:$0xff]
  %v9768 = vld [vmem:[%s9764 + $0x18] sm:$0xff]
  %v9769 = vld [vmem:[%s9764 + $0x20] sm:$0xff]
  %v9770 = vld [vmem:[%s9764 + $0x28] sm:$0xff]
  %v9771 = vld [vmem:[%s9764 + $0x30] sm:$0xff]
  %v9772 = vld [vmem:[%s9764 + $0x38] sm:$0xff]
  %v9773 = vld [vmem:[%s9764 + $0x40] sm:$0xff]
  %v9774 = vld [vmem:[%s9764 + $0x48] sm:$0xff]
  %v9775 = vld [vmem:[%s9764 + $0x50] sm:$0xff]
  %v9776 = vld [vmem:[%s9764 + $0x58] sm:$0xff]
  %v9777 = vld [vmem:[%s9764 + $0x60] sm:$0xff]
  %v9778 = vld [vmem:[%s9764 + $0x68] sm:$0xff]
  %v9779 = vld [vmem:[%s9764 + $0x70] sm:$0xff]
  %v9780 = vld [vmem:[%s9764 + $0x78] sm:$0xff]
  %v9781 = vld [vmem:[%s9764 + $0x80] sm:$0xff]
  %v9782 = vld [vmem:[%s9764 + $0x88] sm:$0xff]
  %v9783 = vld [vmem:[%s9764 + $0x90] sm:$0xff]
  %v9784 = vld [vmem:[%s9764 + $0x98] sm:$0xff]
  %v9805 = vunpack.c.l.b16 %v9765
  %v9806 = vunpack.c.h.b16 %v9765
  %v9807 = vunpack.c.l.b16 %v9766
  %v9808 = vunpack.c.h.b16 %v9766
  %v9809 = vunpack.c.l.b16 %v9767
  %v9810 = vunpack.c.h.b16 %v9767
  %v9811 = vunpack.c.l.b16 %v9768
  %v9812 = vunpack.c.h.b16 %v9768
  %v9813 = vunpack.c.l.b16 %v9769
  %v9814 = vunpack.c.h.b16 %v9769
  %v9815 = vunpack.c.l.b16 %v9770
  %v9816 = vunpack.c.h.b16 %v9770
  %v9817 = vunpack.c.l.b16 %v9771
  %v9818 = vunpack.c.h.b16 %v9771
  %v9819 = vunpack.c.l.b16 %v9772
  %v9820 = vunpack.c.h.b16 %v9772
  %v9821 = vunpack.c.l.b16 %v9773
  %v9822 = vunpack.c.h.b16 %v9773
  %v9823 = vunpack.c.l.b16 %v9774
  %v9824 = vunpack.c.h.b16 %v9774
  %v9825 = vunpack.c.l.b16 %v9775
  %v9826 = vunpack.c.h.b16 %v9775
  %v9827 = vunpack.c.l.b16 %v9776
  %v9828 = vunpack.c.h.b16 %v9776
  %v9829 = vunpack.c.l.b16 %v9777
  %v9830 = vunpack.c.h.b16 %v9777
  %v9831 = vunpack.c.l.b16 %v9778
  %v9832 = vunpack.c.h.b16 %v9778
  %v9833 = vunpack.c.l.b16 %v9779
  %v9834 = vunpack.c.h.b16 %v9779
  %v9835 = vunpack.c.l.b16 %v9780
  %v9836 = vunpack.c.h.b16 %v9780
  %v9837 = vunpack.c.l.b16 %v9781
  %v9838 = vunpack.c.h.b16 %v9781
  %v9839 = vunpack.c.l.b16 %v9782
  %v9840 = vunpack.c.h.b16 %v9782
  %v9841 = vunpack.c.l.b16 %v9783
  %v9842 = vunpack.c.h.b16 %v9783
  %v9843 = vunpack.c.l.b16 %v9784
  %v9844 = vunpack.c.h.b16 %v9784
  %v9845 = vpack.c.b16 %v9807, %v9805
  %v9846 = vpack.c.b16 %v9808, %v9806
  %v9847 = vpack.c.b16 %v9811, %v9809
  %v9848 = vpack.c.b16 %v9812, %v9810
  %v9849 = vpack.c.b16 %v9815, %v9813
  %v9850 = vpack.c.b16 %v9816, %v9814
  %v9851 = vpack.c.b16 %v9819, %v9817
  %v9852 = vpack.c.b16 %v9820, %v9818
  %v9853 = vpack.c.b16 %v9823, %v9821
  %v9854 = vpack.c.b16 %v9824, %v9822
  %v9855 = vpack.c.b16 %v9827, %v9825
  %v9856 = vpack.c.b16 %v9828, %v9826
  %v9857 = vpack.c.b16 %v9831, %v9829
  %v9858 = vpack.c.b16 %v9832, %v9830
  %v9859 = vpack.c.b16 %v9835, %v9833
  %v9860 = vpack.c.b16 %v9836, %v9834
  %v9861 = vpack.c.b16 %v9839, %v9837
  %v9862 = vpack.c.b16 %v9840, %v9838
  %v9863 = vpack.c.b16 %v9843, %v9841
  %v9864 = vpack.c.b16 %v9844, %v9842
  %9885 = vmatprep.subr.bf16.mxu0 %v9846
  %9886 = vmatpush1.bf16.msra.mxu0 %v9845
  %9887 = vmatprep.subr.bf16.mxu0 %v9848
  %9888 = vmatpush1.bf16.msra.mxu0 %v9847
  %9889 = vmatprep.subr.bf16.mxu0 %v9850
  %9890 = vmatpush1.bf16.msra.mxu0 %v9849
  %9891 = vmatprep.subr.bf16.mxu0 %v9852
  %9892 = vmatpush1.bf16.msra.mxu0 %v9851
  %9893 = vmatprep.subr.bf16.mxu0 %v9854
  %9894 = vmatpush1.bf16.msra.mxu0 %v9853
  %9895 = vmatprep.subr.bf16.mxu0 %v9856
  %9896 = vmatpush1.bf16.msra.mxu0 %v9855
  %9897 = vmatprep.subr.bf16.mxu0 %v9858
  %9898 = vmatpush1.bf16.msra.mxu0 %v9857
  %9899 = vmatprep.subr.bf16.mxu0 %v9860
  %9900 = vmatpush1.bf16.msra.mxu0 %v9859
  %9901 = vmatprep.subr.bf16.mxu0 %v9862
  %9902 = vmatpush1.bf16.msra.mxu0 %v9861
  %9903 = vmatprep.subr.bf16.mxu0 %v9864
  %9904 = vmatpush1.bf16.msra.mxu0 %v9863
  %9905 = vmatprep.subr.bf16.mxu0 0
  %9906 = vmatpush1.bf16.msra.mxu0 0
  %9907 = vmatprep.subr.bf16.mxu0 0
  %9908 = vmatpush1.bf16.msra.mxu0 0
  %9909 = vmatprep.subr.bf16.mxu0 0
  %9910 = vmatpush1.bf16.msra.mxu0 0
  %9911 = vmatprep.subr.bf16.mxu0 0
  %9912 = vmatpush1.bf16.msra.mxu0 0
  %9913 = vmatprep.subr.bf16.mxu0 0
  %9914 = vmatpush1.bf16.msra.mxu0 0
  %9915 = vmatprep.subr.bf16.mxu0 0
  %9916 = vmatpush1.bf16.msra.mxu0 0
  %9917 = vmatprep.mubr.bf16.mxu0 %v9331
  %9918 = vmatmul.mubr.bf16.gmra.mrb[0].mxu0 %v9224
  %v9919 = vpop.f32.mrb[0].mxu0
  %v9920 = vadd.f32 0.0, %v9919
  %v9921 = vpop.f32.mrb[0].mxu0
  %v9922 = vadd.f32 0.0, %v9921
  %v9923 = vpop.f32.mrb[0].mxu0
  %v9924 = vadd.f32 0.0, %v9923
  %v9925 = vpop.f32.mrb[0].mxu0
  %v9926 = vadd.f32 0.0, %v9925
  %9927 = vmatprep.mubr.bf16.mxu0 %v9334
  %9928 = vmatmul.mubr.bf16.gmra.mrb[0].mxu0 %v9226
  %v9929 = vpop.f32.mrb[0].mxu0
  %v9930 = vadd.f32 0.0, %v9929
  %v9931 = vpop.f32.mrb[0].mxu0
  %v9932 = vadd.f32 0.0, %v9931
  %v9933 = vpop.f32.mrb[0].mxu0
  %v9934 = vadd.f32 0.0, %v9933
  %v9935 = vpop.f32.mrb[0].mxu0
  %v9936 = vadd.f32 0.0, %v9935
  %9937 = vmatprep.mubr.bf16.mxu0 %v9337
  %9938 = vmatmul.mubr.bf16.gmra.mrb[0].mxu0 %v9228
  %v9939 = vpop.f32.mrb[0].mxu0
  %v9940 = vadd.f32 0.0, %v9939
  %v9941 = vpop.f32.mrb[0].mxu0
  %v9942 = vadd.f32 0.0, %v9941
  %v9943 = vpop.f32.mrb[0].mxu0
  %v9944 = vpop.f32.mrb[0].mxu0
  %9945 = vdwg.mxu0
  %s9946 = scalar_lea.vmem %s11, 640
  %v9947 = vld [vmem:[%s9946] sm:$0xff]
  %v9948 = vld [vmem:[%s9946 + $0x8] sm:$0xff]
  %v9949 = vld [vmem:[%s9946 + $0x10] sm:$0xff]
  %v9950 = vld [vmem:[%s9946 + $0x18] sm:$0xff]
  %v9951 = vld [vmem:[%s9946 + $0x20] sm:$0xff]
  %v9952 = vld [vmem:[%s9946 + $0x28] sm:$0xff]
  %v9953 = vld [vmem:[%s9946 + $0x30] sm:$0xff]
  %v9954 = vld [vmem:[%s9946 + $0x38] sm:$0xff]
  %v9955 = vld [vmem:[%s9946 + $0x40] sm:$0xff]
  %v9956 = vld [vmem:[%s9946 + $0x48] sm:$0xff]
  %v9957 = vld [vmem:[%s9946 + $0x50] sm:$0xff]
  %v9958 = vld [vmem:[%s9946 + $0x58] sm:$0xff]
  %v9959 = vld [vmem:[%s9946 + $0x60] sm:$0xff]
  %v9960 = vld [vmem:[%s9946 + $0x68] sm:$0xff]
  %v9961 = vld [vmem:[%s9946 + $0x70] sm:$0xff]
  %v9962 = vld [vmem:[%s9946 + $0x78] sm:$0xff]
  %v9963 = vld [vmem:[%s9946 + $0x80] sm:$0xff]
  %v9964 = vld [vmem:[%s9946 + $0x88] sm:$0xff]
  %v9965 = vld [vmem:[%s9946 + $0x90] sm:$0xff]
  %v9966 = vld [vmem:[%s9946 + $0x98] sm:$0xff]
  %v9987 = vunpack.c.l.b16 %v9947
  %v9988 = vunpack.c.h.b16 %v9947
  %v9989 = vunpack.c.l.b16 %v9948
  %v9990 = vunpack.c.h.b16 %v9948
  %v9991 = vunpack.c.l.b16 %v9949
  %v9992 = vunpack.c.h.b16 %v9949
  %v9993 = vunpack.c.l.b16 %v9950
  %v9994 = vunpack.c.h.b16 %v9950
  %v9995 = vunpack.c.l.b16 %v9951
  %v9996 = vunpack.c.h.b16 %v9951
  %v9997 = vunpack.c.l.b16 %v9952
  %v9998 = vunpack.c.h.b16 %v9952
  %v9999 = vunpack.c.l.b16 %v9953
  %v10000 = vunpack.c.h.b16 %v9953
  %v10001 = vunpack.c.l.b16 %v9954
  %v10002 = vunpack.c.h.b16 %v9954
  %v10003 = vunpack.c.l.b16 %v9955
  %v10004 = vunpack.c.h.b16 %v9955
  %v10005 = vunpack.c.l.b16 %v9956
  %v10006 = vunpack.c.h.b16 %v9956
  %v10007 = vunpack.c.l.b16 %v9957
  %v10008 = vunpack.c.h.b16 %v9957
  %v10009 = vunpack.c.l.b16 %v9958
  %v10010 = vunpack.c.h.b16 %v9958
  %v10011 = vunpack.c.l.b16 %v9959
  %v10012 = vunpack.c.h.b16 %v9959
  %v10013 = vunpack.c.l.b16 %v9960
  %v10014 = vunpack.c.h.b16 %v9960
  %v10015 = vunpack.c.l.b16 %v9961
  %v10016 = vunpack.c.h.b16 %v9961
  %v10017 = vunpack.c.l.b16 %v9962
  %v10018 = vunpack.c.h.b16 %v9962
  %v10019 = vunpack.c.l.b16 %v9963
  %v10020 = vunpack.c.h.b16 %v9963
  %v10021 = vunpack.c.l.b16 %v9964
  %v10022 = vunpack.c.h.b16 %v9964
  %v10023 = vunpack.c.l.b16 %v9965
  %v10024 = vunpack.c.h.b16 %v9965
  %v10025 = vunpack.c.l.b16 %v9966
  %v10026 = vunpack.c.h.b16 %v9966
  %v10027 = vpack.c.b16 %v9989, %v9987
  %v10028 = vpack.c.b16 %v9990, %v9988
  %v10029 = vpack.c.b16 %v9993, %v9991
  %v10030 = vpack.c.b16 %v9994, %v9992
  %v10031 = vpack.c.b16 %v9997, %v9995
  %v10032 = vpack.c.b16 %v9998, %v9996
  %v10033 = vpack.c.b16 %v10001, %v9999
  %v10034 = vpack.c.b16 %v10002, %v10000
  %v10035 = vpack.c.b16 %v10005, %v10003
  %v10036 = vpack.c.b16 %v10006, %v10004
  %v10037 = vpack.c.b16 %v10009, %v10007
  %v10038 = vpack.c.b16 %v10010, %v10008
  %v10039 = vpack.c.b16 %v10013, %v10011
  %v10040 = vpack.c.b16 %v10014, %v10012
  %v10041 = vpack.c.b16 %v10017, %v10015
  %v10042 = vpack.c.b16 %v10018, %v10016
  %v10043 = vpack.c.b16 %v10021, %v10019
  %v10044 = vpack.c.b16 %v10022, %v10020
  %v10045 = vpack.c.b16 %v10025, %v10023
  %v10046 = vpack.c.b16 %v10026, %v10024
  %10067 = vmatprep.subr.bf16.mxu0 %v10028
  %10068 = vmatpush1.bf16.msra.mxu0 %v10027
  %10069 = vmatprep.subr.bf16.mxu0 %v10030
  %10070 = vmatpush1.bf16.msra.mxu0 %v10029
  %10071 = vmatprep.subr.bf16.mxu0 %v10032
  %10072 = vmatpush1.bf16.msra.mxu0 %v10031
  %10073 = vmatprep.subr.bf16.mxu0 %v10034
  %10074 = vmatpush1.bf16.msra.mxu0 %v10033
  %10075 = vmatprep.subr.bf16.mxu0 %v10036
  %10076 = vmatpush1.bf16.msra.mxu0 %v10035
  %10077 = vmatprep.subr.bf16.mxu0 %v10038
  %10078 = vmatpush1.bf16.msra.mxu0 %v10037
  %10079 = vmatprep.subr.bf16.mxu0 %v10040
  %10080 = vmatpush1.bf16.msra.mxu0 %v10039
  %10081 = vmatprep.subr.bf16.mxu0 %v10042
  %10082 = vmatpush1.bf16.msra.mxu0 %v10041
  %10083 = vmatprep.subr.bf16.mxu0 %v10044
  %10084 = vmatpush1.bf16.msra.mxu0 %v10043
  %10085 = vmatprep.subr.bf16.mxu0 %v10046
  %10086 = vmatpush1.bf16.msra.mxu0 %v10045
  %10087 = vmatprep.subr.bf16.mxu0 0
  %10088 = vmatpush1.bf16.msra.mxu0 0
  %10089 = vmatprep.subr.bf16.mxu0 0
  %10090 = vmatpush1.bf16.msra.mxu0 0
  %10091 = vmatprep.subr.bf16.mxu0 0
  %10092 = vmatpush1.bf16.msra.mxu0 0
  %10093 = vmatprep.subr.bf16.mxu0 0
  %10094 = vmatpush1.bf16.msra.mxu0 0
  %10095 = vmatprep.subr.bf16.mxu0 0
  %10096 = vmatpush1.bf16.msra.mxu0 0
  %10097 = vmatprep.subr.bf16.mxu0 0
  %10098 = vmatpush1.bf16.msra.mxu0 0
  %10099 = vmatprep.mubr.bf16.mxu0 %v9331
  %10100 = vmatmul.mubr.bf16.gmra.mrb[0].mxu0 %v9224
  %v10101 = vpop.f32.mrb[0].mxu0
  %v10102 = vadd.f32 0.0, %v10101
  %v10103 = vpop.f32.mrb[0].mxu0
  %v10104 = vadd.f32 0.0, %v10103
  %v10105 = vpop.f32.mrb[0].mxu0
  %v10106 = vadd.f32 0.0, %v10105
  %v10107 = vpop.f32.mrb[0].mxu0
  %v10108 = vadd.f32 0.0, %v10107
  %10109 = vmatprep.mubr.bf16.mxu0 %v9334
  %10110 = vmatmul.mubr.bf16.gmra.mrb[0].mxu0 %v9226
  %v10111 = vpop.f32.mrb[0].mxu0
  %v10112 = vadd.f32 0.0, %v10111
  %v10113 = vpop.f32.mrb[0].mxu0
  %v10114 = vadd.f32 0.0, %v10113
  %v10115 = vpop.f32.mrb[0].mxu0
  %v10116 = vadd.f32 0.0, %v10115
  %v10117 = vpop.f32.mrb[0].mxu0
  %v10118 = vadd.f32 0.0, %v10117
  %10119 = vmatprep.mubr.bf16.mxu0 %v9337
  %10120 = vmatmul.mubr.bf16.gmra.mrb[0].mxu0 %v9228
  %v10121 = vpop.f32.mrb[0].mxu0
  %v10122 = vadd.f32 0.0, %v10121
  %v10123 = vpop.f32.mrb[0].mxu0
  %v10124 = vadd.f32 0.0, %v10123
  %v10125 = vpop.f32.mrb[0].mxu0
  %v10126 = vpop.f32.mrb[0].mxu0
  %10127 = vdwg.mxu0
  %v10128 = vadd.f32 %v9378, %v9738
  %v10129 = vadd.f32 %v9380, %v9740
  %v10130 = vadd.f32 %v9560, %v9920
  %v10131 = vadd.f32 %v9562, %v9922
  %v10132 = vadd.f32 %v9384, %v9742
  %v10133 = vadd.f32 %v9386, %v9744
  %v10134 = vadd.f32 %v10132, %v10102
  %v10135 = vadd.f32 %v10133, %v10104
  %v10136 = vadd.f32 %v9566, %v9924
  %v10137 = vadd.f32 %v9568, %v9926
  %v10138 = vadd.f32 %v9388, %v9748
  %v10139 = vadd.f32 %v9390, %v9750
  %v10140 = vadd.f32 %v10138, %v10106
  %v10141 = vadd.f32 %v10139, %v10108
  %v10142 = vadd.f32 %v9570, %v9930
  %v10143 = vadd.f32 %v9572, %v9932
  %v10144 = vadd.f32 %v9394, %v9752
  %v10145 = vadd.f32 %v9396, %v9754
  %v10146 = vadd.f32 %v10144, %v10112
  %v10147 = vadd.f32 %v10145, %v10114
  %v10148 = vadd.f32 %v9576, %v9934
  %v10149 = vadd.f32 %v9578, %v9936
  %v10150 = vadd.f32 %v9758, %v10116
  %v10151 = vadd.f32 %v9760, %v10118
  %v10152 = vld [vmem:[%s12] sm:$0x3]
  %v10154 = vlaneseq
  %v10155 = vshrl.u32 %v10154, 7
  %v10156 = vsub.s32 0, %v10155
  %v10157 = vrot.slane %v10152, %v10156
  %v10158 = vlaneseq
  %v10159 = vshrl.u32 %v10158, 7
  %v10160 = vsub.s32 1, %v10159
  %v10161 = vrot.slane %v10152, %v10160
  %v10164 = vadd.f32 %v9374, %v10157
  %v10165 = vadd.f32 %v9376, %v10161
  %v10166 = vadd.f32 %v9556, %v10157
  %v10167 = vadd.f32 %v9558, %v10161
  %v10168 = vadd.f32 %v10128, %v10157
  %v10169 = vadd.f32 %v10129, %v10161
  %v10170 = vadd.f32 %v10130, %v10157
  %v10171 = vadd.f32 %v10131, %v10161
  %v10172 = vadd.f32 %v10134, %v10157
  %v10173 = vadd.f32 %v10135, %v10161
  %v10174 = vadd.f32 %v10136, %v10157
  %v10175 = vadd.f32 %v10137, %v10161
  %v10176 = vadd.f32 %v10140, %v10157
  %v10177 = vadd.f32 %v10141, %v10161
  %v10178 = vadd.f32 %v10142, %v10157
  %v10179 = vadd.f32 %v10143, %v10161
  %v10180 = vadd.f32 %v10146, %v10157
  %v10181 = vadd.f32 %v10147, %v10161
  %v10182 = vadd.f32 %v10148, %v10157
  %v10183 = vadd.f32 %v10149, %v10161
  %v10184 = vadd.f32 %v10150, %v10157
  %v10185 = vadd.f32 %v10151, %v10161
  %v10186 = vadd.f32 %v9940, %v10157
  %v10187 = vadd.f32 %v9942, %v10161
  %v10188 = vadd.f32 %v10122, %v10157
  %v10189 = vadd.f32 %v10124, %v10161
  %v10190 = vmax.f32 %v10164, 0.0
  %v10191 = vmax.f32 %v10165, 0.0
  %v10192 = vmax.f32 %v10166, 0.0
  %v10193 = vmax.f32 %v10167, 0.0
  %v10194 = vmax.f32 %v10168, 0.0
  %v10195 = vmax.f32 %v10169, 0.0
  %v10196 = vmax.f32 %v10170, 0.0
  %v10197 = vmax.f32 %v10171, 0.0
  %v10198 = vmax.f32 %v10172, 0.0
  %v10199 = vmax.f32 %v10173, 0.0
  %v10200 = vmax.f32 %v10174, 0.0
  %v10201 = vmax.f32 %v10175, 0.0
  %v10202 = vmax.f32 %v10176, 0.0
  %v10203 = vmax.f32 %v10177, 0.0
  %v10204 = vmax.f32 %v10178, 0.0
  %v10205 = vmax.f32 %v10179, 0.0
  %v10206 = vmax.f32 %v10180, 0.0
  %v10207 = vmax.f32 %v10181, 0.0
  %v10208 = vmax.f32 %v10182, 0.0
  %v10209 = vmax.f32 %v10183, 0.0
  %v10210 = vmax.f32 %v10184, 0.0
  %v10211 = vmax.f32 %v10185, 0.0
  %v10212 = vmax.f32 %v10186, 0.0
  %v10213 = vmax.f32 %v10187, 0.0
  %v10214 = vmax.f32 %v10188, 0.0
  %v10215 = vmax.f32 %v10189, 0.0
  %v10216 = vld [vmem:[%s13] sm:$0xf]
  %v10217 = vld [vmem:[%s13 + $0x4] sm:$0xf]
  %v10218 = vld [vmem:[%s13 + $0x8] sm:$0xf]
  %v10219 = vld [vmem:[%s13 + $0xc] sm:$0xf]
  %v10220 = vld [vmem:[%s13 + $0x10] sm:$0xf]
  %v10221 = vld [vmem:[%s13 + $0x14] sm:$0xf]
  %v10222 = vld [vmem:[%s13 + $0x18] sm:$0xf]
  %v10223 = vld [vmem:[%s13 + $0x1c] sm:$0xf]
  %v10224 = vld [vmem:[%s13 + $0x20] sm:$0xf]
  %v10225 = vld [vmem:[%s13 + $0x24] sm:$0xf]
  %v10226 = vld [vmem:[%s13 + $0x28] sm:$0xf]
  %v10227 = vld [vmem:[%s13 + $0x2c] sm:$0xf]
  %v10228 = vld [vmem:[%s13 + $0x30] sm:$0xf]
  %v10229 = vld [vmem:[%s13 + $0x34] sm:$0xf]
  %v10230 = vld [vmem:[%s13 + $0x38] sm:$0xf]
  %v10231 = vld [vmem:[%s13 + $0x3c] sm:$0xf]
  %v10232 = vld [vmem:[%s13 + $0x40] sm:$0xf]
  %v10233 = vld [vmem:[%s13 + $0x44] sm:$0xf]
  %v10234 = vld [vmem:[%s13 + $0x48] sm:$0xf]
  %v10235 = vld [vmem:[%s13 + $0x4c] sm:$0xf]
  %v10236 = vld [vmem:[%s13 + $0x50] sm:$0xf]
  %v10237 = vld [vmem:[%s13 + $0x54] sm:$0xf]
  %v10238 = vld [vmem:[%s13 + $0x58] sm:$0xf]
  %v10239 = vld [vmem:[%s13 + $0x5c] sm:$0xf]
  %v10240 = vld [vmem:[%s13 + $0x60] sm:$0xf]
  %v10241 = vld [vmem:[%s13 + $0x64] sm:$0xf]
  %v10242 = vpack.c.bf16 %v10192, %v10190
  %v10243 = vpack.c.bf16 %v10193, %v10191
  %v10244 = vpack.c.bf16 %v10196, %v10194
  %v10245 = vpack.c.bf16 %v10197, %v10195
  %v10246 = vpack.c.bf16 %v10200, %v10198
  %v10247 = vpack.c.bf16 %v10201, %v10199
  %v10248 = vpack.c.bf16 %v10204, %v10202
  %v10249 = vpack.c.bf16 %v10205, %v10203
  %v10250 = vpack.c.bf16 %v10208, %v10206
  %v10251 = vpack.c.bf16 %v10209, %v10207
  %v10252 = vpack.c.bf16 %v10212, %v10210
  %v10253 = vpack.c.bf16 %v10213, %v10211
  %v10254 = vpack.c.bf16 %v10214, %v10214
  %v10255 = vpack.c.bf16 %v10215, %v10215
  %v10282 = vunpack.c.l.b16 %v10216
  %v10283 = vunpack.c.l.b16 %v10217
  %v10284 = vunpack.c.l.b16 %v10218
  %v10285 = vunpack.c.l.b16 %v10219
  %v10286 = vunpack.c.l.b16 %v10220
  %v10287 = vunpack.c.l.b16 %v10221
  %v10288 = vunpack.c.l.b16 %v10222
  %v10289 = vunpack.c.l.b16 %v10223
  %v10290 = vunpack.c.l.b16 %v10224
  %v10291 = vunpack.c.l.b16 %v10225
  %v10292 = vunpack.c.l.b16 %v10226
  %v10293 = vunpack.c.l.b16 %v10227
  %v10294 = vunpack.c.l.b16 %v10228
  %v10295 = vunpack.c.l.b16 %v10229
  %v10296 = vunpack.c.l.b16 %v10230
  %v10297 = vunpack.c.l.b16 %v10231
  %v10298 = vunpack.c.l.b16 %v10232
  %v10299 = vunpack.c.l.b16 %v10233
  %v10300 = vunpack.c.l.b16 %v10234
  %v10301 = vunpack.c.l.b16 %v10235
  %v10302 = vunpack.c.l.b16 %v10236
  %v10303 = vunpack.c.l.b16 %v10237
  %v10304 = vunpack.c.l.b16 %v10238
  %v10305 = vunpack.c.l.b16 %v10239
  %v10306 = vunpack.c.l.b16 %v10240
  %v10307 = vunpack.c.l.b16 %v10241
  %v10308 = vpack.c.b16 %v10283, %v10282
  %v10309 = vpack.c.b16 %v10285, %v10284
  %v10310 = vpack.c.b16 %v10287, %v10286
  %v10311 = vpack.c.b16 %v10289, %v10288
  %v10312 = vpack.c.b16 %v10291, %v10290
  %v10313 = vpack.c.b16 %v10293, %v10292
  %v10314 = vpack.c.b16 %v10295, %v10294
  %v10315 = vpack.c.b16 %v10297, %v10296
  %v10316 = vpack.c.b16 %v10299, %v10298
  %v10317 = vpack.c.b16 %v10301, %v10300
  %v10318 = vpack.c.b16 %v10303, %v10302
  %v10319 = vpack.c.b16 %v10305, %v10304
  %v10320 = vpack.c.b16 %v10307, %v10306
  %v10335 = vsel %vm3167, %v10243, 0
  %v10338 = vsel %vm3167, %v10245, 0
  %v10341 = vsel %vm3167, %v10247, 0
  %v10344 = vsel %vm3167, %v10249, 0
  %v10347 = vsel %vm3167, %v10251, 0
  %v10350 = vsel %vm3167, %v10253, 0
  %v10353 = vsel %vm3167, %v10255, 0
  %10355 = vmatprep.subr.bf16.mxu0 0
  %10356 = vmatpush1.bf16.msra.mxu0 %v10308
  %10357 = vmatprep.subr.bf16.mxu0 0
  %10358 = vmatpush1.bf16.msra.mxu0 %v10309
  %10359 = vmatprep.subr.bf16.mxu0 0
  %10360 = vmatpush1.bf16.msra.mxu0 %v10310
  %10361 = vmatprep.subr.bf16.mxu0 0
  %10362 = vmatpush1.bf16.msra.mxu0 %v10311
  %10363 = vmatprep.subr.bf16.mxu0 0
  %10364 = vmatpush1.bf16.msra.mxu0 %v10312
  %10365 = vmatprep.subr.bf16.mxu0 0
  %10366 = vmatpush1.bf16.msra.mxu0 %v10313
  %10367 = vmatprep.subr.bf16.mxu0 0
  %10368 = vmatpush1.bf16.msra.mxu0 %v10314
  %10369 = vmatprep.subr.bf16.mxu0 0
  %10370 = vmatpush1.bf16.msra.mxu0 %v10315
  %10371 = vmatprep.subr.bf16.mxu0 0
  %10372 = vmatpush1.bf16.msra.mxu0 %v10316
  %10373 = vmatprep.subr.bf16.mxu0 0
  %10374 = vmatpush1.bf16.msra.mxu0 %v10317
  %10375 = vmatprep.subr.bf16.mxu0 0
  %10376 = vmatpush1.bf16.msra.mxu0 %v10318
  %10377 = vmatprep.subr.bf16.mxu0 0
  %10378 = vmatpush1.bf16.msra.mxu0 %v10319
  %10379 = vmatprep.subr.bf16.mxu0 0
  %10380 = vmatpush1.bf16.msra.mxu0 %v10320
  %10381 = vmatprep.subr.bf16.mxu0 0
  %10382 = vmatpush1.bf16.msra.mxu0 0
  %10383 = vmatprep.subr.bf16.mxu0 0
  %10384 = vmatpush1.bf16.msra.mxu0 0
  %10385 = vmatprep.subr.bf16.mxu0 0
  %10386 = vmatpush1.bf16.msra.mxu0 0
  %10387 = vmatprep.mubr.bf16.mxu0 %v10335
  %10388 = vmatmul.mubr.bf16.gmra.mrb[0].mxu0 %v10242
  %v10389 = vpop.f32.mrb[0].mxu0
  %v10390 = vadd.f32 0.0, %v10389
  %v10391 = vpop.f32.mrb[0].mxu0
  %v10392 = vpop.f32.mrb[0].mxu0
  %v10393 = vadd.f32 0.0, %v10392
  %v10394 = vpop.f32.mrb[0].mxu0
  %10395 = vmatprep.mubr.bf16.mxu0 %v10338
  %10396 = vmatmul.mubr.bf16.gmra.mrb[0].mxu0 %v10244
  %v10397 = vpop.f32.mrb[0].mxu0
  %v10398 = vadd.f32 0.0, %v10397
  %v10399 = vpop.f32.mrb[0].mxu0
  %v10400 = vpop.f32.mrb[0].mxu0
  %v10401 = vadd.f32 0.0, %v10400
  %v10402 = vpop.f32.mrb[0].mxu0
  %10403 = vmatprep.mubr.bf16.mxu0 %v10341
  %10404 = vmatmul.mubr.bf16.gmra.mrb[0].mxu0 %v10246
  %v10405 = vpop.f32.mrb[0].mxu0
  %v10406 = vadd.f32 0.0, %v10405
  %v10407 = vpop.f32.mrb[0].mxu0
  %v10408 = vpop.f32.mrb[0].mxu0
  %v10409 = vadd.f32 0.0, %v10408
  %v10410 = vpop.f32.mrb[0].mxu0
  %10411 = vmatprep.mubr.bf16.mxu0 %v10344
  %10412 = vmatmul.mubr.bf16.gmra.mrb[0].mxu0 %v10248
  %v10413 = vpop.f32.mrb[0].mxu0
  %v10414 = vadd.f32 0.0, %v10413
  %v10415 = vpop.f32.mrb[0].mxu0
  %v10416 = vpop.f32.mrb[0].mxu0
  %v10417 = vadd.f32 0.0, %v10416
  %v10418 = vpop.f32.mrb[0].mxu0
  %10419 = vmatprep.mubr.bf16.mxu0 %v10347
  %10420 = vmatmul.mubr.bf16.gmra.mrb[0].mxu0 %v10250
  %v10421 = vpop.f32.mrb[0].mxu0
  %v10422 = vadd.f32 0.0, %v10421
  %v10423 = vpop.f32.mrb[0].mxu0
  %v10424 = vpop.f32.mrb[0].mxu0
  %v10425 = vadd.f32 0.0, %v10424
  %v10426 = vpop.f32.mrb[0].mxu0
  %10427 = vmatprep.mubr.bf16.mxu0 %v10350
  %10428 = vmatmul.mubr.bf16.gmra.mrb[0].mxu0 %v10252
  %v10429 = vpop.f32.mrb[0].mxu0
  %v10430 = vadd.f32 0.0, %v10429
  %v10431 = vpop.f32.mrb[0].mxu0
  %v10432 = vpop.f32.mrb[0].mxu0
  %v10433 = vadd.f32 0.0, %v10432
  %v10434 = vpop.f32.mrb[0].mxu0
  %10435 = vmatprep.mubr.bf16.mxu0 %v10353
  %10436 = vmatmul.mubr.bf16.gmra.mrb[0].mxu0 %v10254
  %v10437 = vpop.f32.mrb[0].mxu0
  %v10438 = vadd.f32 0.0, %v10437
  %v10439 = vpop.f32.mrb[0].mxu0
  %v10440 = vpop.f32.mrb[0].mxu0
  %v10441 = vpop.f32.mrb[0].mxu0
  %10442 = vdwg.mxu0
  %s10443 = scalar_lea.vmem %s13, 104
  %v10444 = vld [vmem:[%s10443] sm:$0xf]
  %v10445 = vld [vmem:[%s10443 + $0x4] sm:$0xf]
  %v10446 = vld [vmem:[%s10443 + $0x8] sm:$0xf]
  %v10447 = vld [vmem:[%s10443 + $0xc] sm:$0xf]
  %v10448 = vld [vmem:[%s10443 + $0x10] sm:$0xf]
  %v10449 = vld [vmem:[%s10443 + $0x14] sm:$0xf]
  %v10450 = vld [vmem:[%s10443 + $0x18] sm:$0xf]
  %v10451 = vld [vmem:[%s10443 + $0x1c] sm:$0xf]
  %v10452 = vld [vmem:[%s10443 + $0x20] sm:$0xf]
  %v10453 = vld [vmem:[%s10443 + $0x24] sm:$0xf]
  %v10454 = vld [vmem:[%s10443 + $0x28] sm:$0xf]
  %v10455 = vld [vmem:[%s10443 + $0x2c] sm:$0xf]
  %v10456 = vld [vmem:[%s10443 + $0x30] sm:$0xf]
  %v10457 = vld [vmem:[%s10443 + $0x34] sm:$0xf]
  %v10458 = vld [vmem:[%s10443 + $0x38] sm:$0xf]
  %v10459 = vld [vmem:[%s10443 + $0x3c] sm:$0xf]
  %v10460 = vld [vmem:[%s10443 + $0x40] sm:$0xf]
  %v10461 = vld [vmem:[%s10443 + $0x44] sm:$0xf]
  %v10462 = vld [vmem:[%s10443 + $0x48] sm:$0xf]
  %v10463 = vld [vmem:[%s10443 + $0x4c] sm:$0xf]
  %v10464 = vld [vmem:[%s10443 + $0x50] sm:$0xf]
  %v10465 = vld [vmem:[%s10443 + $0x54] sm:$0xf]
  %v10466 = vld [vmem:[%s10443 + $0x58] sm:$0xf]
  %v10467 = vld [vmem:[%s10443 + $0x5c] sm:$0xf]
  %v10468 = vld [vmem:[%s10443 + $0x60] sm:$0xf]
  %v10469 = vld [vmem:[%s10443 + $0x64] sm:$0xf]
  %v10496 = vunpack.c.l.b16 %v10444
  %v10497 = vunpack.c.l.b16 %v10445
  %v10498 = vunpack.c.l.b16 %v10446
  %v10499 = vunpack.c.l.b16 %v10447
  %v10500 = vunpack.c.l.b16 %v10448
  %v10501 = vunpack.c.l.b16 %v10449
  %v10502 = vunpack.c.l.b16 %v10450
  %v10503 = vunpack.c.l.b16 %v10451
  %v10504 = vunpack.c.l.b16 %v10452
  %v10505 = vunpack.c.l.b16 %v10453
  %v10506 = vunpack.c.l.b16 %v10454
  %v10507 = vunpack.c.l.b16 %v10455
  %v10508 = vunpack.c.l.b16 %v10456
  %v10509 = vunpack.c.l.b16 %v10457
  %v10510 = vunpack.c.l.b16 %v10458
  %v10511 = vunpack.c.l.b16 %v10459
  %v10512 = vunpack.c.l.b16 %v10460
  %v10513 = vunpack.c.l.b16 %v10461
  %v10514 = vunpack.c.l.b16 %v10462
  %v10515 = vunpack.c.l.b16 %v10463
  %v10516 = vunpack.c.l.b16 %v10464
  %v10517 = vunpack.c.l.b16 %v10465
  %v10518 = vunpack.c.l.b16 %v10466
  %v10519 = vunpack.c.l.b16 %v10467
  %v10520 = vunpack.c.l.b16 %v10468
  %v10521 = vunpack.c.l.b16 %v10469
  %v10522 = vpack.c.b16 %v10497, %v10496
  %v10523 = vpack.c.b16 %v10499, %v10498
  %v10524 = vpack.c.b16 %v10501, %v10500
  %v10525 = vpack.c.b16 %v10503, %v10502
  %v10526 = vpack.c.b16 %v10505, %v10504
  %v10527 = vpack.c.b16 %v10507, %v10506
  %v10528 = vpack.c.b16 %v10509, %v10508
  %v10529 = vpack.c.b16 %v10511, %v10510
  %v10530 = vpack.c.b16 %v10513, %v10512
  %v10531 = vpack.c.b16 %v10515, %v10514
  %v10532 = vpack.c.b16 %v10517, %v10516
  %v10533 = vpack.c.b16 %v10519, %v10518
  %v10534 = vpack.c.b16 %v10521, %v10520
  %10548 = vmatprep.subr.bf16.mxu0 0
  %10549 = vmatpush1.bf16.msra.mxu0 %v10522
  %10550 = vmatprep.subr.bf16.mxu0 0
  %10551 = vmatpush1.bf16.msra.mxu0 %v10523
  %10552 = vmatprep.subr.bf16.mxu0 0
  %10553 = vmatpush1.bf16.msra.mxu0 %v10524
  %10554 = vmatprep.subr.bf16.mxu0 0
  %10555 = vmatpush1.bf16.msra.mxu0 %v10525
  %10556 = vmatprep.subr.bf16.mxu0 0
  %10557 = vmatpush1.bf16.msra.mxu0 %v10526
  %10558 = vmatprep.subr.bf16.mxu0 0
  %10559 = vmatpush1.bf16.msra.mxu0 %v10527
  %10560 = vmatprep.subr.bf16.mxu0 0
  %10561 = vmatpush1.bf16.msra.mxu0 %v10528
  %10562 = vmatprep.subr.bf16.mxu0 0
  %10563 = vmatpush1.bf16.msra.mxu0 %v10529
  %10564 = vmatprep.subr.bf16.mxu0 0
  %10565 = vmatpush1.bf16.msra.mxu0 %v10530
  %10566 = vmatprep.subr.bf16.mxu0 0
  %10567 = vmatpush1.bf16.msra.mxu0 %v10531
  %10568 = vmatprep.subr.bf16.mxu0 0
  %10569 = vmatpush1.bf16.msra.mxu0 %v10532
  %10570 = vmatprep.subr.bf16.mxu0 0
  %10571 = vmatpush1.bf16.msra.mxu0 %v10533
  %10572 = vmatprep.subr.bf16.mxu0 0
  %10573 = vmatpush1.bf16.msra.mxu0 %v10534
  %10574 = vmatprep.subr.bf16.mxu0 0
  %10575 = vmatpush1.bf16.msra.mxu0 0
  %10576 = vmatprep.subr.bf16.mxu0 0
  %10577 = vmatpush1.bf16.msra.mxu0 0
  %10578 = vmatprep.subr.bf16.mxu0 0
  %10579 = vmatpush1.bf16.msra.mxu0 0
  %10580 = vmatprep.mubr.bf16.mxu0 %v10335
  %10581 = vmatmul.mubr.bf16.gmra.mrb[0].mxu0 %v10242
  %v10582 = vpop.f32.mrb[0].mxu0
  %v10583 = vadd.f32 0.0, %v10582
  %v10584 = vpop.f32.mrb[0].mxu0
  %v10585 = vpop.f32.mrb[0].mxu0
  %v10586 = vadd.f32 0.0, %v10585
  %v10587 = vpop.f32.mrb[0].mxu0
  %10588 = vmatprep.mubr.bf16.mxu0 %v10338
  %10589 = vmatmul.mubr.bf16.gmra.mrb[0].mxu0 %v10244
  %v10590 = vpop.f32.mrb[0].mxu0
  %v10591 = vadd.f32 0.0, %v10590
  %v10592 = vpop.f32.mrb[0].mxu0
  %v10593 = vpop.f32.mrb[0].mxu0
  %v10594 = vadd.f32 0.0, %v10593
  %v10595 = vpop.f32.mrb[0].mxu0
  %10596 = vmatprep.mubr.bf16.mxu0 %v10341
  %10597 = vmatmul.mubr.bf16.gmra.mrb[0].mxu0 %v10246
  %v10598 = vpop.f32.mrb[0].mxu0
  %v10599 = vadd.f32 0.0, %v10598
  %v10600 = vpop.f32.mrb[0].mxu0
  %v10601 = vpop.f32.mrb[0].mxu0
  %v10602 = vadd.f32 0.0, %v10601
  %v10603 = vpop.f32.mrb[0].mxu0
  %10604 = vmatprep.mubr.bf16.mxu0 %v10344
  %10605 = vmatmul.mubr.bf16.gmra.mrb[0].mxu0 %v10248
  %v10606 = vpop.f32.mrb[0].mxu0
  %v10607 = vadd.f32 0.0, %v10606
  %v10608 = vpop.f32.mrb[0].mxu0
  %v10609 = vpop.f32.mrb[0].mxu0
  %v10610 = vadd.f32 0.0, %v10609
  %v10611 = vpop.f32.mrb[0].mxu0
  %10612 = vmatprep.mubr.bf16.mxu0 %v10347
  %10613 = vmatmul.mubr.bf16.gmra.mrb[0].mxu0 %v10250
  %v10614 = vpop.f32.mrb[0].mxu0
  %v10615 = vadd.f32 0.0, %v10614
  %v10616 = vpop.f32.mrb[0].mxu0
  %v10617 = vpop.f32.mrb[0].mxu0
  %v10618 = vadd.f32 0.0, %v10617
  %v10619 = vpop.f32.mrb[0].mxu0
  %10620 = vmatprep.mubr.bf16.mxu0 %v10350
  %10621 = vmatmul.mubr.bf16.gmra.mrb[0].mxu0 %v10252
  %v10622 = vpop.f32.mrb[0].mxu0
  %v10623 = vadd.f32 0.0, %v10622
  %v10624 = vpop.f32.mrb[0].mxu0
  %v10625 = vpop.f32.mrb[0].mxu0
  %v10626 = vadd.f32 0.0, %v10625
  %v10627 = vpop.f32.mrb[0].mxu0
  %10628 = vmatprep.mubr.bf16.mxu0 %v10353
  %10629 = vmatmul.mubr.bf16.gmra.mrb[0].mxu0 %v10254
  %v10630 = vpop.f32.mrb[0].mxu0
  %v10631 = vadd.f32 0.0, %v10630
  %v10632 = vpop.f32.mrb[0].mxu0
  %v10633 = vpop.f32.mrb[0].mxu0
  %v10634 = vpop.f32.mrb[0].mxu0
  %10635 = vdwg.mxu0
  %s10636 = scalar_lea.vmem %s13, 208
  %v10637 = vld [vmem:[%s10636] sm:$0xf]
  %v10638 = vld [vmem:[%s10636 + $0x4] sm:$0xf]
  %v10639 = vld [vmem:[%s10636 + $0x8] sm:$0xf]
  %v10640 = vld [vmem:[%s10636 + $0xc] sm:$0xf]
  %v10641 = vld [vmem:[%s10636 + $0x10] sm:$0xf]
  %v10642 = vld [vmem:[%s10636 + $0x14] sm:$0xf]
  %v10643 = vld [vmem:[%s10636 + $0x18] sm:$0xf]
  %v10644 = vld [vmem:[%s10636 + $0x1c] sm:$0xf]
  %v10645 = vld [vmem:[%s10636 + $0x20] sm:$0xf]
  %v10646 = vld [vmem:[%s10636 + $0x24] sm:$0xf]
  %v10647 = vld [vmem:[%s10636 + $0x28] sm:$0xf]
  %v10648 = vld [vmem:[%s10636 + $0x2c] sm:$0xf]
  %v10649 = vld [vmem:[%s10636 + $0x30] sm:$0xf]
  %v10650 = vld [vmem:[%s10636 + $0x34] sm:$0xf]
  %v10651 = vld [vmem:[%s10636 + $0x38] sm:$0xf]
  %v10652 = vld [vmem:[%s10636 + $0x3c] sm:$0xf]
  %v10653 = vld [vmem:[%s10636 + $0x40] sm:$0xf]
  %v10654 = vld [vmem:[%s10636 + $0x44] sm:$0xf]
  %v10655 = vld [vmem:[%s10636 + $0x48] sm:$0xf]
  %v10656 = vld [vmem:[%s10636 + $0x4c] sm:$0xf]
  %v10657 = vld [vmem:[%s10636 + $0x50] sm:$0xf]
  %v10658 = vld [vmem:[%s10636 + $0x54] sm:$0xf]
  %v10659 = vld [vmem:[%s10636 + $0x58] sm:$0xf]
  %v10660 = vld [vmem:[%s10636 + $0x5c] sm:$0xf]
  %v10661 = vld [vmem:[%s10636 + $0x60] sm:$0xf]
  %v10662 = vld [vmem:[%s10636 + $0x64] sm:$0xf]
  %v10689 = vunpack.c.l.b16 %v10637
  %v10690 = vunpack.c.l.b16 %v10638
  %v10691 = vunpack.c.l.b16 %v10639
  %v10692 = vunpack.c.l.b16 %v10640
  %v10693 = vunpack.c.l.b16 %v10641
  %v10694 = vunpack.c.l.b16 %v10642
  %v10695 = vunpack.c.l.b16 %v10643
  %v10696 = vunpack.c.l.b16 %v10644
  %v10697 = vunpack.c.l.b16 %v10645
  %v10698 = vunpack.c.l.b16 %v10646
  %v10699 = vunpack.c.l.b16 %v10647
  %v10700 = vunpack.c.l.b16 %v10648
  %v10701 = vunpack.c.l.b16 %v10649
  %v10702 = vunpack.c.l.b16 %v10650
  %v10703 = vunpack.c.l.b16 %v10651
  %v10704 = vunpack.c.l.b16 %v10652
  %v10705 = vunpack.c.l.b16 %v10653
  %v10706 = vunpack.c.l.b16 %v10654
  %v10707 = vunpack.c.l.b16 %v10655
  %v10708 = vunpack.c.l.b16 %v10656
  %v10709 = vunpack.c.l.b16 %v10657
  %v10710 = vunpack.c.l.b16 %v10658
  %v10711 = vunpack.c.l.b16 %v10659
  %v10712 = vunpack.c.l.b16 %v10660
  %v10713 = vunpack.c.l.b16 %v10661
  %v10714 = vunpack.c.l.b16 %v10662
  %v10715 = vpack.c.b16 %v10690, %v10689
  %v10716 = vpack.c.b16 %v10692, %v10691
  %v10717 = vpack.c.b16 %v10694, %v10693
  %v10718 = vpack.c.b16 %v10696, %v10695
  %v10719 = vpack.c.b16 %v10698, %v10697
  %v10720 = vpack.c.b16 %v10700, %v10699
  %v10721 = vpack.c.b16 %v10702, %v10701
  %v10722 = vpack.c.b16 %v10704, %v10703
  %v10723 = vpack.c.b16 %v10706, %v10705
  %v10724 = vpack.c.b16 %v10708, %v10707
  %v10725 = vpack.c.b16 %v10710, %v10709
  %v10726 = vpack.c.b16 %v10712, %v10711
  %v10727 = vpack.c.b16 %v10714, %v10713
  %10741 = vmatprep.subr.bf16.mxu0 0
  %10742 = vmatpush1.bf16.msra.mxu0 %v10715
  %10743 = vmatprep.subr.bf16.mxu0 0
  %10744 = vmatpush1.bf16.msra.mxu0 %v10716
  %10745 = vmatprep.subr.bf16.mxu0 0
  %10746 = vmatpush1.bf16.msra.mxu0 %v10717
  %10747 = vmatprep.subr.bf16.mxu0 0
  %10748 = vmatpush1.bf16.msra.mxu0 %v10718
  %10749 = vmatprep.subr.bf16.mxu0 0
  %10750 = vmatpush1.bf16.msra.mxu0 %v10719
  %10751 = vmatprep.subr.bf16.mxu0 0
  %10752 = vmatpush1.bf16.msra.mxu0 %v10720
  %10753 = vmatprep.subr.bf16.mxu0 0
  %10754 = vmatpush1.bf16.msra.mxu0 %v10721
  %10755 = vmatprep.subr.bf16.mxu0 0
  %10756 = vmatpush1.bf16.msra.mxu0 %v10722
  %10757 = vmatprep.subr.bf16.mxu0 0
  %10758 = vmatpush1.bf16.msra.mxu0 %v10723
  %10759 = vmatprep.subr.bf16.mxu0 0
  %10760 = vmatpush1.bf16.msra.mxu0 %v10724
  %10761 = vmatprep.subr.bf16.mxu0 0
  %10762 = vmatpush1.bf16.msra.mxu0 %v10725
  %10763 = vmatprep.subr.bf16.mxu0 0
  %10764 = vmatpush1.bf16.msra.mxu0 %v10726
  %10765 = vmatprep.subr.bf16.mxu0 0
  %10766 = vmatpush1.bf16.msra.mxu0 %v10727
  %10767 = vmatprep.subr.bf16.mxu0 0
  %10768 = vmatpush1.bf16.msra.mxu0 0
  %10769 = vmatprep.subr.bf16.mxu0 0
  %10770 = vmatpush1.bf16.msra.mxu0 0
  %10771 = vmatprep.subr.bf16.mxu0 0
  %10772 = vmatpush1.bf16.msra.mxu0 0
  %10773 = vmatprep.mubr.bf16.mxu0 %v10335
  %10774 = vmatmul.mubr.bf16.gmra.mrb[0].mxu0 %v10242
  %v10775 = vpop.f32.mrb[0].mxu0
  %v10776 = vadd.f32 0.0, %v10775
  %v10777 = vpop.f32.mrb[0].mxu0
  %v10778 = vpop.f32.mrb[0].mxu0
  %v10779 = vadd.f32 0.0, %v10778
  %v10780 = vpop.f32.mrb[0].mxu0
  %10781 = vmatprep.mubr.bf16.mxu0 %v10338
  %10782 = vmatmul.mubr.bf16.gmra.mrb[0].mxu0 %v10244
  %v10783 = vpop.f32.mrb[0].mxu0
  %v10784 = vadd.f32 0.0, %v10783
  %v10785 = vpop.f32.mrb[0].mxu0
  %v10786 = vpop.f32.mrb[0].mxu0
  %v10787 = vadd.f32 0.0, %v10786
  %v10788 = vpop.f32.mrb[0].mxu0
  %10789 = vmatprep.mubr.bf16.mxu0 %v10341
  %10790 = vmatmul.mubr.bf16.gmra.mrb[0].mxu0 %v10246
  %v10791 = vpop.f32.mrb[0].mxu0
  %v10792 = vadd.f32 0.0, %v10791
  %v10793 = vpop.f32.mrb[0].mxu0
  %v10794 = vpop.f32.mrb[0].mxu0
  %v10795 = vadd.f32 0.0, %v10794
  %v10796 = vpop.f32.mrb[0].mxu0
  %10797 = vmatprep.mubr.bf16.mxu0 %v10344
  %10798 = vmatmul.mubr.bf16.gmra.mrb[0].mxu0 %v10248
  %v10799 = vpop.f32.mrb[0].mxu0
  %v10800 = vadd.f32 0.0, %v10799
  %v10801 = vpop.f32.mrb[0].mxu0
  %v10802 = vpop.f32.mrb[0].mxu0
  %v10803 = vadd.f32 0.0, %v10802
  %v10804 = vpop.f32.mrb[0].mxu0
  %10805 = vmatprep.mubr.bf16.mxu0 %v10347
  %10806 = vmatmul.mubr.bf16.gmra.mrb[0].mxu0 %v10250
  %v10807 = vpop.f32.mrb[0].mxu0
  %v10808 = vadd.f32 0.0, %v10807
  %v10809 = vpop.f32.mrb[0].mxu0
  %v10810 = vpop.f32.mrb[0].mxu0
  %v10811 = vadd.f32 0.0, %v10810
  %v10812 = vpop.f32.mrb[0].mxu0
  %10813 = vmatprep.mubr.bf16.mxu0 %v10350
  %10814 = vmatmul.mubr.bf16.gmra.mrb[0].mxu0 %v10252
  %v10815 = vpop.f32.mrb[0].mxu0
  %v10816 = vadd.f32 0.0, %v10815
  %v10817 = vpop.f32.mrb[0].mxu0
  %v10818 = vpop.f32.mrb[0].mxu0
  %v10819 = vadd.f32 0.0, %v10818
  %v10820 = vpop.f32.mrb[0].mxu0
  %10821 = vmatprep.mubr.bf16.mxu0 %v10353
  %10822 = vmatmul.mubr.bf16.gmra.mrb[0].mxu0 %v10254
  %v10823 = vpop.f32.mrb[0].mxu0
  %v10824 = vadd.f32 0.0, %v10823
  %v10825 = vpop.f32.mrb[0].mxu0
  %v10826 = vpop.f32.mrb[0].mxu0
  %v10827 = vpop.f32.mrb[0].mxu0
  %10828 = vdwg.mxu0
  %s10829 = scalar_lea.vmem %s13, 312
  %v10830 = vld [vmem:[%s10829] sm:$0xf]
  %v10831 = vld [vmem:[%s10829 + $0x4] sm:$0xf]
  %v10832 = vld [vmem:[%s10829 + $0x8] sm:$0xf]
  %v10833 = vld [vmem:[%s10829 + $0xc] sm:$0xf]
  %v10834 = vld [vmem:[%s10829 + $0x10] sm:$0xf]
  %v10835 = vld [vmem:[%s10829 + $0x14] sm:$0xf]
  %v10836 = vld [vmem:[%s10829 + $0x18] sm:$0xf]
  %v10837 = vld [vmem:[%s10829 + $0x1c] sm:$0xf]
  %v10838 = vld [vmem:[%s10829 + $0x20] sm:$0xf]
  %v10839 = vld [vmem:[%s10829 + $0x24] sm:$0xf]
  %v10840 = vld [vmem:[%s10829 + $0x28] sm:$0xf]
  %v10841 = vld [vmem:[%s10829 + $0x2c] sm:$0xf]
  %v10842 = vld [vmem:[%s10829 + $0x30] sm:$0xf]
  %v10843 = vld [vmem:[%s10829 + $0x34] sm:$0xf]
  %v10844 = vld [vmem:[%s10829 + $0x38] sm:$0xf]
  %v10845 = vld [vmem:[%s10829 + $0x3c] sm:$0xf]
  %v10846 = vld [vmem:[%s10829 + $0x40] sm:$0xf]
  %v10847 = vld [vmem:[%s10829 + $0x44] sm:$0xf]
  %v10848 = vld [vmem:[%s10829 + $0x48] sm:$0xf]
  %v10849 = vld [vmem:[%s10829 + $0x4c] sm:$0xf]
  %v10850 = vld [vmem:[%s10829 + $0x50] sm:$0xf]
  %v10851 = vld [vmem:[%s10829 + $0x54] sm:$0xf]
  %v10852 = vld [vmem:[%s10829 + $0x58] sm:$0xf]
  %v10853 = vld [vmem:[%s10829 + $0x5c] sm:$0xf]
  %v10854 = vld [vmem:[%s10829 + $0x60] sm:$0xf]
  %v10855 = vld [vmem:[%s10829 + $0x64] sm:$0xf]
  %v10882 = vunpack.c.l.b16 %v10830
  %v10883 = vunpack.c.l.b16 %v10831
  %v10884 = vunpack.c.l.b16 %v10832
  %v10885 = vunpack.c.l.b16 %v10833
  %v10886 = vunpack.c.l.b16 %v10834
  %v10887 = vunpack.c.l.b16 %v10835
  %v10888 = vunpack.c.l.b16 %v10836
  %v10889 = vunpack.c.l.b16 %v10837
  %v10890 = vunpack.c.l.b16 %v10838
  %v10891 = vunpack.c.l.b16 %v10839
  %v10892 = vunpack.c.l.b16 %v10840
  %v10893 = vunpack.c.l.b16 %v10841
  %v10894 = vunpack.c.l.b16 %v10842
  %v10895 = vunpack.c.l.b16 %v10843
  %v10896 = vunpack.c.l.b16 %v10844
  %v10897 = vunpack.c.l.b16 %v10845
  %v10898 = vunpack.c.l.b16 %v10846
  %v10899 = vunpack.c.l.b16 %v10847
  %v10900 = vunpack.c.l.b16 %v10848
  %v10901 = vunpack.c.l.b16 %v10849
  %v10902 = vunpack.c.l.b16 %v10850
  %v10903 = vunpack.c.l.b16 %v10851
  %v10904 = vunpack.c.l.b16 %v10852
  %v10905 = vunpack.c.l.b16 %v10853
  %v10906 = vunpack.c.l.b16 %v10854
  %v10907 = vunpack.c.l.b16 %v10855
  %v10908 = vpack.c.b16 %v10883, %v10882
  %v10909 = vpack.c.b16 %v10885, %v10884
  %v10910 = vpack.c.b16 %v10887, %v10886
  %v10911 = vpack.c.b16 %v10889, %v10888
  %v10912 = vpack.c.b16 %v10891, %v10890
  %v10913 = vpack.c.b16 %v10893, %v10892
  %v10914 = vpack.c.b16 %v10895, %v10894
  %v10915 = vpack.c.b16 %v10897, %v10896
  %v10916 = vpack.c.b16 %v10899, %v10898
  %v10917 = vpack.c.b16 %v10901, %v10900
  %v10918 = vpack.c.b16 %v10903, %v10902
  %v10919 = vpack.c.b16 %v10905, %v10904
  %v10920 = vpack.c.b16 %v10907, %v10906
  %10934 = vmatprep.subr.bf16.mxu0 0
  %10935 = vmatpush1.bf16.msra.mxu0 %v10908
  %10936 = vmatprep.subr.bf16.mxu0 0
  %10937 = vmatpush1.bf16.msra.mxu0 %v10909
  %10938 = vmatprep.subr.bf16.mxu0 0
  %10939 = vmatpush1.bf16.msra.mxu0 %v10910
  %10940 = vmatprep.subr.bf16.mxu0 0
  %10941 = vmatpush1.bf16.msra.mxu0 %v10911
  %10942 = vmatprep.subr.bf16.mxu0 0
  %10943 = vmatpush1.bf16.msra.mxu0 %v10912
  %10944 = vmatprep.subr.bf16.mxu0 0
  %10945 = vmatpush1.bf16.msra.mxu0 %v10913
  %10946 = vmatprep.subr.bf16.mxu0 0
  %10947 = vmatpush1.bf16.msra.mxu0 %v10914
  %10948 = vmatprep.subr.bf16.mxu0 0
  %10949 = vmatpush1.bf16.msra.mxu0 %v10915
  %10950 = vmatprep.subr.bf16.mxu0 0
  %10951 = vmatpush1.bf16.msra.mxu0 %v10916
  %10952 = vmatprep.subr.bf16.mxu0 0
  %10953 = vmatpush1.bf16.msra.mxu0 %v10917
  %10954 = vmatprep.subr.bf16.mxu0 0
  %10955 = vmatpush1.bf16.msra.mxu0 %v10918
  %10956 = vmatprep.subr.bf16.mxu0 0
  %10957 = vmatpush1.bf16.msra.mxu0 %v10919
  %10958 = vmatprep.subr.bf16.mxu0 0
  %10959 = vmatpush1.bf16.msra.mxu0 %v10920
  %10960 = vmatprep.subr.bf16.mxu0 0
  %10961 = vmatpush1.bf16.msra.mxu0 0
  %10962 = vmatprep.subr.bf16.mxu0 0
  %10963 = vmatpush1.bf16.msra.mxu0 0
  %10964 = vmatprep.subr.bf16.mxu0 0
  %10965 = vmatpush1.bf16.msra.mxu0 0
  %10966 = vmatprep.mubr.bf16.mxu0 %v10335
  %10967 = vmatmul.mubr.bf16.gmra.mrb[0].mxu0 %v10242
  %v10968 = vpop.f32.mrb[0].mxu0
  %v10969 = vadd.f32 0.0, %v10968
  %v10970 = vpop.f32.mrb[0].mxu0
  %v10971 = vpop.f32.mrb[0].mxu0
  %v10972 = vadd.f32 0.0, %v10971
  %v10973 = vpop.f32.mrb[0].mxu0
  %10974 = vmatprep.mubr.bf16.mxu0 %v10338
  %10975 = vmatmul.mubr.bf16.gmra.mrb[0].mxu0 %v10244
  %v10976 = vpop.f32.mrb[0].mxu0
  %v10977 = vadd.f32 0.0, %v10976
  %v10978 = vpop.f32.mrb[0].mxu0
  %v10979 = vpop.f32.mrb[0].mxu0
  %v10980 = vadd.f32 0.0, %v10979
  %v10981 = vpop.f32.mrb[0].mxu0
  %10982 = vmatprep.mubr.bf16.mxu0 %v10341
  %10983 = vmatmul.mubr.bf16.gmra.mrb[0].mxu0 %v10246
  %v10984 = vpop.f32.mrb[0].mxu0
  %v10985 = vadd.f32 0.0, %v10984
  %v10986 = vpop.f32.mrb[0].mxu0
  %v10987 = vpop.f32.mrb[0].mxu0
  %v10988 = vadd.f32 0.0, %v10987
  %v10989 = vpop.f32.mrb[0].mxu0
  %10990 = vmatprep.mubr.bf16.mxu0 %v10344
  %10991 = vmatmul.mubr.bf16.gmra.mrb[0].mxu0 %v10248
  %v10992 = vpop.f32.mrb[0].mxu0
  %v10993 = vadd.f32 0.0, %v10992
  %v10994 = vpop.f32.mrb[0].mxu0
  %v10995 = vpop.f32.mrb[0].mxu0
  %v10996 = vadd.f32 0.0, %v10995
  %v10997 = vpop.f32.mrb[0].mxu0
  %10998 = vmatprep.mubr.bf16.mxu0 %v10347
  %10999 = vmatmul.mubr.bf16.gmra.mrb[0].mxu0 %v10250
  %v11000 = vpop.f32.mrb[0].mxu0
  %v11001 = vadd.f32 0.0, %v11000
  %v11002 = vpop.f32.mrb[0].mxu0
  %v11003 = vpop.f32.mrb[0].mxu0
  %v11004 = vadd.f32 0.0, %v11003
  %v11005 = vpop.f32.mrb[0].mxu0
  %11006 = vmatprep.mubr.bf16.mxu0 %v10350
  %11007 = vmatmul.mubr.bf16.gmra.mrb[0].mxu0 %v10252
  %v11008 = vpop.f32.mrb[0].mxu0
  %v11009 = vadd.f32 0.0, %v11008
  %v11010 = vpop.f32.mrb[0].mxu0
  %v11011 = vpop.f32.mrb[0].mxu0
  %v11012 = vadd.f32 0.0, %v11011
  %v11013 = vpop.f32.mrb[0].mxu0
  %11014 = vmatprep.mubr.bf16.mxu0 %v10353
  %11015 = vmatmul.mubr.bf16.gmra.mrb[0].mxu0 %v10254
  %v11016 = vpop.f32.mrb[0].mxu0
  %v11017 = vadd.f32 0.0, %v11016
  %v11018 = vpop.f32.mrb[0].mxu0
  %v11019 = vpop.f32.mrb[0].mxu0
  %v11020 = vpop.f32.mrb[0].mxu0
  %11021 = vdwg.mxu0
  %v11022 = vadd.f32 %v10393, %v10776
  %v11023 = vadd.f32 %v10586, %v10969
  %v11024 = vadd.f32 %v10398, %v10779
  %v11025 = vadd.f32 %v10591, %v10972
  %v11026 = vadd.f32 %v10401, %v10784
  %v11027 = vadd.f32 %v10594, %v10977
  %v11028 = vadd.f32 %v10406, %v10787
  %v11029 = vadd.f32 %v10599, %v10980
  %v11030 = vadd.f32 %v10409, %v10792
  %v11031 = vadd.f32 %v10602, %v10985
  %v11032 = vadd.f32 %v10414, %v10795
  %v11033 = vadd.f32 %v10607, %v10988
  %v11034 = vadd.f32 %v10417, %v10800
  %v11035 = vadd.f32 %v10610, %v10993
  %v11036 = vadd.f32 %v10422, %v10803
  %v11037 = vadd.f32 %v10615, %v10996
  %v11038 = vadd.f32 %v10425, %v10808
  %v11039 = vadd.f32 %v10618, %v11001
  %v11040 = vadd.f32 %v10430, %v10811
  %v11041 = vadd.f32 %v10623, %v11004
  %v11042 = vadd.f32 %v10433, %v10816
  %v11043 = vadd.f32 %v10626, %v11009
  %v11044 = vadd.f32 %v10438, %v10819
  %v11045 = vadd.f32 %v10631, %v11012
  %v11046 = vld [vmem:[#allocation2] sm:$0x1]
  %v11048 = vlaneseq
  %v11049 = vshrl.u32 %v11048, 7
  %v11050 = vsub.s32 0, %v11049
  %v11051 = vrot.slane %v11046, %v11050
  %11052 = vset.pattern.permute.xlu0 0
  %11053 = vperm.xlu0 %11052, %v11051
  %v11054 = vpop.permute.xlu0 %11053
  %v11056 = vadd.f32 %v10390, %v11054
  %v11057 = vadd.f32 %v10583, %v11054
  %v11058 = vadd.f32 %v11022, %v11054
  %v11059 = vadd.f32 %v11023, %v11054
  %v11060 = vadd.f32 %v11024, %v11054
  %v11061 = vadd.f32 %v11025, %v11054
  %v11062 = vadd.f32 %v11026, %v11054
  %v11063 = vadd.f32 %v11027, %v11054
  %v11064 = vadd.f32 %v11028, %v11054
  %v11065 = vadd.f32 %v11029, %v11054
  %v11066 = vadd.f32 %v11030, %v11054
  %v11067 = vadd.f32 %v11031, %v11054
  %v11068 = vadd.f32 %v11032, %v11054
  %v11069 = vadd.f32 %v11033, %v11054
  %v11070 = vadd.f32 %v11034, %v11054
  %v11071 = vadd.f32 %v11035, %v11054
  %v11072 = vadd.f32 %v11036, %v11054
  %v11073 = vadd.f32 %v11037, %v11054
  %v11074 = vadd.f32 %v11038, %v11054
  %v11075 = vadd.f32 %v11039, %v11054
  %v11076 = vadd.f32 %v11040, %v11054
  %v11077 = vadd.f32 %v11041, %v11054
  %v11078 = vadd.f32 %v11042, %v11054
  %v11079 = vadd.f32 %v11043, %v11054
  %v11080 = vadd.f32 %v11044, %v11054
  %v11081 = vadd.f32 %v11045, %v11054
  %v11082 = vadd.f32 %v10824, %v11054
  %v11083 = vadd.f32 %v11017, %v11054
  %v11084 = vmax.f32 %v11056, 0.0
  %v11085 = vmax.f32 %v11057, 0.0
  %v11086 = vmax.f32 %v11058, 0.0
  %v11087 = vmax.f32 %v11059, 0.0
  %v11088 = vmax.f32 %v11060, 0.0
  %v11089 = vmax.f32 %v11061, 0.0
  %v11090 = vmax.f32 %v11062, 0.0
  %v11091 = vmax.f32 %v11063, 0.0
  %v11092 = vmax.f32 %v11064, 0.0
  %v11093 = vmax.f32 %v11065, 0.0
  %v11094 = vmax.f32 %v11066, 0.0
  %v11095 = vmax.f32 %v11067, 0.0
  %v11096 = vmax.f32 %v11068, 0.0
  %v11097 = vmax.f32 %v11069, 0.0
  %v11098 = vmax.f32 %v11070, 0.0
  %v11099 = vmax.f32 %v11071, 0.0
  %v11100 = vmax.f32 %v11072, 0.0
  %v11101 = vmax.f32 %v11073, 0.0
  %v11102 = vmax.f32 %v11074, 0.0
  %v11103 = vmax.f32 %v11075, 0.0
  %v11104 = vmax.f32 %v11076, 0.0
  %v11105 = vmax.f32 %v11077, 0.0
  %v11106 = vmax.f32 %v11078, 0.0
  %v11107 = vmax.f32 %v11079, 0.0
  %v11108 = vmax.f32 %v11080, 0.0
  %v11109 = vmax.f32 %v11081, 0.0
  %v11110 = vmax.f32 %v11082, 0.0
  %v11111 = vmax.f32 %v11083, 0.0
  %11112 = vst.msk [vmem:[%s15] sm:$0xff] %vm160, %v11084
  %11113 = vst.msk [vmem:[%s15 + $0x8] sm:$0xff] %vm160, %v11085
  %11114 = vst.msk [vmem:[%s15 + $0x10] sm:$0xff] %vm160, %v11086
  %11115 = vst.msk [vmem:[%s15 + $0x18] sm:$0xff] %vm160, %v11087
  %11116 = vst.msk [vmem:[%s15 + $0x20] sm:$0xff] %vm160, %v11088
  %11117 = vst.msk [vmem:[%s15 + $0x28] sm:$0xff] %vm160, %v11089
  %11118 = vst.msk [vmem:[%s15 + $0x30] sm:$0xff] %vm160, %v11090
  %11119 = vst.msk [vmem:[%s15 + $0x38] sm:$0xff] %vm160, %v11091
  %11120 = vst.msk [vmem:[%s15 + $0x40] sm:$0xff] %vm160, %v11092
  %11121 = vst.msk [vmem:[%s15 + $0x48] sm:$0xff] %vm160, %v11093
  %11122 = vst.msk [vmem:[%s15 + $0x50] sm:$0xff] %vm160, %v11094
  %11123 = vst.msk [vmem:[%s15 + $0x58] sm:$0xff] %vm160, %v11095
  %11124 = vst.msk [vmem:[%s15 + $0x60] sm:$0xff] %vm160, %v11096
  %11125 = vst.msk [vmem:[%s15 + $0x68] sm:$0xff] %vm160, %v11097
  %11126 = vst.msk [vmem:[%s15 + $0x70] sm:$0xff] %vm160, %v11098
  %11127 = vst.msk [vmem:[%s15 + $0x78] sm:$0xff] %vm160, %v11099
  %11128 = vst.msk [vmem:[%s15 + $0x80] sm:$0xff] %vm160, %v11100
  %11129 = vst.msk [vmem:[%s15 + $0x88] sm:$0xff] %vm160, %v11101
  %11130 = vst.msk [vmem:[%s15 + $0x90] sm:$0xff] %vm160, %v11102
  %11131 = vst.msk [vmem:[%s15 + $0x98] sm:$0xff] %vm160, %v11103
  %11132 = vst.msk [vmem:[%s15 + $0xa0] sm:$0xff] %vm160, %v11104
  %11133 = vst.msk [vmem:[%s15 + $0xa8] sm:$0xff] %vm160, %v11105
  %11134 = vst.msk [vmem:[%s15 + $0xb0] sm:$0xff] %vm160, %v11106
  %11135 = vst.msk [vmem:[%s15 + $0xb8] sm:$0xff] %vm160, %v11107
  %11136 = vst.msk [vmem:[%s15 + $0xc0] sm:$0xff] %vm160, %v11108
  %11137 = vst.msk [vmem:[%s15 + $0xc8] sm:$0xff] %vm160, %v11109
  %11138 = vst.msk [vmem:[%s15 + $0xd0] sm:$0xff] %vm160, %v11110
  %11139 = vst.msk [vmem:[%s15 + $0xd8] sm:$0xff] %vm160, %v11111
  // Predicated region
  $region62: #{autoencoder_forward.1} parent=0 // pred_check
    _
  $region63: #{autoencoder_forward.1} parent=0 // pred_check_branch
    %11141 = sbr.rel (0) target = $region65
  $region64: #{autoencoder_forward.1} parent=0 // pred_region
    _
  $region65: #{autoencoder_forward.1} parent=0 // pred_fallthru
    _
  // Predicated region
  $region66: #{autoencoder_forward.1} parent=0 // pred_check
    _
  $region67: #{autoencoder_forward.1} parent=0 // pred_check_branch
    %11143 = sbr.rel (0) target = $region69
  $region68: #{autoencoder_forward.1} parent=0 // pred_region
    _
  $region69: #{autoencoder_forward.1} parent=0 // pred_fallthru
    _

</llo_original>
